<compile_context>
chip_gen: v7x
topology: tpu7x:2x2x1
jax: 0.10.0
libtpu: 0.0.40
codegen_flags: <defaults>
</compile_context>

<pallas_src>
import functools

import jax
import jax.numpy as jnp
from jax.experimental import pallas as pl
from jax.experimental.pallas import tpu as pltpu


# ----------------------------- config (scaled-down) -----------------------------
CFG = dict(
    batch=2,
    wav_len=640,
    conv_dims=(32, 32, 32),          # real model: (512,)*7
    conv_kernels=(10, 3, 3),         # real model: (10,3,3,3,3,2,2)
    conv_strides=(5, 2, 2),          # real model: (5,2,2,2,2,2,2)
    hidden=64,                       # real model: 768
    heads=4,                         # real model: 12
    layers=2,                        # real model: 12
    intermediate=128,                # real model: 3072
    pos_conv_kernel=8,               # real model: 128
    pos_conv_groups=4,               # real model: 16
    ll_hidden=32,                    # real model: 256 (Linear(768,256))
    ll_out=32,                       # real model: 256 (Linear(256,256))
)

LN_EPS = 1e-5
WAV_EPS = 1e-7
NEG_INF = -1e30


def _conv_len(length, kernel, stride):
    return (length - kernel) // stride + 1


# --------------------------- derived static sizes --------------------------------
_S0 = CFG["conv_strides"][0]
_K0 = CFG["conv_kernels"][0]
assert _K0 == 2 * _S0 and CFG["wav_len"] % _S0 == 0
_ROWS = CFG["wav_len"] // _S0                                        # 128 lane-dense axis
T0 = _conv_len(CFG["wav_len"], _K0, _S0)                             # 127
T1 = _conv_len(T0, CFG["conv_kernels"][1], CFG["conv_strides"][1])   # 63
T2 = _conv_len(T1, CFG["conv_kernels"][2], CFG["conv_strides"][2])   # 31 real frames
T_PAD = T2 + (-T2) % 8                                               # 32 padded frames
T1_PAD = T1 + (-T1) % 8                                              # 64


# TODO(synk): HF wav2vec2 uses exact erf-GELU; tanh-approx GELU is used here for safe
#             Mosaic lowering of the transcendental.
def _gelu(x):
    return jax.nn.gelu(x, approximate=True)


def _layer_norm(x, g, b):
    mu = jnp.mean(x, axis=-1, keepdims=True)
    var = jnp.mean((x - mu) ** 2, axis=-1, keepdims=True)
    return (x - mu) * jax.lax.rsqrt(var + LN_EPS) * g + b


def _conv_ct(x_ct, w_ref, b_col, *, stride, t_out, t_out_pad):
    """Strided 1-D conv in channels-first layout via selection-matrix matmuls.

    x_ct: (Cin, T_in_pad) value; w_ref: (K, Cout, Cin) ref; b_col: (Cout, 1).
    Selection matrices are built in-kernel from iota (no im2col, no strided loads);
    the MXU does the time gather. Rows t >= t_out of the result are don't-care.
    """
    f32 = jnp.float32
    t_in_pad = x_ct.shape[1]
    k_taps, c_out, _ = w_ref.shape
    jj = jax.lax.broadcasted_iota(jnp.int32, (t_in_pad, t_out_pad), 0)
    tt = jax.lax.broadcasted_iota(jnp.int32, (t_in_pad, t_out_pad), 1)
    acc = jnp.zeros((c_out, t_out_pad), f32)
    for k in range(k_taps):
        sel = jnp.logical_and(jj == stride * tt + k, tt < t_out).astype(f32)
        xk = jnp.dot(x_ct, sel, preferred_element_type=f32)           # (Cin, t_out_pad)
        acc = acc + jnp.dot(w_ref[k], xk, preferred_element_type=f32)  # (Cout, t_out_pad)
    return acc + b_col


# ------------------------- kernel 1: conv feature extractor ----------------------
def _features_kernel(wav_ref, w0a_ref, w0b_ref, b0_ref, gng_ref, gnb_ref,
                     w1_ref, b1_ref, w2_ref, b2_ref,
                     fpg_ref, fpb_ref, wp_ref, bp_ref, o_ref,
                     *, t0, t1, t2, t_pad, t1_pad, s1, s2):
    f32 = jnp.float32
    x = wav_ref[0]                                        # (stride0, rows)=(5,128) lane-dense

    # --- per-utterance zero-mean / unit-variance waveform normalization
    m = jnp.mean(x, axis=(0, 1), keepdims=True)
    v = jnp.mean((x - m) ** 2, axis=(0, 1), keepdims=True)
    xn = (x - m) * jax.lax.rsqrt(v + WAV_EPS)

    # --- conv0 via the K == 2*stride trick: y0[:, t] = W0a @ x[:, t] + W0b @ x[:, t+1]
    a = jnp.dot(w0a_ref[...], xn, preferred_element_type=f32)          # (C0, rows)
    b = jnp.dot(w0b_ref[...], xn, preferred_element_type=f32)          # (C0, rows)
    b = jnp.concatenate([b[:, 1:], jnp.zeros((b.shape[0], 1), f32)], axis=1)
    y0 = a + b + b0_ref[...]                                           # valid cols < t0

    # --- GroupNorm(num_groups == channels) over the t0 valid frames, then GELU
    rows = y0.shape[1]
    lmask = (jax.lax.broadcasted_iota(jnp.int32, (1, rows), 1) < t0).astype(f32)
    mu = jnp.sum(y0 * lmask, axis=1, keepdims=True) * (1.0 / t0)
    var = jnp.sum(((y0 - mu) * lmask) ** 2, axis=1, keepdims=True) * (1.0 / t0)
    g0 = _gelu((y0 - mu) * jax.lax.rsqrt(var + LN_EPS) * gng_ref[...] + gnb_ref[...])

    # --- conv layers 1..2 (stride 2, K=3) as selection-matrix matmuls + GELU
    g1 = _gelu(_conv_ct(g0, w1_ref, b1_ref[...], stride=s1, t_out=t1, t_out_pad=t1_pad))
    g2 = _gelu(_conv_ct(g1, w2_ref, b2_ref[...], stride=s2, t_out=t2, t_out_pad=t_pad))

    # --- channels-first -> time-first via an identity matmul (trans_b dot on the MXU)
    ii = jax.lax.broadcasted_iota(jnp.int32, (t_pad, t_pad), 0)
    jj = jax.lax.broadcasted_iota(jnp.int32, (t_pad, t_pad), 1)
    eye = (ii == jj).astype(f32)
    g2_tc = jax.lax.dot_general(eye, g2, (((1,), (1,)), ((), ())),
                                preferred_element_type=f32)            # (t_pad, C2)

    # --- feature projection: LayerNorm over channels + Linear -> hidden D
    mu = jnp.mean(g2_tc, axis=-1, keepdims=True)
    var = jnp.mean((g2_tc - mu) ** 2, axis=-1, keepdims=True)
    xp = (g2_tc - mu) * jax.lax.rsqrt(var + LN_EPS) * fpg_ref[...] + fpb_ref[...]
    h = jnp.dot(xp, wp_ref[...], preferred_element_type=f32) + bp_ref[...]

    # zero padded frames (t >= t2) so downstream 'same' pos-conv sees true zero padding
    rmask = (jax.lax.broadcasted_iota(jnp.int32, (t_pad, 1), 0) < t2).astype(f32)
    o_ref[0] = h * rmask


def _features_call(wav_sr, prep):
    B = wav_sr.shape[0]
    D = CFG["hidden"]
    kern = functools.partial(
        _features_kernel, t0=T0, t1=T1, t2=T2, t_pad=T_PAD, t1_pad=T1_PAD,
        s1=CFG["conv_strides"][1], s2=CFG["conv_strides"][2])

    def full2(a):
        return pl.BlockSpec(a.shape, lambda i: (0, 0))

    def full3(a):
        return pl.BlockSpec(a.shape, lambda i: (0, 0, 0))

    return pl.pallas_call(
        kern,
        out_shape=jax.ShapeDtypeStruct((B, T_PAD, D), jnp.float32),
        grid=(B,),
        in_specs=[
            pl.BlockSpec((1, wav_sr.shape[1], wav_sr.shape[2]), lambda i: (i, 0, 0)),
            full2(prep["w0a"]), full2(prep["w0b"]), full2(prep["b0"]),
            full2(prep["gn_g"]), full2(prep["gn_b"]),
            full3(prep["w1"]), full2(prep["b1"]),
            full3(prep["w2"]), full2(prep["b2"]),
            full2(prep["fp_g"]), full2(prep["fp_b"]),
            full2(prep["wp"]), full2(prep["bp"]),
        ],
        out_specs=pl.BlockSpec((1, T_PAD, D), lambda i: (i, 0, 0)),
        compiler_params=pltpu.CompilerParams(dimension_semantics=("parallel",)),
    )(wav_sr, prep["w0a"], prep["w0b"], prep["b0"], prep["gn_g"], prep["gn_b"],
      prep["w1"], prep["b1"], prep["w2"], prep["b2"],
      prep["fp_g"], prep["fp_b"], prep["wp"], prep["bp"])


# -------------------- kernel 2: pos-conv + transformer encoder + head ------------
def _encoder_kernel(h_ref, wpos_ref, bpos_ref, encg_ref, encb_ref,
                    wqkv_ref, bqkv_ref, wo_ref, bo_ref, l1g_ref, l1b_ref,
                    wfi_ref, bfi_ref, wfo_ref, bfo_ref, l2g_ref, l2b_ref,
                    wl1_ref, bl1_ref, wl2_ref, bl2_ref, o_ref,
                    *, heads, t_real):
    f32 = jnp.float32
    h = h_ref[0]                                           # (T_pad, D); rows >= t_real are 0
    t_pad, d = h.shape
    n_layers = wqkv_ref.shape[0]
    groups, kcg, cg = wpos_ref.shape
    kp = kcg // cg
    pad_l = kp // 2
    hd = d // heads

    # ---- grouped positional conv ('same' pad; trailing output dropped for even K) +
    #      GELU + residual + encoder LayerNorm.  True grouped: (T, K*cg) @ (K*cg, cg).
    # TODO(synk): HF applies weight_norm to the positional conv weight; raw weight used here.
    hpad = jnp.concatenate(
        [jnp.zeros((pad_l, d), f32), h, jnp.zeros((kp - 1 - pad_l, d), f32)], axis=0)
    shifted = [hpad[k:k + t_pad, :] for k in range(kp)]    # each (T_pad, D)
    pos_groups = []
    for g in range(groups):
        patches = jnp.concatenate([s[:, g * cg:(g + 1) * cg] for s in shifted], axis=1)
        pos_groups.append(jnp.dot(patches, wpos_ref[g], preferred_element_type=f32))
    pos = jnp.concatenate(pos_groups, axis=1) + bpos_ref[...]
    h = _layer_norm(_gelu(pos) + h, encg_ref[...], encb_ref[...])

    # ---- post-norm transformer layers; all per-layer weights stacked and VMEM-resident
    key_idx = jax.lax.broadcasted_iota(jnp.int32, (t_pad, t_pad), 1)
    for l in range(n_layers):
        qkv = jnp.dot(h, wqkv_ref[l], preferred_element_type=f32) + bqkv_ref[l]  # (T, 3D)
        wo = wo_ref[l]                                                            # (D, D)
        attn = jnp.zeros((t_pad, d), f32)
        for hh in range(heads):
            lo = hh * hd
            qh = qkv[:, lo:lo + hd]                        # softmax scale pre-folded in W_q
            kh = qkv[:, d + lo:d + lo + hd]
            vh = qkv[:, 2 * d + lo:2 * d + lo + hd]
            s = jax.lax.dot_general(qh, kh, (((1,), (1,)), ((), ())),
                                    preferred_element_type=f32)                  # (T, T)
            s = jnp.where(key_idx < t_real, s, NEG_INF)    # mask padded keys
            p = jnp.exp(s - jnp.max(s, axis=-1, keepdims=True))
            p = p * pl.reciprocal(jnp.sum(p, axis=-1, keepdims=True), approx=True)
            hv = jnp.dot(p, vh, preferred_element_type=f32)                      # (T, hd)
            # head concat + output projection fused into one accumulation
            attn = attn + jnp.dot(hv, wo[lo:lo + hd, :], preferred_element_type=f32)
        h = _layer_norm(attn + bo_ref[l] + h, l1g_ref[l], l1b_ref[l])
        ff = _gelu(jnp.dot(h, wfi_ref[l], preferred_element_type=f32) + bfi_ref[l])
        h = _layer_norm(jnp.dot(ff, wfo_ref[l], preferred_element_type=f32)
                        + bfo_ref[l] + h, l2g_ref[l], l2b_ref[l])

    # ---- masked mean pool over the t_real real frames + Linear -> ReLU -> Linear head
    rmask = (jax.lax.broadcasted_iota(jnp.int32, (t_pad, 1), 0) < t_real).astype(f32)
    pooled = jnp.sum(h * rmask, axis=0, keepdims=True) * (1.0 / t_real)           # (1, D)
    r = jnp.maximum(jnp.dot(pooled, wl1_ref[...], preferred_element_type=f32)
                    + bl1_ref[...], 0.0)
    o_ref[0] = jnp.dot(r, wl2_ref[...], preferred_element_type=f32) + bl2_ref[...]


def _encoder_call(h, prep):
    B, t_pad, d = h.shape
    ll_out = prep["wl2"].shape[1]
    kern = functools.partial(_encoder_kernel, heads=CFG["heads"], t_real=T2)

    def full2(a):
        return pl.BlockSpec(a.shape, lambda i: (0, 0))

    def full3(a):
        return pl.BlockSpec(a.shape, lambda i: (0, 0, 0))

    return pl.pallas_call(
        kern,
        out_shape=jax.ShapeDtypeStruct((B, 1, ll_out), jnp.float32),
        grid=(B,),
        in_specs=[
            pl.BlockSpec((1, t_pad, d), lambda i: (i, 0, 0)),
            full3(prep["wpos"]), full2(prep["bpos"]), full2(prep["enc_g"]), full2(prep["enc_b"]),
            full3(prep["wqkv"]), full3(prep["bqkv"]), full3(prep["wo"]), full3(prep["bo"]),
            full3(prep["l1g"]), full3(prep["l1b"]),
            full3(prep["wfi"]), full3(prep["bfi"]), full3(prep["wfo"]), full3(prep["bfo"]),
            full3(prep["l2g"]), full3(prep["l2b"]),
            full2(prep["wl1"]), full2(prep["bl1"]), full2(prep["wl2"]), full2(prep["bl2"]),
        ],
        out_specs=pl.BlockSpec((1, 1, ll_out), lambda i: (i, 0, 0)),
        compiler_params=pltpu.CompilerParams(dimension_semantics=("parallel",)),
    )(h, prep["wpos"], prep["bpos"], prep["enc_g"], prep["enc_b"],
      prep["wqkv"], prep["bqkv"], prep["wo"], prep["bo"],
      prep["l1g"], prep["l1b"], prep["wfi"], prep["bfi"], prep["wfo"], prep["bfo"],
      prep["l2g"], prep["l2b"], prep["wl1"], prep["bl1"], prep["wl2"], prep["bl2"])


# --------------------------------- parameters ------------------------------------
def init_params(key, cfg):
    keys = iter(jax.random.split(key, 256))

    def dense(din, dout, scale=0.05):
        return {"w": scale * jax.random.normal(next(keys), (din, dout), jnp.float32),
                "b": 0.01 * jax.random.normal(next(keys), (dout,), jnp.float32)}

    def conv(cout, cin, k, scale=0.1):
        return {"w": scale * jax.random.normal(next(keys), (cout, cin, k), jnp.float32),
                "b": 0.01 * jax.random.normal(next(keys), (cout,), jnp.float32)}

    def affine(d):
        return {"g": 1.0 + 0.01 * jax.random.normal(next(keys), (d,), jnp.float32),
                "b": 0.01 * jax.random.normal(next(keys), (d,), jnp.float32)}

    p = {}
    convs, cin = [], 1
    for cd, k in zip(cfg["conv_dims"], cfg["conv_kernels"]):
        convs.append(conv(cd, cin, k))
        cin = cd
    p["convs"] = convs
    p["gn"] = affine(cfg["conv_dims"][0])
    p["fp_ln"] = affine(cfg["conv_dims"][-1])
    p["fp_proj"] = dense(cfg["conv_dims"][-1], cfg["hidden"])
    D, G, K = cfg["hidden"], cfg["pos_conv_groups"], cfg["pos_conv_kernel"]
    p["pos_conv"] = conv(D, D // G, K)
    p["enc_ln"] = affine(D)
    p["layers"] = [
        {"q": dense(D, D), "k": dense(D, D), "v": dense(D, D), "o": dense(D, D),
         "ln1": affine(D),
         "ff_i": dense(D, cfg["intermediate"]),
         "ff_o": dense(cfg["intermediate"], D),
         "ln2": affine(D)}
        for _ in range(cfg["layers"])
    ]
    p["ll1"] = dense(D, cfg["ll_hidden"])
    p["ll2"] = dense(cfg["ll_hidden"], cfg["ll_out"])
    return p


def prepare_params(p, cfg):
    """One-time weight layout preparation (runs eagerly, outside the jitted forward)."""
    D, H = cfg["hidden"], cfg["heads"]
    hd = D // H
    G, K = cfg["pos_conv_groups"], cfg["pos_conv_kernel"]
    cg = D // G
    scale = hd ** -0.5
    s0 = cfg["conv_strides"][0]

    prep = {}
    # conv0: torch (C0, 1, K0) -> two (C0, stride) channel-first tap blocks
    w0 = p["convs"][0]["w"]
    prep["w0a"] = w0[:, 0, :s0]
    prep["w0b"] = w0[:, 0, s0:]
    prep["b0"] = p["convs"][0]["b"].reshape(-1, 1)
    prep["gn_g"] = p["gn"]["g"].reshape(-1, 1)
    prep["gn_b"] = p["gn"]["b"].reshape(-1, 1)
    # later convs: torch (Cout, Cin, K) -> (K, Cout, Cin)
    prep["w1"] = jnp.transpose(p["convs"][1]["w"], (2, 0, 1))
    prep["b1"] = p["convs"][1]["b"].reshape(-1, 1)
    prep["w2"] = jnp.transpose(p["convs"][2]["w"], (2, 0, 1))
    prep["b2"] = p["convs"][2]["b"].reshape(-1, 1)
    prep["fp_g"] = p["fp_ln"]["g"].reshape(1, -1)
    prep["fp_b"] = p["fp_ln"]["b"].reshape(1, -1)
    prep["wp"] = p["fp_proj"]["w"]
    prep["bp"] = p["fp_proj"]["b"].reshape(1, -1)
    # grouped positional conv: (D, D//G, K) -> (G, K*cg, cg)  [row index = k*cg + ci]
    wpc = p["pos_conv"]["w"]
    prep["wpos"] = jnp.stack(
        [jnp.transpose(wpc[g * cg:(g + 1) * cg], (2, 1, 0)).reshape(K * cg, cg)
         for g in range(G)])
    prep["bpos"] = p["pos_conv"]["b"].reshape(1, -1)
    prep["enc_g"] = p["enc_ln"]["g"].reshape(1, -1)
    prep["enc_b"] = p["enc_ln"]["b"].reshape(1, -1)
    # transformer layers: fused QKV (softmax scale folded into Q), stacked over layers
    stack = {k: [] for k in
             ("wqkv", "bqkv", "wo", "bo", "l1g", "l1b", "wfi", "bfi", "wfo", "bfo",
              "l2g", "l2b")}
    for lp in p["layers"]:
        stack["wqkv"].append(
            jnp.concatenate([lp["q"]["w"] * scale, lp["k"]["w"], lp["v"]["w"]], axis=1))
        stack["bqkv"].append(
            jnp.concatenate([lp["q"]["b"] * scale, lp["k"]["b"], lp["v"]["b"]]).reshape(1, -1))
        stack["wo"].append(lp["o"]["w"])
        stack["bo"].append(lp["o"]["b"].reshape(1, -1))
        stack["l1g"].append(lp["ln1"]["g"].reshape(1, -1))
        stack["l1b"].append(lp["ln1"]["b"].reshape(1, -1))
        stack["wfi"].append(lp["ff_i"]["w"])
        stack["bfi"].append(lp["ff_i"]["b"].reshape(1, -1))
        stack["wfo"].append(lp["ff_o"]["w"])
        stack["bfo"].append(lp["ff_o"]["b"].reshape(1, -1))
        stack["l2g"].append(lp["ln2"]["g"].reshape(1, -1))
        stack["l2b"].append(lp["ln2"]["b"].reshape(1, -1))
    for k, v in stack.items():
        prep[k] = jnp.stack(v)
    prep["wl1"] = p["ll1"]["w"]
    prep["bl1"] = p["ll1"]["b"].reshape(1, -1)
    prep["wl2"] = p["ll2"]["w"]
    prep["bl2"] = p["ll2"]["b"].reshape(1, -1)
    return prep


# --------------------------------- forward pass -----------------------------------
def forward(prep, wav):
    B, L = wav.shape
    s0 = CFG["conv_strides"][0]
    rows = L // s0
    # lane-dense waveform layout per utterance: x[b, s, r] = wav[b, r*stride + s]
    wav_sr = jnp.transpose(wav.reshape(B, rows, s0), (0, 2, 1))
    h = _features_call(wav_sr, prep)          # (B, T_PAD, D)   kernel 1
    y = _encoder_call(h, prep)                # (B, 1, ll_out)  kernel 2
    return y[:, 0, :]


# ------------------------------------- main ---------------------------------------
if __name__ == "__main__":
    key = jax.random.PRNGKey(0)
    pkey, xkey = jax.random.split(key)
    params = init_params(pkey, CFG)
    prep = prepare_params(params, CFG)        # weight layout prep, once, outside jit
    wav = jax.random.normal(xkey, (CFG["batch"], CFG["wav_len"]), jnp.float32)

    out = jax.jit(forward)(prep, wav)
    out = jax.block_until_ready(out)
    assert out.shape == (CFG["batch"], CFG["ll_out"]), out.shape
    assert bool(jnp.all(jnp.isfinite(out)))
    print("KERNEL_OK")
</pallas_src>

<mosaic_0001>
module attributes {stable_mosaic.version = 11 : i64} {
  func.func @_features_kernel(%arg0: i32, %arg1: memref<1x5x128xf32, #tpu.memory_space<vmem>>, %arg2: memref<32x5xf32, #tpu.memory_space<vmem>>, %arg3: memref<32x5xf32, #tpu.memory_space<vmem>>, %arg4: memref<32x1xf32, #tpu.memory_space<vmem>>, %arg5: memref<32x1xf32, #tpu.memory_space<vmem>>, %arg6: memref<32x1xf32, #tpu.memory_space<vmem>>, %arg7: memref<3x32x32xf32, #tpu.memory_space<vmem>>, %arg8: memref<32x1xf32, #tpu.memory_space<vmem>>, %arg9: memref<3x32x32xf32, #tpu.memory_space<vmem>>, %arg10: memref<32x1xf32, #tpu.memory_space<vmem>>, %arg11: memref<1x32xf32, #tpu.memory_space<vmem>>, %arg12: memref<1x32xf32, #tpu.memory_space<vmem>>, %arg13: memref<32x64xf32, #tpu.memory_space<vmem>>, %arg14: memref<1x64xf32, #tpu.memory_space<vmem>>, %arg15: memref<1x32x64xf32, #tpu.memory_space<vmem>>) attributes {dimension_semantics = [#tpu.dimension_semantics<parallel>], iteration_bounds = array<i64: 2>, scalar_prefetch = 0 : i64, scratch_operands = 0 : i64, tpu.core_type = #tpu.core_type<tc>, window_params = [{transform_indices = @transform_0, window_bounds = array<i64: 1, 5, 128>}, {pipeline_mode = #tpu.pipeline_mode<synchronous>, transform_indices = @transform_1, window_bounds = array<i64: 32, 5>}, {pipeline_mode = #tpu.pipeline_mode<synchronous>, transform_indices = @transform_2, window_bounds = array<i64: 32, 5>}, {pipeline_mode = #tpu.pipeline_mode<synchronous>, transform_indices = @transform_3, window_bounds = array<i64: 32, 1>}, {pipeline_mode = #tpu.pipeline_mode<synchronous>, transform_indices = @transform_4, window_bounds = array<i64: 32, 1>}, {pipeline_mode = #tpu.pipeline_mode<synchronous>, transform_indices = @transform_5, window_bounds = array<i64: 32, 1>}, {pipeline_mode = #tpu.pipeline_mode<synchronous>, transform_indices = @transform_6, window_bounds = array<i64: 3, 32, 32>}, {pipeline_mode = #tpu.pipeline_mode<synchronous>, transform_indices = @transform_7, window_bounds = array<i64: 32, 1>}, {pipeline_mode = #tpu.pipeline_mode<synchronous>, transform_indices = @transform_8, window_bounds = array<i64: 3, 32, 32>}, {pipeline_mode = #tpu.pipeline_mode<synchronous>, transform_indices = @transform_9, window_bounds = array<i64: 32, 1>}, {pipeline_mode = #tpu.pipeline_mode<synchronous>, transform_indices = @transform_10, window_bounds = array<i64: 1, 32>}, {pipeline_mode = #tpu.pipeline_mode<synchronous>, transform_indices = @transform_11, window_bounds = array<i64: 1, 32>}, {pipeline_mode = #tpu.pipeline_mode<synchronous>, transform_indices = @transform_12, window_bounds = array<i64: 32, 64>}, {pipeline_mode = #tpu.pipeline_mode<synchronous>, transform_indices = @transform_13, window_bounds = array<i64: 1, 64>}, {transform_indices = @transform_14, window_bounds = array<i64: 1, 32, 64>}]} {
    %c0 = arith.constant 0 : index
    %c0_0 = arith.constant 0 : index
    %c0_1 = arith.constant 0 : index
    %0 = vector.load %arg1[%c0, %c0_0, %c0_1] : memref<1x5x128xf32, #tpu.memory_space<vmem>>, vector<1x5x128xf32>
    %1 = vector.shape_cast %0 : vector<1x5x128xf32> to vector<5x128xf32>
    %2 = vector.shape_cast %1 : vector<5x128xf32> to vector<1x5x128xf32>
    %cst = arith.constant dense<0.000000e+00> : vector<1xf32>
    %3 = vector.multi_reduction <add>, %2, %cst [1, 2] : vector<1x5x128xf32> to vector<1xf32>
    %4 = vector.shape_cast %3 : vector<1xf32> to vector<1x1x1xf32>
    %5 = vector.extract %4[0, 0, 0] : f32 from vector<1x1x1xf32>
    %6 = vector.broadcast %5 : f32 to vector<1x1xf32>
    %cst_2 = arith.constant 6.400000e+02 : f32
    %7 = vector.broadcast %cst_2 : f32 to vector<1x1xf32>
    %8 = arith.divf %6, %7 : vector<1x1xf32>
    %9 = vector.broadcast %8 : vector<1x1xf32> to vector<5x128xf32>
    %10 = arith.subf %1, %9 : vector<5x128xf32>
    %11 = arith.mulf %10, %10 : vector<5x128xf32>
    %12 = vector.shape_cast %11 : vector<5x128xf32> to vector<1x5x128xf32>
    %cst_3 = arith.constant dense<0.000000e+00> : vector<1xf32>
    %13 = vector.multi_reduction <add>, %12, %cst_3 [1, 2] : vector<1x5x128xf32> to vector<1xf32>
    %14 = vector.shape_cast %13 : vector<1xf32> to vector<1x1x1xf32>
    %15 = vector.extract %14[0, 0, 0] : f32 from vector<1x1x1xf32>
    %16 = vector.broadcast %15 : f32 to vector<1x1xf32>
    %cst_4 = arith.constant 6.400000e+02 : f32
    %17 = vector.broadcast %cst_4 : f32 to vector<1x1xf32>
    %18 = arith.divf %16, %17 : vector<1x1xf32>
    %19 = vector.broadcast %8 : vector<1x1xf32> to vector<5x128xf32>
    %20 = arith.subf %1, %19 : vector<5x128xf32>
    %cst_5 = arith.constant 1.000000e-07 : f32
    %21 = vector.broadcast %cst_5 : f32 to vector<1x1xf32>
    %22 = arith.addf %18, %21 : vector<1x1xf32>
    %23 = math.rsqrt %22 : vector<1x1xf32>
    %24 = vector.broadcast %23 : vector<1x1xf32> to vector<5x128xf32>
    %25 = arith.mulf %20, %24 : vector<5x128xf32>
    %c0_6 = arith.constant 0 : index
    %c0_7 = arith.constant 0 : index
    %26 = vector.load %arg2[%c0_6, %c0_7] : memref<32x5xf32, #tpu.memory_space<vmem>>, vector<32x5xf32>
    %cst_8 = arith.constant dense<0.000000e+00> : vector<32x128xf32>
    %27 = tpu.matmul %26, %25, %cst_8 {dimension_numbers = #tpu.dot_dimension_numbers<[1], [0], [0], [1], [0, 0, 1, 1], [], []>} : vector<32x5xf32>, vector<5x128xf32>, vector<32x128xf32> -> vector<32x128xf32>
    %c0_9 = arith.constant 0 : index
    %c0_10 = arith.constant 0 : index
    %28 = vector.load %arg3[%c0_9, %c0_10] : memref<32x5xf32, #tpu.memory_space<vmem>>, vector<32x5xf32>
    %cst_11 = arith.constant dense<0.000000e+00> : vector<32x128xf32>
    %29 = tpu.matmul %28, %25, %cst_11 {dimension_numbers = #tpu.dot_dimension_numbers<[1], [0], [0], [1], [0, 0, 1, 1], [], []>} : vector<32x5xf32>, vector<5x128xf32>, vector<32x128xf32> -> vector<32x128xf32>
    %30 = vector.extract_strided_slice %29 {offsets = [0, 1], sizes = [32, 127], strides = [1, 1]} : vector<32x128xf32> to vector<32x127xf32>
    %cst_12 = arith.constant 0.000000e+00 : f32
    %31 = vector.broadcast %cst_12 : f32 to vector<32x1xf32>
    %32 = tpu.concatenate %30, %31 in 1 : vector<32x127xf32>, vector<32x1xf32> -> vector<32x128xf32>
    %33 = arith.addf %27, %32 : vector<32x128xf32>
    %c0_13 = arith.constant 0 : index
    %c0_14 = arith.constant 0 : index
    %34 = vector.load %arg4[%c0_13, %c0_14] : memref<32x1xf32, #tpu.memory_space<vmem>>, vector<32x1xf32>
    %35 = vector.broadcast %34 : vector<32x1xf32> to vector<32x128xf32>
    %36 = arith.addf %33, %35 : vector<32x128xf32>
    %37 = tpu.iota {dimensions = array<i32: 1>} : vector<1x128xi32>
    %c127_i32 = arith.constant 127 : i32
    %38 = vector.broadcast %c127_i32 : i32 to vector<1x128xi32>
    %39 = arith.cmpi slt, %37, %38 : vector<1x128xi32>
    %40 = arith.extui %39 : vector<1x128xi1> to vector<1x128xi32>
    %41 = arith.sitofp %40 : vector<1x128xi32> to vector<1x128xf32>
    %42 = vector.broadcast %41 : vector<1x128xf32> to vector<32x128xf32>
    %43 = arith.mulf %36, %42 : vector<32x128xf32>
    %cst_15 = arith.constant dense<0.000000e+00> : vector<32xf32>
    %44 = vector.multi_reduction <add>, %43, %cst_15 [1] : vector<32x128xf32> to vector<32xf32>
    %45 = vector.shape_cast %44 : vector<32xf32> to vector<32x1xf32>
    %cst_16 = arith.constant 0.00787401571 : f32
    %46 = vector.broadcast %cst_16 : f32 to vector<32x1xf32>
    %47 = arith.mulf %45, %46 : vector<32x1xf32>
    %48 = vector.broadcast %47 : vector<32x1xf32> to vector<32x128xf32>
    %49 = arith.subf %36, %48 : vector<32x128xf32>
    %50 = vector.broadcast %41 : vector<1x128xf32> to vector<32x128xf32>
    %51 = arith.mulf %49, %50 : vector<32x128xf32>
    %52 = arith.mulf %51, %51 : vector<32x128xf32>
    %cst_17 = arith.constant dense<0.000000e+00> : vector<32xf32>
    %53 = vector.multi_reduction <add>, %52, %cst_17 [1] : vector<32x128xf32> to vector<32xf32>
    %54 = vector.shape_cast %53 : vector<32xf32> to vector<32x1xf32>
    %cst_18 = arith.constant 0.00787401571 : f32
    %55 = vector.broadcast %cst_18 : f32 to vector<32x1xf32>
    %56 = arith.mulf %54, %55 : vector<32x1xf32>
    %57 = vector.broadcast %47 : vector<32x1xf32> to vector<32x128xf32>
    %58 = arith.subf %36, %57 : vector<32x128xf32>
    %cst_19 = arith.constant 9.99999974E-6 : f32
    %59 = vector.broadcast %cst_19 : f32 to vector<32x1xf32>
    %60 = arith.addf %56, %59 : vector<32x1xf32>
    %61 = math.rsqrt %60 : vector<32x1xf32>
    %62 = vector.broadcast %61 : vector<32x1xf32> to vector<32x128xf32>
    %63 = arith.mulf %58, %62 : vector<32x128xf32>
    %c0_20 = arith.constant 0 : index
    %c0_21 = arith.constant 0 : index
    %64 = vector.load %arg5[%c0_20, %c0_21] : memref<32x1xf32, #tpu.memory_space<vmem>>, vector<32x1xf32>
    %65 = vector.broadcast %64 : vector<32x1xf32> to vector<32x128xf32>
    %66 = arith.mulf %63, %65 : vector<32x128xf32>
    %c0_22 = arith.constant 0 : index
    %c0_23 = arith.constant 0 : index
    %67 = vector.load %arg6[%c0_22, %c0_23] : memref<32x1xf32, #tpu.memory_space<vmem>>, vector<32x1xf32>
    %68 = vector.broadcast %67 : vector<32x1xf32> to vector<32x128xf32>
    %69 = arith.addf %66, %68 : vector<32x128xf32>
    %70 = arith.mulf %69, %69 : vector<32x128xf32>
    %71 = arith.mulf %69, %70 : vector<32x128xf32>
    %cst_24 = arith.constant 4.471500e-02 : f32
    %72 = vector.broadcast %cst_24 : f32 to vector<32x128xf32>
    %73 = arith.mulf %72, %71 : vector<32x128xf32>
    %74 = arith.addf %69, %73 : vector<32x128xf32>
    %cst_25 = arith.constant 0.797884583 : f32
    %75 = vector.broadcast %cst_25 : f32 to vector<32x128xf32>
    %76 = arith.mulf %75, %74 : vector<32x128xf32>
    %77 = math.tanh %76 : vector<32x128xf32>
    %cst_26 = arith.constant 1.000000e+00 : f32
    %78 = vector.broadcast %cst_26 : f32 to vector<32x128xf32>
    %79 = arith.addf %78, %77 : vector<32x128xf32>
    %cst_27 = arith.constant 5.000000e-01 : f32
    %80 = vector.broadcast %cst_27 : f32 to vector<32x128xf32>
    %81 = arith.mulf %80, %79 : vector<32x128xf32>
    %82 = arith.mulf %69, %81 : vector<32x128xf32>
    %c0_28 = arith.constant 0 : index
    %c0_29 = arith.constant 0 : index
    %83 = vector.load %arg8[%c0_28, %c0_29] : memref<32x1xf32, #tpu.memory_space<vmem>>, vector<32x1xf32>
    %84 = tpu.iota {dimensions = array<i32: 0>} : vector<128x64xi32>
    %85 = tpu.iota {dimensions = array<i32: 1>} : vector<128x64xi32>
    %cst_30 = arith.constant 0.000000e+00 : f32
    %86 = vector.broadcast %cst_30 : f32 to vector<32x64xf32>
    %c2_i32 = arith.constant 2 : i32
    %87 = vector.broadcast %c2_i32 : i32 to vector<128x64xi32>
    %88 = arith.muli %87, %85 : vector<128x64xi32>
    %c0_i32 = arith.constant 0 : i32
    %89 = vector.broadcast %c0_i32 : i32 to vector<128x64xi32>
    %90 = arith.addi %88, %89 : vector<128x64xi32>
    %91 = arith.cmpi eq, %84, %90 : vector<128x64xi32>
    %c63_i32 = arith.constant 63 : i32
    %92 = vector.broadcast %c63_i32 : i32 to vector<128x64xi32>
    %93 = arith.cmpi slt, %85, %92 : vector<128x64xi32>
    %94 = arith.andi %91, %93 : vector<128x64xi1>
    %95 = arith.extui %94 : vector<128x64xi1> to vector<128x64xi32>
    %96 = arith.sitofp %95 : vector<128x64xi32> to vector<128x64xf32>
    %cst_31 = arith.constant dense<0.000000e+00> : vector<32x64xf32>
    %97 = tpu.matmul %82, %96, %cst_31 {dimension_numbers = #tpu.dot_dimension_numbers<[1], [0], [0], [1], [0, 0, 1, 1], [], []>} : vector<32x128xf32>, vector<128x64xf32>, vector<32x64xf32> -> vector<32x64xf32>
    %c0_32 = arith.constant 0 : index
    %c0_33 = arith.constant 0 : index
    %c0_34 = arith.constant 0 : index
    %98 = vector.load %arg7[%c0_32, %c0_33, %c0_34] : memref<3x32x32xf32, #tpu.memory_space<vmem>>, vector<1x32x32xf32>
    %99 = vector.shape_cast %98 : vector<1x32x32xf32> to vector<32x32xf32>
    %cst_35 = arith.constant dense<0.000000e+00> : vector<32x64xf32>
    %100 = tpu.matmul %99, %97, %cst_35 {dimension_numbers = #tpu.dot_dimension_numbers<[1], [0], [0], [1], [0, 0, 1, 1], [], []>} : vector<32x32xf32>, vector<32x64xf32>, vector<32x64xf32> -> vector<32x64xf32>
    %101 = arith.addf %86, %100 : vector<32x64xf32>
    %c2_i32_36 = arith.constant 2 : i32
    %102 = vector.broadcast %c2_i32_36 : i32 to vector<128x64xi32>
    %103 = arith.muli %102, %85 : vector<128x64xi32>
    %c1_i32 = arith.constant 1 : i32
    %104 = vector.broadcast %c1_i32 : i32 to vector<128x64xi32>
    %105 = arith.addi %103, %104 : vector<128x64xi32>
    %106 = arith.cmpi eq, %84, %105 : vector<128x64xi32>
    %c63_i32_37 = arith.constant 63 : i32
    %107 = vector.broadcast %c63_i32_37 : i32 to vector<128x64xi32>
    %108 = arith.cmpi slt, %85, %107 : vector<128x64xi32>
    %109 = arith.andi %106, %108 : vector<128x64xi1>
    %110 = arith.extui %109 : vector<128x64xi1> to vector<128x64xi32>
    %111 = arith.sitofp %110 : vector<128x64xi32> to vector<128x64xf32>
    %cst_38 = arith.constant dense<0.000000e+00> : vector<32x64xf32>
    %112 = tpu.matmul %82, %111, %cst_38 {dimension_numbers = #tpu.dot_dimension_numbers<[1], [0], [0], [1], [0, 0, 1, 1], [], []>} : vector<32x128xf32>, vector<128x64xf32>, vector<32x64xf32> -> vector<32x64xf32>
    %c1 = arith.constant 1 : index
    %c0_39 = arith.constant 0 : index
    %c0_40 = arith.constant 0 : index
    %113 = vector.load %arg7[%c1, %c0_39, %c0_40] : memref<3x32x32xf32, #tpu.memory_space<vmem>>, vector<1x32x32xf32>
    %114 = vector.shape_cast %113 : vector<1x32x32xf32> to vector<32x32xf32>
    %cst_41 = arith.constant dense<0.000000e+00> : vector<32x64xf32>
    %115 = tpu.matmul %114, %112, %cst_41 {dimension_numbers = #tpu.dot_dimension_numbers<[1], [0], [0], [1], [0, 0, 1, 1], [], []>} : vector<32x32xf32>, vector<32x64xf32>, vector<32x64xf32> -> vector<32x64xf32>
    %116 = arith.addf %101, %115 : vector<32x64xf32>
    %c2_i32_42 = arith.constant 2 : i32
    %117 = vector.broadcast %c2_i32_42 : i32 to vector<128x64xi32>
    %118 = arith.muli %117, %85 : vector<128x64xi32>
    %c2_i32_43 = arith.constant 2 : i32
    %119 = vector.broadcast %c2_i32_43 : i32 to vector<128x64xi32>
    %120 = arith.addi %118, %119 : vector<128x64xi32>
    %121 = arith.cmpi eq, %84, %120 : vector<128x64xi32>
    %c63_i32_44 = arith.constant 63 : i32
    %122 = vector.broadcast %c63_i32_44 : i32 to vector<128x64xi32>
    %123 = arith.cmpi slt, %85, %122 : vector<128x64xi32>
    %124 = arith.andi %121, %123 : vector<128x64xi1>
    %125 = arith.extui %124 : vector<128x64xi1> to vector<128x64xi32>
    %126 = arith.sitofp %125 : vector<128x64xi32> to vector<128x64xf32>
    %cst_45 = arith.constant dense<0.000000e+00> : vector<32x64xf32>
    %127 = tpu.matmul %82, %126, %cst_45 {dimension_numbers = #tpu.dot_dimension_numbers<[1], [0], [0], [1], [0, 0, 1, 1], [], []>} : vector<32x128xf32>, vector<128x64xf32>, vector<32x64xf32> -> vector<32x64xf32>
    %c2 = arith.constant 2 : index
    %c0_46 = arith.constant 0 : index
    %c0_47 = arith.constant 0 : index
    %128 = vector.load %arg7[%c2, %c0_46, %c0_47] : memref<3x32x32xf32, #tpu.memory_space<vmem>>, vector<1x32x32xf32>
    %129 = vector.shape_cast %128 : vector<1x32x32xf32> to vector<32x32xf32>
    %cst_48 = arith.constant dense<0.000000e+00> : vector<32x64xf32>
    %130 = tpu.matmul %129, %127, %cst_48 {dimension_numbers = #tpu.dot_dimension_numbers<[1], [0], [0], [1], [0, 0, 1, 1], [], []>} : vector<32x32xf32>, vector<32x64xf32>, vector<32x64xf32> -> vector<32x64xf32>
    %131 = arith.addf %116, %130 : vector<32x64xf32>
    %132 = vector.broadcast %83 : vector<32x1xf32> to vector<32x64xf32>
    %133 = arith.addf %131, %132 : vector<32x64xf32>
    %134 = arith.mulf %133, %133 : vector<32x64xf32>
    %135 = arith.mulf %133, %134 : vector<32x64xf32>
    %cst_49 = arith.constant 4.471500e-02 : f32
    %136 = vector.broadcast %cst_49 : f32 to vector<32x64xf32>
    %137 = arith.mulf %136, %135 : vector<32x64xf32>
    %138 = arith.addf %133, %137 : vector<32x64xf32>
    %cst_50 = arith.constant 0.797884583 : f32
    %139 = vector.broadcast %cst_50 : f32 to vector<32x64xf32>
    %140 = arith.mulf %139, %138 : vector<32x64xf32>
    %141 = math.tanh %140 : vector<32x64xf32>
    %cst_51 = arith.constant 1.000000e+00 : f32
    %142 = vector.broadcast %cst_51 : f32 to vector<32x64xf32>
    %143 = arith.addf %142, %141 : vector<32x64xf32>
    %cst_52 = arith.constant 5.000000e-01 : f32
    %144 = vector.broadcast %cst_52 : f32 to vector<32x64xf32>
    %145 = arith.mulf %144, %143 : vector<32x64xf32>
    %146 = arith.mulf %133, %145 : vector<32x64xf32>
    %c0_53 = arith.constant 0 : index
    %c0_54 = arith.constant 0 : index
    %147 = vector.load %arg10[%c0_53, %c0_54] : memref<32x1xf32, #tpu.memory_space<vmem>>, vector<32x1xf32>
    %148 = tpu.iota {dimensions = array<i32: 0>} : vector<64x32xi32>
    %149 = tpu.iota {dimensions = array<i32: 1>} : vector<64x32xi32>
    %cst_55 = arith.constant 0.000000e+00 : f32
    %150 = vector.broadcast %cst_55 : f32 to vector<32x32xf32>
    %c2_i32_56 = arith.constant 2 : i32
    %151 = vector.broadcast %c2_i32_56 : i32 to vector<64x32xi32>
    %152 = arith.muli %151, %149 : vector<64x32xi32>
    %c0_i32_57 = arith.constant 0 : i32
    %153 = vector.broadcast %c0_i32_57 : i32 to vector<64x32xi32>
    %154 = arith.addi %152, %153 : vector<64x32xi32>
    %155 = arith.cmpi eq, %148, %154 : vector<64x32xi32>
    %c31_i32 = arith.constant 31 : i32
    %156 = vector.broadcast %c31_i32 : i32 to vector<64x32xi32>
    %157 = arith.cmpi slt, %149, %156 : vector<64x32xi32>
    %158 = arith.andi %155, %157 : vector<64x32xi1>
    %159 = arith.extui %158 : vector<64x32xi1> to vector<64x32xi32>
    %160 = arith.sitofp %159 : vector<64x32xi32> to vector<64x32xf32>
    %cst_58 = arith.constant dense<0.000000e+00> : vector<32x32xf32>
    %161 = tpu.matmul %146, %160, %cst_58 {dimension_numbers = #tpu.dot_dimension_numbers<[1], [0], [0], [1], [0, 0, 1, 1], [], []>} : vector<32x64xf32>, vector<64x32xf32>, vector<32x32xf32> -> vector<32x32xf32>
    %c0_59 = arith.constant 0 : index
    %c0_60 = arith.constant 0 : index
    %c0_61 = arith.constant 0 : index
    %162 = vector.load %arg9[%c0_59, %c0_60, %c0_61] : memref<3x32x32xf32, #tpu.memory_space<vmem>>, vector<1x32x32xf32>
    %163 = vector.shape_cast %162 : vector<1x32x32xf32> to vector<32x32xf32>
    %cst_62 = arith.constant dense<0.000000e+00> : vector<32x32xf32>
    %164 = tpu.matmul %163, %161, %cst_62 {dimension_numbers = #tpu.dot_dimension_numbers<[1], [0], [0], [1], [0, 0, 1, 1], [], []>} : vector<32x32xf32>, vector<32x32xf32>, vector<32x32xf32> -> vector<32x32xf32>
    %165 = arith.addf %150, %164 : vector<32x32xf32>
    %c2_i32_63 = arith.constant 2 : i32
    %166 = vector.broadcast %c2_i32_63 : i32 to vector<64x32xi32>
    %167 = arith.muli %166, %149 : vector<64x32xi32>
    %c1_i32_64 = arith.constant 1 : i32
    %168 = vector.broadcast %c1_i32_64 : i32 to vector<64x32xi32>
    %169 = arith.addi %167, %168 : vector<64x32xi32>
    %170 = arith.cmpi eq, %148, %169 : vector<64x32xi32>
    %c31_i32_65 = arith.constant 31 : i32
    %171 = vector.broadcast %c31_i32_65 : i32 to vector<64x32xi32>
    %172 = arith.cmpi slt, %149, %171 : vector<64x32xi32>
    %173 = arith.andi %170, %172 : vector<64x32xi1>
    %174 = arith.extui %173 : vector<64x32xi1> to vector<64x32xi32>
    %175 = arith.sitofp %174 : vector<64x32xi32> to vector<64x32xf32>
    %cst_66 = arith.constant dense<0.000000e+00> : vector<32x32xf32>
    %176 = tpu.matmul %146, %175, %cst_66 {dimension_numbers = #tpu.dot_dimension_numbers<[1], [0], [0], [1], [0, 0, 1, 1], [], []>} : vector<32x64xf32>, vector<64x32xf32>, vector<32x32xf32> -> vector<32x32xf32>
    %c1_67 = arith.constant 1 : index
    %c0_68 = arith.constant 0 : index
    %c0_69 = arith.constant 0 : index
    %177 = vector.load %arg9[%c1_67, %c0_68, %c0_69] : memref<3x32x32xf32, #tpu.memory_space<vmem>>, vector<1x32x32xf32>
    %178 = vector.shape_cast %177 : vector<1x32x32xf32> to vector<32x32xf32>
    %cst_70 = arith.constant dense<0.000000e+00> : vector<32x32xf32>
    %179 = tpu.matmul %178, %176, %cst_70 {dimension_numbers = #tpu.dot_dimension_numbers<[1], [0], [0], [1], [0, 0, 1, 1], [], []>} : vector<32x32xf32>, vector<32x32xf32>, vector<32x32xf32> -> vector<32x32xf32>
    %180 = arith.addf %165, %179 : vector<32x32xf32>
    %c2_i32_71 = arith.constant 2 : i32
    %181 = vector.broadcast %c2_i32_71 : i32 to vector<64x32xi32>
    %182 = arith.muli %181, %149 : vector<64x32xi32>
    %c2_i32_72 = arith.constant 2 : i32
    %183 = vector.broadcast %c2_i32_72 : i32 to vector<64x32xi32>
    %184 = arith.addi %182, %183 : vector<64x32xi32>
    %185 = arith.cmpi eq, %148, %184 : vector<64x32xi32>
    %c31_i32_73 = arith.constant 31 : i32
    %186 = vector.broadcast %c31_i32_73 : i32 to vector<64x32xi32>
    %187 = arith.cmpi slt, %149, %186 : vector<64x32xi32>
    %188 = arith.andi %185, %187 : vector<64x32xi1>
    %189 = arith.extui %188 : vector<64x32xi1> to vector<64x32xi32>
    %190 = arith.sitofp %189 : vector<64x32xi32> to vector<64x32xf32>
    %cst_74 = arith.constant dense<0.000000e+00> : vector<32x32xf32>
    %191 = tpu.matmul %146, %190, %cst_74 {dimension_numbers = #tpu.dot_dimension_numbers<[1], [0], [0], [1], [0, 0, 1, 1], [], []>} : vector<32x64xf32>, vector<64x32xf32>, vector<32x32xf32> -> vector<32x32xf32>
    %c2_75 = arith.constant 2 : index
    %c0_76 = arith.constant 0 : index
    %c0_77 = arith.constant 0 : index
    %192 = vector.load %arg9[%c2_75, %c0_76, %c0_77] : memref<3x32x32xf32, #tpu.memory_space<vmem>>, vector<1x32x32xf32>
    %193 = vector.shape_cast %192 : vector<1x32x32xf32> to vector<32x32xf32>
    %cst_78 = arith.constant dense<0.000000e+00> : vector<32x32xf32>
    %194 = tpu.matmul %193, %191, %cst_78 {dimension_numbers = #tpu.dot_dimension_numbers<[1], [0], [0], [1], [0, 0, 1, 1], [], []>} : vector<32x32xf32>, vector<32x32xf32>, vector<32x32xf32> -> vector<32x32xf32>
    %195 = arith.addf %180, %194 : vector<32x32xf32>
    %196 = vector.broadcast %147 : vector<32x1xf32> to vector<32x32xf32>
    %197 = arith.addf %195, %196 : vector<32x32xf32>
    %198 = arith.mulf %197, %197 : vector<32x32xf32>
    %199 = arith.mulf %197, %198 : vector<32x32xf32>
    %cst_79 = arith.constant 4.471500e-02 : f32
    %200 = vector.broadcast %cst_79 : f32 to vector<32x32xf32>
    %201 = arith.mulf %200, %199 : vector<32x32xf32>
    %202 = arith.addf %197, %201 : vector<32x32xf32>
    %cst_80 = arith.constant 0.797884583 : f32
    %203 = vector.broadcast %cst_80 : f32 to vector<32x32xf32>
    %204 = arith.mulf %203, %202 : vector<32x32xf32>
    %205 = math.tanh %204 : vector<32x32xf32>
    %cst_81 = arith.constant 1.000000e+00 : f32
    %206 = vector.broadcast %cst_81 : f32 to vector<32x32xf32>
    %207 = arith.addf %206, %205 : vector<32x32xf32>
    %cst_82 = arith.constant 5.000000e-01 : f32
    %208 = vector.broadcast %cst_82 : f32 to vector<32x32xf32>
    %209 = arith.mulf %208, %207 : vector<32x32xf32>
    %210 = arith.mulf %197, %209 : vector<32x32xf32>
    %211 = tpu.iota {dimensions = array<i32: 0>} : vector<32x32xi32>
    %212 = tpu.iota {dimensions = array<i32: 1>} : vector<32x32xi32>
    %213 = arith.cmpi eq, %211, %212 : vector<32x32xi32>
    %214 = arith.extui %213 : vector<32x32xi1> to vector<32x32xi32>
    %215 = arith.sitofp %214 : vector<32x32xi32> to vector<32x32xf32>
    %cst_83 = arith.constant dense<0.000000e+00> : vector<32x32xf32>
    %216 = tpu.matmul %215, %210, %cst_83 {dimension_numbers = #tpu.dot_dimension_numbers<[1], [1], [0], [0], [0, 0, 1, 0], [], []>} : vector<32x32xf32>, vector<32x32xf32>, vector<32x32xf32> -> vector<32x32xf32>
    %cst_84 = arith.constant dense<0.000000e+00> : vector<32xf32>
    %217 = vector.multi_reduction <add>, %216, %cst_84 [1] : vector<32x32xf32> to vector<32xf32>
    %218 = vector.shape_cast %217 : vector<32xf32> to vector<32x1xf32>
    %cst_85 = arith.constant 3.200000e+01 : f32
    %219 = vector.broadcast %cst_85 : f32 to vector<32x1xf32>
    %220 = arith.divf %218, %219 : vector<32x1xf32>
    %221 = vector.broadcast %220 : vector<32x1xf32> to vector<32x32xf32>
    %222 = arith.subf %216, %221 : vector<32x32xf32>
    %223 = arith.mulf %222, %222 : vector<32x32xf32>
    %cst_86 = arith.constant dense<0.000000e+00> : vector<32xf32>
    %224 = vector.multi_reduction <add>, %223, %cst_86 [1] : vector<32x32xf32> to vector<32xf32>
    %225 = vector.shape_cast %224 : vector<32xf32> to vector<32x1xf32>
    %cst_87 = arith.constant 3.200000e+01 : f32
    %226 = vector.broadcast %cst_87 : f32 to vector<32x1xf32>
    %227 = arith.divf %225, %226 : vector<32x1xf32>
    %228 = vector.broadcast %220 : vector<32x1xf32> to vector<32x32xf32>
    %229 = arith.subf %216, %228 : vector<32x32xf32>
    %cst_88 = arith.constant 9.99999974E-6 : f32
    %230 = vector.broadcast %cst_88 : f32 to vector<32x1xf32>
    %231 = arith.addf %227, %230 : vector<32x1xf32>
    %232 = math.rsqrt %231 : vector<32x1xf32>
    %233 = vector.broadcast %232 : vector<32x1xf32> to vector<32x32xf32>
    %234 = arith.mulf %229, %233 : vector<32x32xf32>
    %c0_89 = arith.constant 0 : index
    %c0_90 = arith.constant 0 : index
    %235 = vector.load %arg11[%c0_89, %c0_90] : memref<1x32xf32, #tpu.memory_space<vmem>>, vector<1x32xf32>
    %236 = vector.broadcast %235 : vector<1x32xf32> to vector<32x32xf32>
    %237 = arith.mulf %234, %236 : vector<32x32xf32>
    %c0_91 = arith.constant 0 : index
    %c0_92 = arith.constant 0 : index
    %238 = vector.load %arg12[%c0_91, %c0_92] : memref<1x32xf32, #tpu.memory_space<vmem>>, vector<1x32xf32>
    %239 = vector.broadcast %238 : vector<1x32xf32> to vector<32x32xf32>
    %240 = arith.addf %237, %239 : vector<32x32xf32>
    %c0_93 = arith.constant 0 : index
    %c0_94 = arith.constant 0 : index
    %241 = vector.load %arg13[%c0_93, %c0_94] : memref<32x64xf32, #tpu.memory_space<vmem>>, vector<32x64xf32>
    %cst_95 = arith.constant dense<0.000000e+00> : vector<32x64xf32>
    %242 = tpu.matmul %240, %241, %cst_95 {dimension_numbers = #tpu.dot_dimension_numbers<[1], [0], [0], [1], [0, 0, 1, 1], [], []>} : vector<32x32xf32>, vector<32x64xf32>, vector<32x64xf32> -> vector<32x64xf32>
    %c0_96 = arith.constant 0 : index
    %c0_97 = arith.constant 0 : index
    %243 = vector.load %arg14[%c0_96, %c0_97] : memref<1x64xf32, #tpu.memory_space<vmem>>, vector<1x64xf32>
    %244 = vector.broadcast %243 : vector<1x64xf32> to vector<32x64xf32>
    %245 = arith.addf %242, %244 : vector<32x64xf32>
    %246 = tpu.iota {dimensions = array<i32: 0>} : vector<32x1xi32>
    %c31_i32_98 = arith.constant 31 : i32
    %247 = vector.broadcast %c31_i32_98 : i32 to vector<32x1xi32>
    %248 = arith.cmpi slt, %246, %247 : vector<32x1xi32>
    %249 = arith.extui %248 : vector<32x1xi1> to vector<32x1xi32>
    %250 = arith.sitofp %249 : vector<32x1xi32> to vector<32x1xf32>
    %251 = vector.broadcast %250 : vector<32x1xf32> to vector<32x64xf32>
    %252 = arith.mulf %245, %251 : vector<32x64xf32>
    %c0_99 = arith.constant 0 : index
    %c0_100 = arith.constant 0 : index
    %c0_101 = arith.constant 0 : index
    %253 = vector.load %arg15[%c0_99, %c0_100, %c0_101] : memref<1x32x64xf32, #tpu.memory_space<vmem>>, vector<1x32x64xf32>
    %254 = vector.shape_cast %253 : vector<1x32x64xf32> to vector<32x64xf32>
    %255 = vector.shape_cast %252 : vector<32x64xf32> to vector<1x32x64xf32>
    tpu.vector_store %arg15[%c0_99, %c0_100, %c0_101], %255 {strides = array<i32>} : memref<1x32x64xf32, #tpu.memory_space<vmem>>, vector<1x32x64xf32>,
    return
  }
  func.func @transform_0(%arg0: i32) -> (i32, i32, i32) {
    %c0_i32 = arith.constant 0 : i32
    %c0_i32_0 = arith.constant 0 : i32
    %c0_i32_1 = arith.constant 0 : i32
    return %arg0, %c0_i32, %c0_i32_0 : i32, i32, i32
  }
  func.func @transform_1(%arg0: i32) -> (i32, i32) {
    %c0_i32 = arith.constant 0 : i32
    %c0_i32_0 = arith.constant 0 : i32
    %c0_i32_1 = arith.constant 0 : i32
    return %c0_i32, %c0_i32_0 : i32, i32
  }
  func.func @transform_2(%arg0: i32) -> (i32, i32) {
    %c0_i32 = arith.constant 0 : i32
    %c0_i32_0 = arith.constant 0 : i32
    %c0_i32_1 = arith.constant 0 : i32
    return %c0_i32, %c0_i32_0 : i32, i32
  }
  func.func @transform_3(%arg0: i32) -> (i32, i32) {
    %c0_i32 = arith.constant 0 : i32
    %c0_i32_0 = arith.constant 0 : i32
    %c0_i32_1 = arith.constant 0 : i32
    return %c0_i32, %c0_i32_0 : i32, i32
  }
  func.func @transform_4(%arg0: i32) -> (i32, i32) {
    %c0_i32 = arith.constant 0 : i32
    %c0_i32_0 = arith.constant 0 : i32
    %c0_i32_1 = arith.constant 0 : i32
    return %c0_i32, %c0_i32_0 : i32, i32
  }
  func.func @transform_5(%arg0: i32) -> (i32, i32) {
    %c0_i32 = arith.constant 0 : i32
    %c0_i32_0 = arith.constant 0 : i32
    %c0_i32_1 = arith.constant 0 : i32
    return %c0_i32, %c0_i32_0 : i32, i32
  }
  func.func @transform_6(%arg0: i32) -> (i32, i32, i32) {
    %c0_i32 = arith.constant 0 : i32
    %c0_i32_0 = arith.constant 0 : i32
    %c0_i32_1 = arith.constant 0 : i32
    %c0_i32_2 = arith.constant 0 : i32
    return %c0_i32, %c0_i32_0, %c0_i32_1 : i32, i32, i32
  }
  func.func @transform_7(%arg0: i32) -> (i32, i32) {
    %c0_i32 = arith.constant 0 : i32
    %c0_i32_0 = arith.constant 0 : i32
    %c0_i32_1 = arith.constant 0 : i32
    return %c0_i32, %c0_i32_0 : i32, i32
  }
  func.func @transform_8(%arg0: i32) -> (i32, i32, i32) {
    %c0_i32 = arith.constant 0 : i32
    %c0_i32_0 = arith.constant 0 : i32
    %c0_i32_1 = arith.constant 0 : i32
    %c0_i32_2 = arith.constant 0 : i32
    return %c0_i32, %c0_i32_0, %c0_i32_1 : i32, i32, i32
  }
  func.func @transform_9(%arg0: i32) -> (i32, i32) {
    %c0_i32 = arith.constant 0 : i32
    %c0_i32_0 = arith.constant 0 : i32
    %c0_i32_1 = arith.constant 0 : i32
    return %c0_i32, %c0_i32_0 : i32, i32
  }
  func.func @transform_10(%arg0: i32) -> (i32, i32) {
    %c0_i32 = arith.constant 0 : i32
    %c0_i32_0 = arith.constant 0 : i32
    %c0_i32_1 = arith.constant 0 : i32
    return %c0_i32, %c0_i32_0 : i32, i32
  }
  func.func @transform_11(%arg0: i32) -> (i32, i32) {
    %c0_i32 = arith.constant 0 : i32
    %c0_i32_0 = arith.constant 0 : i32
    %c0_i32_1 = arith.constant 0 : i32
    return %c0_i32, %c0_i32_0 : i32, i32
  }
  func.func @transform_12(%arg0: i32) -> (i32, i32) {
    %c0_i32 = arith.constant 0 : i32
    %c0_i32_0 = arith.constant 0 : i32
    %c0_i32_1 = arith.constant 0 : i32
    return %c0_i32, %c0_i32_0 : i32, i32
  }
  func.func @transform_13(%arg0: i32) -> (i32, i32) {
    %c0_i32 = arith.constant 0 : i32
    %c0_i32_0 = arith.constant 0 : i32
    %c0_i32_1 = arith.constant 0 : i32
    return %c0_i32, %c0_i32_0 : i32, i32
  }
  func.func @transform_14(%arg0: i32) -> (i32, i32, i32) {
    %c0_i32 = arith.constant 0 : i32
    %c0_i32_0 = arith.constant 0 : i32
    %c0_i32_1 = arith.constant 0 : i32
    return %arg0, %c0_i32, %c0_i32_0 : i32, i32, i32
  }
}

module attributes {stable_mosaic.version = 11 : i64} {
  func.func @_encoder_kernel(%arg0: i32, %arg1: memref<1x32x64xf32, #tpu.memory_space<vmem>>, %arg2: memref<4x128x16xf32, #tpu.memory_space<vmem>>, %arg3: memref<1x64xf32, #tpu.memory_space<vmem>>, %arg4: memref<1x64xf32, #tpu.memory_space<vmem>>, %arg5: memref<1x64xf32, #tpu.memory_space<vmem>>, %arg6: memref<2x64x192xf32, #tpu.memory_space<vmem>>, %arg7: memref<2x1x192xf32, #tpu.memory_space<vmem>>, %arg8: memref<2x64x64xf32, #tpu.memory_space<vmem>>, %arg9: memref<2x1x64xf32, #tpu.memory_space<vmem>>, %arg10: memref<2x1x64xf32, #tpu.memory_space<vmem>>, %arg11: memref<2x1x64xf32, #tpu.memory_space<vmem>>, %arg12: memref<2x64x128xf32, #tpu.memory_space<vmem>>, %arg13: memref<2x1x128xf32, #tpu.memory_space<vmem>>, %arg14: memref<2x128x64xf32, #tpu.memory_space<vmem>>, %arg15: memref<2x1x64xf32, #tpu.memory_space<vmem>>, %arg16: memref<2x1x64xf32, #tpu.memory_space<vmem>>, %arg17: memref<2x1x64xf32, #tpu.memory_space<vmem>>, %arg18: memref<64x32xf32, #tpu.memory_space<vmem>>, %arg19: memref<1x32xf32, #tpu.memory_space<vmem>>, %arg20: memref<32x32xf32, #tpu.memory_space<vmem>>, %arg21: memref<1x32xf32, #tpu.memory_space<vmem>>, %arg22: memref<1x1x32xf32, #tpu.memory_space<vmem>>) attributes {dimension_semantics = [#tpu.dimension_semantics<parallel>], iteration_bounds = array<i64: 2>, scalar_prefetch = 0 : i64, scratch_operands = 0 : i64, tpu.core_type = #tpu.core_type<tc>, window_params = [{transform_indices = @transform_0, window_bounds = array<i64: 1, 32, 64>}, {pipeline_mode = #tpu.pipeline_mode<synchronous>, transform_indices = @transform_1, window_bounds = array<i64: 4, 128, 16>}, {pipeline_mode = #tpu.pipeline_mode<synchronous>, transform_indices = @transform_2, window_bounds = array<i64: 1, 64>}, {pipeline_mode = #tpu.pipeline_mode<synchronous>, transform_indices = @transform_3, window_bounds = array<i64: 1, 64>}, {pipeline_mode = #tpu.pipeline_mode<synchronous>, transform_indices = @transform_4, window_bounds = array<i64: 1, 64>}, {pipeline_mode = #tpu.pipeline_mode<synchronous>, transform_indices = @transform_5, window_bounds = array<i64: 2, 64, 192>}, {pipeline_mode = #tpu.pipeline_mode<synchronous>, transform_indices = @transform_6, window_bounds = array<i64: 2, 1, 192>}, {pipeline_mode = #tpu.pipeline_mode<synchronous>, transform_indices = @transform_7, window_bounds = array<i64: 2, 64, 64>}, {pipeline_mode = #tpu.pipeline_mode<synchronous>, transform_indices = @transform_8, window_bounds = array<i64: 2, 1, 64>}, {pipeline_mode = #tpu.pipeline_mode<synchronous>, transform_indices = @transform_9, window_bounds = array<i64: 2, 1, 64>}, {pipeline_mode = #tpu.pipeline_mode<synchronous>, transform_indices = @transform_10, window_bounds = array<i64: 2, 1, 64>}, {pipeline_mode = #tpu.pipeline_mode<synchronous>, transform_indices = @transform_11, window_bounds = array<i64: 2, 64, 128>}, {pipeline_mode = #tpu.pipeline_mode<synchronous>, transform_indices = @transform_12, window_bounds = array<i64: 2, 1, 128>}, {pipeline_mode = #tpu.pipeline_mode<synchronous>, transform_indices = @transform_13, window_bounds = array<i64: 2, 128, 64>}, {pipeline_mode = #tpu.pipeline_mode<synchronous>, transform_indices = @transform_14, window_bounds = array<i64: 2, 1, 64>}, {pipeline_mode = #tpu.pipeline_mode<synchronous>, transform_indices = @transform_15, window_bounds = array<i64: 2, 1, 64>}, {pipeline_mode = #tpu.pipeline_mode<synchronous>, transform_indices = @transform_16, window_bounds = array<i64: 2, 1, 64>}, {pipeline_mode = #tpu.pipeline_mode<synchronous>, transform_indices = @transform_17, window_bounds = array<i64: 64, 32>}, {pipeline_mode = #tpu.pipeline_mode<synchronous>, transform_indices = @transform_18, window_bounds = array<i64: 1, 32>}, {pipeline_mode = #tpu.pipeline_mode<synchronous>, transform_indices = @transform_19, window_bounds = array<i64: 32, 32>}, {pipeline_mode = #tpu.pipeline_mode<synchronous>, transform_indices = @transform_20, window_bounds = array<i64: 1, 32>}, {transform_indices = @transform_21, window_bounds = array<i64: 1, 1, 32>}]} {
    %c0 = arith.constant 0 : index
    %c0_0 = arith.constant 0 : index
    %c0_1 = arith.constant 0 : index
    %0 = vector.load %arg1[%c0, %c0_0, %c0_1] : memref<1x32x64xf32, #tpu.memory_space<vmem>>, vector<1x32x64xf32>
    %1 = vector.shape_cast %0 : vector<1x32x64xf32> to vector<32x64xf32>
    %cst = arith.constant 0.000000e+00 : f32
    %2 = vector.broadcast %cst : f32 to vector<4x64xf32>
    %cst_2 = arith.constant 0.000000e+00 : f32
    %3 = vector.broadcast %cst_2 : f32 to vector<3x64xf32>
    %4 = tpu.concatenate %2, %1, %3 in 0 : vector<4x64xf32>, vector<32x64xf32>, vector<3x64xf32> -> vector<39x64xf32>
    %5 = vector.extract_strided_slice %4 {offsets = [0, 0], sizes = [32, 64], strides = [1, 1]} : vector<39x64xf32> to vector<32x64xf32>
    %6 = vector.extract_strided_slice %4 {offsets = [1, 0], sizes = [32, 64], strides = [1, 1]} : vector<39x64xf32> to vector<32x64xf32>
    %7 = vector.extract_strided_slice %4 {offsets = [2, 0], sizes = [32, 64], strides = [1, 1]} : vector<39x64xf32> to vector<32x64xf32>
    %8 = vector.extract_strided_slice %4 {offsets = [3, 0], sizes = [32, 64], strides = [1, 1]} : vector<39x64xf32> to vector<32x64xf32>
    %9 = vector.extract_strided_slice %4 {offsets = [4, 0], sizes = [32, 64], strides = [1, 1]} : vector<39x64xf32> to vector<32x64xf32>
    %10 = vector.extract_strided_slice %4 {offsets = [5, 0], sizes = [32, 64], strides = [1, 1]} : vector<39x64xf32> to vector<32x64xf32>
    %11 = vector.extract_strided_slice %4 {offsets = [6, 0], sizes = [32, 64], strides = [1, 1]} : vector<39x64xf32> to vector<32x64xf32>
    %12 = vector.extract_strided_slice %4 {offsets = [7, 0], sizes = [32, 64], strides = [1, 1]} : vector<39x64xf32> to vector<32x64xf32>
    %13 = vector.extract_strided_slice %5 {offsets = [0, 0], sizes = [32, 16], strides = [1, 1]} : vector<32x64xf32> to vector<32x16xf32>
    %14 = vector.extract_strided_slice %6 {offsets = [0, 0], sizes = [32, 16], strides = [1, 1]} : vector<32x64xf32> to vector<32x16xf32>
    %15 = vector.extract_strided_slice %7 {offsets = [0, 0], sizes = [32, 16], strides = [1, 1]} : vector<32x64xf32> to vector<32x16xf32>
    %16 = vector.extract_strided_slice %8 {offsets = [0, 0], sizes = [32, 16], strides = [1, 1]} : vector<32x64xf32> to vector<32x16xf32>
    %17 = vector.extract_strided_slice %9 {offsets = [0, 0], sizes = [32, 16], strides = [1, 1]} : vector<32x64xf32> to vector<32x16xf32>
    %18 = vector.extract_strided_slice %10 {offsets = [0, 0], sizes = [32, 16], strides = [1, 1]} : vector<32x64xf32> to vector<32x16xf32>
    %19 = vector.extract_strided_slice %11 {offsets = [0, 0], sizes = [32, 16], strides = [1, 1]} : vector<32x64xf32> to vector<32x16xf32>
    %20 = vector.extract_strided_slice %12 {offsets = [0, 0], sizes = [32, 16], strides = [1, 1]} : vector<32x64xf32> to vector<32x16xf32>
    %21 = tpu.concatenate %13, %14, %15, %16, %17, %18, %19, %20 in 1 : vector<32x16xf32>, vector<32x16xf32>, vector<32x16xf32>, vector<32x16xf32>, vector<32x16xf32>, vector<32x16xf32>, vector<32x16xf32>, vector<32x16xf32> -> vector<32x128xf32>
    %c0_3 = arith.constant 0 : index
    %c0_4 = arith.constant 0 : index
    %c0_5 = arith.constant 0 : index
    %22 = vector.load %arg2[%c0_3, %c0_4, %c0_5] : memref<4x128x16xf32, #tpu.memory_space<vmem>>, vector<1x128x16xf32>
    %23 = vector.shape_cast %22 : vector<1x128x16xf32> to vector<128x16xf32>
    %cst_6 = arith.constant dense<0.000000e+00> : vector<32x16xf32>
    %24 = tpu.matmul %21, %23, %cst_6 {dimension_numbers = #tpu.dot_dimension_numbers<[1], [0], [0], [1], [0, 0, 1, 1], [], []>} : vector<32x128xf32>, vector<128x16xf32>, vector<32x16xf32> -> vector<32x16xf32>
    %25 = vector.extract_strided_slice %5 {offsets = [0, 16], sizes = [32, 16], strides = [1, 1]} : vector<32x64xf32> to vector<32x16xf32>
    %26 = vector.extract_strided_slice %6 {offsets = [0, 16], sizes = [32, 16], strides = [1, 1]} : vector<32x64xf32> to vector<32x16xf32>
    %27 = vector.extract_strided_slice %7 {offsets = [0, 16], sizes = [32, 16], strides = [1, 1]} : vector<32x64xf32> to vector<32x16xf32>
    %28 = vector.extract_strided_slice %8 {offsets = [0, 16], sizes = [32, 16], strides = [1, 1]} : vector<32x64xf32> to vector<32x16xf32>
    %29 = vector.extract_strided_slice %9 {offsets = [0, 16], sizes = [32, 16], strides = [1, 1]} : vector<32x64xf32> to vector<32x16xf32>
    %30 = vector.extract_strided_slice %10 {offsets = [0, 16], sizes = [32, 16], strides = [1, 1]} : vector<32x64xf32> to vector<32x16xf32>
    %31 = vector.extract_strided_slice %11 {offsets = [0, 16], sizes = [32, 16], strides = [1, 1]} : vector<32x64xf32> to vector<32x16xf32>
    %32 = vector.extract_strided_slice %12 {offsets = [0, 16], sizes = [32, 16], strides = [1, 1]} : vector<32x64xf32> to vector<32x16xf32>
    %33 = tpu.concatenate %25, %26, %27, %28, %29, %30, %31, %32 in 1 : vector<32x16xf32>, vector<32x16xf32>, vector<32x16xf32>, vector<32x16xf32>, vector<32x16xf32>, vector<32x16xf32>, vector<32x16xf32>, vector<32x16xf32> -> vector<32x128xf32>
    %c1 = arith.constant 1 : index
    %c0_7 = arith.constant 0 : index
    %c0_8 = arith.constant 0 : index
    %34 = vector.load %arg2[%c1, %c0_7, %c0_8] : memref<4x128x16xf32, #tpu.memory_space<vmem>>, vector<1x128x16xf32>
    %35 = vector.shape_cast %34 : vector<1x128x16xf32> to vector<128x16xf32>
    %cst_9 = arith.constant dense<0.000000e+00> : vector<32x16xf32>
    %36 = tpu.matmul %33, %35, %cst_9 {dimension_numbers = #tpu.dot_dimension_numbers<[1], [0], [0], [1], [0, 0, 1, 1], [], []>} : vector<32x128xf32>, vector<128x16xf32>, vector<32x16xf32> -> vector<32x16xf32>
    %37 = vector.extract_strided_slice %5 {offsets = [0, 32], sizes = [32, 16], strides = [1, 1]} : vector<32x64xf32> to vector<32x16xf32>
    %38 = vector.extract_strided_slice %6 {offsets = [0, 32], sizes = [32, 16], strides = [1, 1]} : vector<32x64xf32> to vector<32x16xf32>
    %39 = vector.extract_strided_slice %7 {offsets = [0, 32], sizes = [32, 16], strides = [1, 1]} : vector<32x64xf32> to vector<32x16xf32>
    %40 = vector.extract_strided_slice %8 {offsets = [0, 32], sizes = [32, 16], strides = [1, 1]} : vector<32x64xf32> to vector<32x16xf32>
    %41 = vector.extract_strided_slice %9 {offsets = [0, 32], sizes = [32, 16], strides = [1, 1]} : vector<32x64xf32> to vector<32x16xf32>
    %42 = vector.extract_strided_slice %10 {offsets = [0, 32], sizes = [32, 16], strides = [1, 1]} : vector<32x64xf32> to vector<32x16xf32>
    %43 = vector.extract_strided_slice %11 {offsets = [0, 32], sizes = [32, 16], strides = [1, 1]} : vector<32x64xf32> to vector<32x16xf32>
    %44 = vector.extract_strided_slice %12 {offsets = [0, 32], sizes = [32, 16], strides = [1, 1]} : vector<32x64xf32> to vector<32x16xf32>
    %45 = tpu.concatenate %37, %38, %39, %40, %41, %42, %43, %44 in 1 : vector<32x16xf32>, vector<32x16xf32>, vector<32x16xf32>, vector<32x16xf32>, vector<32x16xf32>, vector<32x16xf32>, vector<32x16xf32>, vector<32x16xf32> -> vector<32x128xf32>
    %c2 = arith.constant 2 : index
    %c0_10 = arith.constant 0 : index
    %c0_11 = arith.constant 0 : index
    %46 = vector.load %arg2[%c2, %c0_10, %c0_11] : memref<4x128x16xf32, #tpu.memory_space<vmem>>, vector<1x128x16xf32>
    %47 = vector.shape_cast %46 : vector<1x128x16xf32> to vector<128x16xf32>
    %cst_12 = arith.constant dense<0.000000e+00> : vector<32x16xf32>
    %48 = tpu.matmul %45, %47, %cst_12 {dimension_numbers = #tpu.dot_dimension_numbers<[1], [0], [0], [1], [0, 0, 1, 1], [], []>} : vector<32x128xf32>, vector<128x16xf32>, vector<32x16xf32> -> vector<32x16xf32>
    %49 = vector.extract_strided_slice %5 {offsets = [0, 48], sizes = [32, 16], strides = [1, 1]} : vector<32x64xf32> to vector<32x16xf32>
    %50 = vector.extract_strided_slice %6 {offsets = [0, 48], sizes = [32, 16], strides = [1, 1]} : vector<32x64xf32> to vector<32x16xf32>
    %51 = vector.extract_strided_slice %7 {offsets = [0, 48], sizes = [32, 16], strides = [1, 1]} : vector<32x64xf32> to vector<32x16xf32>
    %52 = vector.extract_strided_slice %8 {offsets = [0, 48], sizes = [32, 16], strides = [1, 1]} : vector<32x64xf32> to vector<32x16xf32>
    %53 = vector.extract_strided_slice %9 {offsets = [0, 48], sizes = [32, 16], strides = [1, 1]} : vector<32x64xf32> to vector<32x16xf32>
    %54 = vector.extract_strided_slice %10 {offsets = [0, 48], sizes = [32, 16], strides = [1, 1]} : vector<32x64xf32> to vector<32x16xf32>
    %55 = vector.extract_strided_slice %11 {offsets = [0, 48], sizes = [32, 16], strides = [1, 1]} : vector<32x64xf32> to vector<32x16xf32>
    %56 = vector.extract_strided_slice %12 {offsets = [0, 48], sizes = [32, 16], strides = [1, 1]} : vector<32x64xf32> to vector<32x16xf32>
    %57 = tpu.concatenate %49, %50, %51, %52, %53, %54, %55, %56 in 1 : vector<32x16xf32>, vector<32x16xf32>, vector<32x16xf32>, vector<32x16xf32>, vector<32x16xf32>, vector<32x16xf32>, vector<32x16xf32>, vector<32x16xf32> -> vector<32x128xf32>
    %c3 = arith.constant 3 : index
    %c0_13 = arith.constant 0 : index
    %c0_14 = arith.constant 0 : index
    %58 = vector.load %arg2[%c3, %c0_13, %c0_14] : memref<4x128x16xf32, #tpu.memory_space<vmem>>, vector<1x128x16xf32>
    %59 = vector.shape_cast %58 : vector<1x128x16xf32> to vector<128x16xf32>
    %cst_15 = arith.constant dense<0.000000e+00> : vector<32x16xf32>
    %60 = tpu.matmul %57, %59, %cst_15 {dimension_numbers = #tpu.dot_dimension_numbers<[1], [0], [0], [1], [0, 0, 1, 1], [], []>} : vector<32x128xf32>, vector<128x16xf32>, vector<32x16xf32> -> vector<32x16xf32>
    %61 = tpu.concatenate %24, %36, %48, %60 in 1 : vector<32x16xf32>, vector<32x16xf32>, vector<32x16xf32>, vector<32x16xf32> -> vector<32x64xf32>
    %c0_16 = arith.constant 0 : index
    %c0_17 = arith.constant 0 : index
    %62 = vector.load %arg3[%c0_16, %c0_17] : memref<1x64xf32, #tpu.memory_space<vmem>>, vector<1x64xf32>
    %63 = vector.broadcast %62 : vector<1x64xf32> to vector<32x64xf32>
    %64 = arith.addf %61, %63 : vector<32x64xf32>
    %65 = arith.mulf %64, %64 : vector<32x64xf32>
    %66 = arith.mulf %64, %65 : vector<32x64xf32>
    %cst_18 = arith.constant 4.471500e-02 : f32
    %67 = vector.broadcast %cst_18 : f32 to vector<32x64xf32>
    %68 = arith.mulf %67, %66 : vector<32x64xf32>
    %69 = arith.addf %64, %68 : vector<32x64xf32>
    %cst_19 = arith.constant 0.797884583 : f32
    %70 = vector.broadcast %cst_19 : f32 to vector<32x64xf32>
    %71 = arith.mulf %70, %69 : vector<32x64xf32>
    %72 = math.tanh %71 : vector<32x64xf32>
    %cst_20 = arith.constant 1.000000e+00 : f32
    %73 = vector.broadcast %cst_20 : f32 to vector<32x64xf32>
    %74 = arith.addf %73, %72 : vector<32x64xf32>
    %cst_21 = arith.constant 5.000000e-01 : f32
    %75 = vector.broadcast %cst_21 : f32 to vector<32x64xf32>
    %76 = arith.mulf %75, %74 : vector<32x64xf32>
    %77 = arith.mulf %64, %76 : vector<32x64xf32>
    %78 = arith.addf %77, %1 : vector<32x64xf32>
    %c0_22 = arith.constant 0 : index
    %c0_23 = arith.constant 0 : index
    %79 = vector.load %arg4[%c0_22, %c0_23] : memref<1x64xf32, #tpu.memory_space<vmem>>, vector<1x64xf32>
    %c0_24 = arith.constant 0 : index
    %c0_25 = arith.constant 0 : index
    %80 = vector.load %arg5[%c0_24, %c0_25] : memref<1x64xf32, #tpu.memory_space<vmem>>, vector<1x64xf32>
    %cst_26 = arith.constant dense<0.000000e+00> : vector<32xf32>
    %81 = vector.multi_reduction <add>, %78, %cst_26 [1] : vector<32x64xf32> to vector<32xf32>
    %82 = vector.shape_cast %81 : vector<32xf32> to vector<32x1xf32>
    %cst_27 = arith.constant 6.400000e+01 : f32
    %83 = vector.broadcast %cst_27 : f32 to vector<32x1xf32>
    %84 = arith.divf %82, %83 : vector<32x1xf32>
    %85 = vector.broadcast %84 : vector<32x1xf32> to vector<32x64xf32>
    %86 = arith.subf %78, %85 : vector<32x64xf32>
    %87 = arith.mulf %86, %86 : vector<32x64xf32>
    %cst_28 = arith.constant dense<0.000000e+00> : vector<32xf32>
    %88 = vector.multi_reduction <add>, %87, %cst_28 [1] : vector<32x64xf32> to vector<32xf32>
    %89 = vector.shape_cast %88 : vector<32xf32> to vector<32x1xf32>
    %cst_29 = arith.constant 6.400000e+01 : f32
    %90 = vector.broadcast %cst_29 : f32 to vector<32x1xf32>
    %91 = arith.divf %89, %90 : vector<32x1xf32>
    %92 = vector.broadcast %84 : vector<32x1xf32> to vector<32x64xf32>
    %93 = arith.subf %78, %92 : vector<32x64xf32>
    %cst_30 = arith.constant 9.99999974E-6 : f32
    %94 = vector.broadcast %cst_30 : f32 to vector<32x1xf32>
    %95 = arith.addf %91, %94 : vector<32x1xf32>
    %96 = math.rsqrt %95 : vector<32x1xf32>
    %97 = vector.broadcast %96 : vector<32x1xf32> to vector<32x64xf32>
    %98 = arith.mulf %93, %97 : vector<32x64xf32>
    %99 = vector.broadcast %79 : vector<1x64xf32> to vector<32x64xf32>
    %100 = arith.mulf %98, %99 : vector<32x64xf32>
    %101 = vector.broadcast %80 : vector<1x64xf32> to vector<32x64xf32>
    %102 = arith.addf %100, %101 : vector<32x64xf32>
    %103 = tpu.iota {dimensions = array<i32: 1>} : vector<32x32xi32>
    %c0_31 = arith.constant 0 : index
    %c0_32 = arith.constant 0 : index
    %c0_33 = arith.constant 0 : index
    %104 = vector.load %arg6[%c0_31, %c0_32, %c0_33] : memref<2x64x192xf32, #tpu.memory_space<vmem>>, vector<1x64x192xf32>
    %105 = vector.shape_cast %104 : vector<1x64x192xf32> to vector<64x192xf32>
    %cst_34 = arith.constant dense<0.000000e+00> : vector<32x192xf32>
    %106 = tpu.matmul %102, %105, %cst_34 {dimension_numbers = #tpu.dot_dimension_numbers<[1], [0], [0], [1], [0, 0, 1, 1], [], []>} : vector<32x64xf32>, vector<64x192xf32>, vector<32x192xf32> -> vector<32x192xf32>
    %c0_35 = arith.constant 0 : index
    %c0_36 = arith.constant 0 : index
    %c0_37 = arith.constant 0 : index
    %107 = vector.load %arg7[%c0_35, %c0_36, %c0_37] : memref<2x1x192xf32, #tpu.memory_space<vmem>>, vector<1x1x192xf32>
    %108 = vector.shape_cast %107 : vector<1x1x192xf32> to vector<1x192xf32>
    %109 = vector.broadcast %108 : vector<1x192xf32> to vector<32x192xf32>
    %110 = arith.addf %106, %109 : vector<32x192xf32>
    %c0_38 = arith.constant 0 : index
    %c0_39 = arith.constant 0 : index
    %c0_40 = arith.constant 0 : index
    %111 = vector.load %arg8[%c0_38, %c0_39, %c0_40] : memref<2x64x64xf32, #tpu.memory_space<vmem>>, vector<1x64x64xf32>
    %112 = vector.shape_cast %111 : vector<1x64x64xf32> to vector<64x64xf32>
    %cst_41 = arith.constant 0.000000e+00 : f32
    %113 = vector.broadcast %cst_41 : f32 to vector<32x64xf32>
    %114 = vector.extract_strided_slice %110 {offsets = [0, 0], sizes = [32, 16], strides = [1, 1]} : vector<32x192xf32> to vector<32x16xf32>
    %115 = vector.extract_strided_slice %110 {offsets = [0, 64], sizes = [32, 16], strides = [1, 1]} : vector<32x192xf32> to vector<32x16xf32>
    %116 = vector.extract_strided_slice %110 {offsets = [0, 128], sizes = [32, 16], strides = [1, 1]} : vector<32x192xf32> to vector<32x16xf32>
    %cst_42 = arith.constant dense<0.000000e+00> : vector<32x32xf32>
    %117 = tpu.matmul %114, %115, %cst_42 {dimension_numbers = #tpu.dot_dimension_numbers<[1], [1], [0], [0], [0, 0, 1, 0], [], []>} : vector<32x16xf32>, vector<32x16xf32>, vector<32x32xf32> -> vector<32x32xf32>
    %c31_i32 = arith.constant 31 : i32
    %118 = vector.broadcast %c31_i32 : i32 to vector<32x32xi32>
    %119 = arith.cmpi slt, %103, %118 : vector<32x32xi32>
    %cst_43 = arith.constant -1.000000e+30 : f32
    %120 = vector.broadcast %cst_43 : f32 to vector<32x32xf32>
    %121 = arith.select %119, %117, %120 : vector<32x32xi1>, vector<32x32xf32>
    %cst_44 = arith.constant dense<0xFF800000> : vector<32xf32>
    %122 = vector.multi_reduction <maximumf>, %121, %cst_44 [1] : vector<32x32xf32> to vector<32xf32>
    %123 = vector.shape_cast %122 : vector<32xf32> to vector<32x1xf32>
    %124 = vector.broadcast %123 : vector<32x1xf32> to vector<32x32xf32>
    %125 = arith.subf %121, %124 : vector<32x32xf32>
    %126 = math.exp %125 : vector<32x32xf32>
    %cst_45 = arith.constant dense<0.000000e+00> : vector<32xf32>
    %127 = vector.multi_reduction <add>, %126, %cst_45 [1] : vector<32x32xf32> to vector<32xf32>
    %128 = vector.shape_cast %127 : vector<32xf32> to vector<32x1xf32>
    %129 = tpu.reciprocal %128 {approx = true} : vector<32x1xf32> -> vector<32x1xf32>
    %130 = vector.broadcast %129 : vector<32x1xf32> to vector<32x32xf32>
    %131 = arith.mulf %126, %130 : vector<32x32xf32>
    %cst_46 = arith.constant dense<0.000000e+00> : vector<32x16xf32>
    %132 = tpu.matmul %131, %116, %cst_46 {dimension_numbers = #tpu.dot_dimension_numbers<[1], [0], [0], [1], [0, 0, 1, 1], [], []>} : vector<32x32xf32>, vector<32x16xf32>, vector<32x16xf32> -> vector<32x16xf32>
    %133 = vector.extract_strided_slice %112 {offsets = [0, 0], sizes = [16, 64], strides = [1, 1]} : vector<64x64xf32> to vector<16x64xf32>
    %cst_47 = arith.constant dense<0.000000e+00> : vector<32x64xf32>
    %134 = tpu.matmul %132, %133, %cst_47 {dimension_numbers = #tpu.dot_dimension_numbers<[1], [0], [0], [1], [0, 0, 1, 1], [], []>} : vector<32x16xf32>, vector<16x64xf32>, vector<32x64xf32> -> vector<32x64xf32>
    %135 = arith.addf %113, %134 : vector<32x64xf32>
    %136 = vector.extract_strided_slice %110 {offsets = [0, 16], sizes = [32, 16], strides = [1, 1]} : vector<32x192xf32> to vector<32x16xf32>
    %137 = vector.extract_strided_slice %110 {offsets = [0, 80], sizes = [32, 16], strides = [1, 1]} : vector<32x192xf32> to vector<32x16xf32>
    %138 = vector.extract_strided_slice %110 {offsets = [0, 144], sizes = [32, 16], strides = [1, 1]} : vector<32x192xf32> to vector<32x16xf32>
    %cst_48 = arith.constant dense<0.000000e+00> : vector<32x32xf32>
    %139 = tpu.matmul %136, %137, %cst_48 {dimension_numbers = #tpu.dot_dimension_numbers<[1], [1], [0], [0], [0, 0, 1, 0], [], []>} : vector<32x16xf32>, vector<32x16xf32>, vector<32x32xf32> -> vector<32x32xf32>
    %c31_i32_49 = arith.constant 31 : i32
    %140 = vector.broadcast %c31_i32_49 : i32 to vector<32x32xi32>
    %141 = arith.cmpi slt, %103, %140 : vector<32x32xi32>
    %cst_50 = arith.constant -1.000000e+30 : f32
    %142 = vector.broadcast %cst_50 : f32 to vector<32x32xf32>
    %143 = arith.select %141, %139, %142 : vector<32x32xi1>, vector<32x32xf32>
    %cst_51 = arith.constant dense<0xFF800000> : vector<32xf32>
    %144 = vector.multi_reduction <maximumf>, %143, %cst_51 [1] : vector<32x32xf32> to vector<32xf32>
    %145 = vector.shape_cast %144 : vector<32xf32> to vector<32x1xf32>
    %146 = vector.broadcast %145 : vector<32x1xf32> to vector<32x32xf32>
    %147 = arith.subf %143, %146 : vector<32x32xf32>
    %148 = math.exp %147 : vector<32x32xf32>
    %cst_52 = arith.constant dense<0.000000e+00> : vector<32xf32>
    %149 = vector.multi_reduction <add>, %148, %cst_52 [1] : vector<32x32xf32> to vector<32xf32>
    %150 = vector.shape_cast %149 : vector<32xf32> to vector<32x1xf32>
    %151 = tpu.reciprocal %150 {approx = true} : vector<32x1xf32> -> vector<32x1xf32>
    %152 = vector.broadcast %151 : vector<32x1xf32> to vector<32x32xf32>
    %153 = arith.mulf %148, %152 : vector<32x32xf32>
    %cst_53 = arith.constant dense<0.000000e+00> : vector<32x16xf32>
    %154 = tpu.matmul %153, %138, %cst_53 {dimension_numbers = #tpu.dot_dimension_numbers<[1], [0], [0], [1], [0, 0, 1, 1], [], []>} : vector<32x32xf32>, vector<32x16xf32>, vector<32x16xf32> -> vector<32x16xf32>
    %155 = vector.extract_strided_slice %112 {offsets = [16, 0], sizes = [16, 64], strides = [1, 1]} : vector<64x64xf32> to vector<16x64xf32>
    %cst_54 = arith.constant dense<0.000000e+00> : vector<32x64xf32>
    %156 = tpu.matmul %154, %155, %cst_54 {dimension_numbers = #tpu.dot_dimension_numbers<[1], [0], [0], [1], [0, 0, 1, 1], [], []>} : vector<32x16xf32>, vector<16x64xf32>, vector<32x64xf32> -> vector<32x64xf32>
    %157 = arith.addf %135, %156 : vector<32x64xf32>
    %158 = vector.extract_strided_slice %110 {offsets = [0, 32], sizes = [32, 16], strides = [1, 1]} : vector<32x192xf32> to vector<32x16xf32>
    %159 = vector.extract_strided_slice %110 {offsets = [0, 96], sizes = [32, 16], strides = [1, 1]} : vector<32x192xf32> to vector<32x16xf32>
    %160 = vector.extract_strided_slice %110 {offsets = [0, 160], sizes = [32, 16], strides = [1, 1]} : vector<32x192xf32> to vector<32x16xf32>
    %cst_55 = arith.constant dense<0.000000e+00> : vector<32x32xf32>
    %161 = tpu.matmul %158, %159, %cst_55 {dimension_numbers = #tpu.dot_dimension_numbers<[1], [1], [0], [0], [0, 0, 1, 0], [], []>} : vector<32x16xf32>, vector<32x16xf32>, vector<32x32xf32> -> vector<32x32xf32>
    %c31_i32_56 = arith.constant 31 : i32
    %162 = vector.broadcast %c31_i32_56 : i32 to vector<32x32xi32>
    %163 = arith.cmpi slt, %103, %162 : vector<32x32xi32>
    %cst_57 = arith.constant -1.000000e+30 : f32
    %164 = vector.broadcast %cst_57 : f32 to vector<32x32xf32>
    %165 = arith.select %163, %161, %164 : vector<32x32xi1>, vector<32x32xf32>
    %cst_58 = arith.constant dense<0xFF800000> : vector<32xf32>
    %166 = vector.multi_reduction <maximumf>, %165, %cst_58 [1] : vector<32x32xf32> to vector<32xf32>
    %167 = vector.shape_cast %166 : vector<32xf32> to vector<32x1xf32>
    %168 = vector.broadcast %167 : vector<32x1xf32> to vector<32x32xf32>
    %169 = arith.subf %165, %168 : vector<32x32xf32>
    %170 = math.exp %169 : vector<32x32xf32>
    %cst_59 = arith.constant dense<0.000000e+00> : vector<32xf32>
    %171 = vector.multi_reduction <add>, %170, %cst_59 [1] : vector<32x32xf32> to vector<32xf32>
    %172 = vector.shape_cast %171 : vector<32xf32> to vector<32x1xf32>
    %173 = tpu.reciprocal %172 {approx = true} : vector<32x1xf32> -> vector<32x1xf32>
    %174 = vector.broadcast %173 : vector<32x1xf32> to vector<32x32xf32>
    %175 = arith.mulf %170, %174 : vector<32x32xf32>
    %cst_60 = arith.constant dense<0.000000e+00> : vector<32x16xf32>
    %176 = tpu.matmul %175, %160, %cst_60 {dimension_numbers = #tpu.dot_dimension_numbers<[1], [0], [0], [1], [0, 0, 1, 1], [], []>} : vector<32x32xf32>, vector<32x16xf32>, vector<32x16xf32> -> vector<32x16xf32>
    %177 = vector.extract_strided_slice %112 {offsets = [32, 0], sizes = [16, 64], strides = [1, 1]} : vector<64x64xf32> to vector<16x64xf32>
    %cst_61 = arith.constant dense<0.000000e+00> : vector<32x64xf32>
    %178 = tpu.matmul %176, %177, %cst_61 {dimension_numbers = #tpu.dot_dimension_numbers<[1], [0], [0], [1], [0, 0, 1, 1], [], []>} : vector<32x16xf32>, vector<16x64xf32>, vector<32x64xf32> -> vector<32x64xf32>
    %179 = arith.addf %157, %178 : vector<32x64xf32>
    %180 = vector.extract_strided_slice %110 {offsets = [0, 48], sizes = [32, 16], strides = [1, 1]} : vector<32x192xf32> to vector<32x16xf32>
    %181 = vector.extract_strided_slice %110 {offsets = [0, 112], sizes = [32, 16], strides = [1, 1]} : vector<32x192xf32> to vector<32x16xf32>
    %182 = vector.extract_strided_slice %110 {offsets = [0, 176], sizes = [32, 16], strides = [1, 1]} : vector<32x192xf32> to vector<32x16xf32>
    %cst_62 = arith.constant dense<0.000000e+00> : vector<32x32xf32>
    %183 = tpu.matmul %180, %181, %cst_62 {dimension_numbers = #tpu.dot_dimension_numbers<[1], [1], [0], [0], [0, 0, 1, 0], [], []>} : vector<32x16xf32>, vector<32x16xf32>, vector<32x32xf32> -> vector<32x32xf32>
    %c31_i32_63 = arith.constant 31 : i32
    %184 = vector.broadcast %c31_i32_63 : i32 to vector<32x32xi32>
    %185 = arith.cmpi slt, %103, %184 : vector<32x32xi32>
    %cst_64 = arith.constant -1.000000e+30 : f32
    %186 = vector.broadcast %cst_64 : f32 to vector<32x32xf32>
    %187 = arith.select %185, %183, %186 : vector<32x32xi1>, vector<32x32xf32>
    %cst_65 = arith.constant dense<0xFF800000> : vector<32xf32>
    %188 = vector.multi_reduction <maximumf>, %187, %cst_65 [1] : vector<32x32xf32> to vector<32xf32>
    %189 = vector.shape_cast %188 : vector<32xf32> to vector<32x1xf32>
    %190 = vector.broadcast %189 : vector<32x1xf32> to vector<32x32xf32>
    %191 = arith.subf %187, %190 : vector<32x32xf32>
    %192 = math.exp %191 : vector<32x32xf32>
    %cst_66 = arith.constant dense<0.000000e+00> : vector<32xf32>
    %193 = vector.multi_reduction <add>, %192, %cst_66 [1] : vector<32x32xf32> to vector<32xf32>
    %194 = vector.shape_cast %193 : vector<32xf32> to vector<32x1xf32>
    %195 = tpu.reciprocal %194 {approx = true} : vector<32x1xf32> -> vector<32x1xf32>
    %196 = vector.broadcast %195 : vector<32x1xf32> to vector<32x32xf32>
    %197 = arith.mulf %192, %196 : vector<32x32xf32>
    %cst_67 = arith.constant dense<0.000000e+00> : vector<32x16xf32>
    %198 = tpu.matmul %197, %182, %cst_67 {dimension_numbers = #tpu.dot_dimension_numbers<[1], [0], [0], [1], [0, 0, 1, 1], [], []>} : vector<32x32xf32>, vector<32x16xf32>, vector<32x16xf32> -> vector<32x16xf32>
    %199 = vector.extract_strided_slice %112 {offsets = [48, 0], sizes = [16, 64], strides = [1, 1]} : vector<64x64xf32> to vector<16x64xf32>
    %cst_68 = arith.constant dense<0.000000e+00> : vector<32x64xf32>
    %200 = tpu.matmul %198, %199, %cst_68 {dimension_numbers = #tpu.dot_dimension_numbers<[1], [0], [0], [1], [0, 0, 1, 1], [], []>} : vector<32x16xf32>, vector<16x64xf32>, vector<32x64xf32> -> vector<32x64xf32>
    %201 = arith.addf %179, %200 : vector<32x64xf32>
    %c0_69 = arith.constant 0 : index
    %c0_70 = arith.constant 0 : index
    %c0_71 = arith.constant 0 : index
    %202 = vector.load %arg9[%c0_69, %c0_70, %c0_71] : memref<2x1x64xf32, #tpu.memory_space<vmem>>, vector<1x1x64xf32>
    %203 = vector.shape_cast %202 : vector<1x1x64xf32> to vector<1x64xf32>
    %204 = vector.broadcast %203 : vector<1x64xf32> to vector<32x64xf32>
    %205 = arith.addf %201, %204 : vector<32x64xf32>
    %206 = arith.addf %205, %102 : vector<32x64xf32>
    %c0_72 = arith.constant 0 : index
    %c0_73 = arith.constant 0 : index
    %c0_74 = arith.constant 0 : index
    %207 = vector.load %arg10[%c0_72, %c0_73, %c0_74] : memref<2x1x64xf32, #tpu.memory_space<vmem>>, vector<1x1x64xf32>
    %208 = vector.shape_cast %207 : vector<1x1x64xf32> to vector<1x64xf32>
    %c0_75 = arith.constant 0 : index
    %c0_76 = arith.constant 0 : index
    %c0_77 = arith.constant 0 : index
    %209 = vector.load %arg11[%c0_75, %c0_76, %c0_77] : memref<2x1x64xf32, #tpu.memory_space<vmem>>, vector<1x1x64xf32>
    %210 = vector.shape_cast %209 : vector<1x1x64xf32> to vector<1x64xf32>
    %cst_78 = arith.constant dense<0.000000e+00> : vector<32xf32>
    %211 = vector.multi_reduction <add>, %206, %cst_78 [1] : vector<32x64xf32> to vector<32xf32>
    %212 = vector.shape_cast %211 : vector<32xf32> to vector<32x1xf32>
    %cst_79 = arith.constant 6.400000e+01 : f32
    %213 = vector.broadcast %cst_79 : f32 to vector<32x1xf32>
    %214 = arith.divf %212, %213 : vector<32x1xf32>
    %215 = vector.broadcast %214 : vector<32x1xf32> to vector<32x64xf32>
    %216 = arith.subf %206, %215 : vector<32x64xf32>
    %217 = arith.mulf %216, %216 : vector<32x64xf32>
    %cst_80 = arith.constant dense<0.000000e+00> : vector<32xf32>
    %218 = vector.multi_reduction <add>, %217, %cst_80 [1] : vector<32x64xf32> to vector<32xf32>
    %219 = vector.shape_cast %218 : vector<32xf32> to vector<32x1xf32>
    %cst_81 = arith.constant 6.400000e+01 : f32
    %220 = vector.broadcast %cst_81 : f32 to vector<32x1xf32>
    %221 = arith.divf %219, %220 : vector<32x1xf32>
    %222 = vector.broadcast %214 : vector<32x1xf32> to vector<32x64xf32>
    %223 = arith.subf %206, %222 : vector<32x64xf32>
    %cst_82 = arith.constant 9.99999974E-6 : f32
    %224 = vector.broadcast %cst_82 : f32 to vector<32x1xf32>
    %225 = arith.addf %221, %224 : vector<32x1xf32>
    %226 = math.rsqrt %225 : vector<32x1xf32>
    %227 = vector.broadcast %226 : vector<32x1xf32> to vector<32x64xf32>
    %228 = arith.mulf %223, %227 : vector<32x64xf32>
    %229 = vector.broadcast %208 : vector<1x64xf32> to vector<32x64xf32>
    %230 = arith.mulf %228, %229 : vector<32x64xf32>
    %231 = vector.broadcast %210 : vector<1x64xf32> to vector<32x64xf32>
    %232 = arith.addf %230, %231 : vector<32x64xf32>
    %c0_83 = arith.constant 0 : index
    %c0_84 = arith.constant 0 : index
    %c0_85 = arith.constant 0 : index
    %233 = vector.load %arg12[%c0_83, %c0_84, %c0_85] : memref<2x64x128xf32, #tpu.memory_space<vmem>>, vector<1x64x128xf32>
    %234 = vector.shape_cast %233 : vector<1x64x128xf32> to vector<64x128xf32>
    %cst_86 = arith.constant dense<0.000000e+00> : vector<32x128xf32>
    %235 = tpu.matmul %232, %234, %cst_86 {dimension_numbers = #tpu.dot_dimension_numbers<[1], [0], [0], [1], [0, 0, 1, 1], [], []>} : vector<32x64xf32>, vector<64x128xf32>, vector<32x128xf32> -> vector<32x128xf32>
    %c0_87 = arith.constant 0 : index
    %c0_88 = arith.constant 0 : index
    %c0_89 = arith.constant 0 : index
    %236 = vector.load %arg13[%c0_87, %c0_88, %c0_89] : memref<2x1x128xf32, #tpu.memory_space<vmem>>, vector<1x1x128xf32>
    %237 = vector.shape_cast %236 : vector<1x1x128xf32> to vector<1x128xf32>
    %238 = vector.broadcast %237 : vector<1x128xf32> to vector<32x128xf32>
    %239 = arith.addf %235, %238 : vector<32x128xf32>
    %240 = arith.mulf %239, %239 : vector<32x128xf32>
    %241 = arith.mulf %239, %240 : vector<32x128xf32>
    %cst_90 = arith.constant 4.471500e-02 : f32
    %242 = vector.broadcast %cst_90 : f32 to vector<32x128xf32>
    %243 = arith.mulf %242, %241 : vector<32x128xf32>
    %244 = arith.addf %239, %243 : vector<32x128xf32>
    %cst_91 = arith.constant 0.797884583 : f32
    %245 = vector.broadcast %cst_91 : f32 to vector<32x128xf32>
    %246 = arith.mulf %245, %244 : vector<32x128xf32>
    %247 = math.tanh %246 : vector<32x128xf32>
    %cst_92 = arith.constant 1.000000e+00 : f32
    %248 = vector.broadcast %cst_92 : f32 to vector<32x128xf32>
    %249 = arith.addf %248, %247 : vector<32x128xf32>
    %cst_93 = arith.constant 5.000000e-01 : f32
    %250 = vector.broadcast %cst_93 : f32 to vector<32x128xf32>
    %251 = arith.mulf %250, %249 : vector<32x128xf32>
    %252 = arith.mulf %239, %251 : vector<32x128xf32>
    %c0_94 = arith.constant 0 : index
    %c0_95 = arith.constant 0 : index
    %c0_96 = arith.constant 0 : index
    %253 = vector.load %arg14[%c0_94, %c0_95, %c0_96] : memref<2x128x64xf32, #tpu.memory_space<vmem>>, vector<1x128x64xf32>
    %254 = vector.shape_cast %253 : vector<1x128x64xf32> to vector<128x64xf32>
    %cst_97 = arith.constant dense<0.000000e+00> : vector<32x64xf32>
    %255 = tpu.matmul %252, %254, %cst_97 {dimension_numbers = #tpu.dot_dimension_numbers<[1], [0], [0], [1], [0, 0, 1, 1], [], []>} : vector<32x128xf32>, vector<128x64xf32>, vector<32x64xf32> -> vector<32x64xf32>
    %c0_98 = arith.constant 0 : index
    %c0_99 = arith.constant 0 : index
    %c0_100 = arith.constant 0 : index
    %256 = vector.load %arg15[%c0_98, %c0_99, %c0_100] : memref<2x1x64xf32, #tpu.memory_space<vmem>>, vector<1x1x64xf32>
    %257 = vector.shape_cast %256 : vector<1x1x64xf32> to vector<1x64xf32>
    %258 = vector.broadcast %257 : vector<1x64xf32> to vector<32x64xf32>
    %259 = arith.addf %255, %258 : vector<32x64xf32>
    %260 = arith.addf %259, %232 : vector<32x64xf32>
    %c0_101 = arith.constant 0 : index
    %c0_102 = arith.constant 0 : index
    %c0_103 = arith.constant 0 : index
    %261 = vector.load %arg16[%c0_101, %c0_102, %c0_103] : memref<2x1x64xf32, #tpu.memory_space<vmem>>, vector<1x1x64xf32>
    %262 = vector.shape_cast %261 : vector<1x1x64xf32> to vector<1x64xf32>
    %c0_104 = arith.constant 0 : index
    %c0_105 = arith.constant 0 : index
    %c0_106 = arith.constant 0 : index
    %263 = vector.load %arg17[%c0_104, %c0_105, %c0_106] : memref<2x1x64xf32, #tpu.memory_space<vmem>>, vector<1x1x64xf32>
    %264 = vector.shape_cast %263 : vector<1x1x64xf32> to vector<1x64xf32>
    %cst_107 = arith.constant dense<0.000000e+00> : vector<32xf32>
    %265 = vector.multi_reduction <add>, %260, %cst_107 [1] : vector<32x64xf32> to vector<32xf32>
    %266 = vector.shape_cast %265 : vector<32xf32> to vector<32x1xf32>
    %cst_108 = arith.constant 6.400000e+01 : f32
    %267 = vector.broadcast %cst_108 : f32 to vector<32x1xf32>
    %268 = arith.divf %266, %267 : vector<32x1xf32>
    %269 = vector.broadcast %268 : vector<32x1xf32> to vector<32x64xf32>
    %270 = arith.subf %260, %269 : vector<32x64xf32>
    %271 = arith.mulf %270, %270 : vector<32x64xf32>
    %cst_109 = arith.constant dense<0.000000e+00> : vector<32xf32>
    %272 = vector.multi_reduction <add>, %271, %cst_109 [1] : vector<32x64xf32> to vector<32xf32>
    %273 = vector.shape_cast %272 : vector<32xf32> to vector<32x1xf32>
    %cst_110 = arith.constant 6.400000e+01 : f32
    %274 = vector.broadcast %cst_110 : f32 to vector<32x1xf32>
    %275 = arith.divf %273, %274 : vector<32x1xf32>
    %276 = vector.broadcast %268 : vector<32x1xf32> to vector<32x64xf32>
    %277 = arith.subf %260, %276 : vector<32x64xf32>
    %cst_111 = arith.constant 9.99999974E-6 : f32
    %278 = vector.broadcast %cst_111 : f32 to vector<32x1xf32>
    %279 = arith.addf %275, %278 : vector<32x1xf32>
    %280 = math.rsqrt %279 : vector<32x1xf32>
    %281 = vector.broadcast %280 : vector<32x1xf32> to vector<32x64xf32>
    %282 = arith.mulf %277, %281 : vector<32x64xf32>
    %283 = vector.broadcast %262 : vector<1x64xf32> to vector<32x64xf32>
    %284 = arith.mulf %282, %283 : vector<32x64xf32>
    %285 = vector.broadcast %264 : vector<1x64xf32> to vector<32x64xf32>
    %286 = arith.addf %284, %285 : vector<32x64xf32>
    %c1_112 = arith.constant 1 : index
    %c0_113 = arith.constant 0 : index
    %c0_114 = arith.constant 0 : index
    %287 = vector.load %arg6[%c1_112, %c0_113, %c0_114] : memref<2x64x192xf32, #tpu.memory_space<vmem>>, vector<1x64x192xf32>
    %288 = vector.shape_cast %287 : vector<1x64x192xf32> to vector<64x192xf32>
    %cst_115 = arith.constant dense<0.000000e+00> : vector<32x192xf32>
    %289 = tpu.matmul %286, %288, %cst_115 {dimension_numbers = #tpu.dot_dimension_numbers<[1], [0], [0], [1], [0, 0, 1, 1], [], []>} : vector<32x64xf32>, vector<64x192xf32>, vector<32x192xf32> -> vector<32x192xf32>
    %c1_116 = arith.constant 1 : index
    %c0_117 = arith.constant 0 : index
    %c0_118 = arith.constant 0 : index
    %290 = vector.load %arg7[%c1_116, %c0_117, %c0_118] : memref<2x1x192xf32, #tpu.memory_space<vmem>>, vector<1x1x192xf32>
    %291 = vector.shape_cast %290 : vector<1x1x192xf32> to vector<1x192xf32>
    %292 = vector.broadcast %291 : vector<1x192xf32> to vector<32x192xf32>
    %293 = arith.addf %289, %292 : vector<32x192xf32>
    %c1_119 = arith.constant 1 : index
    %c0_120 = arith.constant 0 : index
    %c0_121 = arith.constant 0 : index
    %294 = vector.load %arg8[%c1_119, %c0_120, %c0_121] : memref<2x64x64xf32, #tpu.memory_space<vmem>>, vector<1x64x64xf32>
    %295 = vector.shape_cast %294 : vector<1x64x64xf32> to vector<64x64xf32>
    %cst_122 = arith.constant 0.000000e+00 : f32
    %296 = vector.broadcast %cst_122 : f32 to vector<32x64xf32>
    %297 = vector.extract_strided_slice %293 {offsets = [0, 0], sizes = [32, 16], strides = [1, 1]} : vector<32x192xf32> to vector<32x16xf32>
    %298 = vector.extract_strided_slice %293 {offsets = [0, 64], sizes = [32, 16], strides = [1, 1]} : vector<32x192xf32> to vector<32x16xf32>
    %299 = vector.extract_strided_slice %293 {offsets = [0, 128], sizes = [32, 16], strides = [1, 1]} : vector<32x192xf32> to vector<32x16xf32>
    %cst_123 = arith.constant dense<0.000000e+00> : vector<32x32xf32>
    %300 = tpu.matmul %297, %298, %cst_123 {dimension_numbers = #tpu.dot_dimension_numbers<[1], [1], [0], [0], [0, 0, 1, 0], [], []>} : vector<32x16xf32>, vector<32x16xf32>, vector<32x32xf32> -> vector<32x32xf32>
    %c31_i32_124 = arith.constant 31 : i32
    %301 = vector.broadcast %c31_i32_124 : i32 to vector<32x32xi32>
    %302 = arith.cmpi slt, %103, %301 : vector<32x32xi32>
    %cst_125 = arith.constant -1.000000e+30 : f32
    %303 = vector.broadcast %cst_125 : f32 to vector<32x32xf32>
    %304 = arith.select %302, %300, %303 : vector<32x32xi1>, vector<32x32xf32>
    %cst_126 = arith.constant dense<0xFF800000> : vector<32xf32>
    %305 = vector.multi_reduction <maximumf>, %304, %cst_126 [1] : vector<32x32xf32> to vector<32xf32>
    %306 = vector.shape_cast %305 : vector<32xf32> to vector<32x1xf32>
    %307 = vector.broadcast %306 : vector<32x1xf32> to vector<32x32xf32>
    %308 = arith.subf %304, %307 : vector<32x32xf32>
    %309 = math.exp %308 : vector<32x32xf32>
    %cst_127 = arith.constant dense<0.000000e+00> : vector<32xf32>
    %310 = vector.multi_reduction <add>, %309, %cst_127 [1] : vector<32x32xf32> to vector<32xf32>
    %311 = vector.shape_cast %310 : vector<32xf32> to vector<32x1xf32>
    %312 = tpu.reciprocal %311 {approx = true} : vector<32x1xf32> -> vector<32x1xf32>
    %313 = vector.broadcast %312 : vector<32x1xf32> to vector<32x32xf32>
    %314 = arith.mulf %309, %313 : vector<32x32xf32>
    %cst_128 = arith.constant dense<0.000000e+00> : vector<32x16xf32>
    %315 = tpu.matmul %314, %299, %cst_128 {dimension_numbers = #tpu.dot_dimension_numbers<[1], [0], [0], [1], [0, 0, 1, 1], [], []>} : vector<32x32xf32>, vector<32x16xf32>, vector<32x16xf32> -> vector<32x16xf32>
    %316 = vector.extract_strided_slice %295 {offsets = [0, 0], sizes = [16, 64], strides = [1, 1]} : vector<64x64xf32> to vector<16x64xf32>
    %cst_129 = arith.constant dense<0.000000e+00> : vector<32x64xf32>
    %317 = tpu.matmul %315, %316, %cst_129 {dimension_numbers = #tpu.dot_dimension_numbers<[1], [0], [0], [1], [0, 0, 1, 1], [], []>} : vector<32x16xf32>, vector<16x64xf32>, vector<32x64xf32> -> vector<32x64xf32>
    %318 = arith.addf %296, %317 : vector<32x64xf32>
    %319 = vector.extract_strided_slice %293 {offsets = [0, 16], sizes = [32, 16], strides = [1, 1]} : vector<32x192xf32> to vector<32x16xf32>
    %320 = vector.extract_strided_slice %293 {offsets = [0, 80], sizes = [32, 16], strides = [1, 1]} : vector<32x192xf32> to vector<32x16xf32>
    %321 = vector.extract_strided_slice %293 {offsets = [0, 144], sizes = [32, 16], strides = [1, 1]} : vector<32x192xf32> to vector<32x16xf32>
    %cst_130 = arith.constant dense<0.000000e+00> : vector<32x32xf32>
    %322 = tpu.matmul %319, %320, %cst_130 {dimension_numbers = #tpu.dot_dimension_numbers<[1], [1], [0], [0], [0, 0, 1, 0], [], []>} : vector<32x16xf32>, vector<32x16xf32>, vector<32x32xf32> -> vector<32x32xf32>
    %c31_i32_131 = arith.constant 31 : i32
    %323 = vector.broadcast %c31_i32_131 : i32 to vector<32x32xi32>
    %324 = arith.cmpi slt, %103, %323 : vector<32x32xi32>
    %cst_132 = arith.constant -1.000000e+30 : f32
    %325 = vector.broadcast %cst_132 : f32 to vector<32x32xf32>
    %326 = arith.select %324, %322, %325 : vector<32x32xi1>, vector<32x32xf32>
    %cst_133 = arith.constant dense<0xFF800000> : vector<32xf32>
    %327 = vector.multi_reduction <maximumf>, %326, %cst_133 [1] : vector<32x32xf32> to vector<32xf32>
    %328 = vector.shape_cast %327 : vector<32xf32> to vector<32x1xf32>
    %329 = vector.broadcast %328 : vector<32x1xf32> to vector<32x32xf32>
    %330 = arith.subf %326, %329 : vector<32x32xf32>
    %331 = math.exp %330 : vector<32x32xf32>
    %cst_134 = arith.constant dense<0.000000e+00> : vector<32xf32>
    %332 = vector.multi_reduction <add>, %331, %cst_134 [1] : vector<32x32xf32> to vector<32xf32>
    %333 = vector.shape_cast %332 : vector<32xf32> to vector<32x1xf32>
    %334 = tpu.reciprocal %333 {approx = true} : vector<32x1xf32> -> vector<32x1xf32>
    %335 = vector.broadcast %334 : vector<32x1xf32> to vector<32x32xf32>
    %336 = arith.mulf %331, %335 : vector<32x32xf32>
    %cst_135 = arith.constant dense<0.000000e+00> : vector<32x16xf32>
    %337 = tpu.matmul %336, %321, %cst_135 {dimension_numbers = #tpu.dot_dimension_numbers<[1], [0], [0], [1], [0, 0, 1, 1], [], []>} : vector<32x32xf32>, vector<32x16xf32>, vector<32x16xf32> -> vector<32x16xf32>
    %338 = vector.extract_strided_slice %295 {offsets = [16, 0], sizes = [16, 64], strides = [1, 1]} : vector<64x64xf32> to vector<16x64xf32>
    %cst_136 = arith.constant dense<0.000000e+00> : vector<32x64xf32>
    %339 = tpu.matmul %337, %338, %cst_136 {dimension_numbers = #tpu.dot_dimension_numbers<[1], [0], [0], [1], [0, 0, 1, 1], [], []>} : vector<32x16xf32>, vector<16x64xf32>, vector<32x64xf32> -> vector<32x64xf32>
    %340 = arith.addf %318, %339 : vector<32x64xf32>
    %341 = vector.extract_strided_slice %293 {offsets = [0, 32], sizes = [32, 16], strides = [1, 1]} : vector<32x192xf32> to vector<32x16xf32>
    %342 = vector.extract_strided_slice %293 {offsets = [0, 96], sizes = [32, 16], strides = [1, 1]} : vector<32x192xf32> to vector<32x16xf32>
    %343 = vector.extract_strided_slice %293 {offsets = [0, 160], sizes = [32, 16], strides = [1, 1]} : vector<32x192xf32> to vector<32x16xf32>
    %cst_137 = arith.constant dense<0.000000e+00> : vector<32x32xf32>
    %344 = tpu.matmul %341, %342, %cst_137 {dimension_numbers = #tpu.dot_dimension_numbers<[1], [1], [0], [0], [0, 0, 1, 0], [], []>} : vector<32x16xf32>, vector<32x16xf32>, vector<32x32xf32> -> vector<32x32xf32>
    %c31_i32_138 = arith.constant 31 : i32
    %345 = vector.broadcast %c31_i32_138 : i32 to vector<32x32xi32>
    %346 = arith.cmpi slt, %103, %345 : vector<32x32xi32>
    %cst_139 = arith.constant -1.000000e+30 : f32
    %347 = vector.broadcast %cst_139 : f32 to vector<32x32xf32>
    %348 = arith.select %346, %344, %347 : vector<32x32xi1>, vector<32x32xf32>
    %cst_140 = arith.constant dense<0xFF800000> : vector<32xf32>
    %349 = vector.multi_reduction <maximumf>, %348, %cst_140 [1] : vector<32x32xf32> to vector<32xf32>
    %350 = vector.shape_cast %349 : vector<32xf32> to vector<32x1xf32>
    %351 = vector.broadcast %350 : vector<32x1xf32> to vector<32x32xf32>
    %352 = arith.subf %348, %351 : vector<32x32xf32>
    %353 = math.exp %352 : vector<32x32xf32>
    %cst_141 = arith.constant dense<0.000000e+00> : vector<32xf32>
    %354 = vector.multi_reduction <add>, %353, %cst_141 [1] : vector<32x32xf32> to vector<32xf32>
    %355 = vector.shape_cast %354 : vector<32xf32> to vector<32x1xf32>
    %356 = tpu.reciprocal %355 {approx = true} : vector<32x1xf32> -> vector<32x1xf32>
    %357 = vector.broadcast %356 : vector<32x1xf32> to vector<32x32xf32>
    %358 = arith.mulf %353, %357 : vector<32x32xf32>
    %cst_142 = arith.constant dense<0.000000e+00> : vector<32x16xf32>
    %359 = tpu.matmul %358, %343, %cst_142 {dimension_numbers = #tpu.dot_dimension_numbers<[1], [0], [0], [1], [0, 0, 1, 1], [], []>} : vector<32x32xf32>, vector<32x16xf32>, vector<32x16xf32> -> vector<32x16xf32>
    %360 = vector.extract_strided_slice %295 {offsets = [32, 0], sizes = [16, 64], strides = [1, 1]} : vector<64x64xf32> to vector<16x64xf32>
    %cst_143 = arith.constant dense<0.000000e+00> : vector<32x64xf32>
    %361 = tpu.matmul %359, %360, %cst_143 {dimension_numbers = #tpu.dot_dimension_numbers<[1], [0], [0], [1], [0, 0, 1, 1], [], []>} : vector<32x16xf32>, vector<16x64xf32>, vector<32x64xf32> -> vector<32x64xf32>
    %362 = arith.addf %340, %361 : vector<32x64xf32>
    %363 = vector.extract_strided_slice %293 {offsets = [0, 48], sizes = [32, 16], strides = [1, 1]} : vector<32x192xf32> to vector<32x16xf32>
    %364 = vector.extract_strided_slice %293 {offsets = [0, 112], sizes = [32, 16], strides = [1, 1]} : vector<32x192xf32> to vector<32x16xf32>
    %365 = vector.extract_strided_slice %293 {offsets = [0, 176], sizes = [32, 16], strides = [1, 1]} : vector<32x192xf32> to vector<32x16xf32>
    %cst_144 = arith.constant dense<0.000000e+00> : vector<32x32xf32>
    %366 = tpu.matmul %363, %364, %cst_144 {dimension_numbers = #tpu.dot_dimension_numbers<[1], [1], [0], [0], [0, 0, 1, 0], [], []>} : vector<32x16xf32>, vector<32x16xf32>, vector<32x32xf32> -> vector<32x32xf32>
    %c31_i32_145 = arith.constant 31 : i32
    %367 = vector.broadcast %c31_i32_145 : i32 to vector<32x32xi32>
    %368 = arith.cmpi slt, %103, %367 : vector<32x32xi32>
    %cst_146 = arith.constant -1.000000e+30 : f32
    %369 = vector.broadcast %cst_146 : f32 to vector<32x32xf32>
    %370 = arith.select %368, %366, %369 : vector<32x32xi1>, vector<32x32xf32>
    %cst_147 = arith.constant dense<0xFF800000> : vector<32xf32>
    %371 = vector.multi_reduction <maximumf>, %370, %cst_147 [1] : vector<32x32xf32> to vector<32xf32>
    %372 = vector.shape_cast %371 : vector<32xf32> to vector<32x1xf32>
    %373 = vector.broadcast %372 : vector<32x1xf32> to vector<32x32xf32>
    %374 = arith.subf %370, %373 : vector<32x32xf32>
    %375 = math.exp %374 : vector<32x32xf32>
    %cst_148 = arith.constant dense<0.000000e+00> : vector<32xf32>
    %376 = vector.multi_reduction <add>, %375, %cst_148 [1] : vector<32x32xf32> to vector<32xf32>
    %377 = vector.shape_cast %376 : vector<32xf32> to vector<32x1xf32>
    %378 = tpu.reciprocal %377 {approx = true} : vector<32x1xf32> -> vector<32x1xf32>
    %379 = vector.broadcast %378 : vector<32x1xf32> to vector<32x32xf32>
    %380 = arith.mulf %375, %379 : vector<32x32xf32>
    %cst_149 = arith.constant dense<0.000000e+00> : vector<32x16xf32>
    %381 = tpu.matmul %380, %365, %cst_149 {dimension_numbers = #tpu.dot_dimension_numbers<[1], [0], [0], [1], [0, 0, 1, 1], [], []>} : vector<32x32xf32>, vector<32x16xf32>, vector<32x16xf32> -> vector<32x16xf32>
    %382 = vector.extract_strided_slice %295 {offsets = [48, 0], sizes = [16, 64], strides = [1, 1]} : vector<64x64xf32> to vector<16x64xf32>
    %cst_150 = arith.constant dense<0.000000e+00> : vector<32x64xf32>
    %383 = tpu.matmul %381, %382, %cst_150 {dimension_numbers = #tpu.dot_dimension_numbers<[1], [0], [0], [1], [0, 0, 1, 1], [], []>} : vector<32x16xf32>, vector<16x64xf32>, vector<32x64xf32> -> vector<32x64xf32>
    %384 = arith.addf %362, %383 : vector<32x64xf32>
    %c1_151 = arith.constant 1 : index
    %c0_152 = arith.constant 0 : index
    %c0_153 = arith.constant 0 : index
    %385 = vector.load %arg9[%c1_151, %c0_152, %c0_153] : memref<2x1x64xf32, #tpu.memory_space<vmem>>, vector<1x1x64xf32>
    %386 = vector.shape_cast %385 : vector<1x1x64xf32> to vector<1x64xf32>
    %387 = vector.broadcast %386 : vector<1x64xf32> to vector<32x64xf32>
    %388 = arith.addf %384, %387 : vector<32x64xf32>
    %389 = arith.addf %388, %286 : vector<32x64xf32>
    %c1_154 = arith.constant 1 : index
    %c0_155 = arith.constant 0 : index
    %c0_156 = arith.constant 0 : index
    %390 = vector.load %arg10[%c1_154, %c0_155, %c0_156] : memref<2x1x64xf32, #tpu.memory_space<vmem>>, vector<1x1x64xf32>
    %391 = vector.shape_cast %390 : vector<1x1x64xf32> to vector<1x64xf32>
    %c1_157 = arith.constant 1 : index
    %c0_158 = arith.constant 0 : index
    %c0_159 = arith.constant 0 : index
    %392 = vector.load %arg11[%c1_157, %c0_158, %c0_159] : memref<2x1x64xf32, #tpu.memory_space<vmem>>, vector<1x1x64xf32>
    %393 = vector.shape_cast %392 : vector<1x1x64xf32> to vector<1x64xf32>
    %cst_160 = arith.constant dense<0.000000e+00> : vector<32xf32>
    %394 = vector.multi_reduction <add>, %389, %cst_160 [1] : vector<32x64xf32> to vector<32xf32>
    %395 = vector.shape_cast %394 : vector<32xf32> to vector<32x1xf32>
    %cst_161 = arith.constant 6.400000e+01 : f32
    %396 = vector.broadcast %cst_161 : f32 to vector<32x1xf32>
    %397 = arith.divf %395, %396 : vector<32x1xf32>
    %398 = vector.broadcast %397 : vector<32x1xf32> to vector<32x64xf32>
    %399 = arith.subf %389, %398 : vector<32x64xf32>
    %400 = arith.mulf %399, %399 : vector<32x64xf32>
    %cst_162 = arith.constant dense<0.000000e+00> : vector<32xf32>
    %401 = vector.multi_reduction <add>, %400, %cst_162 [1] : vector<32x64xf32> to vector<32xf32>
    %402 = vector.shape_cast %401 : vector<32xf32> to vector<32x1xf32>
    %cst_163 = arith.constant 6.400000e+01 : f32
    %403 = vector.broadcast %cst_163 : f32 to vector<32x1xf32>
    %404 = arith.divf %402, %403 : vector<32x1xf32>
    %405 = vector.broadcast %397 : vector<32x1xf32> to vector<32x64xf32>
    %406 = arith.subf %389, %405 : vector<32x64xf32>
    %cst_164 = arith.constant 9.99999974E-6 : f32
    %407 = vector.broadcast %cst_164 : f32 to vector<32x1xf32>
    %408 = arith.addf %404, %407 : vector<32x1xf32>
    %409 = math.rsqrt %408 : vector<32x1xf32>
    %410 = vector.broadcast %409 : vector<32x1xf32> to vector<32x64xf32>
    %411 = arith.mulf %406, %410 : vector<32x64xf32>
    %412 = vector.broadcast %391 : vector<1x64xf32> to vector<32x64xf32>
    %413 = arith.mulf %411, %412 : vector<32x64xf32>
    %414 = vector.broadcast %393 : vector<1x64xf32> to vector<32x64xf32>
    %415 = arith.addf %413, %414 : vector<32x64xf32>
    %c1_165 = arith.constant 1 : index
    %c0_166 = arith.constant 0 : index
    %c0_167 = arith.constant 0 : index
    %416 = vector.load %arg12[%c1_165, %c0_166, %c0_167] : memref<2x64x128xf32, #tpu.memory_space<vmem>>, vector<1x64x128xf32>
    %417 = vector.shape_cast %416 : vector<1x64x128xf32> to vector<64x128xf32>
    %cst_168 = arith.constant dense<0.000000e+00> : vector<32x128xf32>
    %418 = tpu.matmul %415, %417, %cst_168 {dimension_numbers = #tpu.dot_dimension_numbers<[1], [0], [0], [1], [0, 0, 1, 1], [], []>} : vector<32x64xf32>, vector<64x128xf32>, vector<32x128xf32> -> vector<32x128xf32>
    %c1_169 = arith.constant 1 : index
    %c0_170 = arith.constant 0 : index
    %c0_171 = arith.constant 0 : index
    %419 = vector.load %arg13[%c1_169, %c0_170, %c0_171] : memref<2x1x128xf32, #tpu.memory_space<vmem>>, vector<1x1x128xf32>
    %420 = vector.shape_cast %419 : vector<1x1x128xf32> to vector<1x128xf32>
    %421 = vector.broadcast %420 : vector<1x128xf32> to vector<32x128xf32>
    %422 = arith.addf %418, %421 : vector<32x128xf32>
    %423 = arith.mulf %422, %422 : vector<32x128xf32>
    %424 = arith.mulf %422, %423 : vector<32x128xf32>
    %cst_172 = arith.constant 4.471500e-02 : f32
    %425 = vector.broadcast %cst_172 : f32 to vector<32x128xf32>
    %426 = arith.mulf %425, %424 : vector<32x128xf32>
    %427 = arith.addf %422, %426 : vector<32x128xf32>
    %cst_173 = arith.constant 0.797884583 : f32
    %428 = vector.broadcast %cst_173 : f32 to vector<32x128xf32>
    %429 = arith.mulf %428, %427 : vector<32x128xf32>
    %430 = math.tanh %429 : vector<32x128xf32>
    %cst_174 = arith.constant 1.000000e+00 : f32
    %431 = vector.broadcast %cst_174 : f32 to vector<32x128xf32>
    %432 = arith.addf %431, %430 : vector<32x128xf32>
    %cst_175 = arith.constant 5.000000e-01 : f32
    %433 = vector.broadcast %cst_175 : f32 to vector<32x128xf32>
    %434 = arith.mulf %433, %432 : vector<32x128xf32>
    %435 = arith.mulf %422, %434 : vector<32x128xf32>
    %c1_176 = arith.constant 1 : index
    %c0_177 = arith.constant 0 : index
    %c0_178 = arith.constant 0 : index
    %436 = vector.load %arg14[%c1_176, %c0_177, %c0_178] : memref<2x128x64xf32, #tpu.memory_space<vmem>>, vector<1x128x64xf32>
    %437 = vector.shape_cast %436 : vector<1x128x64xf32> to vector<128x64xf32>
    %cst_179 = arith.constant dense<0.000000e+00> : vector<32x64xf32>
    %438 = tpu.matmul %435, %437, %cst_179 {dimension_numbers = #tpu.dot_dimension_numbers<[1], [0], [0], [1], [0, 0, 1, 1], [], []>} : vector<32x128xf32>, vector<128x64xf32>, vector<32x64xf32> -> vector<32x64xf32>
    %c1_180 = arith.constant 1 : index
    %c0_181 = arith.constant 0 : index
    %c0_182 = arith.constant 0 : index
    %439 = vector.load %arg15[%c1_180, %c0_181, %c0_182] : memref<2x1x64xf32, #tpu.memory_space<vmem>>, vector<1x1x64xf32>
    %440 = vector.shape_cast %439 : vector<1x1x64xf32> to vector<1x64xf32>
    %441 = vector.broadcast %440 : vector<1x64xf32> to vector<32x64xf32>
    %442 = arith.addf %438, %441 : vector<32x64xf32>
    %443 = arith.addf %442, %415 : vector<32x64xf32>
    %c1_183 = arith.constant 1 : index
    %c0_184 = arith.constant 0 : index
    %c0_185 = arith.constant 0 : index
    %444 = vector.load %arg16[%c1_183, %c0_184, %c0_185] : memref<2x1x64xf32, #tpu.memory_space<vmem>>, vector<1x1x64xf32>
    %445 = vector.shape_cast %444 : vector<1x1x64xf32> to vector<1x64xf32>
    %c1_186 = arith.constant 1 : index
    %c0_187 = arith.constant 0 : index
    %c0_188 = arith.constant 0 : index
    %446 = vector.load %arg17[%c1_186, %c0_187, %c0_188] : memref<2x1x64xf32, #tpu.memory_space<vmem>>, vector<1x1x64xf32>
    %447 = vector.shape_cast %446 : vector<1x1x64xf32> to vector<1x64xf32>
    %cst_189 = arith.constant dense<0.000000e+00> : vector<32xf32>
    %448 = vector.multi_reduction <add>, %443, %cst_189 [1] : vector<32x64xf32> to vector<32xf32>
    %449 = vector.shape_cast %448 : vector<32xf32> to vector<32x1xf32>
    %cst_190 = arith.constant 6.400000e+01 : f32
    %450 = vector.broadcast %cst_190 : f32 to vector<32x1xf32>
    %451 = arith.divf %449, %450 : vector<32x1xf32>
    %452 = vector.broadcast %451 : vector<32x1xf32> to vector<32x64xf32>
    %453 = arith.subf %443, %452 : vector<32x64xf32>
    %454 = arith.mulf %453, %453 : vector<32x64xf32>
    %cst_191 = arith.constant dense<0.000000e+00> : vector<32xf32>
    %455 = vector.multi_reduction <add>, %454, %cst_191 [1] : vector<32x64xf32> to vector<32xf32>
    %456 = vector.shape_cast %455 : vector<32xf32> to vector<32x1xf32>
    %cst_192 = arith.constant 6.400000e+01 : f32
    %457 = vector.broadcast %cst_192 : f32 to vector<32x1xf32>
    %458 = arith.divf %456, %457 : vector<32x1xf32>
    %459 = vector.broadcast %451 : vector<32x1xf32> to vector<32x64xf32>
    %460 = arith.subf %443, %459 : vector<32x64xf32>
    %cst_193 = arith.constant 9.99999974E-6 : f32
    %461 = vector.broadcast %cst_193 : f32 to vector<32x1xf32>
    %462 = arith.addf %458, %461 : vector<32x1xf32>
    %463 = math.rsqrt %462 : vector<32x1xf32>
    %464 = vector.broadcast %463 : vector<32x1xf32> to vector<32x64xf32>
    %465 = arith.mulf %460, %464 : vector<32x64xf32>
    %466 = vector.broadcast %445 : vector<1x64xf32> to vector<32x64xf32>
    %467 = arith.mulf %465, %466 : vector<32x64xf32>
    %468 = vector.broadcast %447 : vector<1x64xf32> to vector<32x64xf32>
    %469 = arith.addf %467, %468 : vector<32x64xf32>
    %470 = tpu.iota {dimensions = array<i32: 0>} : vector<32x1xi32>
    %c31_i32_194 = arith.constant 31 : i32
    %471 = vector.broadcast %c31_i32_194 : i32 to vector<32x1xi32>
    %472 = arith.cmpi slt, %470, %471 : vector<32x1xi32>
    %473 = arith.extui %472 : vector<32x1xi1> to vector<32x1xi32>
    %474 = arith.sitofp %473 : vector<32x1xi32> to vector<32x1xf32>
    %475 = vector.broadcast %474 : vector<32x1xf32> to vector<32x64xf32>
    %476 = arith.mulf %469, %475 : vector<32x64xf32>
    %cst_195 = arith.constant dense<0.000000e+00> : vector<64xf32>
    %477 = vector.multi_reduction <add>, %476, %cst_195 [0] : vector<32x64xf32> to vector<64xf32>
    %478 = vector.shape_cast %477 : vector<64xf32> to vector<1x64xf32>
    %cst_196 = arith.constant 0.0322580636 : f32
    %479 = vector.broadcast %cst_196 : f32 to vector<1x64xf32>
    %480 = arith.mulf %478, %479 : vector<1x64xf32>
    %c0_197 = arith.constant 0 : index
    %c0_198 = arith.constant 0 : index
    %481 = vector.load %arg18[%c0_197, %c0_198] : memref<64x32xf32, #tpu.memory_space<vmem>>, vector<64x32xf32>
    %cst_199 = arith.constant dense<0.000000e+00> : vector<1x32xf32>
    %482 = tpu.matmul %480, %481, %cst_199 {dimension_numbers = #tpu.dot_dimension_numbers<[1], [0], [0], [1], [0, 0, 1, 1], [], []>} : vector<1x64xf32>, vector<64x32xf32>, vector<1x32xf32> -> vector<1x32xf32>
    %c0_200 = arith.constant 0 : index
    %c0_201 = arith.constant 0 : index
    %483 = vector.load %arg19[%c0_200, %c0_201] : memref<1x32xf32, #tpu.memory_space<vmem>>, vector<1x32xf32>
    %484 = arith.addf %482, %483 : vector<1x32xf32>
    %cst_202 = arith.constant 0.000000e+00 : f32
    %485 = vector.broadcast %cst_202 : f32 to vector<1x32xf32>
    %486 = arith.maximumf %484, %485 : vector<1x32xf32>
    %c0_203 = arith.constant 0 : index
    %c0_204 = arith.constant 0 : index
    %487 = vector.load %arg20[%c0_203, %c0_204] : memref<32x32xf32, #tpu.memory_space<vmem>>, vector<32x32xf32>
    %cst_205 = arith.constant dense<0.000000e+00> : vector<1x32xf32>
    %488 = tpu.matmul %486, %487, %cst_205 {dimension_numbers = #tpu.dot_dimension_numbers<[1], [0], [0], [1], [0, 0, 1, 1], [], []>} : vector<1x32xf32>, vector<32x32xf32>, vector<1x32xf32> -> vector<1x32xf32>
    %c0_206 = arith.constant 0 : index
    %c0_207 = arith.constant 0 : index
    %489 = vector.load %arg21[%c0_206, %c0_207] : memref<1x32xf32, #tpu.memory_space<vmem>>, vector<1x32xf32>
    %490 = arith.addf %488, %489 : vector<1x32xf32>
    %c0_208 = arith.constant 0 : index
    %c0_209 = arith.constant 0 : index
    %c0_210 = arith.constant 0 : index
    %491 = vector.load %arg22[%c0_208, %c0_209, %c0_210] : memref<1x1x32xf32, #tpu.memory_space<vmem>>, vector<1x1x32xf32>
    %492 = vector.shape_cast %491 : vector<1x1x32xf32> to vector<1x32xf32>
    %493 = vector.shape_cast %490 : vector<1x32xf32> to vector<1x1x32xf32>
    tpu.vector_store %arg22[%c0_208, %c0_209, %c0_210], %493 {strides = array<i32>} : memref<1x1x32xf32, #tpu.memory_space<vmem>>, vector<1x1x32xf32>,
    return
  }
  func.func @transform_0(%arg0: i32) -> (i32, i32, i32) {
    %c0_i32 = arith.constant 0 : i32
    %c0_i32_0 = arith.constant 0 : i32
    %c0_i32_1 = arith.constant 0 : i32
    return %arg0, %c0_i32, %c0_i32_0 : i32, i32, i32
  }
  func.func @transform_1(%arg0: i32) -> (i32, i32, i32) {
    %c0_i32 = arith.constant 0 : i32
    %c0_i32_0 = arith.constant 0 : i32
    %c0_i32_1 = arith.constant 0 : i32
    %c0_i32_2 = arith.constant 0 : i32
    return %c0_i32, %c0_i32_0, %c0_i32_1 : i32, i32, i32
  }
  func.func @transform_2(%arg0: i32) -> (i32, i32) {
    %c0_i32 = arith.constant 0 : i32
    %c0_i32_0 = arith.constant 0 : i32
    %c0_i32_1 = arith.constant 0 : i32
    return %c0_i32, %c0_i32_0 : i32, i32
  }
  func.func @transform_3(%arg0: i32) -> (i32, i32) {
    %c0_i32 = arith.constant 0 : i32
    %c0_i32_0 = arith.constant 0 : i32
    %c0_i32_1 = arith.constant 0 : i32
    return %c0_i32, %c0_i32_0 : i32, i32
  }
  func.func @transform_4(%arg0: i32) -> (i32, i32) {
    %c0_i32 = arith.constant 0 : i32
    %c0_i32_0 = arith.constant 0 : i32
    %c0_i32_1 = arith.constant 0 : i32
    return %c0_i32, %c0_i32_0 : i32, i32
  }
  func.func @transform_5(%arg0: i32) -> (i32, i32, i32) {
    %c0_i32 = arith.constant 0 : i32
    %c0_i32_0 = arith.constant 0 : i32
    %c0_i32_1 = arith.constant 0 : i32
    %c0_i32_2 = arith.constant 0 : i32
    return %c0_i32, %c0_i32_0, %c0_i32_1 : i32, i32, i32
  }
  func.func @transform_6(%arg0: i32) -> (i32, i32, i32) {
    %c0_i32 = arith.constant 0 : i32
    %c0_i32_0 = arith.constant 0 : i32
    %c0_i32_1 = arith.constant 0 : i32
    %c0_i32_2 = arith.constant 0 : i32
    return %c0_i32, %c0_i32_0, %c0_i32_1 : i32, i32, i32
  }
  func.func @transform_7(%arg0: i32) -> (i32, i32, i32) {
    %c0_i32 = arith.constant 0 : i32
    %c0_i32_0 = arith.constant 0 : i32
    %c0_i32_1 = arith.constant 0 : i32
    %c0_i32_2 = arith.constant 0 : i32
    return %c0_i32, %c0_i32_0, %c0_i32_1 : i32, i32, i32
  }
  func.func @transform_8(%arg0: i32) -> (i32, i32, i32) {
    %c0_i32 = arith.constant 0 : i32
    %c0_i32_0 = arith.constant 0 : i32
    %c0_i32_1 = arith.constant 0 : i32
    %c0_i32_2 = arith.constant 0 : i32
    return %c0_i32, %c0_i32_0, %c0_i32_1 : i32, i32, i32
  }
  func.func @transform_9(%arg0: i32) -> (i32, i32, i32) {
    %c0_i32 = arith.constant 0 : i32
    %c0_i32_0 = arith.constant 0 : i32
    %c0_i32_1 = arith.constant 0 : i32
    %c0_i32_2 = arith.constant 0 : i32
    return %c0_i32, %c0_i32_0, %c0_i32_1 : i32, i32, i32
  }
  func.func @transform_10(%arg0: i32) -> (i32, i32, i32) {
    %c0_i32 = arith.constant 0 : i32
    %c0_i32_0 = arith.constant 0 : i32
    %c0_i32_1 = arith.constant 0 : i32
    %c0_i32_2 = arith.constant 0 : i32
    return %c0_i32, %c0_i32_0, %c0_i32_1 : i32, i32, i32
  }
  func.func @transform_11(%arg0: i32) -> (i32, i32, i32) {
    %c0_i32 = arith.constant 0 : i32
    %c0_i32_0 = arith.constant 0 : i32
    %c0_i32_1 = arith.constant 0 : i32
    %c0_i32_2 = arith.constant 0 : i32
    return %c0_i32, %c0_i32_0, %c0_i32_1 : i32, i32, i32
  }
  func.func @transform_12(%arg0: i32) -> (i32, i32, i32) {
    %c0_i32 = arith.constant 0 : i32
    %c0_i32_0 = arith.constant 0 : i32
    %c0_i32_1 = arith.constant 0 : i32
    %c0_i32_2 = arith.constant 0 : i32
    return %c0_i32, %c0_i32_0, %c0_i32_1 : i32, i32, i32
  }
  func.func @transform_13(%arg0: i32) -> (i32, i32, i32) {
    %c0_i32 = arith.constant 0 : i32
    %c0_i32_0 = arith.constant 0 : i32
    %c0_i32_1 = arith.constant 0 : i32
    %c0_i32_2 = arith.constant 0 : i32
    return %c0_i32, %c0_i32_0, %c0_i32_1 : i32, i32, i32
  }
  func.func @transform_14(%arg0: i32) -> (i32, i32, i32) {
    %c0_i32 = arith.constant 0 : i32
    %c0_i32_0 = arith.constant 0 : i32
    %c0_i32_1 = arith.constant 0 : i32
    %c0_i32_2 = arith.constant 0 : i32
    return %c0_i32, %c0_i32_0, %c0_i32_1 : i32, i32, i32
  }
  func.func @transform_15(%arg0: i32) -> (i32, i32, i32) {
    %c0_i32 = arith.constant 0 : i32
    %c0_i32_0 = arith.constant 0 : i32
    %c0_i32_1 = arith.constant 0 : i32
    %c0_i32_2 = arith.constant 0 : i32
    return %c0_i32, %c0_i32_0, %c0_i32_1 : i32, i32, i32
  }
  func.func @transform_16(%arg0: i32) -> (i32, i32, i32) {
    %c0_i32 = arith.constant 0 : i32
    %c0_i32_0 = arith.constant 0 : i32
    %c0_i32_1 = arith.constant 0 : i32
    %c0_i32_2 = arith.constant 0 : i32
    return %c0_i32, %c0_i32_0, %c0_i32_1 : i32, i32, i32
  }
  func.func @transform_17(%arg0: i32) -> (i32, i32) {
    %c0_i32 = arith.constant 0 : i32
    %c0_i32_0 = arith.constant 0 : i32
    %c0_i32_1 = arith.constant 0 : i32
    return %c0_i32, %c0_i32_0 : i32, i32
  }
  func.func @transform_18(%arg0: i32) -> (i32, i32) {
    %c0_i32 = arith.constant 0 : i32
    %c0_i32_0 = arith.constant 0 : i32
    %c0_i32_1 = arith.constant 0 : i32
    return %c0_i32, %c0_i32_0 : i32, i32
  }
  func.func @transform_19(%arg0: i32) -> (i32, i32) {
    %c0_i32 = arith.constant 0 : i32
    %c0_i32_0 = arith.constant 0 : i32
    %c0_i32_1 = arith.constant 0 : i32
    return %c0_i32, %c0_i32_0 : i32, i32
  }
  func.func @transform_20(%arg0: i32) -> (i32, i32) {
    %c0_i32 = arith.constant 0 : i32
    %c0_i32_0 = arith.constant 0 : i32
    %c0_i32_1 = arith.constant 0 : i32
    return %c0_i32, %c0_i32_0 : i32, i32
  }
  func.func @transform_21(%arg0: i32) -> (i32, i32, i32) {
    %c0_i32 = arith.constant 0 : i32
    %c0_i32_0 = arith.constant 0 : i32
    %c0_i32_1 = arith.constant 0 : i32
    return %arg0, %c0_i32, %c0_i32_0 : i32, i32, i32
  }
}

</mosaic_0001>

<llo_original>
// kernel: forward.2
$region0: #{forward.2}
  #allocation0 [shape = 'u32[]', space=smem, size = 0x4, offset = 0x4, fixed_abs, tag = 'smem constant byte address 0x4 - core index']
  #allocation1 [shape = 'u32[144,128]{1,0:T(1,128)}', space=vmem, size = 0x12000, scoped, tag = 'internal scratch']
  %s0 = inlined_call_operand.vmem [shape: f32[2,5,128], index: 0, kind: input, shape index: {}]
  %s1 = inlined_call_operand.vmem [shape: f32[32,5], index: 1, kind: input, shape index: {}]
  %s2 = inlined_call_operand.vmem [shape: f32[32,5], index: 2, kind: input, shape index: {}]
  %s3 = inlined_call_operand.vmem [shape: f32[32,1], index: 3, kind: input, shape index: {}]
  %s4 = inlined_call_operand.vmem [shape: f32[32,1], index: 4, kind: input, shape index: {}]
  %s5 = inlined_call_operand.vmem [shape: f32[32,1], index: 5, kind: input, shape index: {}]
  %s6 = inlined_call_operand.vmem [shape: f32[3,32,32], index: 6, kind: input, shape index: {}]
  %s7 = inlined_call_operand.vmem [shape: f32[32,1], index: 7, kind: input, shape index: {}]
  %s8 = inlined_call_operand.vmem [shape: f32[3,32,32], index: 8, kind: input, shape index: {}]
  %s9 = inlined_call_operand.vmem [shape: f32[32,1], index: 9, kind: input, shape index: {}]
  %s10 = inlined_call_operand.vmem [shape: f32[1,32], index: 10, kind: input, shape index: {}]
  %s11 = inlined_call_operand.vmem [shape: f32[1,32], index: 11, kind: input, shape index: {}]
  %s12 = inlined_call_operand.vmem [shape: f32[32,64], index: 12, kind: input, shape index: {}]
  %s13 = inlined_call_operand.vmem [shape: f32[1,64], index: 13, kind: input, shape index: {}]
  %s14 = inlined_call_operand.vmem [shape: f32[2,32,64], index: 14, kind: output, shape index: {}]
  %s15 = sld [smem:[#allocation0]]
  $region89: #{forward.2} parent=0
    _
  %s17 = ssub.s32 1, %s15
  %s18 = scalar_select 0, %s17, %s15
  loop: start=0, step=1, limit=4
  $region2: #{forward.2} parent=0 // loop_pre_header
    _
  $region3: #{forward.2} parent=0 // loop_header
    %s20 = sphi 0, %s24
    %p21 = scmp.ge.s32.totalorder %s20, 4
    %s30 = sphi 0, %s32
    %s33 = sphi 0, %s30
    %s34 = sphi 0, %s33
    %s50 = sphi 0, %s34
    %s54 = sphi 0, %s54
    %s56 = sphi 0, %s54
    %s57 = sphi 0, %s56
    %s71 = sphi 0, %s57
    %s75 = sphi 0, %s75
    %s77 = sphi 0, %s75
    %s78 = sphi 0, %s77
    %s92 = sphi 0, %s78
    %s96 = sphi 0, %s96
    %s98 = sphi 0, %s96
    %s99 = sphi 0, %s98
    %s113 = sphi 0, %s99
    %s117 = sphi 0, %s117
    %s119 = sphi 0, %s117
    %s120 = sphi 0, %s119
    %s134 = sphi 0, %s120
    %s138 = sphi 0, %s138
    %s140 = sphi 0, %s138
    %s141 = sphi 0, %s140
    %s155 = sphi 0, %s141
    %s159 = sphi 0, %s159
    %s161 = sphi 0, %s159
    %s162 = sphi 0, %s161
    %s176 = sphi 0, %s162
    %s180 = sphi 0, %s180
    %s182 = sphi 0, %s180
    %s183 = sphi 0, %s182
    %s197 = sphi 0, %s183
    %s201 = sphi 0, %s201
    %s203 = sphi 0, %s201
    %s204 = sphi 0, %s203
    %s218 = sphi 0, %s204
    %s222 = sphi 0, %s222
    %s224 = sphi 0, %s222
    %s225 = sphi 0, %s224
    %s239 = sphi 0, %s225
    %s243 = sphi 0, %s243
    %s245 = sphi 0, %s243
    %s246 = sphi 0, %s245
    %s260 = sphi 0, %s246
    %s264 = sphi 0, %s264
    %s266 = sphi 0, %s264
    %s267 = sphi 0, %s266
    %s281 = sphi 0, %s267
    %s285 = sphi 0, %s285
    %s287 = sphi 0, %s285
    %s288 = sphi 0, %s287
    %s302 = sphi 0, %s288
    %s306 = sphi 0, %s306
    %s308 = sphi 0, %s306
    %s309 = sphi 0, %s308
    %s323 = sphi 0, %s309
    %s329 = sphi 0, %s331
    %s332 = sphi 0, %s329
    %s333 = sphi 0, %s332
    %s349 = sphi 0, %s333
  $region4: #{forward.2} parent=0 // loop_header_branch
    %23 = sbr.rel (%p21) target = $region8
  $region5: #{forward.2} parent=0 // loop_body
    %s25 = ssub.s32 %s20, 1
    %s26 = ssub.s32 %s20, 2
    %s27 = sadd.s32 %s20, 1
    %s28 = ssub.s32 %s20, %s27
    %p29 = scmp.eq.s32.totalorder %s28, 0
    %s31 = sadd.s32 %s30, 1
    %s32 = scalar_select %p29, %s30, %s31
    %p35 = pneg %p29
    %p36 = scmp.eq.s32.totalorder %s20, 1
    %p37 = por %p35, %p36
    %p38 = scmp.ne.s32.totalorder %s30, %s33
    %p39 = scmp.eq.s32.totalorder %s20, 0
    %p40 = por %p38, %p39
    %p41 = scmp.ne.s32.totalorder %s30, %s33
    %p42 = scmp.eq.s32.totalorder %s25, 1
    %p43 = por %p41, %p42
    %p44 = scmp.ne.s32.totalorder %s33, %s34
    %p45 = scmp.eq.s32.totalorder %s25, 0
    %p46 = por %p44, %p45
    %p47 = scmp.ne.s32.totalorder %s33, %s34
    %p48 = scmp.eq.s32.totalorder %s26, 1
    %p49 = por %p47, %p48
    %p51 = scmp.ne.s32.totalorder %s34, %s50
    %p52 = scmp.eq.s32.totalorder %s26, 0
    %p53 = por %p51, %p52
    %s55 = sadd.s32 %s54, 1
    %p58 = scmp.eq.s32.totalorder %s20, 1
    %p59 = scmp.ne.s32.totalorder %s54, %s56
    %p60 = scmp.eq.s32.totalorder %s20, 0
    %p61 = por %p59, %p60
    %p62 = scmp.ne.s32.totalorder %s54, %s56
    %p63 = scmp.eq.s32.totalorder %s25, 1
    %p64 = por %p62, %p63
    %p65 = scmp.ne.s32.totalorder %s56, %s57
    %p66 = scmp.eq.s32.totalorder %s25, 0
    %p67 = por %p65, %p66
    %p68 = scmp.ne.s32.totalorder %s56, %s57
    %p69 = scmp.eq.s32.totalorder %s26, 1
    %p70 = por %p68, %p69
    %p72 = scmp.ne.s32.totalorder %s57, %s71
    %p73 = scmp.eq.s32.totalorder %s26, 0
    %p74 = por %p72, %p73
    %s76 = sadd.s32 %s75, 1
    %p79 = scmp.eq.s32.totalorder %s20, 1
    %p80 = scmp.ne.s32.totalorder %s75, %s77
    %p81 = scmp.eq.s32.totalorder %s20, 0
    %p82 = por %p80, %p81
    %p83 = scmp.ne.s32.totalorder %s75, %s77
    %p84 = scmp.eq.s32.totalorder %s25, 1
    %p85 = por %p83, %p84
    %p86 = scmp.ne.s32.totalorder %s77, %s78
    %p87 = scmp.eq.s32.totalorder %s25, 0
    %p88 = por %p86, %p87
    %p89 = scmp.ne.s32.totalorder %s77, %s78
    %p90 = scmp.eq.s32.totalorder %s26, 1
    %p91 = por %p89, %p90
    %p93 = scmp.ne.s32.totalorder %s78, %s92
    %p94 = scmp.eq.s32.totalorder %s26, 0
    %p95 = por %p93, %p94
    %s97 = sadd.s32 %s96, 1
    %p100 = scmp.eq.s32.totalorder %s20, 1
    %p101 = scmp.ne.s32.totalorder %s96, %s98
    %p102 = scmp.eq.s32.totalorder %s20, 0
    %p103 = por %p101, %p102
    %p104 = scmp.ne.s32.totalorder %s96, %s98
    %p105 = scmp.eq.s32.totalorder %s25, 1
    %p106 = por %p104, %p105
    %p107 = scmp.ne.s32.totalorder %s98, %s99
    %p108 = scmp.eq.s32.totalorder %s25, 0
    %p109 = por %p107, %p108
    %p110 = scmp.ne.s32.totalorder %s98, %s99
    %p111 = scmp.eq.s32.totalorder %s26, 1
    %p112 = por %p110, %p111
    %p114 = scmp.ne.s32.totalorder %s99, %s113
    %p115 = scmp.eq.s32.totalorder %s26, 0
    %p116 = por %p114, %p115
    %s118 = sadd.s32 %s117, 1
    %p121 = scmp.eq.s32.totalorder %s20, 1
    %p122 = scmp.ne.s32.totalorder %s117, %s119
    %p123 = scmp.eq.s32.totalorder %s20, 0
    %p124 = por %p122, %p123
    %p125 = scmp.ne.s32.totalorder %s117, %s119
    %p126 = scmp.eq.s32.totalorder %s25, 1
    %p127 = por %p125, %p126
    %p128 = scmp.ne.s32.totalorder %s119, %s120
    %p129 = scmp.eq.s32.totalorder %s25, 0
    %p130 = por %p128, %p129
    %p131 = scmp.ne.s32.totalorder %s119, %s120
    %p132 = scmp.eq.s32.totalorder %s26, 1
    %p133 = por %p131, %p132
    %p135 = scmp.ne.s32.totalorder %s120, %s134
    %p136 = scmp.eq.s32.totalorder %s26, 0
    %p137 = por %p135, %p136
    %s139 = sadd.s32 %s138, 1
    %p142 = scmp.eq.s32.totalorder %s20, 1
    %p143 = scmp.ne.s32.totalorder %s138, %s140
    %p144 = scmp.eq.s32.totalorder %s20, 0
    %p145 = por %p143, %p144
    %p146 = scmp.ne.s32.totalorder %s138, %s140
    %p147 = scmp.eq.s32.totalorder %s25, 1
    %p148 = por %p146, %p147
    %p149 = scmp.ne.s32.totalorder %s140, %s141
    %p150 = scmp.eq.s32.totalorder %s25, 0
    %p151 = por %p149, %p150
    %p152 = scmp.ne.s32.totalorder %s140, %s141
    %p153 = scmp.eq.s32.totalorder %s26, 1
    %p154 = por %p152, %p153
    %p156 = scmp.ne.s32.totalorder %s141, %s155
    %p157 = scmp.eq.s32.totalorder %s26, 0
    %p158 = por %p156, %p157
    %s160 = sadd.s32 %s159, 1
    %p163 = scmp.eq.s32.totalorder %s20, 1
    %p164 = scmp.ne.s32.totalorder %s159, %s161
    %p165 = scmp.eq.s32.totalorder %s20, 0
    %p166 = por %p164, %p165
    %p167 = scmp.ne.s32.totalorder %s159, %s161
    %p168 = scmp.eq.s32.totalorder %s25, 1
    %p169 = por %p167, %p168
    %p170 = scmp.ne.s32.totalorder %s161, %s162
    %p171 = scmp.eq.s32.totalorder %s25, 0
    %p172 = por %p170, %p171
    %p173 = scmp.ne.s32.totalorder %s161, %s162
    %p174 = scmp.eq.s32.totalorder %s26, 1
    %p175 = por %p173, %p174
    %p177 = scmp.ne.s32.totalorder %s162, %s176
    %p178 = scmp.eq.s32.totalorder %s26, 0
    %p179 = por %p177, %p178
    %s181 = sadd.s32 %s180, 1
    %p184 = scmp.eq.s32.totalorder %s20, 1
    %p185 = scmp.ne.s32.totalorder %s180, %s182
    %p186 = scmp.eq.s32.totalorder %s20, 0
    %p187 = por %p185, %p186
    %p188 = scmp.ne.s32.totalorder %s180, %s182
    %p189 = scmp.eq.s32.totalorder %s25, 1
    %p190 = por %p188, %p189
    %p191 = scmp.ne.s32.totalorder %s182, %s183
    %p192 = scmp.eq.s32.totalorder %s25, 0
    %p193 = por %p191, %p192
    %p194 = scmp.ne.s32.totalorder %s182, %s183
    %p195 = scmp.eq.s32.totalorder %s26, 1
    %p196 = por %p194, %p195
    %p198 = scmp.ne.s32.totalorder %s183, %s197
    %p199 = scmp.eq.s32.totalorder %s26, 0
    %p200 = por %p198, %p199
    %s202 = sadd.s32 %s201, 1
    %p205 = scmp.eq.s32.totalorder %s20, 1
    %p206 = scmp.ne.s32.totalorder %s201, %s203
    %p207 = scmp.eq.s32.totalorder %s20, 0
    %p208 = por %p206, %p207
    %p209 = scmp.ne.s32.totalorder %s201, %s203
    %p210 = scmp.eq.s32.totalorder %s25, 1
    %p211 = por %p209, %p210
    %p212 = scmp.ne.s32.totalorder %s203, %s204
    %p213 = scmp.eq.s32.totalorder %s25, 0
    %p214 = por %p212, %p213
    %p215 = scmp.ne.s32.totalorder %s203, %s204
    %p216 = scmp.eq.s32.totalorder %s26, 1
    %p217 = por %p215, %p216
    %p219 = scmp.ne.s32.totalorder %s204, %s218
    %p220 = scmp.eq.s32.totalorder %s26, 0
    %p221 = por %p219, %p220
    %s223 = sadd.s32 %s222, 1
    %p226 = scmp.eq.s32.totalorder %s20, 1
    %p227 = scmp.ne.s32.totalorder %s222, %s224
    %p228 = scmp.eq.s32.totalorder %s20, 0
    %p229 = por %p227, %p228
    %p230 = scmp.ne.s32.totalorder %s222, %s224
    %p231 = scmp.eq.s32.totalorder %s25, 1
    %p232 = por %p230, %p231
    %p233 = scmp.ne.s32.totalorder %s224, %s225
    %p234 = scmp.eq.s32.totalorder %s25, 0
    %p235 = por %p233, %p234
    %p236 = scmp.ne.s32.totalorder %s224, %s225
    %p237 = scmp.eq.s32.totalorder %s26, 1
    %p238 = por %p236, %p237
    %p240 = scmp.ne.s32.totalorder %s225, %s239
    %p241 = scmp.eq.s32.totalorder %s26, 0
    %p242 = por %p240, %p241
    %s244 = sadd.s32 %s243, 1
    %p247 = scmp.eq.s32.totalorder %s20, 1
    %p248 = scmp.ne.s32.totalorder %s243, %s245
    %p249 = scmp.eq.s32.totalorder %s20, 0
    %p250 = por %p248, %p249
    %p251 = scmp.ne.s32.totalorder %s243, %s245
    %p252 = scmp.eq.s32.totalorder %s25, 1
    %p253 = por %p251, %p252
    %p254 = scmp.ne.s32.totalorder %s245, %s246
    %p255 = scmp.eq.s32.totalorder %s25, 0
    %p256 = por %p254, %p255
    %p257 = scmp.ne.s32.totalorder %s245, %s246
    %p258 = scmp.eq.s32.totalorder %s26, 1
    %p259 = por %p257, %p258
    %p261 = scmp.ne.s32.totalorder %s246, %s260
    %p262 = scmp.eq.s32.totalorder %s26, 0
    %p263 = por %p261, %p262
    %s265 = sadd.s32 %s264, 1
    %p268 = scmp.eq.s32.totalorder %s20, 1
    %p269 = scmp.ne.s32.totalorder %s264, %s266
    %p270 = scmp.eq.s32.totalorder %s20, 0
    %p271 = por %p269, %p270
    %p272 = scmp.ne.s32.totalorder %s264, %s266
    %p273 = scmp.eq.s32.totalorder %s25, 1
    %p274 = por %p272, %p273
    %p275 = scmp.ne.s32.totalorder %s266, %s267
    %p276 = scmp.eq.s32.totalorder %s25, 0
    %p277 = por %p275, %p276
    %p278 = scmp.ne.s32.totalorder %s266, %s267
    %p279 = scmp.eq.s32.totalorder %s26, 1
    %p280 = por %p278, %p279
    %p282 = scmp.ne.s32.totalorder %s267, %s281
    %p283 = scmp.eq.s32.totalorder %s26, 0
    %p284 = por %p282, %p283
    %s286 = sadd.s32 %s285, 1
    %p289 = scmp.eq.s32.totalorder %s20, 1
    %p290 = scmp.ne.s32.totalorder %s285, %s287
    %p291 = scmp.eq.s32.totalorder %s20, 0
    %p292 = por %p290, %p291
    %p293 = scmp.ne.s32.totalorder %s285, %s287
    %p294 = scmp.eq.s32.totalorder %s25, 1
    %p295 = por %p293, %p294
    %p296 = scmp.ne.s32.totalorder %s287, %s288
    %p297 = scmp.eq.s32.totalorder %s25, 0
    %p298 = por %p296, %p297
    %p299 = scmp.ne.s32.totalorder %s287, %s288
    %p300 = scmp.eq.s32.totalorder %s26, 1
    %p301 = por %p299, %p300
    %p303 = scmp.ne.s32.totalorder %s288, %s302
    %p304 = scmp.eq.s32.totalorder %s26, 0
    %p305 = por %p303, %p304
    %s307 = sadd.s32 %s306, 1
    %p310 = scmp.eq.s32.totalorder %s20, 1
    %p311 = scmp.ne.s32.totalorder %s306, %s308
    %p312 = scmp.eq.s32.totalorder %s20, 0
    %p313 = por %p311, %p312
    %p314 = scmp.ne.s32.totalorder %s306, %s308
    %p315 = scmp.eq.s32.totalorder %s25, 1
    %p316 = por %p314, %p315
    %p317 = scmp.ne.s32.totalorder %s308, %s309
    %p318 = scmp.eq.s32.totalorder %s25, 0
    %p319 = por %p317, %p318
    %p320 = scmp.ne.s32.totalorder %s308, %s309
    %p321 = scmp.eq.s32.totalorder %s26, 1
    %p322 = por %p320, %p321
    %p324 = scmp.ne.s32.totalorder %s309, %s323
    %p325 = scmp.eq.s32.totalorder %s26, 0
    %p326 = por %p324, %p325
    %s327 = ssub.s32 %s20, %s27
    %p328 = scmp.eq.s32.totalorder %s327, 0
    %s330 = sadd.s32 %s329, 1
    %s331 = scalar_select %p328, %s329, %s330
    %p334 = pneg %p328
    %p335 = scmp.eq.s32.totalorder %s20, 1
    %p336 = por %p334, %p335
    %p337 = scmp.ne.s32.totalorder %s329, %s332
    %p338 = scmp.eq.s32.totalorder %s20, 0
    %p339 = por %p337, %p338
    %p340 = scmp.ne.s32.totalorder %s329, %s332
    %p341 = scmp.eq.s32.totalorder %s25, 1
    %p342 = por %p340, %p341
    %p343 = scmp.ne.s32.totalorder %s332, %s333
    %p344 = scmp.eq.s32.totalorder %s25, 0
    %p345 = por %p343, %p344
    %p346 = scmp.ne.s32.totalorder %s332, %s333
    %p347 = scmp.eq.s32.totalorder %s26, 1
    %p348 = por %p346, %p347
    %p350 = scmp.ne.s32.totalorder %s333, %s349
    %p351 = scmp.eq.s32.totalorder %s26, 0
    %p352 = por %p350, %p351
    %p353 = scmp.le.s32.totalorder 1, %s20
    %p354 = scmp.lt.s32.totalorder %s20, 3
    %p355 = pnand %p353, %p354
    %p356 = pneg %p355
    // Predicated region
    $region9: #{forward.2} parent=5 // pred_check
      _
    $region10: #{forward.2} parent=5 // pred_check_branch
      %358 = sbr.rel (%p355) target = $region12
    $region11: #{forward.2} parent=5 // pred_region
      %s359 = ssub.s32 %s20, 1
      // Predicated region
      $region13: #{forward.2} parent=11 // pred_check
        %p360 = pneg %p67
      $region14: #{forward.2} parent=11 // pred_check_branch
        %362 = sbr.rel (%p360) target = $region16
      $region15: #{forward.2} parent=11 // pred_region
        _
      $region16: #{forward.2} parent=11 // pred_fallthru
        _
      // Predicated region
      $region17: #{forward.2} parent=11 // pred_check
        %p363 = pneg %p88
      $region18: #{forward.2} parent=11 // pred_check_branch
        %365 = sbr.rel (%p363) target = $region20
      $region19: #{forward.2} parent=11 // pred_region
        _
      $region20: #{forward.2} parent=11 // pred_fallthru
        _
      // Predicated region
      $region21: #{forward.2} parent=11 // pred_check
        %p366 = pneg %p109
      $region22: #{forward.2} parent=11 // pred_check_branch
        %368 = sbr.rel (%p366) target = $region24
      $region23: #{forward.2} parent=11 // pred_region
        _
      $region24: #{forward.2} parent=11 // pred_fallthru
        _
      // Predicated region
      $region25: #{forward.2} parent=11 // pred_check
        %p369 = pneg %p130
      $region26: #{forward.2} parent=11 // pred_check_branch
        %371 = sbr.rel (%p369) target = $region28
      $region27: #{forward.2} parent=11 // pred_region
        _
      $region28: #{forward.2} parent=11 // pred_fallthru
        _
      // Predicated region
      $region29: #{forward.2} parent=11 // pred_check
        %p372 = pneg %p151
      $region30: #{forward.2} parent=11 // pred_check_branch
        %374 = sbr.rel (%p372) target = $region32
      $region31: #{forward.2} parent=11 // pred_region
        _
      $region32: #{forward.2} parent=11 // pred_fallthru
        _
      // Predicated region
      $region33: #{forward.2} parent=11 // pred_check
        %p375 = pneg %p172
      $region34: #{forward.2} parent=11 // pred_check_branch
        %377 = sbr.rel (%p375) target = $region36
      $region35: #{forward.2} parent=11 // pred_region
        _
      $region36: #{forward.2} parent=11 // pred_fallthru
        _
      // Predicated region
      $region37: #{forward.2} parent=11 // pred_check
        %p378 = pneg %p193
      $region38: #{forward.2} parent=11 // pred_check_branch
        %380 = sbr.rel (%p378) target = $region40
      $region39: #{forward.2} parent=11 // pred_region
        _
      $region40: #{forward.2} parent=11 // pred_fallthru
        _
      // Predicated region
      $region41: #{forward.2} parent=11 // pred_check
        %p381 = pneg %p214
      $region42: #{forward.2} parent=11 // pred_check_branch
        %383 = sbr.rel (%p381) target = $region44
      $region43: #{forward.2} parent=11 // pred_region
        _
      $region44: #{forward.2} parent=11 // pred_fallthru
        _
      // Predicated region
      $region45: #{forward.2} parent=11 // pred_check
        %p384 = pneg %p235
      $region46: #{forward.2} parent=11 // pred_check_branch
        %386 = sbr.rel (%p384) target = $region48
      $region47: #{forward.2} parent=11 // pred_region
        _
      $region48: #{forward.2} parent=11 // pred_fallthru
        _
      // Predicated region
      $region49: #{forward.2} parent=11 // pred_check
        %p387 = pneg %p256
      $region50: #{forward.2} parent=11 // pred_check_branch
        %389 = sbr.rel (%p387) target = $region52
      $region51: #{forward.2} parent=11 // pred_region
        _
      $region52: #{forward.2} parent=11 // pred_fallthru
        _
      // Predicated region
      $region53: #{forward.2} parent=11 // pred_check
        %p390 = pneg %p277
      $region54: #{forward.2} parent=11 // pred_check_branch
        %392 = sbr.rel (%p390) target = $region56
      $region55: #{forward.2} parent=11 // pred_region
        _
      $region56: #{forward.2} parent=11 // pred_fallthru
        _
      // Predicated region
      $region57: #{forward.2} parent=11 // pred_check
        %p393 = pneg %p298
      $region58: #{forward.2} parent=11 // pred_check_branch
        %395 = sbr.rel (%p393) target = $region60
      $region59: #{forward.2} parent=11 // pred_region
        _
      $region60: #{forward.2} parent=11 // pred_fallthru
        _
      // Predicated region
      $region61: #{forward.2} parent=11 // pred_check
        %p396 = pneg %p319
      $region62: #{forward.2} parent=11 // pred_check_branch
        %398 = sbr.rel (%p396) target = $region64
      $region63: #{forward.2} parent=11 // pred_region
        _
      $region64: #{forward.2} parent=11 // pred_fallthru
        _
    $region12: #{forward.2} parent=5 // pred_fallthru
      _
    %p399 = scmp.lt.s32.totalorder %s20, 2
    // Predicated region
    $region65: #{forward.2} parent=5 // pred_check
      %p400 = pneg %p399
    $region66: #{forward.2} parent=5 // pred_check_branch
      %402 = sbr.rel (%p400) target = $region68
    $region67: #{forward.2} parent=5 // pred_region
      // Predicated region
      $region69: #{forward.2} parent=67 // pred_check
        %p403 = pneg %p40
      $region70: #{forward.2} parent=67 // pred_check_branch
        %405 = sbr.rel (%p403) target = $region72
      $region71: #{forward.2} parent=67 // pred_region
        %p406 = scmp.lt.s32.totalorder %s20, 1
        %s407 = scalar_select %p406, %s20, 1
        %s408 = smul.addr %s407, 8
        %s409 = scalar_lea.vmem %s0, %s408
      $region72: #{forward.2} parent=67 // pred_fallthru
        _
    $region68: #{forward.2} parent=5 // pred_fallthru
      _
    %p410 = scmp.le.s32.totalorder 1, %s20
    %p411 = scmp.lt.s32.totalorder %s20, 3
    %p412 = pnand %p410, %p411
    %p413 = pneg %p412
    // Predicated region
    $region73: #{forward.2} parent=5 // pred_check
      _
    $region74: #{forward.2} parent=5 // pred_check_branch
      %415 = sbr.rel (%p412) target = $region76
    $region75: #{forward.2} parent=5 // pred_region
      %s416 = ssub.s32 %s20, 1
      %p417 = scmp.lt.s32.totalorder %s25, 1
      %s418 = scalar_select %p417, %s25, 1
      %s419 = smul.addr %s418, 8
      %s420 = scalar_lea.vmem %s0, %s419
      %p421 = pneg %p46
      %p422 = pneg %p43
      %p423 = pneg %p67
      %p424 = pneg %p64
      %p425 = pneg %p88
      %p426 = pneg %p85
      %p427 = pneg %p109
      %p428 = pneg %p106
      %p429 = pneg %p130
      %p430 = pneg %p127
      %p431 = pneg %p151
      %p432 = pneg %p148
      %p433 = pneg %p172
      %p434 = pneg %p169
      %p435 = pneg %p193
      %p436 = pneg %p190
      %p437 = pneg %p214
      %p438 = pneg %p211
      %p439 = pneg %p235
      %p440 = pneg %p232
      %p441 = pneg %p256
      %p442 = pneg %p253
      %p443 = pneg %p277
      %p444 = pneg %p274
      %p445 = pneg %p298
      %p446 = pneg %p295
      %p447 = pneg %p319
      %p448 = pneg %p316
      %p449 = pneg %p345
      %p450 = pneg %p342
      %p451 = scmp.lt.s32.totalorder %s25, 1
      %s452 = scalar_select %p451, %s25, 1
      %s453 = smul.addr %s452, 4
      %s454 = smul.addr %s453, 8
      %s455 = scalar_lea.vmem %s14, %s454
      %p456 = scmp.lt.s32.totalorder %s25, 1
      %s457 = scalar_select %p456, %s25, 1
      %s458 = smul.addr %s457, 8
      %s459 = scalar_lea.vmem %s0, %s458
      %p460 = scmp.lt.s32.totalorder %s25, 1
      %s461 = scalar_select %p460, %s25, 1
      %s462 = smul.addr %s461, 4
      %s463 = smul.addr %s462, 8
      %s464 = scalar_lea.vmem %s14, %s463
      %v465 = vld [vmem:[%s459] sm:$0x1f]
      %vm466 = vcmask 1044480
      %v467 = vsel %vm466, %v465, 0.0
      %468 = vadd.xlane.f32.xlu0 %v467
      %v469 = vpop.xlane.xlu0 %468
      %v470 = vrot.slane %v469, 4
      %v471 = vadd.f32 %v469, %v470
      %v472 = vrot.slane %v471, 2
      %v473 = vadd.f32 %v471, %v472
      %v474 = vrot.slane %v473, 1
      %v475 = vadd.f32 %v473, %v474
      %s476 = vtos %v475
      %v477 = vstv %s476
      %v478 = vrcp.pop 640.0
      %v479 = vmul.f32 %v477, %v478
      %v480 = vsub.f32 %v465, %v479
      %v481 = vmul.f32 %v480, %v480
      %v482 = vsel %vm466, %v481, 0.0
      %483 = vadd.xlane.f32.xlu0 %v482
      %v484 = vpop.xlane.xlu0 %483
      %v485 = vrot.slane %v484, 4
      %v486 = vadd.f32 %v484, %v485
      %v487 = vrot.slane %v486, 2
      %v488 = vadd.f32 %v486, %v487
      %v489 = vrot.slane %v488, 1
      %v490 = vadd.f32 %v488, %v489
      %s491 = vtos %v490
      %v492 = vstv %s491
      %v493 = vmul.f32 %v492, %v478
      %v494 = vadd.f32 %v493, 1e-07
      %v495 = vrsqrt.pop %v494
      %v496 = vmul.f32 %v480, %v495
      %v497 = vld [vmem:[%s1] sm:$0xff]
      %v498 = vld [vmem:[%s1 + $0x8] sm:$0xff]
      %v499 = vld [vmem:[%s1 + $0x10] sm:$0xff]
      %v500 = vld [vmem:[%s1 + $0x18] sm:$0xff]
      %v501 = vld [vmem:[%s2] sm:$0xff]
      %v502 = vld [vmem:[%s2 + $0x8] sm:$0xff]
      %v503 = vld [vmem:[%s2 + $0x10] sm:$0xff]
      %v504 = vld [vmem:[%s2 + $0x18] sm:$0xff]
      %vm505 = vcmask 39936
      %v507 = vsel %vm505, %v501, 0
      %v510 = vsel %vm505, %v502, 0
      %v513 = vsel %vm505, %v503, 0
      %v516 = vsel %vm505, %v504, 0
      %v519 = vsel %vm466, %v496, 0
      %521 = vmatprep.subr.mxu0 0.0
      %522 = vmatpush1.msra.mxu0 %v519
      %523 = vmatprep.subr.mxu0 0.0
      %524 = vmatpush1.msra.mxu0 0.0
      %525 = vmatprep.subr.mxu0 0.0
      %526 = vmatpush1.msra.mxu0 0.0
      %527 = vmatprep.subr.mxu0 0.0
      %528 = vmatpush1.msra.mxu0 0.0
      %529 = vmatprep.subr.mxu0 0.0
      %530 = vmatpush1.msra.mxu0 0.0
      %531 = vmatprep.subr.mxu0 0.0
      %532 = vmatpush1.msra.mxu0 0.0
      %533 = vmatprep.subr.mxu0 0.0
      %534 = vmatpush1.msra.mxu0 0.0
      %535 = vmatprep.subr.mxu0 0.0
      %536 = vmatpush1.msra.mxu0 0.0
      %537 = vmatprep.subr.mxu0 0.0
      %538 = vmatpush1.msra.mxu0 0.0
      %539 = vmatprep.subr.mxu0 0.0
      %540 = vmatpush1.msra.mxu0 0.0
      %541 = vmatprep.subr.mxu0 0.0
      %542 = vmatpush1.msra.mxu0 0.0
      %543 = vmatprep.subr.mxu0 0.0
      %544 = vmatpush1.msra.mxu0 0.0
      %545 = vmatprep.subr.mxu0 0.0
      %546 = vmatpush1.msra.mxu0 0.0
      %547 = vmatprep.subr.mxu0 0.0
      %548 = vmatpush1.msra.mxu0 0.0
      %549 = vmatprep.subr.mxu0 0.0
      %550 = vmatpush1.msra.mxu0 0.0
      %551 = vmatprep.subr.mxu0 0.0
      %552 = vmatpush1.msra.mxu0 0.0
      %553 = vmatprep.subr.mxu0 0.0
      %554 = vmatpush1.msra.mxu0 0.0
      %555 = vmatprep.subr.mxu0 0.0
      %556 = vmatpush1.msra.mxu0 0.0
      %557 = vmatprep.subr.mxu0 0.0
      %558 = vmatpush1.msra.mxu0 0.0
      %559 = vmatprep.subr.mxu0 0.0
      %560 = vmatpush1.msra.mxu0 0.0
      %561 = vmatprep.subr.mxu0 0.0
      %562 = vmatpush1.msra.mxu0 0.0
      %563 = vmatprep.subr.mxu0 0.0
      %564 = vmatpush1.msra.mxu0 0.0
      %565 = vmatprep.subr.mxu0 0.0
      %566 = vmatpush1.msra.mxu0 0.0
      %567 = vmatprep.subr.mxu0 0.0
      %568 = vmatpush1.msra.mxu0 0.0
      %569 = vmatprep.subr.mxu0 0.0
      %570 = vmatpush1.msra.mxu0 0.0
      %571 = vmatprep.subr.mxu0 0.0
      %572 = vmatpush1.msra.mxu0 0.0
      %573 = vmatprep.subr.mxu0 0.0
      %574 = vmatpush1.msra.mxu0 0.0
      %575 = vmatprep.subr.mxu0 0.0
      %576 = vmatpush1.msra.mxu0 0.0
      %577 = vmatprep.subr.mxu0 0.0
      %578 = vmatpush1.msra.mxu0 0.0
      %579 = vmatprep.subr.mxu0 0.0
      %580 = vmatpush1.msra.mxu0 0.0
      %581 = vmatprep.subr.mxu0 0.0
      %582 = vmatpush1.msra.mxu0 0.0
      %583 = vmatprep.subr.mxu0 0.0
      %584 = vmatpush1.msra.mxu0 0.0
      %585 = vmatprep.mubr.f32.mxu0 0.0
      %586 = vmatmul.mubr.f32.gmra.mrb[0].mxu0 %v507
      %v587 = vpop.f32.mrb[0].mxu0
      %v588 = vadd.f32 0.0, %v587
      %v589 = vpop.f32.mrb[0].mxu0
      %590 = vmatprep.mubr.f32.mxu0 0.0
      %591 = vmatmul.mubr.f32.gmra.mrb[0].mxu0 %v510
      %v592 = vpop.f32.mrb[0].mxu0
      %v593 = vadd.f32 0.0, %v592
      %v594 = vpop.f32.mrb[0].mxu0
      %595 = vmatprep.mubr.f32.mxu0 0.0
      %596 = vmatmul.mubr.f32.gmra.mrb[0].mxu0 %v513
      %v597 = vpop.f32.mrb[0].mxu0
      %v598 = vadd.f32 0.0, %v597
      %v599 = vpop.f32.mrb[0].mxu0
      %600 = vmatprep.mubr.f32.mxu0 0.0
      %601 = vmatmul.mubr.f32.gmra.mrb[0].mxu0 %v516
      %v602 = vpop.f32.mrb[0].mxu0
      %v603 = vadd.f32 0.0, %v602
      %v604 = vpop.f32.mrb[0].mxu0
      %605 = vdwg.mxu0
      %610 = vrot.lane.b32.xlu0 %v588, 127
      %v611 = vpop.permute.xlu0 %610
      %612 = vrot.lane.b32.xlu0 %v593, 127
      %v613 = vpop.permute.xlu0 %612
      %614 = vrot.lane.b32.xlu0 %v598, 127
      %v615 = vpop.permute.xlu0 %614
      %616 = vrot.lane.b32.xlu0 %v603, 127
      %v617 = vpop.permute.xlu0 %616
      %vm622 = vcmask 1039360
      %v623 = vsel %vm622, %v611, 0.0
      %v624 = vsel %vm622, %v613, 0.0
      %v625 = vsel %vm622, %v615, 0.0
      %v626 = vsel %vm622, %v617, 0.0
      %v628 = vsel %vm505, %v497, 0
      %v631 = vsel %vm505, %v498, 0
      %v634 = vsel %vm505, %v499, 0
      %v637 = vsel %vm505, %v500, 0
      %639 = vmatprep.subr.mxu0 0.0
      %640 = vmatpush1.msra.mxu0 %v519
      %641 = vmatprep.subr.mxu0 0.0
      %642 = vmatpush1.msra.mxu0 0.0
      %643 = vmatprep.subr.mxu0 0.0
      %644 = vmatpush1.msra.mxu0 0.0
      %645 = vmatprep.subr.mxu0 0.0
      %646 = vmatpush1.msra.mxu0 0.0
      %647 = vmatprep.subr.mxu0 0.0
      %648 = vmatpush1.msra.mxu0 0.0
      %649 = vmatprep.subr.mxu0 0.0
      %650 = vmatpush1.msra.mxu0 0.0
      %651 = vmatprep.subr.mxu0 0.0
      %652 = vmatpush1.msra.mxu0 0.0
      %653 = vmatprep.subr.mxu0 0.0
      %654 = vmatpush1.msra.mxu0 0.0
      %655 = vmatprep.subr.mxu0 0.0
      %656 = vmatpush1.msra.mxu0 0.0
      %657 = vmatprep.subr.mxu0 0.0
      %658 = vmatpush1.msra.mxu0 0.0
      %659 = vmatprep.subr.mxu0 0.0
      %660 = vmatpush1.msra.mxu0 0.0
      %661 = vmatprep.subr.mxu0 0.0
      %662 = vmatpush1.msra.mxu0 0.0
      %663 = vmatprep.subr.mxu0 0.0
      %664 = vmatpush1.msra.mxu0 0.0
      %665 = vmatprep.subr.mxu0 0.0
      %666 = vmatpush1.msra.mxu0 0.0
      %667 = vmatprep.subr.mxu0 0.0
      %668 = vmatpush1.msra.mxu0 0.0
      %669 = vmatprep.subr.mxu0 0.0
      %670 = vmatpush1.msra.mxu0 0.0
      %671 = vmatprep.subr.mxu0 0.0
      %672 = vmatpush1.msra.mxu0 0.0
      %673 = vmatprep.subr.mxu0 0.0
      %674 = vmatpush1.msra.mxu0 0.0
      %675 = vmatprep.subr.mxu0 0.0
      %676 = vmatpush1.msra.mxu0 0.0
      %677 = vmatprep.subr.mxu0 0.0
      %678 = vmatpush1.msra.mxu0 0.0
      %679 = vmatprep.subr.mxu0 0.0
      %680 = vmatpush1.msra.mxu0 0.0
      %681 = vmatprep.subr.mxu0 0.0
      %682 = vmatpush1.msra.mxu0 0.0
      %683 = vmatprep.subr.mxu0 0.0
      %684 = vmatpush1.msra.mxu0 0.0
      %685 = vmatprep.subr.mxu0 0.0
      %686 = vmatpush1.msra.mxu0 0.0
      %687 = vmatprep.subr.mxu0 0.0
      %688 = vmatpush1.msra.mxu0 0.0
      %689 = vmatprep.subr.mxu0 0.0
      %690 = vmatpush1.msra.mxu0 0.0
      %691 = vmatprep.subr.mxu0 0.0
      %692 = vmatpush1.msra.mxu0 0.0
      %693 = vmatprep.subr.mxu0 0.0
      %694 = vmatpush1.msra.mxu0 0.0
      %695 = vmatprep.subr.mxu0 0.0
      %696 = vmatpush1.msra.mxu0 0.0
      %697 = vmatprep.subr.mxu0 0.0
      %698 = vmatpush1.msra.mxu0 0.0
      %699 = vmatprep.subr.mxu0 0.0
      %700 = vmatpush1.msra.mxu0 0.0
      %701 = vmatprep.subr.mxu0 0.0
      %702 = vmatpush1.msra.mxu0 0.0
      %703 = vmatprep.mubr.f32.mxu0 0.0
      %704 = vmatmul.mubr.f32.gmra.mrb[0].mxu0 %v628
      %v705 = vpop.f32.mrb[0].mxu0
      %v706 = vadd.f32 %v623, %v705
      %v707 = vpop.f32.mrb[0].mxu0
      %708 = vmatprep.mubr.f32.mxu0 0.0
      %709 = vmatmul.mubr.f32.gmra.mrb[0].mxu0 %v631
      %v710 = vpop.f32.mrb[0].mxu0
      %v711 = vadd.f32 %v624, %v710
      %v712 = vpop.f32.mrb[0].mxu0
      %713 = vmatprep.mubr.f32.mxu0 0.0
      %714 = vmatmul.mubr.f32.gmra.mrb[0].mxu0 %v634
      %v715 = vpop.f32.mrb[0].mxu0
      %v716 = vadd.f32 %v625, %v715
      %v717 = vpop.f32.mrb[0].mxu0
      %718 = vmatprep.mubr.f32.mxu0 0.0
      %719 = vmatmul.mubr.f32.gmra.mrb[0].mxu0 %v637
      %v720 = vpop.f32.mrb[0].mxu0
      %v721 = vadd.f32 %v626, %v720
      %v722 = vpop.f32.mrb[0].mxu0
      %723 = vdwg.mxu0
      %v724 = vld [vmem:[%s3] sm:$0xff]
      %v725 = vld [vmem:[%s3 + $0x8] sm:$0xff]
      %v726 = vld [vmem:[%s3 + $0x10] sm:$0xff]
      %v727 = vld [vmem:[%s3 + $0x18] sm:$0xff]
      %729 = vset.pattern.permute.xlu0 0
      %730 = vperm.xlu0 %729, %v724
      %v731 = vpop.permute.xlu0 %730
      %734 = vset.pattern.permute.xlu0 0
      %735 = vperm.xlu0 %734, %v725
      %v736 = vpop.permute.xlu0 %735
      %739 = vset.pattern.permute.xlu0 0
      %740 = vperm.xlu0 %739, %v726
      %v741 = vpop.permute.xlu0 %740
      %744 = vset.pattern.permute.xlu0 0
      %745 = vperm.xlu0 %744, %v727
      %v746 = vpop.permute.xlu0 %745
      %v748 = vadd.f32 %v706, %v731
      %v749 = vadd.f32 %v711, %v736
      %v750 = vadd.f32 %v716, %v741
      %v751 = vadd.f32 %v721, %v746
      %v752 = vlaneseq
      %v753 = vand.u32 %v752, 127
      %vm754 = vcmp.lt.s32.totalorder %v753, 127
      %v755 = vsel %vm754, 1, 0
      %v756 = vcvt.s32.f32 %v755
      %v757 = vmul.f32 %v748, %v756
      %v758 = vmul.f32 %v749, %v756
      %v759 = vmul.f32 %v750, %v756
      %v760 = vmul.f32 %v751, %v756
      %761 = vadd.xlane.f32.xlu0 %v757
      %v762 = vpop.xlane.xlu0 %761
      %763 = vadd.xlane.f32.xlu0 %v758
      %v764 = vpop.xlane.xlu0 %763
      %765 = vadd.xlane.f32.xlu0 %v759
      %v766 = vpop.xlane.xlu0 %765
      %767 = vadd.xlane.f32.xlu0 %v760
      %v768 = vpop.xlane.xlu0 %767
      %v769 = vmul.f32 %v762, 0.007874016
      %v770 = vmul.f32 %v764, 0.007874016
      %v771 = vmul.f32 %v766, 0.007874016
      %v772 = vmul.f32 %v768, 0.007874016
      %v773 = vsub.f32 %v748, %v769
      %v774 = vsub.f32 %v749, %v770
      %v775 = vsub.f32 %v750, %v771
      %v776 = vsub.f32 %v751, %v772
      %v777 = vmul.f32 %v773, %v756
      %v778 = vmul.f32 %v774, %v756
      %v779 = vmul.f32 %v775, %v756
      %v780 = vmul.f32 %v776, %v756
      %v781 = vmul.f32 %v777, %v777
      %v782 = vmul.f32 %v778, %v778
      %v783 = vmul.f32 %v779, %v779
      %v784 = vmul.f32 %v780, %v780
      %785 = vadd.xlane.f32.xlu0 %v781
      %v786 = vpop.xlane.xlu0 %785
      %787 = vadd.xlane.f32.xlu0 %v782
      %v788 = vpop.xlane.xlu0 %787
      %789 = vadd.xlane.f32.xlu0 %v783
      %v790 = vpop.xlane.xlu0 %789
      %791 = vadd.xlane.f32.xlu0 %v784
      %v792 = vpop.xlane.xlu0 %791
      %v793 = vmul.f32 %v786, 0.007874016
      %v794 = vmul.f32 %v788, 0.007874016
      %v795 = vmul.f32 %v790, 0.007874016
      %v796 = vmul.f32 %v792, 0.007874016
      %v797 = vadd.f32 %v793, 1e-05
      %v798 = vadd.f32 %v794, 1e-05
      %v799 = vadd.f32 %v795, 1e-05
      %v800 = vadd.f32 %v796, 1e-05
      %v801 = vrsqrt.pop %v797
      %v802 = vrsqrt.pop %v798
      %v803 = vrsqrt.pop %v799
      %v804 = vrsqrt.pop %v800
      %v805 = vmul.f32 %v773, %v801
      %v806 = vmul.f32 %v774, %v802
      %v807 = vmul.f32 %v775, %v803
      %v808 = vmul.f32 %v776, %v804
      %v809 = vld [vmem:[%s4] sm:$0xff]
      %v810 = vld [vmem:[%s4 + $0x8] sm:$0xff]
      %v811 = vld [vmem:[%s4 + $0x10] sm:$0xff]
      %v812 = vld [vmem:[%s4 + $0x18] sm:$0xff]
      %814 = vset.pattern.permute.xlu0 0
      %815 = vperm.xlu0 %814, %v809
      %v816 = vpop.permute.xlu0 %815
      %819 = vset.pattern.permute.xlu0 0
      %820 = vperm.xlu0 %819, %v810
      %v821 = vpop.permute.xlu0 %820
      %824 = vset.pattern.permute.xlu0 0
      %825 = vperm.xlu0 %824, %v811
      %v826 = vpop.permute.xlu0 %825
      %829 = vset.pattern.permute.xlu0 0
      %830 = vperm.xlu0 %829, %v812
      %v831 = vpop.permute.xlu0 %830
      %v833 = vmul.f32 %v805, %v816
      %v834 = vmul.f32 %v806, %v821
      %v835 = vmul.f32 %v807, %v826
      %v836 = vmul.f32 %v808, %v831
      %v837 = vld [vmem:[%s5] sm:$0xff]
      %v838 = vld [vmem:[%s5 + $0x8] sm:$0xff]
      %v839 = vld [vmem:[%s5 + $0x10] sm:$0xff]
      %v840 = vld [vmem:[%s5 + $0x18] sm:$0xff]
      %842 = vset.pattern.permute.xlu0 0
      %843 = vperm.xlu0 %842, %v837
      %v844 = vpop.permute.xlu0 %843
      %847 = vset.pattern.permute.xlu0 0
      %848 = vperm.xlu0 %847, %v838
      %v849 = vpop.permute.xlu0 %848
      %852 = vset.pattern.permute.xlu0 0
      %853 = vperm.xlu0 %852, %v839
      %v854 = vpop.permute.xlu0 %853
      %857 = vset.pattern.permute.xlu0 0
      %858 = vperm.xlu0 %857, %v840
      %v859 = vpop.permute.xlu0 %858
      %v861 = vadd.f32 %v833, %v844
      %v862 = vadd.f32 %v834, %v849
      %v863 = vadd.f32 %v835, %v854
      %v864 = vadd.f32 %v836, %v859
      %v865 = vmul.f32 %v861, %v861
      %v866 = vmul.f32 %v862, %v862
      %v867 = vmul.f32 %v863, %v863
      %v868 = vmul.f32 %v864, %v864
      %v869 = vmul.f32 %v861, %v865
      %v870 = vmul.f32 %v862, %v866
      %v871 = vmul.f32 %v863, %v867
      %v872 = vmul.f32 %v864, %v868
      %v873 = vmul.f32 %v869, 0.044715
      %v874 = vmul.f32 %v870, 0.044715
      %v875 = vmul.f32 %v871, 0.044715
      %v876 = vmul.f32 %v872, 0.044715
      %v877 = vadd.f32 %v861, %v873
      %v878 = vadd.f32 %v862, %v874
      %v879 = vadd.f32 %v863, %v875
      %v880 = vadd.f32 %v864, %v876
      %v881 = vmul.f32 %v877, 0.7978846
      %v882 = vmul.f32 %v878, 0.7978846
      %v883 = vmul.f32 %v879, 0.7978846
      %v884 = vmul.f32 %v880, 0.7978846
      %v885 = vtanh.pop %v881
      %v886 = vtanh.pop %v882
      %v887 = vtanh.pop %v883
      %v888 = vtanh.pop %v884
      %v889 = vadd.f32 %v885, 1.0
      %v890 = vadd.f32 %v886, 1.0
      %v891 = vadd.f32 %v887, 1.0
      %v892 = vadd.f32 %v888, 1.0
      %v893 = vmul.f32 %v889, 0.5
      %v894 = vmul.f32 %v890, 0.5
      %v895 = vmul.f32 %v891, 0.5
      %v896 = vmul.f32 %v892, 0.5
      %v897 = vmul.f32 %v861, %v893
      %v898 = vmul.f32 %v862, %v894
      %v899 = vmul.f32 %v863, %v895
      %v900 = vmul.f32 %v864, %v896
      %v901 = vld [vmem:[%s7] sm:$0xff]
      %v902 = vld [vmem:[%s7 + $0x8] sm:$0xff]
      %v903 = vld [vmem:[%s7 + $0x10] sm:$0xff]
      %v904 = vld [vmem:[%s7 + $0x18] sm:$0xff]
      %v905 = vlaneseq
      %v906 = vshrl.u32 %v905, 7
      %v907 = vadd.s32 %v906, 8
      %v908 = vadd.s32 %v906, 16
      %v909 = vadd.s32 %v906, 24
      %v910 = vadd.s32 %v906, 32
      %v911 = vadd.s32 %v906, 40
      %v912 = vadd.s32 %v906, 48
      %v913 = vadd.s32 %v906, 56
      %v914 = vadd.s32 %v906, 64
      %v915 = vadd.s32 %v906, 72
      %v916 = vadd.s32 %v906, 80
      %v917 = vadd.s32 %v906, 88
      %v918 = vadd.s32 %v906, 96
      %v919 = vadd.s32 %v906, 104
      %v920 = vadd.s32 %v906, 112
      %v921 = vadd.s32 %v906, 120
      %v922 = vmul.u32 %v753, 2
      %vm923 = vcmp.eq.s32.totalorder %v906, %v922
      %vm924 = vcmp.eq.s32.totalorder %v907, %v922
      %vm925 = vcmp.eq.s32.totalorder %v908, %v922
      %vm926 = vcmp.eq.s32.totalorder %v909, %v922
      %vm927 = vcmp.eq.s32.totalorder %v910, %v922
      %vm928 = vcmp.eq.s32.totalorder %v911, %v922
      %vm929 = vcmp.eq.s32.totalorder %v912, %v922
      %vm930 = vcmp.eq.s32.totalorder %v913, %v922
      %vm931 = vcmp.eq.s32.totalorder %v914, %v922
      %vm932 = vcmp.eq.s32.totalorder %v915, %v922
      %vm933 = vcmp.eq.s32.totalorder %v916, %v922
      %vm934 = vcmp.eq.s32.totalorder %v917, %v922
      %vm935 = vcmp.eq.s32.totalorder %v918, %v922
      %vm936 = vcmp.eq.s32.totalorder %v919, %v922
      %vm937 = vcmp.eq.s32.totalorder %v920, %v922
      %vm938 = vcmp.eq.s32.totalorder %v921, %v922
      %vm939 = vcmp.lt.s32.totalorder %v753, 63
      %vm940 = vmand %vm923, %vm939
      %vm941 = vmand %vm924, %vm939
      %vm942 = vmand %vm925, %vm939
      %vm943 = vmand %vm926, %vm939
      %vm944 = vmand %vm927, %vm939
      %vm945 = vmand %vm928, %vm939
      %vm946 = vmand %vm929, %vm939
      %vm947 = vmand %vm930, %vm939
      %vm948 = vmand %vm931, %vm939
      %vm949 = vmand %vm932, %vm939
      %vm950 = vmand %vm933, %vm939
      %vm951 = vmand %vm934, %vm939
      %vm952 = vmand %vm935, %vm939
      %vm953 = vmand %vm936, %vm939
      %vm954 = vmand %vm937, %vm939
      %vm955 = vmand %vm938, %vm939
      %v956 = vsel %vm940, 1, 0
      %v957 = vsel %vm941, 1, 0
      %v958 = vsel %vm942, 1, 0
      %v959 = vsel %vm943, 1, 0
      %v960 = vsel %vm944, 1, 0
      %v961 = vsel %vm945, 1, 0
      %v962 = vsel %vm946, 1, 0
      %v963 = vsel %vm947, 1, 0
      %v964 = vsel %vm948, 1, 0
      %v965 = vsel %vm949, 1, 0
      %v966 = vsel %vm950, 1, 0
      %v967 = vsel %vm951, 1, 0
      %v968 = vsel %vm952, 1, 0
      %v969 = vsel %vm953, 1, 0
      %v970 = vsel %vm954, 1, 0
      %v971 = vsel %vm955, 1, 0
      %v972 = vcvt.s32.f32 %v956
      %v973 = vcvt.s32.f32 %v957
      %v974 = vcvt.s32.f32 %v958
      %v975 = vcvt.s32.f32 %v959
      %v976 = vcvt.s32.f32 %v960
      %v977 = vcvt.s32.f32 %v961
      %v978 = vcvt.s32.f32 %v962
      %v979 = vcvt.s32.f32 %v963
      %v980 = vcvt.s32.f32 %v964
      %v981 = vcvt.s32.f32 %v965
      %v982 = vcvt.s32.f32 %v966
      %v983 = vcvt.s32.f32 %v967
      %v984 = vcvt.s32.f32 %v968
      %v985 = vcvt.s32.f32 %v969
      %v986 = vcvt.s32.f32 %v970
      %v987 = vcvt.s32.f32 %v971
      %988 = vmatprep.subr.mxu0 0.0
      %989 = vmatpush1.msra.mxu0 %v972
      %990 = vmatprep.subr.mxu0 0.0
      %991 = vmatpush1.msra.mxu0 %v973
      %992 = vmatprep.subr.mxu0 0.0
      %993 = vmatpush1.msra.mxu0 %v974
      %994 = vmatprep.subr.mxu0 0.0
      %995 = vmatpush1.msra.mxu0 %v975
      %996 = vmatprep.subr.mxu0 0.0
      %997 = vmatpush1.msra.mxu0 %v976
      %998 = vmatprep.subr.mxu0 0.0
      %999 = vmatpush1.msra.mxu0 %v977
      %1000 = vmatprep.subr.mxu0 0.0
      %1001 = vmatpush1.msra.mxu0 %v978
      %1002 = vmatprep.subr.mxu0 0.0
      %1003 = vmatpush1.msra.mxu0 %v979
      %1004 = vmatprep.subr.mxu0 0.0
      %1005 = vmatpush1.msra.mxu0 %v980
      %1006 = vmatprep.subr.mxu0 0.0
      %1007 = vmatpush1.msra.mxu0 %v981
      %1008 = vmatprep.subr.mxu0 0.0
      %1009 = vmatpush1.msra.mxu0 %v982
      %1010 = vmatprep.subr.mxu0 0.0
      %1011 = vmatpush1.msra.mxu0 %v983
      %1012 = vmatprep.subr.mxu0 0.0
      %1013 = vmatpush1.msra.mxu0 %v984
      %1014 = vmatprep.subr.mxu0 0.0
      %1015 = vmatpush1.msra.mxu0 %v985
      %1016 = vmatprep.subr.mxu0 0.0
      %1017 = vmatpush1.msra.mxu0 %v986
      %1018 = vmatprep.subr.mxu0 0.0
      %1019 = vmatpush1.msra.mxu0 %v987
      %1020 = vmatprep.subr.mxu0 0.0
      %1021 = vmatpush1.msra.mxu0 0.0
      %1022 = vmatprep.subr.mxu0 0.0
      %1023 = vmatpush1.msra.mxu0 0.0
      %1024 = vmatprep.subr.mxu0 0.0
      %1025 = vmatpush1.msra.mxu0 0.0
      %1026 = vmatprep.subr.mxu0 0.0
      %1027 = vmatpush1.msra.mxu0 0.0
      %1028 = vmatprep.subr.mxu0 0.0
      %1029 = vmatpush1.msra.mxu0 0.0
      %1030 = vmatprep.subr.mxu0 0.0
      %1031 = vmatpush1.msra.mxu0 0.0
      %1032 = vmatprep.subr.mxu0 0.0
      %1033 = vmatpush1.msra.mxu0 0.0
      %1034 = vmatprep.subr.mxu0 0.0
      %1035 = vmatpush1.msra.mxu0 0.0
      %1036 = vmatprep.subr.mxu0 0.0
      %1037 = vmatpush1.msra.mxu0 0.0
      %1038 = vmatprep.subr.mxu0 0.0
      %1039 = vmatpush1.msra.mxu0 0.0
      %1040 = vmatprep.subr.mxu0 0.0
      %1041 = vmatpush1.msra.mxu0 0.0
      %1042 = vmatprep.subr.mxu0 0.0
      %1043 = vmatpush1.msra.mxu0 0.0
      %1044 = vmatprep.subr.mxu0 0.0
      %1045 = vmatpush1.msra.mxu0 0.0
      %1046 = vmatprep.subr.mxu0 0.0
      %1047 = vmatpush1.msra.mxu0 0.0
      %1048 = vmatprep.subr.mxu0 0.0
      %1049 = vmatpush1.msra.mxu0 0.0
      %1050 = vmatprep.subr.mxu0 0.0
      %1051 = vmatpush1.msra.mxu0 0.0
      %1052 = vmatprep.mubr.f32.mxu0 0.0
      %1053 = vmatmul.mubr.f32.gmra.mrb[0].mxu0 %v897
      %v1054 = vpop.f32.mrb[0].mxu0
      %v1055 = vadd.f32 0.0, %v1054
      %v1056 = vpop.f32.mrb[0].mxu0
      %1057 = vmatprep.mubr.f32.mxu0 0.0
      %1058 = vmatmul.mubr.f32.gmra.mrb[0].mxu0 %v898
      %v1059 = vpop.f32.mrb[0].mxu0
      %v1060 = vadd.f32 0.0, %v1059
      %v1061 = vpop.f32.mrb[0].mxu0
      %1062 = vmatprep.mubr.f32.mxu0 0.0
      %1063 = vmatmul.mubr.f32.gmra.mrb[0].mxu0 %v899
      %v1064 = vpop.f32.mrb[0].mxu0
      %v1065 = vadd.f32 0.0, %v1064
      %v1066 = vpop.f32.mrb[0].mxu0
      %1067 = vmatprep.mubr.f32.mxu0 0.0
      %1068 = vmatmul.mubr.f32.gmra.mrb[0].mxu0 %v900
      %v1069 = vpop.f32.mrb[0].mxu0
      %v1070 = vadd.f32 0.0, %v1069
      %v1071 = vpop.f32.mrb[0].mxu0
      %1072 = vdwg.mxu0
      %v1073 = vld [vmem:[%s6] sm:$0xff]
      %v1074 = vld [vmem:[%s6 + $0x8] sm:$0xff]
      %v1075 = vld [vmem:[%s6 + $0x10] sm:$0xff]
      %v1076 = vld [vmem:[%s6 + $0x18] sm:$0xff]
      %v1077 = vadd.s32 %v922, 1
      %vm1078 = vcmp.eq.s32.totalorder %v906, %v1077
      %vm1079 = vcmp.eq.s32.totalorder %v907, %v1077
      %vm1080 = vcmp.eq.s32.totalorder %v908, %v1077
      %vm1081 = vcmp.eq.s32.totalorder %v909, %v1077
      %vm1082 = vcmp.eq.s32.totalorder %v910, %v1077
      %vm1083 = vcmp.eq.s32.totalorder %v911, %v1077
      %vm1084 = vcmp.eq.s32.totalorder %v912, %v1077
      %vm1085 = vcmp.eq.s32.totalorder %v913, %v1077
      %vm1086 = vcmp.eq.s32.totalorder %v914, %v1077
      %vm1087 = vcmp.eq.s32.totalorder %v915, %v1077
      %vm1088 = vcmp.eq.s32.totalorder %v916, %v1077
      %vm1089 = vcmp.eq.s32.totalorder %v917, %v1077
      %vm1090 = vcmp.eq.s32.totalorder %v918, %v1077
      %vm1091 = vcmp.eq.s32.totalorder %v919, %v1077
      %vm1092 = vcmp.eq.s32.totalorder %v920, %v1077
      %vm1093 = vcmp.eq.s32.totalorder %v921, %v1077
      %vm1094 = vmand %vm1078, %vm939
      %vm1095 = vmand %vm1079, %vm939
      %vm1096 = vmand %vm1080, %vm939
      %vm1097 = vmand %vm1081, %vm939
      %vm1098 = vmand %vm1082, %vm939
      %vm1099 = vmand %vm1083, %vm939
      %vm1100 = vmand %vm1084, %vm939
      %vm1101 = vmand %vm1085, %vm939
      %vm1102 = vmand %vm1086, %vm939
      %vm1103 = vmand %vm1087, %vm939
      %vm1104 = vmand %vm1088, %vm939
      %vm1105 = vmand %vm1089, %vm939
      %vm1106 = vmand %vm1090, %vm939
      %vm1107 = vmand %vm1091, %vm939
      %vm1108 = vmand %vm1092, %vm939
      %vm1109 = vmand %vm1093, %vm939
      %v1110 = vsel %vm1094, 1, 0
      %v1111 = vsel %vm1095, 1, 0
      %v1112 = vsel %vm1096, 1, 0
      %v1113 = vsel %vm1097, 1, 0
      %v1114 = vsel %vm1098, 1, 0
      %v1115 = vsel %vm1099, 1, 0
      %v1116 = vsel %vm1100, 1, 0
      %v1117 = vsel %vm1101, 1, 0
      %v1118 = vsel %vm1102, 1, 0
      %v1119 = vsel %vm1103, 1, 0
      %v1120 = vsel %vm1104, 1, 0
      %v1121 = vsel %vm1105, 1, 0
      %v1122 = vsel %vm1106, 1, 0
      %v1123 = vsel %vm1107, 1, 0
      %v1124 = vsel %vm1108, 1, 0
      %v1125 = vsel %vm1109, 1, 0
      %v1126 = vcvt.s32.f32 %v1110
      %v1127 = vcvt.s32.f32 %v1111
      %v1128 = vcvt.s32.f32 %v1112
      %v1129 = vcvt.s32.f32 %v1113
      %v1130 = vcvt.s32.f32 %v1114
      %v1131 = vcvt.s32.f32 %v1115
      %v1132 = vcvt.s32.f32 %v1116
      %v1133 = vcvt.s32.f32 %v1117
      %v1134 = vcvt.s32.f32 %v1118
      %v1135 = vcvt.s32.f32 %v1119
      %v1136 = vcvt.s32.f32 %v1120
      %v1137 = vcvt.s32.f32 %v1121
      %v1138 = vcvt.s32.f32 %v1122
      %v1139 = vcvt.s32.f32 %v1123
      %v1140 = vcvt.s32.f32 %v1124
      %v1141 = vcvt.s32.f32 %v1125
      %1142 = vmatprep.subr.mxu0 0.0
      %1143 = vmatpush1.msra.mxu0 %v1126
      %1144 = vmatprep.subr.mxu0 0.0
      %1145 = vmatpush1.msra.mxu0 %v1127
      %1146 = vmatprep.subr.mxu0 0.0
      %1147 = vmatpush1.msra.mxu0 %v1128
      %1148 = vmatprep.subr.mxu0 0.0
      %1149 = vmatpush1.msra.mxu0 %v1129
      %1150 = vmatprep.subr.mxu0 0.0
      %1151 = vmatpush1.msra.mxu0 %v1130
      %1152 = vmatprep.subr.mxu0 0.0
      %1153 = vmatpush1.msra.mxu0 %v1131
      %1154 = vmatprep.subr.mxu0 0.0
      %1155 = vmatpush1.msra.mxu0 %v1132
      %1156 = vmatprep.subr.mxu0 0.0
      %1157 = vmatpush1.msra.mxu0 %v1133
      %1158 = vmatprep.subr.mxu0 0.0
      %1159 = vmatpush1.msra.mxu0 %v1134
      %1160 = vmatprep.subr.mxu0 0.0
      %1161 = vmatpush1.msra.mxu0 %v1135
      %1162 = vmatprep.subr.mxu0 0.0
      %1163 = vmatpush1.msra.mxu0 %v1136
      %1164 = vmatprep.subr.mxu0 0.0
      %1165 = vmatpush1.msra.mxu0 %v1137
      %1166 = vmatprep.subr.mxu0 0.0
      %1167 = vmatpush1.msra.mxu0 %v1138
      %1168 = vmatprep.subr.mxu0 0.0
      %1169 = vmatpush1.msra.mxu0 %v1139
      %1170 = vmatprep.subr.mxu0 0.0
      %1171 = vmatpush1.msra.mxu0 %v1140
      %1172 = vmatprep.subr.mxu0 0.0
      %1173 = vmatpush1.msra.mxu0 %v1141
      %1174 = vmatprep.subr.mxu0 0.0
      %1175 = vmatpush1.msra.mxu0 0.0
      %1176 = vmatprep.subr.mxu0 0.0
      %1177 = vmatpush1.msra.mxu0 0.0
      %1178 = vmatprep.subr.mxu0 0.0
      %1179 = vmatpush1.msra.mxu0 0.0
      %1180 = vmatprep.subr.mxu0 0.0
      %1181 = vmatpush1.msra.mxu0 0.0
      %1182 = vmatprep.subr.mxu0 0.0
      %1183 = vmatpush1.msra.mxu0 0.0
      %1184 = vmatprep.subr.mxu0 0.0
      %1185 = vmatpush1.msra.mxu0 0.0
      %1186 = vmatprep.subr.mxu0 0.0
      %1187 = vmatpush1.msra.mxu0 0.0
      %1188 = vmatprep.subr.mxu0 0.0
      %1189 = vmatpush1.msra.mxu0 0.0
      %1190 = vmatprep.subr.mxu0 0.0
      %1191 = vmatpush1.msra.mxu0 0.0
      %1192 = vmatprep.subr.mxu0 0.0
      %1193 = vmatpush1.msra.mxu0 0.0
      %1194 = vmatprep.subr.mxu0 0.0
      %1195 = vmatpush1.msra.mxu0 0.0
      %1196 = vmatprep.subr.mxu0 0.0
      %1197 = vmatpush1.msra.mxu0 0.0
      %1198 = vmatprep.subr.mxu0 0.0
      %1199 = vmatpush1.msra.mxu0 0.0
      %1200 = vmatprep.subr.mxu0 0.0
      %1201 = vmatpush1.msra.mxu0 0.0
      %1202 = vmatprep.subr.mxu0 0.0
      %1203 = vmatpush1.msra.mxu0 0.0
      %1204 = vmatprep.subr.mxu0 0.0
      %1205 = vmatpush1.msra.mxu0 0.0
      %1206 = vmatprep.mubr.f32.mxu0 0.0
      %1207 = vmatmul.mubr.f32.gmra.mrb[0].mxu0 %v897
      %v1208 = vpop.f32.mrb[0].mxu0
      %v1209 = vadd.f32 0.0, %v1208
      %v1210 = vpop.f32.mrb[0].mxu0
      %1211 = vmatprep.mubr.f32.mxu0 0.0
      %1212 = vmatmul.mubr.f32.gmra.mrb[0].mxu0 %v898
      %v1213 = vpop.f32.mrb[0].mxu0
      %v1214 = vadd.f32 0.0, %v1213
      %v1215 = vpop.f32.mrb[0].mxu0
      %1216 = vmatprep.mubr.f32.mxu0 0.0
      %1217 = vmatmul.mubr.f32.gmra.mrb[0].mxu0 %v899
      %v1218 = vpop.f32.mrb[0].mxu0
      %v1219 = vadd.f32 0.0, %v1218
      %v1220 = vpop.f32.mrb[0].mxu0
      %1221 = vmatprep.mubr.f32.mxu0 0.0
      %1222 = vmatmul.mubr.f32.gmra.mrb[0].mxu0 %v900
      %v1223 = vpop.f32.mrb[0].mxu0
      %v1224 = vadd.f32 0.0, %v1223
      %v1225 = vpop.f32.mrb[0].mxu0
      %1226 = vdwg.mxu0
      %s1227 = scalar_lea.vmem %s6, 32
      %v1228 = vld [vmem:[%s1227] sm:$0xff]
      %v1229 = vld [vmem:[%s1227 + $0x8] sm:$0xff]
      %v1230 = vld [vmem:[%s1227 + $0x10] sm:$0xff]
      %v1231 = vld [vmem:[%s1227 + $0x18] sm:$0xff]
      %vm1232 = vcmask 261120
      %v1234 = vsel %vm1232, %v1228, 0
      %v1237 = vsel %vm1232, %v1229, 0
      %v1240 = vsel %vm1232, %v1230, 0
      %v1243 = vsel %vm1232, %v1231, 0
      %1245 = vmatprep.subr.mxu0 0.0
      %1246 = vmatpush1.msra.mxu0 %v1209
      %1247 = vmatprep.subr.mxu0 0.0
      %1248 = vmatpush1.msra.mxu0 %v1214
      %1249 = vmatprep.subr.mxu0 0.0
      %1250 = vmatpush1.msra.mxu0 %v1219
      %1251 = vmatprep.subr.mxu0 0.0
      %1252 = vmatpush1.msra.mxu0 %v1224
      %1253 = vmatprep.subr.mxu0 0.0
      %1254 = vmatpush1.msra.mxu0 0.0
      %1255 = vmatprep.subr.mxu0 0.0
      %1256 = vmatpush1.msra.mxu0 0.0
      %1257 = vmatprep.subr.mxu0 0.0
      %1258 = vmatpush1.msra.mxu0 0.0
      %1259 = vmatprep.subr.mxu0 0.0
      %1260 = vmatpush1.msra.mxu0 0.0
      %1261 = vmatprep.subr.mxu0 0.0
      %1262 = vmatpush1.msra.mxu0 0.0
      %1263 = vmatprep.subr.mxu0 0.0
      %1264 = vmatpush1.msra.mxu0 0.0
      %1265 = vmatprep.subr.mxu0 0.0
      %1266 = vmatpush1.msra.mxu0 0.0
      %1267 = vmatprep.subr.mxu0 0.0
      %1268 = vmatpush1.msra.mxu0 0.0
      %1269 = vmatprep.subr.mxu0 0.0
      %1270 = vmatpush1.msra.mxu0 0.0
      %1271 = vmatprep.subr.mxu0 0.0
      %1272 = vmatpush1.msra.mxu0 0.0
      %1273 = vmatprep.subr.mxu0 0.0
      %1274 = vmatpush1.msra.mxu0 0.0
      %1275 = vmatprep.subr.mxu0 0.0
      %1276 = vmatpush1.msra.mxu0 0.0
      %1277 = vmatprep.subr.mxu0 0.0
      %1278 = vmatpush1.msra.mxu0 0.0
      %1279 = vmatprep.subr.mxu0 0.0
      %1280 = vmatpush1.msra.mxu0 0.0
      %1281 = vmatprep.subr.mxu0 0.0
      %1282 = vmatpush1.msra.mxu0 0.0
      %1283 = vmatprep.subr.mxu0 0.0
      %1284 = vmatpush1.msra.mxu0 0.0
      %1285 = vmatprep.subr.mxu0 0.0
      %1286 = vmatpush1.msra.mxu0 0.0
      %1287 = vmatprep.subr.mxu0 0.0
      %1288 = vmatpush1.msra.mxu0 0.0
      %1289 = vmatprep.subr.mxu0 0.0
      %1290 = vmatpush1.msra.mxu0 0.0
      %1291 = vmatprep.subr.mxu0 0.0
      %1292 = vmatpush1.msra.mxu0 0.0
      %1293 = vmatprep.subr.mxu0 0.0
      %1294 = vmatpush1.msra.mxu0 0.0
      %1295 = vmatprep.subr.mxu0 0.0
      %1296 = vmatpush1.msra.mxu0 0.0
      %1297 = vmatprep.subr.mxu0 0.0
      %1298 = vmatpush1.msra.mxu0 0.0
      %1299 = vmatprep.subr.mxu0 0.0
      %1300 = vmatpush1.msra.mxu0 0.0
      %1301 = vmatprep.subr.mxu0 0.0
      %1302 = vmatpush1.msra.mxu0 0.0
      %1303 = vmatprep.subr.mxu0 0.0
      %1304 = vmatpush1.msra.mxu0 0.0
      %1305 = vmatprep.subr.mxu0 0.0
      %1306 = vmatpush1.msra.mxu0 0.0
      %1307 = vmatprep.subr.mxu0 0.0
      %1308 = vmatpush1.msra.mxu0 0.0
      %1309 = vmatprep.mubr.f32.mxu0 0.0
      %1310 = vmatmul.mubr.f32.gmra.mrb[0].mxu0 %v1234
      %v1311 = vpop.f32.mrb[0].mxu0
      %v1312 = vadd.f32 0.0, %v1311
      %v1313 = vpop.f32.mrb[0].mxu0
      %1314 = vmatprep.mubr.f32.mxu0 0.0
      %1315 = vmatmul.mubr.f32.gmra.mrb[0].mxu0 %v1237
      %v1316 = vpop.f32.mrb[0].mxu0
      %v1317 = vadd.f32 0.0, %v1316
      %v1318 = vpop.f32.mrb[0].mxu0
      %1319 = vmatprep.mubr.f32.mxu0 0.0
      %1320 = vmatmul.mubr.f32.gmra.mrb[0].mxu0 %v1240
      %v1321 = vpop.f32.mrb[0].mxu0
      %v1322 = vadd.f32 0.0, %v1321
      %v1323 = vpop.f32.mrb[0].mxu0
      %1324 = vmatprep.mubr.f32.mxu0 0.0
      %1325 = vmatmul.mubr.f32.gmra.mrb[0].mxu0 %v1243
      %v1326 = vpop.f32.mrb[0].mxu0
      %v1327 = vadd.f32 0.0, %v1326
      %v1328 = vpop.f32.mrb[0].mxu0
      %1329 = vdwg.mxu0
      %v1331 = vsel %vm1232, %v1073, 0
      %v1334 = vsel %vm1232, %v1074, 0
      %v1337 = vsel %vm1232, %v1075, 0
      %v1340 = vsel %vm1232, %v1076, 0
      %1342 = vmatprep.subr.mxu0 0.0
      %1343 = vmatpush1.msra.mxu0 %v1055
      %1344 = vmatprep.subr.mxu0 0.0
      %1345 = vmatpush1.msra.mxu0 %v1060
      %1346 = vmatprep.subr.mxu0 0.0
      %1347 = vmatpush1.msra.mxu0 %v1065
      %1348 = vmatprep.subr.mxu0 0.0
      %1349 = vmatpush1.msra.mxu0 %v1070
      %1350 = vmatprep.subr.mxu0 0.0
      %1351 = vmatpush1.msra.mxu0 0.0
      %1352 = vmatprep.subr.mxu0 0.0
      %1353 = vmatpush1.msra.mxu0 0.0
      %1354 = vmatprep.subr.mxu0 0.0
      %1355 = vmatpush1.msra.mxu0 0.0
      %1356 = vmatprep.subr.mxu0 0.0
      %1357 = vmatpush1.msra.mxu0 0.0
      %1358 = vmatprep.subr.mxu0 0.0
      %1359 = vmatpush1.msra.mxu0 0.0
      %1360 = vmatprep.subr.mxu0 0.0
      %1361 = vmatpush1.msra.mxu0 0.0
      %1362 = vmatprep.subr.mxu0 0.0
      %1363 = vmatpush1.msra.mxu0 0.0
      %1364 = vmatprep.subr.mxu0 0.0
      %1365 = vmatpush1.msra.mxu0 0.0
      %1366 = vmatprep.subr.mxu0 0.0
      %1367 = vmatpush1.msra.mxu0 0.0
      %1368 = vmatprep.subr.mxu0 0.0
      %1369 = vmatpush1.msra.mxu0 0.0
      %1370 = vmatprep.subr.mxu0 0.0
      %1371 = vmatpush1.msra.mxu0 0.0
      %1372 = vmatprep.subr.mxu0 0.0
      %1373 = vmatpush1.msra.mxu0 0.0
      %1374 = vmatprep.subr.mxu0 0.0
      %1375 = vmatpush1.msra.mxu0 0.0
      %1376 = vmatprep.subr.mxu0 0.0
      %1377 = vmatpush1.msra.mxu0 0.0
      %1378 = vmatprep.subr.mxu0 0.0
      %1379 = vmatpush1.msra.mxu0 0.0
      %1380 = vmatprep.subr.mxu0 0.0
      %1381 = vmatpush1.msra.mxu0 0.0
      %1382 = vmatprep.subr.mxu0 0.0
      %1383 = vmatpush1.msra.mxu0 0.0
      %1384 = vmatprep.subr.mxu0 0.0
      %1385 = vmatpush1.msra.mxu0 0.0
      %1386 = vmatprep.subr.mxu0 0.0
      %1387 = vmatpush1.msra.mxu0 0.0
      %1388 = vmatprep.subr.mxu0 0.0
      %1389 = vmatpush1.msra.mxu0 0.0
      %1390 = vmatprep.subr.mxu0 0.0
      %1391 = vmatpush1.msra.mxu0 0.0
      %1392 = vmatprep.subr.mxu0 0.0
      %1393 = vmatpush1.msra.mxu0 0.0
      %1394 = vmatprep.subr.mxu0 0.0
      %1395 = vmatpush1.msra.mxu0 0.0
      %1396 = vmatprep.subr.mxu0 0.0
      %1397 = vmatpush1.msra.mxu0 0.0
      %1398 = vmatprep.subr.mxu0 0.0
      %1399 = vmatpush1.msra.mxu0 0.0
      %1400 = vmatprep.subr.mxu0 0.0
      %1401 = vmatpush1.msra.mxu0 0.0
      %1402 = vmatprep.subr.mxu0 0.0
      %1403 = vmatpush1.msra.mxu0 0.0
      %1404 = vmatprep.subr.mxu0 0.0
      %1405 = vmatpush1.msra.mxu0 0.0
      %1406 = vmatprep.mubr.f32.mxu0 0.0
      %1407 = vmatmul.mubr.f32.gmra.mrb[0].mxu0 %v1331
      %v1408 = vpop.f32.mrb[0].mxu0
      %v1409 = vadd.f32 %v1312, %v1408
      %v1410 = vpop.f32.mrb[0].mxu0
      %1411 = vmatprep.mubr.f32.mxu0 0.0
      %1412 = vmatmul.mubr.f32.gmra.mrb[0].mxu0 %v1334
      %v1413 = vpop.f32.mrb[0].mxu0
      %v1414 = vadd.f32 %v1317, %v1413
      %v1415 = vpop.f32.mrb[0].mxu0
      %1416 = vmatprep.mubr.f32.mxu0 0.0
      %1417 = vmatmul.mubr.f32.gmra.mrb[0].mxu0 %v1337
      %v1418 = vpop.f32.mrb[0].mxu0
      %v1419 = vadd.f32 %v1322, %v1418
      %v1420 = vpop.f32.mrb[0].mxu0
      %1421 = vmatprep.mubr.f32.mxu0 0.0
      %1422 = vmatmul.mubr.f32.gmra.mrb[0].mxu0 %v1340
      %v1423 = vpop.f32.mrb[0].mxu0
      %v1424 = vadd.f32 %v1327, %v1423
      %v1425 = vpop.f32.mrb[0].mxu0
      %1426 = vdwg.mxu0
      %v1427 = vadd.s32 %v922, 2
      %vm1428 = vcmp.eq.s32.totalorder %v906, %v1427
      %vm1429 = vcmp.eq.s32.totalorder %v907, %v1427
      %vm1430 = vcmp.eq.s32.totalorder %v908, %v1427
      %vm1431 = vcmp.eq.s32.totalorder %v909, %v1427
      %vm1432 = vcmp.eq.s32.totalorder %v910, %v1427
      %vm1433 = vcmp.eq.s32.totalorder %v911, %v1427
      %vm1434 = vcmp.eq.s32.totalorder %v912, %v1427
      %vm1435 = vcmp.eq.s32.totalorder %v913, %v1427
      %vm1436 = vcmp.eq.s32.totalorder %v914, %v1427
      %vm1437 = vcmp.eq.s32.totalorder %v915, %v1427
      %vm1438 = vcmp.eq.s32.totalorder %v916, %v1427
      %vm1439 = vcmp.eq.s32.totalorder %v917, %v1427
      %vm1440 = vcmp.eq.s32.totalorder %v918, %v1427
      %vm1441 = vcmp.eq.s32.totalorder %v919, %v1427
      %vm1442 = vcmp.eq.s32.totalorder %v920, %v1427
      %vm1443 = vcmp.eq.s32.totalorder %v921, %v1427
      %vm1444 = vmand %vm1428, %vm939
      %vm1445 = vmand %vm1429, %vm939
      %vm1446 = vmand %vm1430, %vm939
      %vm1447 = vmand %vm1431, %vm939
      %vm1448 = vmand %vm1432, %vm939
      %vm1449 = vmand %vm1433, %vm939
      %vm1450 = vmand %vm1434, %vm939
      %vm1451 = vmand %vm1435, %vm939
      %vm1452 = vmand %vm1436, %vm939
      %vm1453 = vmand %vm1437, %vm939
      %vm1454 = vmand %vm1438, %vm939
      %vm1455 = vmand %vm1439, %vm939
      %vm1456 = vmand %vm1440, %vm939
      %vm1457 = vmand %vm1441, %vm939
      %vm1458 = vmand %vm1442, %vm939
      %vm1459 = vmand %vm1443, %vm939
      %v1460 = vsel %vm1444, 1, 0
      %v1461 = vsel %vm1445, 1, 0
      %v1462 = vsel %vm1446, 1, 0
      %v1463 = vsel %vm1447, 1, 0
      %v1464 = vsel %vm1448, 1, 0
      %v1465 = vsel %vm1449, 1, 0
      %v1466 = vsel %vm1450, 1, 0
      %v1467 = vsel %vm1451, 1, 0
      %v1468 = vsel %vm1452, 1, 0
      %v1469 = vsel %vm1453, 1, 0
      %v1470 = vsel %vm1454, 1, 0
      %v1471 = vsel %vm1455, 1, 0
      %v1472 = vsel %vm1456, 1, 0
      %v1473 = vsel %vm1457, 1, 0
      %v1474 = vsel %vm1458, 1, 0
      %v1475 = vsel %vm1459, 1, 0
      %v1476 = vcvt.s32.f32 %v1460
      %v1477 = vcvt.s32.f32 %v1461
      %v1478 = vcvt.s32.f32 %v1462
      %v1479 = vcvt.s32.f32 %v1463
      %v1480 = vcvt.s32.f32 %v1464
      %v1481 = vcvt.s32.f32 %v1465
      %v1482 = vcvt.s32.f32 %v1466
      %v1483 = vcvt.s32.f32 %v1467
      %v1484 = vcvt.s32.f32 %v1468
      %v1485 = vcvt.s32.f32 %v1469
      %v1486 = vcvt.s32.f32 %v1470
      %v1487 = vcvt.s32.f32 %v1471
      %v1488 = vcvt.s32.f32 %v1472
      %v1489 = vcvt.s32.f32 %v1473
      %v1490 = vcvt.s32.f32 %v1474
      %v1491 = vcvt.s32.f32 %v1475
      %1492 = vmatprep.subr.mxu0 0.0
      %1493 = vmatpush1.msra.mxu0 %v1476
      %1494 = vmatprep.subr.mxu0 0.0
      %1495 = vmatpush1.msra.mxu0 %v1477
      %1496 = vmatprep.subr.mxu0 0.0
      %1497 = vmatpush1.msra.mxu0 %v1478
      %1498 = vmatprep.subr.mxu0 0.0
      %1499 = vmatpush1.msra.mxu0 %v1479
      %1500 = vmatprep.subr.mxu0 0.0
      %1501 = vmatpush1.msra.mxu0 %v1480
      %1502 = vmatprep.subr.mxu0 0.0
      %1503 = vmatpush1.msra.mxu0 %v1481
      %1504 = vmatprep.subr.mxu0 0.0
      %1505 = vmatpush1.msra.mxu0 %v1482
      %1506 = vmatprep.subr.mxu0 0.0
      %1507 = vmatpush1.msra.mxu0 %v1483
      %1508 = vmatprep.subr.mxu0 0.0
      %1509 = vmatpush1.msra.mxu0 %v1484
      %1510 = vmatprep.subr.mxu0 0.0
      %1511 = vmatpush1.msra.mxu0 %v1485
      %1512 = vmatprep.subr.mxu0 0.0
      %1513 = vmatpush1.msra.mxu0 %v1486
      %1514 = vmatprep.subr.mxu0 0.0
      %1515 = vmatpush1.msra.mxu0 %v1487
      %1516 = vmatprep.subr.mxu0 0.0
      %1517 = vmatpush1.msra.mxu0 %v1488
      %1518 = vmatprep.subr.mxu0 0.0
      %1519 = vmatpush1.msra.mxu0 %v1489
      %1520 = vmatprep.subr.mxu0 0.0
      %1521 = vmatpush1.msra.mxu0 %v1490
      %1522 = vmatprep.subr.mxu0 0.0
      %1523 = vmatpush1.msra.mxu0 %v1491
      %1524 = vmatprep.subr.mxu0 0.0
      %1525 = vmatpush1.msra.mxu0 0.0
      %1526 = vmatprep.subr.mxu0 0.0
      %1527 = vmatpush1.msra.mxu0 0.0
      %1528 = vmatprep.subr.mxu0 0.0
      %1529 = vmatpush1.msra.mxu0 0.0
      %1530 = vmatprep.subr.mxu0 0.0
      %1531 = vmatpush1.msra.mxu0 0.0
      %1532 = vmatprep.subr.mxu0 0.0
      %1533 = vmatpush1.msra.mxu0 0.0
      %1534 = vmatprep.subr.mxu0 0.0
      %1535 = vmatpush1.msra.mxu0 0.0
      %1536 = vmatprep.subr.mxu0 0.0
      %1537 = vmatpush1.msra.mxu0 0.0
      %1538 = vmatprep.subr.mxu0 0.0
      %1539 = vmatpush1.msra.mxu0 0.0
      %1540 = vmatprep.subr.mxu0 0.0
      %1541 = vmatpush1.msra.mxu0 0.0
      %1542 = vmatprep.subr.mxu0 0.0
      %1543 = vmatpush1.msra.mxu0 0.0
      %1544 = vmatprep.subr.mxu0 0.0
      %1545 = vmatpush1.msra.mxu0 0.0
      %1546 = vmatprep.subr.mxu0 0.0
      %1547 = vmatpush1.msra.mxu0 0.0
      %1548 = vmatprep.subr.mxu0 0.0
      %1549 = vmatpush1.msra.mxu0 0.0
      %1550 = vmatprep.subr.mxu0 0.0
      %1551 = vmatpush1.msra.mxu0 0.0
      %1552 = vmatprep.subr.mxu0 0.0
      %1553 = vmatpush1.msra.mxu0 0.0
      %1554 = vmatprep.subr.mxu0 0.0
      %1555 = vmatpush1.msra.mxu0 0.0
      %1556 = vmatprep.mubr.f32.mxu0 0.0
      %1557 = vmatmul.mubr.f32.gmra.mrb[0].mxu0 %v897
      %v1558 = vpop.f32.mrb[0].mxu0
      %v1559 = vadd.f32 0.0, %v1558
      %v1560 = vpop.f32.mrb[0].mxu0
      %1561 = vmatprep.mubr.f32.mxu0 0.0
      %1562 = vmatmul.mubr.f32.gmra.mrb[0].mxu0 %v898
      %v1563 = vpop.f32.mrb[0].mxu0
      %v1564 = vadd.f32 0.0, %v1563
      %v1565 = vpop.f32.mrb[0].mxu0
      %1566 = vmatprep.mubr.f32.mxu0 0.0
      %1567 = vmatmul.mubr.f32.gmra.mrb[0].mxu0 %v899
      %v1568 = vpop.f32.mrb[0].mxu0
      %v1569 = vadd.f32 0.0, %v1568
      %v1570 = vpop.f32.mrb[0].mxu0
      %1571 = vmatprep.mubr.f32.mxu0 0.0
      %1572 = vmatmul.mubr.f32.gmra.mrb[0].mxu0 %v900
      %v1573 = vpop.f32.mrb[0].mxu0
      %v1574 = vadd.f32 0.0, %v1573
      %v1575 = vpop.f32.mrb[0].mxu0
      %1576 = vdwg.mxu0
      %s1577 = scalar_lea.vmem %s6, 64
      %v1578 = vld [vmem:[%s1577] sm:$0xff]
      %v1579 = vld [vmem:[%s1577 + $0x8] sm:$0xff]
      %v1580 = vld [vmem:[%s1577 + $0x10] sm:$0xff]
      %v1581 = vld [vmem:[%s1577 + $0x18] sm:$0xff]
      %v1583 = vsel %vm1232, %v1578, 0
      %v1586 = vsel %vm1232, %v1579, 0
      %v1589 = vsel %vm1232, %v1580, 0
      %v1592 = vsel %vm1232, %v1581, 0
      %1594 = vmatprep.subr.mxu0 0.0
      %1595 = vmatpush1.msra.mxu0 %v1559
      %1596 = vmatprep.subr.mxu0 0.0
      %1597 = vmatpush1.msra.mxu0 %v1564
      %1598 = vmatprep.subr.mxu0 0.0
      %1599 = vmatpush1.msra.mxu0 %v1569
      %1600 = vmatprep.subr.mxu0 0.0
      %1601 = vmatpush1.msra.mxu0 %v1574
      %1602 = vmatprep.subr.mxu0 0.0
      %1603 = vmatpush1.msra.mxu0 0.0
      %1604 = vmatprep.subr.mxu0 0.0
      %1605 = vmatpush1.msra.mxu0 0.0
      %1606 = vmatprep.subr.mxu0 0.0
      %1607 = vmatpush1.msra.mxu0 0.0
      %1608 = vmatprep.subr.mxu0 0.0
      %1609 = vmatpush1.msra.mxu0 0.0
      %1610 = vmatprep.subr.mxu0 0.0
      %1611 = vmatpush1.msra.mxu0 0.0
      %1612 = vmatprep.subr.mxu0 0.0
      %1613 = vmatpush1.msra.mxu0 0.0
      %1614 = vmatprep.subr.mxu0 0.0
      %1615 = vmatpush1.msra.mxu0 0.0
      %1616 = vmatprep.subr.mxu0 0.0
      %1617 = vmatpush1.msra.mxu0 0.0
      %1618 = vmatprep.subr.mxu0 0.0
      %1619 = vmatpush1.msra.mxu0 0.0
      %1620 = vmatprep.subr.mxu0 0.0
      %1621 = vmatpush1.msra.mxu0 0.0
      %1622 = vmatprep.subr.mxu0 0.0
      %1623 = vmatpush1.msra.mxu0 0.0
      %1624 = vmatprep.subr.mxu0 0.0
      %1625 = vmatpush1.msra.mxu0 0.0
      %1626 = vmatprep.subr.mxu0 0.0
      %1627 = vmatpush1.msra.mxu0 0.0
      %1628 = vmatprep.subr.mxu0 0.0
      %1629 = vmatpush1.msra.mxu0 0.0
      %1630 = vmatprep.subr.mxu0 0.0
      %1631 = vmatpush1.msra.mxu0 0.0
      %1632 = vmatprep.subr.mxu0 0.0
      %1633 = vmatpush1.msra.mxu0 0.0
      %1634 = vmatprep.subr.mxu0 0.0
      %1635 = vmatpush1.msra.mxu0 0.0
      %1636 = vmatprep.subr.mxu0 0.0
      %1637 = vmatpush1.msra.mxu0 0.0
      %1638 = vmatprep.subr.mxu0 0.0
      %1639 = vmatpush1.msra.mxu0 0.0
      %1640 = vmatprep.subr.mxu0 0.0
      %1641 = vmatpush1.msra.mxu0 0.0
      %1642 = vmatprep.subr.mxu0 0.0
      %1643 = vmatpush1.msra.mxu0 0.0
      %1644 = vmatprep.subr.mxu0 0.0
      %1645 = vmatpush1.msra.mxu0 0.0
      %1646 = vmatprep.subr.mxu0 0.0
      %1647 = vmatpush1.msra.mxu0 0.0
      %1648 = vmatprep.subr.mxu0 0.0
      %1649 = vmatpush1.msra.mxu0 0.0
      %1650 = vmatprep.subr.mxu0 0.0
      %1651 = vmatpush1.msra.mxu0 0.0
      %1652 = vmatprep.subr.mxu0 0.0
      %1653 = vmatpush1.msra.mxu0 0.0
      %1654 = vmatprep.subr.mxu0 0.0
      %1655 = vmatpush1.msra.mxu0 0.0
      %1656 = vmatprep.subr.mxu0 0.0
      %1657 = vmatpush1.msra.mxu0 0.0
      %1658 = vmatprep.mubr.f32.mxu0 0.0
      %1659 = vmatmul.mubr.f32.gmra.mrb[0].mxu0 %v1583
      %v1660 = vpop.f32.mrb[0].mxu0
      %v1661 = vadd.f32 0.0, %v1660
      %v1662 = vpop.f32.mrb[0].mxu0
      %1663 = vmatprep.mubr.f32.mxu0 0.0
      %1664 = vmatmul.mubr.f32.gmra.mrb[0].mxu0 %v1586
      %v1665 = vpop.f32.mrb[0].mxu0
      %v1666 = vadd.f32 0.0, %v1665
      %v1667 = vpop.f32.mrb[0].mxu0
      %1668 = vmatprep.mubr.f32.mxu0 0.0
      %1669 = vmatmul.mubr.f32.gmra.mrb[0].mxu0 %v1589
      %v1670 = vpop.f32.mrb[0].mxu0
      %v1671 = vadd.f32 0.0, %v1670
      %v1672 = vpop.f32.mrb[0].mxu0
      %1673 = vmatprep.mubr.f32.mxu0 0.0
      %1674 = vmatmul.mubr.f32.gmra.mrb[0].mxu0 %v1592
      %v1675 = vpop.f32.mrb[0].mxu0
      %v1676 = vadd.f32 0.0, %v1675
      %v1677 = vpop.f32.mrb[0].mxu0
      %1678 = vdwg.mxu0
      %v1679 = vadd.f32 %v1409, %v1661
      %v1680 = vadd.f32 %v1414, %v1666
      %v1681 = vadd.f32 %v1419, %v1671
      %v1682 = vadd.f32 %v1424, %v1676
      %1684 = vset.pattern.permute.xlu0 0
      %1685 = vperm.xlu0 %1684, %v901
      %v1686 = vpop.permute.xlu0 %1685
      %1689 = vset.pattern.permute.xlu0 0
      %1690 = vperm.xlu0 %1689, %v902
      %v1691 = vpop.permute.xlu0 %1690
      %1694 = vset.pattern.permute.xlu0 0
      %1695 = vperm.xlu0 %1694, %v903
      %v1696 = vpop.permute.xlu0 %1695
      %1699 = vset.pattern.permute.xlu0 0
      %1700 = vperm.xlu0 %1699, %v904
      %v1701 = vpop.permute.xlu0 %1700
      %v1703 = vadd.f32 %v1679, %v1686
      %v1704 = vadd.f32 %v1680, %v1691
      %v1705 = vadd.f32 %v1681, %v1696
      %v1706 = vadd.f32 %v1682, %v1701
      %v1707 = vmul.f32 %v1703, %v1703
      %v1708 = vmul.f32 %v1704, %v1704
      %v1709 = vmul.f32 %v1705, %v1705
      %v1710 = vmul.f32 %v1706, %v1706
      %v1711 = vmul.f32 %v1703, %v1707
      %v1712 = vmul.f32 %v1704, %v1708
      %v1713 = vmul.f32 %v1705, %v1709
      %v1714 = vmul.f32 %v1706, %v1710
      %v1715 = vmul.f32 %v1711, 0.044715
      %v1716 = vmul.f32 %v1712, 0.044715
      %v1717 = vmul.f32 %v1713, 0.044715
      %v1718 = vmul.f32 %v1714, 0.044715
      %v1719 = vadd.f32 %v1703, %v1715
      %v1720 = vadd.f32 %v1704, %v1716
      %v1721 = vadd.f32 %v1705, %v1717
      %v1722 = vadd.f32 %v1706, %v1718
      %v1723 = vmul.f32 %v1719, 0.7978846
      %v1724 = vmul.f32 %v1720, 0.7978846
      %v1725 = vmul.f32 %v1721, 0.7978846
      %v1726 = vmul.f32 %v1722, 0.7978846
      %v1727 = vtanh.pop %v1723
      %v1728 = vtanh.pop %v1724
      %v1729 = vtanh.pop %v1725
      %v1730 = vtanh.pop %v1726
      %v1731 = vadd.f32 %v1727, 1.0
      %v1732 = vadd.f32 %v1728, 1.0
      %v1733 = vadd.f32 %v1729, 1.0
      %v1734 = vadd.f32 %v1730, 1.0
      %v1735 = vmul.f32 %v1731, 0.5
      %v1736 = vmul.f32 %v1732, 0.5
      %v1737 = vmul.f32 %v1733, 0.5
      %v1738 = vmul.f32 %v1734, 0.5
      %v1739 = vmul.f32 %v1703, %v1735
      %v1740 = vmul.f32 %v1704, %v1736
      %v1741 = vmul.f32 %v1705, %v1737
      %v1742 = vmul.f32 %v1706, %v1738
      %v1743 = vld [vmem:[%s9] sm:$0xff]
      %v1744 = vld [vmem:[%s9 + $0x8] sm:$0xff]
      %v1745 = vld [vmem:[%s9 + $0x10] sm:$0xff]
      %v1746 = vld [vmem:[%s9 + $0x18] sm:$0xff]
      %vm1747 = vcmp.lt.s32.totalorder %v753, 31
      %vm1748 = vmand %vm923, %vm1747
      %vm1749 = vmand %vm924, %vm1747
      %vm1750 = vmand %vm925, %vm1747
      %vm1751 = vmand %vm926, %vm1747
      %vm1752 = vmand %vm927, %vm1747
      %vm1753 = vmand %vm928, %vm1747
      %vm1754 = vmand %vm929, %vm1747
      %vm1755 = vmand %vm930, %vm1747
      %v1756 = vsel %vm1748, 1, 0
      %v1757 = vsel %vm1749, 1, 0
      %v1758 = vsel %vm1750, 1, 0
      %v1759 = vsel %vm1751, 1, 0
      %v1760 = vsel %vm1752, 1, 0
      %v1761 = vsel %vm1753, 1, 0
      %v1762 = vsel %vm1754, 1, 0
      %v1763 = vsel %vm1755, 1, 0
      %v1764 = vcvt.s32.f32 %v1756
      %v1765 = vcvt.s32.f32 %v1757
      %v1766 = vcvt.s32.f32 %v1758
      %v1767 = vcvt.s32.f32 %v1759
      %v1768 = vcvt.s32.f32 %v1760
      %v1769 = vcvt.s32.f32 %v1761
      %v1770 = vcvt.s32.f32 %v1762
      %v1771 = vcvt.s32.f32 %v1763
      %vm1772 = vcmask 523264
      %v1774 = vsel %vm1772, %v1739, 0
      %v1777 = vsel %vm1772, %v1740, 0
      %v1780 = vsel %vm1772, %v1741, 0
      %v1783 = vsel %vm1772, %v1742, 0
      %1785 = vmatprep.subr.mxu0 0.0
      %1786 = vmatpush1.msra.mxu0 %v1764
      %1787 = vmatprep.subr.mxu0 0.0
      %1788 = vmatpush1.msra.mxu0 %v1765
      %1789 = vmatprep.subr.mxu0 0.0
      %1790 = vmatpush1.msra.mxu0 %v1766
      %1791 = vmatprep.subr.mxu0 0.0
      %1792 = vmatpush1.msra.mxu0 %v1767
      %1793 = vmatprep.subr.mxu0 0.0
      %1794 = vmatpush1.msra.mxu0 %v1768
      %1795 = vmatprep.subr.mxu0 0.0
      %1796 = vmatpush1.msra.mxu0 %v1769
      %1797 = vmatprep.subr.mxu0 0.0
      %1798 = vmatpush1.msra.mxu0 %v1770
      %1799 = vmatprep.subr.mxu0 0.0
      %1800 = vmatpush1.msra.mxu0 %v1771
      %1801 = vmatprep.subr.mxu0 0.0
      %1802 = vmatpush1.msra.mxu0 0.0
      %1803 = vmatprep.subr.mxu0 0.0
      %1804 = vmatpush1.msra.mxu0 0.0
      %1805 = vmatprep.subr.mxu0 0.0
      %1806 = vmatpush1.msra.mxu0 0.0
      %1807 = vmatprep.subr.mxu0 0.0
      %1808 = vmatpush1.msra.mxu0 0.0
      %1809 = vmatprep.subr.mxu0 0.0
      %1810 = vmatpush1.msra.mxu0 0.0
      %1811 = vmatprep.subr.mxu0 0.0
      %1812 = vmatpush1.msra.mxu0 0.0
      %1813 = vmatprep.subr.mxu0 0.0
      %1814 = vmatpush1.msra.mxu0 0.0
      %1815 = vmatprep.subr.mxu0 0.0
      %1816 = vmatpush1.msra.mxu0 0.0
      %1817 = vmatprep.subr.mxu0 0.0
      %1818 = vmatpush1.msra.mxu0 0.0
      %1819 = vmatprep.subr.mxu0 0.0
      %1820 = vmatpush1.msra.mxu0 0.0
      %1821 = vmatprep.subr.mxu0 0.0
      %1822 = vmatpush1.msra.mxu0 0.0
      %1823 = vmatprep.subr.mxu0 0.0
      %1824 = vmatpush1.msra.mxu0 0.0
      %1825 = vmatprep.subr.mxu0 0.0
      %1826 = vmatpush1.msra.mxu0 0.0
      %1827 = vmatprep.subr.mxu0 0.0
      %1828 = vmatpush1.msra.mxu0 0.0
      %1829 = vmatprep.subr.mxu0 0.0
      %1830 = vmatpush1.msra.mxu0 0.0
      %1831 = vmatprep.subr.mxu0 0.0
      %1832 = vmatpush1.msra.mxu0 0.0
      %1833 = vmatprep.subr.mxu0 0.0
      %1834 = vmatpush1.msra.mxu0 0.0
      %1835 = vmatprep.subr.mxu0 0.0
      %1836 = vmatpush1.msra.mxu0 0.0
      %1837 = vmatprep.subr.mxu0 0.0
      %1838 = vmatpush1.msra.mxu0 0.0
      %1839 = vmatprep.subr.mxu0 0.0
      %1840 = vmatpush1.msra.mxu0 0.0
      %1841 = vmatprep.subr.mxu0 0.0
      %1842 = vmatpush1.msra.mxu0 0.0
      %1843 = vmatprep.subr.mxu0 0.0
      %1844 = vmatpush1.msra.mxu0 0.0
      %1845 = vmatprep.subr.mxu0 0.0
      %1846 = vmatpush1.msra.mxu0 0.0
      %1847 = vmatprep.subr.mxu0 0.0
      %1848 = vmatpush1.msra.mxu0 0.0
      %1849 = vmatprep.mubr.f32.mxu0 0.0
      %1850 = vmatmul.mubr.f32.gmra.mrb[0].mxu0 %v1774
      %v1851 = vpop.f32.mrb[0].mxu0
      %v1852 = vadd.f32 0.0, %v1851
      %v1853 = vpop.f32.mrb[0].mxu0
      %1854 = vmatprep.mubr.f32.mxu0 0.0
      %1855 = vmatmul.mubr.f32.gmra.mrb[0].mxu0 %v1777
      %v1856 = vpop.f32.mrb[0].mxu0
      %v1857 = vadd.f32 0.0, %v1856
      %v1858 = vpop.f32.mrb[0].mxu0
      %1859 = vmatprep.mubr.f32.mxu0 0.0
      %1860 = vmatmul.mubr.f32.gmra.mrb[0].mxu0 %v1780
      %v1861 = vpop.f32.mrb[0].mxu0
      %v1862 = vadd.f32 0.0, %v1861
      %v1863 = vpop.f32.mrb[0].mxu0
      %1864 = vmatprep.mubr.f32.mxu0 0.0
      %1865 = vmatmul.mubr.f32.gmra.mrb[0].mxu0 %v1783
      %v1866 = vpop.f32.mrb[0].mxu0
      %v1867 = vadd.f32 0.0, %v1866
      %v1868 = vpop.f32.mrb[0].mxu0
      %1869 = vdwg.mxu0
      %v1870 = vld [vmem:[%s8] sm:$0xff]
      %v1871 = vld [vmem:[%s8 + $0x8] sm:$0xff]
      %v1872 = vld [vmem:[%s8 + $0x10] sm:$0xff]
      %v1873 = vld [vmem:[%s8 + $0x18] sm:$0xff]
      %vm1874 = vmand %vm1078, %vm1747
      %vm1875 = vmand %vm1079, %vm1747
      %vm1876 = vmand %vm1080, %vm1747
      %vm1877 = vmand %vm1081, %vm1747
      %vm1878 = vmand %vm1082, %vm1747
      %vm1879 = vmand %vm1083, %vm1747
      %vm1880 = vmand %vm1084, %vm1747
      %vm1881 = vmand %vm1085, %vm1747
      %v1882 = vsel %vm1874, 1, 0
      %v1883 = vsel %vm1875, 1, 0
      %v1884 = vsel %vm1876, 1, 0
      %v1885 = vsel %vm1877, 1, 0
      %v1886 = vsel %vm1878, 1, 0
      %v1887 = vsel %vm1879, 1, 0
      %v1888 = vsel %vm1880, 1, 0
      %v1889 = vsel %vm1881, 1, 0
      %v1890 = vcvt.s32.f32 %v1882
      %v1891 = vcvt.s32.f32 %v1883
      %v1892 = vcvt.s32.f32 %v1884
      %v1893 = vcvt.s32.f32 %v1885
      %v1894 = vcvt.s32.f32 %v1886
      %v1895 = vcvt.s32.f32 %v1887
      %v1896 = vcvt.s32.f32 %v1888
      %v1897 = vcvt.s32.f32 %v1889
      %1898 = vmatprep.subr.mxu0 0.0
      %1899 = vmatpush1.msra.mxu0 %v1890
      %1900 = vmatprep.subr.mxu0 0.0
      %1901 = vmatpush1.msra.mxu0 %v1891
      %1902 = vmatprep.subr.mxu0 0.0
      %1903 = vmatpush1.msra.mxu0 %v1892
      %1904 = vmatprep.subr.mxu0 0.0
      %1905 = vmatpush1.msra.mxu0 %v1893
      %1906 = vmatprep.subr.mxu0 0.0
      %1907 = vmatpush1.msra.mxu0 %v1894
      %1908 = vmatprep.subr.mxu0 0.0
      %1909 = vmatpush1.msra.mxu0 %v1895
      %1910 = vmatprep.subr.mxu0 0.0
      %1911 = vmatpush1.msra.mxu0 %v1896
      %1912 = vmatprep.subr.mxu0 0.0
      %1913 = vmatpush1.msra.mxu0 %v1897
      %1914 = vmatprep.subr.mxu0 0.0
      %1915 = vmatpush1.msra.mxu0 0.0
      %1916 = vmatprep.subr.mxu0 0.0
      %1917 = vmatpush1.msra.mxu0 0.0
      %1918 = vmatprep.subr.mxu0 0.0
      %1919 = vmatpush1.msra.mxu0 0.0
      %1920 = vmatprep.subr.mxu0 0.0
      %1921 = vmatpush1.msra.mxu0 0.0
      %1922 = vmatprep.subr.mxu0 0.0
      %1923 = vmatpush1.msra.mxu0 0.0
      %1924 = vmatprep.subr.mxu0 0.0
      %1925 = vmatpush1.msra.mxu0 0.0
      %1926 = vmatprep.subr.mxu0 0.0
      %1927 = vmatpush1.msra.mxu0 0.0
      %1928 = vmatprep.subr.mxu0 0.0
      %1929 = vmatpush1.msra.mxu0 0.0
      %1930 = vmatprep.subr.mxu0 0.0
      %1931 = vmatpush1.msra.mxu0 0.0
      %1932 = vmatprep.subr.mxu0 0.0
      %1933 = vmatpush1.msra.mxu0 0.0
      %1934 = vmatprep.subr.mxu0 0.0
      %1935 = vmatpush1.msra.mxu0 0.0
      %1936 = vmatprep.subr.mxu0 0.0
      %1937 = vmatpush1.msra.mxu0 0.0
      %1938 = vmatprep.subr.mxu0 0.0
      %1939 = vmatpush1.msra.mxu0 0.0
      %1940 = vmatprep.subr.mxu0 0.0
      %1941 = vmatpush1.msra.mxu0 0.0
      %1942 = vmatprep.subr.mxu0 0.0
      %1943 = vmatpush1.msra.mxu0 0.0
      %1944 = vmatprep.subr.mxu0 0.0
      %1945 = vmatpush1.msra.mxu0 0.0
      %1946 = vmatprep.subr.mxu0 0.0
      %1947 = vmatpush1.msra.mxu0 0.0
      %1948 = vmatprep.subr.mxu0 0.0
      %1949 = vmatpush1.msra.mxu0 0.0
      %1950 = vmatprep.subr.mxu0 0.0
      %1951 = vmatpush1.msra.mxu0 0.0
      %1952 = vmatprep.subr.mxu0 0.0
      %1953 = vmatpush1.msra.mxu0 0.0
      %1954 = vmatprep.subr.mxu0 0.0
      %1955 = vmatpush1.msra.mxu0 0.0
      %1956 = vmatprep.subr.mxu0 0.0
      %1957 = vmatpush1.msra.mxu0 0.0
      %1958 = vmatprep.subr.mxu0 0.0
      %1959 = vmatpush1.msra.mxu0 0.0
      %1960 = vmatprep.subr.mxu0 0.0
      %1961 = vmatpush1.msra.mxu0 0.0
      %1962 = vmatprep.mubr.f32.mxu0 0.0
      %1963 = vmatmul.mubr.f32.gmra.mrb[0].mxu0 %v1774
      %v1964 = vpop.f32.mrb[0].mxu0
      %v1965 = vadd.f32 0.0, %v1964
      %v1966 = vpop.f32.mrb[0].mxu0
      %1967 = vmatprep.mubr.f32.mxu0 0.0
      %1968 = vmatmul.mubr.f32.gmra.mrb[0].mxu0 %v1777
      %v1969 = vpop.f32.mrb[0].mxu0
      %v1970 = vadd.f32 0.0, %v1969
      %v1971 = vpop.f32.mrb[0].mxu0
      %1972 = vmatprep.mubr.f32.mxu0 0.0
      %1973 = vmatmul.mubr.f32.gmra.mrb[0].mxu0 %v1780
      %v1974 = vpop.f32.mrb[0].mxu0
      %v1975 = vadd.f32 0.0, %v1974
      %v1976 = vpop.f32.mrb[0].mxu0
      %1977 = vmatprep.mubr.f32.mxu0 0.0
      %1978 = vmatmul.mubr.f32.gmra.mrb[0].mxu0 %v1783
      %v1979 = vpop.f32.mrb[0].mxu0
      %v1980 = vadd.f32 0.0, %v1979
      %v1981 = vpop.f32.mrb[0].mxu0
      %1982 = vdwg.mxu0
      %s1983 = scalar_lea.vmem %s8, 32
      %v1984 = vld [vmem:[%s1983] sm:$0xff]
      %v1985 = vld [vmem:[%s1983 + $0x8] sm:$0xff]
      %v1986 = vld [vmem:[%s1983 + $0x10] sm:$0xff]
      %v1987 = vld [vmem:[%s1983 + $0x18] sm:$0xff]
      %v1989 = vsel %vm1232, %v1984, 0
      %v1992 = vsel %vm1232, %v1985, 0
      %v1995 = vsel %vm1232, %v1986, 0
      %v1998 = vsel %vm1232, %v1987, 0
      %2000 = vmatprep.subr.mxu0 0.0
      %2001 = vmatpush1.msra.mxu0 %v1965
      %2002 = vmatprep.subr.mxu0 0.0
      %2003 = vmatpush1.msra.mxu0 %v1970
      %2004 = vmatprep.subr.mxu0 0.0
      %2005 = vmatpush1.msra.mxu0 %v1975
      %2006 = vmatprep.subr.mxu0 0.0
      %2007 = vmatpush1.msra.mxu0 %v1980
      %2008 = vmatprep.subr.mxu0 0.0
      %2009 = vmatpush1.msra.mxu0 0.0
      %2010 = vmatprep.subr.mxu0 0.0
      %2011 = vmatpush1.msra.mxu0 0.0
      %2012 = vmatprep.subr.mxu0 0.0
      %2013 = vmatpush1.msra.mxu0 0.0
      %2014 = vmatprep.subr.mxu0 0.0
      %2015 = vmatpush1.msra.mxu0 0.0
      %2016 = vmatprep.subr.mxu0 0.0
      %2017 = vmatpush1.msra.mxu0 0.0
      %2018 = vmatprep.subr.mxu0 0.0
      %2019 = vmatpush1.msra.mxu0 0.0
      %2020 = vmatprep.subr.mxu0 0.0
      %2021 = vmatpush1.msra.mxu0 0.0
      %2022 = vmatprep.subr.mxu0 0.0
      %2023 = vmatpush1.msra.mxu0 0.0
      %2024 = vmatprep.subr.mxu0 0.0
      %2025 = vmatpush1.msra.mxu0 0.0
      %2026 = vmatprep.subr.mxu0 0.0
      %2027 = vmatpush1.msra.mxu0 0.0
      %2028 = vmatprep.subr.mxu0 0.0
      %2029 = vmatpush1.msra.mxu0 0.0
      %2030 = vmatprep.subr.mxu0 0.0
      %2031 = vmatpush1.msra.mxu0 0.0
      %2032 = vmatprep.subr.mxu0 0.0
      %2033 = vmatpush1.msra.mxu0 0.0
      %2034 = vmatprep.subr.mxu0 0.0
      %2035 = vmatpush1.msra.mxu0 0.0
      %2036 = vmatprep.subr.mxu0 0.0
      %2037 = vmatpush1.msra.mxu0 0.0
      %2038 = vmatprep.subr.mxu0 0.0
      %2039 = vmatpush1.msra.mxu0 0.0
      %2040 = vmatprep.subr.mxu0 0.0
      %2041 = vmatpush1.msra.mxu0 0.0
      %2042 = vmatprep.subr.mxu0 0.0
      %2043 = vmatpush1.msra.mxu0 0.0
      %2044 = vmatprep.subr.mxu0 0.0
      %2045 = vmatpush1.msra.mxu0 0.0
      %2046 = vmatprep.subr.mxu0 0.0
      %2047 = vmatpush1.msra.mxu0 0.0
      %2048 = vmatprep.subr.mxu0 0.0
      %2049 = vmatpush1.msra.mxu0 0.0
      %2050 = vmatprep.subr.mxu0 0.0
      %2051 = vmatpush1.msra.mxu0 0.0
      %2052 = vmatprep.subr.mxu0 0.0
      %2053 = vmatpush1.msra.mxu0 0.0
      %2054 = vmatprep.subr.mxu0 0.0
      %2055 = vmatpush1.msra.mxu0 0.0
      %2056 = vmatprep.subr.mxu0 0.0
      %2057 = vmatpush1.msra.mxu0 0.0
      %2058 = vmatprep.subr.mxu0 0.0
      %2059 = vmatpush1.msra.mxu0 0.0
      %2060 = vmatprep.subr.mxu0 0.0
      %2061 = vmatpush1.msra.mxu0 0.0
      %2062 = vmatprep.subr.mxu0 0.0
      %2063 = vmatpush1.msra.mxu0 0.0
      %2064 = vmatprep.mubr.f32.mxu0 0.0
      %2065 = vmatmul.mubr.f32.gmra.mrb[0].mxu0 %v1989
      %v2066 = vpop.f32.mrb[0].mxu0
      %v2067 = vadd.f32 0.0, %v2066
      %v2068 = vpop.f32.mrb[0].mxu0
      %2069 = vmatprep.mubr.f32.mxu0 0.0
      %2070 = vmatmul.mubr.f32.gmra.mrb[0].mxu0 %v1992
      %v2071 = vpop.f32.mrb[0].mxu0
      %v2072 = vadd.f32 0.0, %v2071
      %v2073 = vpop.f32.mrb[0].mxu0
      %2074 = vmatprep.mubr.f32.mxu0 0.0
      %2075 = vmatmul.mubr.f32.gmra.mrb[0].mxu0 %v1995
      %v2076 = vpop.f32.mrb[0].mxu0
      %v2077 = vadd.f32 0.0, %v2076
      %v2078 = vpop.f32.mrb[0].mxu0
      %2079 = vmatprep.mubr.f32.mxu0 0.0
      %2080 = vmatmul.mubr.f32.gmra.mrb[0].mxu0 %v1998
      %v2081 = vpop.f32.mrb[0].mxu0
      %v2082 = vadd.f32 0.0, %v2081
      %v2083 = vpop.f32.mrb[0].mxu0
      %2084 = vdwg.mxu0
      %v2086 = vsel %vm1232, %v1870, 0
      %v2089 = vsel %vm1232, %v1871, 0
      %v2092 = vsel %vm1232, %v1872, 0
      %v2095 = vsel %vm1232, %v1873, 0
      %2097 = vmatprep.subr.mxu0 0.0
      %2098 = vmatpush1.msra.mxu0 %v1852
      %2099 = vmatprep.subr.mxu0 0.0
      %2100 = vmatpush1.msra.mxu0 %v1857
      %2101 = vmatprep.subr.mxu0 0.0
      %2102 = vmatpush1.msra.mxu0 %v1862
      %2103 = vmatprep.subr.mxu0 0.0
      %2104 = vmatpush1.msra.mxu0 %v1867
      %2105 = vmatprep.subr.mxu0 0.0
      %2106 = vmatpush1.msra.mxu0 0.0
      %2107 = vmatprep.subr.mxu0 0.0
      %2108 = vmatpush1.msra.mxu0 0.0
      %2109 = vmatprep.subr.mxu0 0.0
      %2110 = vmatpush1.msra.mxu0 0.0
      %2111 = vmatprep.subr.mxu0 0.0
      %2112 = vmatpush1.msra.mxu0 0.0
      %2113 = vmatprep.subr.mxu0 0.0
      %2114 = vmatpush1.msra.mxu0 0.0
      %2115 = vmatprep.subr.mxu0 0.0
      %2116 = vmatpush1.msra.mxu0 0.0
      %2117 = vmatprep.subr.mxu0 0.0
      %2118 = vmatpush1.msra.mxu0 0.0
      %2119 = vmatprep.subr.mxu0 0.0
      %2120 = vmatpush1.msra.mxu0 0.0
      %2121 = vmatprep.subr.mxu0 0.0
      %2122 = vmatpush1.msra.mxu0 0.0
      %2123 = vmatprep.subr.mxu0 0.0
      %2124 = vmatpush1.msra.mxu0 0.0
      %2125 = vmatprep.subr.mxu0 0.0
      %2126 = vmatpush1.msra.mxu0 0.0
      %2127 = vmatprep.subr.mxu0 0.0
      %2128 = vmatpush1.msra.mxu0 0.0
      %2129 = vmatprep.subr.mxu0 0.0
      %2130 = vmatpush1.msra.mxu0 0.0
      %2131 = vmatprep.subr.mxu0 0.0
      %2132 = vmatpush1.msra.mxu0 0.0
      %2133 = vmatprep.subr.mxu0 0.0
      %2134 = vmatpush1.msra.mxu0 0.0
      %2135 = vmatprep.subr.mxu0 0.0
      %2136 = vmatpush1.msra.mxu0 0.0
      %2137 = vmatprep.subr.mxu0 0.0
      %2138 = vmatpush1.msra.mxu0 0.0
      %2139 = vmatprep.subr.mxu0 0.0
      %2140 = vmatpush1.msra.mxu0 0.0
      %2141 = vmatprep.subr.mxu0 0.0
      %2142 = vmatpush1.msra.mxu0 0.0
      %2143 = vmatprep.subr.mxu0 0.0
      %2144 = vmatpush1.msra.mxu0 0.0
      %2145 = vmatprep.subr.mxu0 0.0
      %2146 = vmatpush1.msra.mxu0 0.0
      %2147 = vmatprep.subr.mxu0 0.0
      %2148 = vmatpush1.msra.mxu0 0.0
      %2149 = vmatprep.subr.mxu0 0.0
      %2150 = vmatpush1.msra.mxu0 0.0
      %2151 = vmatprep.subr.mxu0 0.0
      %2152 = vmatpush1.msra.mxu0 0.0
      %2153 = vmatprep.subr.mxu0 0.0
      %2154 = vmatpush1.msra.mxu0 0.0
      %2155 = vmatprep.subr.mxu0 0.0
      %2156 = vmatpush1.msra.mxu0 0.0
      %2157 = vmatprep.subr.mxu0 0.0
      %2158 = vmatpush1.msra.mxu0 0.0
      %2159 = vmatprep.subr.mxu0 0.0
      %2160 = vmatpush1.msra.mxu0 0.0
      %2161 = vmatprep.mubr.f32.mxu0 0.0
      %2162 = vmatmul.mubr.f32.gmra.mrb[0].mxu0 %v2086
      %v2163 = vpop.f32.mrb[0].mxu0
      %v2164 = vadd.f32 %v2067, %v2163
      %v2165 = vpop.f32.mrb[0].mxu0
      %2166 = vmatprep.mubr.f32.mxu0 0.0
      %2167 = vmatmul.mubr.f32.gmra.mrb[0].mxu0 %v2089
      %v2168 = vpop.f32.mrb[0].mxu0
      %v2169 = vadd.f32 %v2072, %v2168
      %v2170 = vpop.f32.mrb[0].mxu0
      %2171 = vmatprep.mubr.f32.mxu0 0.0
      %2172 = vmatmul.mubr.f32.gmra.mrb[0].mxu0 %v2092
      %v2173 = vpop.f32.mrb[0].mxu0
      %v2174 = vadd.f32 %v2077, %v2173
      %v2175 = vpop.f32.mrb[0].mxu0
      %2176 = vmatprep.mubr.f32.mxu0 0.0
      %2177 = vmatmul.mubr.f32.gmra.mrb[0].mxu0 %v2095
      %v2178 = vpop.f32.mrb[0].mxu0
      %v2179 = vadd.f32 %v2082, %v2178
      %v2180 = vpop.f32.mrb[0].mxu0
      %2181 = vdwg.mxu0
      %vm2182 = vmand %vm1428, %vm1747
      %vm2183 = vmand %vm1429, %vm1747
      %vm2184 = vmand %vm1430, %vm1747
      %vm2185 = vmand %vm1431, %vm1747
      %vm2186 = vmand %vm1432, %vm1747
      %vm2187 = vmand %vm1433, %vm1747
      %vm2188 = vmand %vm1434, %vm1747
      %vm2189 = vmand %vm1435, %vm1747
      %v2190 = vsel %vm2182, 1, 0
      %v2191 = vsel %vm2183, 1, 0
      %v2192 = vsel %vm2184, 1, 0
      %v2193 = vsel %vm2185, 1, 0
      %v2194 = vsel %vm2186, 1, 0
      %v2195 = vsel %vm2187, 1, 0
      %v2196 = vsel %vm2188, 1, 0
      %v2197 = vsel %vm2189, 1, 0
      %v2198 = vcvt.s32.f32 %v2190
      %v2199 = vcvt.s32.f32 %v2191
      %v2200 = vcvt.s32.f32 %v2192
      %v2201 = vcvt.s32.f32 %v2193
      %v2202 = vcvt.s32.f32 %v2194
      %v2203 = vcvt.s32.f32 %v2195
      %v2204 = vcvt.s32.f32 %v2196
      %v2205 = vcvt.s32.f32 %v2197
      %2206 = vmatprep.subr.mxu0 0.0
      %2207 = vmatpush1.msra.mxu0 %v2198
      %2208 = vmatprep.subr.mxu0 0.0
      %2209 = vmatpush1.msra.mxu0 %v2199
      %2210 = vmatprep.subr.mxu0 0.0
      %2211 = vmatpush1.msra.mxu0 %v2200
      %2212 = vmatprep.subr.mxu0 0.0
      %2213 = vmatpush1.msra.mxu0 %v2201
      %2214 = vmatprep.subr.mxu0 0.0
      %2215 = vmatpush1.msra.mxu0 %v2202
      %2216 = vmatprep.subr.mxu0 0.0
      %2217 = vmatpush1.msra.mxu0 %v2203
      %2218 = vmatprep.subr.mxu0 0.0
      %2219 = vmatpush1.msra.mxu0 %v2204
      %2220 = vmatprep.subr.mxu0 0.0
      %2221 = vmatpush1.msra.mxu0 %v2205
      %2222 = vmatprep.subr.mxu0 0.0
      %2223 = vmatpush1.msra.mxu0 0.0
      %2224 = vmatprep.subr.mxu0 0.0
      %2225 = vmatpush1.msra.mxu0 0.0
      %2226 = vmatprep.subr.mxu0 0.0
      %2227 = vmatpush1.msra.mxu0 0.0
      %2228 = vmatprep.subr.mxu0 0.0
      %2229 = vmatpush1.msra.mxu0 0.0
      %2230 = vmatprep.subr.mxu0 0.0
      %2231 = vmatpush1.msra.mxu0 0.0
      %2232 = vmatprep.subr.mxu0 0.0
      %2233 = vmatpush1.msra.mxu0 0.0
      %2234 = vmatprep.subr.mxu0 0.0
      %2235 = vmatpush1.msra.mxu0 0.0
      %2236 = vmatprep.subr.mxu0 0.0
      %2237 = vmatpush1.msra.mxu0 0.0
      %2238 = vmatprep.subr.mxu0 0.0
      %2239 = vmatpush1.msra.mxu0 0.0
      %2240 = vmatprep.subr.mxu0 0.0
      %2241 = vmatpush1.msra.mxu0 0.0
      %2242 = vmatprep.subr.mxu0 0.0
      %2243 = vmatpush1.msra.mxu0 0.0
      %2244 = vmatprep.subr.mxu0 0.0
      %2245 = vmatpush1.msra.mxu0 0.0
      %2246 = vmatprep.subr.mxu0 0.0
      %2247 = vmatpush1.msra.mxu0 0.0
      %2248 = vmatprep.subr.mxu0 0.0
      %2249 = vmatpush1.msra.mxu0 0.0
      %2250 = vmatprep.subr.mxu0 0.0
      %2251 = vmatpush1.msra.mxu0 0.0
      %2252 = vmatprep.subr.mxu0 0.0
      %2253 = vmatpush1.msra.mxu0 0.0
      %2254 = vmatprep.subr.mxu0 0.0
      %2255 = vmatpush1.msra.mxu0 0.0
      %2256 = vmatprep.subr.mxu0 0.0
      %2257 = vmatpush1.msra.mxu0 0.0
      %2258 = vmatprep.subr.mxu0 0.0
      %2259 = vmatpush1.msra.mxu0 0.0
      %2260 = vmatprep.subr.mxu0 0.0
      %2261 = vmatpush1.msra.mxu0 0.0
      %2262 = vmatprep.subr.mxu0 0.0
      %2263 = vmatpush1.msra.mxu0 0.0
      %2264 = vmatprep.subr.mxu0 0.0
      %2265 = vmatpush1.msra.mxu0 0.0
      %2266 = vmatprep.subr.mxu0 0.0
      %2267 = vmatpush1.msra.mxu0 0.0
      %2268 = vmatprep.subr.mxu0 0.0
      %2269 = vmatpush1.msra.mxu0 0.0
      %2270 = vmatprep.mubr.f32.mxu0 0.0
      %2271 = vmatmul.mubr.f32.gmra.mrb[0].mxu0 %v1774
      %v2272 = vpop.f32.mrb[0].mxu0
      %v2273 = vadd.f32 0.0, %v2272
      %v2274 = vpop.f32.mrb[0].mxu0
      %2275 = vmatprep.mubr.f32.mxu0 0.0
      %2276 = vmatmul.mubr.f32.gmra.mrb[0].mxu0 %v1777
      %v2277 = vpop.f32.mrb[0].mxu0
      %v2278 = vadd.f32 0.0, %v2277
      %v2279 = vpop.f32.mrb[0].mxu0
      %2280 = vmatprep.mubr.f32.mxu0 0.0
      %2281 = vmatmul.mubr.f32.gmra.mrb[0].mxu0 %v1780
      %v2282 = vpop.f32.mrb[0].mxu0
      %v2283 = vadd.f32 0.0, %v2282
      %v2284 = vpop.f32.mrb[0].mxu0
      %2285 = vmatprep.mubr.f32.mxu0 0.0
      %2286 = vmatmul.mubr.f32.gmra.mrb[0].mxu0 %v1783
      %v2287 = vpop.f32.mrb[0].mxu0
      %v2288 = vadd.f32 0.0, %v2287
      %v2289 = vpop.f32.mrb[0].mxu0
      %2290 = vdwg.mxu0
      %s2291 = scalar_lea.vmem %s8, 64
      %v2292 = vld [vmem:[%s2291] sm:$0xff]
      %v2293 = vld [vmem:[%s2291 + $0x8] sm:$0xff]
      %v2294 = vld [vmem:[%s2291 + $0x10] sm:$0xff]
      %v2295 = vld [vmem:[%s2291 + $0x18] sm:$0xff]
      %v2297 = vsel %vm1232, %v2292, 0
      %v2300 = vsel %vm1232, %v2293, 0
      %v2303 = vsel %vm1232, %v2294, 0
      %v2306 = vsel %vm1232, %v2295, 0
      %2308 = vmatprep.subr.mxu0 0.0
      %2309 = vmatpush1.msra.mxu0 %v2273
      %2310 = vmatprep.subr.mxu0 0.0
      %2311 = vmatpush1.msra.mxu0 %v2278
      %2312 = vmatprep.subr.mxu0 0.0
      %2313 = vmatpush1.msra.mxu0 %v2283
      %2314 = vmatprep.subr.mxu0 0.0
      %2315 = vmatpush1.msra.mxu0 %v2288
      %2316 = vmatprep.subr.mxu0 0.0
      %2317 = vmatpush1.msra.mxu0 0.0
      %2318 = vmatprep.subr.mxu0 0.0
      %2319 = vmatpush1.msra.mxu0 0.0
      %2320 = vmatprep.subr.mxu0 0.0
      %2321 = vmatpush1.msra.mxu0 0.0
      %2322 = vmatprep.subr.mxu0 0.0
      %2323 = vmatpush1.msra.mxu0 0.0
      %2324 = vmatprep.subr.mxu0 0.0
      %2325 = vmatpush1.msra.mxu0 0.0
      %2326 = vmatprep.subr.mxu0 0.0
      %2327 = vmatpush1.msra.mxu0 0.0
      %2328 = vmatprep.subr.mxu0 0.0
      %2329 = vmatpush1.msra.mxu0 0.0
      %2330 = vmatprep.subr.mxu0 0.0
      %2331 = vmatpush1.msra.mxu0 0.0
      %2332 = vmatprep.subr.mxu0 0.0
      %2333 = vmatpush1.msra.mxu0 0.0
      %2334 = vmatprep.subr.mxu0 0.0
      %2335 = vmatpush1.msra.mxu0 0.0
      %2336 = vmatprep.subr.mxu0 0.0
      %2337 = vmatpush1.msra.mxu0 0.0
      %2338 = vmatprep.subr.mxu0 0.0
      %2339 = vmatpush1.msra.mxu0 0.0
      %2340 = vmatprep.subr.mxu0 0.0
      %2341 = vmatpush1.msra.mxu0 0.0
      %2342 = vmatprep.subr.mxu0 0.0
      %2343 = vmatpush1.msra.mxu0 0.0
      %2344 = vmatprep.subr.mxu0 0.0
      %2345 = vmatpush1.msra.mxu0 0.0
      %2346 = vmatprep.subr.mxu0 0.0
      %2347 = vmatpush1.msra.mxu0 0.0
      %2348 = vmatprep.subr.mxu0 0.0
      %2349 = vmatpush1.msra.mxu0 0.0
      %2350 = vmatprep.subr.mxu0 0.0
      %2351 = vmatpush1.msra.mxu0 0.0
      %2352 = vmatprep.subr.mxu0 0.0
      %2353 = vmatpush1.msra.mxu0 0.0
      %2354 = vmatprep.subr.mxu0 0.0
      %2355 = vmatpush1.msra.mxu0 0.0
      %2356 = vmatprep.subr.mxu0 0.0
      %2357 = vmatpush1.msra.mxu0 0.0
      %2358 = vmatprep.subr.mxu0 0.0
      %2359 = vmatpush1.msra.mxu0 0.0
      %2360 = vmatprep.subr.mxu0 0.0
      %2361 = vmatpush1.msra.mxu0 0.0
      %2362 = vmatprep.subr.mxu0 0.0
      %2363 = vmatpush1.msra.mxu0 0.0
      %2364 = vmatprep.subr.mxu0 0.0
      %2365 = vmatpush1.msra.mxu0 0.0
      %2366 = vmatprep.subr.mxu0 0.0
      %2367 = vmatpush1.msra.mxu0 0.0
      %2368 = vmatprep.subr.mxu0 0.0
      %2369 = vmatpush1.msra.mxu0 0.0
      %2370 = vmatprep.subr.mxu0 0.0
      %2371 = vmatpush1.msra.mxu0 0.0
      %2372 = vmatprep.mubr.f32.mxu0 0.0
      %2373 = vmatmul.mubr.f32.gmra.mrb[0].mxu0 %v2297
      %v2374 = vpop.f32.mrb[0].mxu0
      %v2375 = vadd.f32 0.0, %v2374
      %v2376 = vpop.f32.mrb[0].mxu0
      %2377 = vmatprep.mubr.f32.mxu0 0.0
      %2378 = vmatmul.mubr.f32.gmra.mrb[0].mxu0 %v2300
      %v2379 = vpop.f32.mrb[0].mxu0
      %v2380 = vadd.f32 0.0, %v2379
      %v2381 = vpop.f32.mrb[0].mxu0
      %2382 = vmatprep.mubr.f32.mxu0 0.0
      %2383 = vmatmul.mubr.f32.gmra.mrb[0].mxu0 %v2303
      %v2384 = vpop.f32.mrb[0].mxu0
      %v2385 = vadd.f32 0.0, %v2384
      %v2386 = vpop.f32.mrb[0].mxu0
      %2387 = vmatprep.mubr.f32.mxu0 0.0
      %2388 = vmatmul.mubr.f32.gmra.mrb[0].mxu0 %v2306
      %v2389 = vpop.f32.mrb[0].mxu0
      %v2390 = vadd.f32 0.0, %v2389
      %v2391 = vpop.f32.mrb[0].mxu0
      %2392 = vdwg.mxu0
      %v2393 = vadd.f32 %v2164, %v2375
      %v2394 = vadd.f32 %v2169, %v2380
      %v2395 = vadd.f32 %v2174, %v2385
      %v2396 = vadd.f32 %v2179, %v2390
      %2398 = vset.pattern.permute.xlu0 0
      %2399 = vperm.xlu0 %2398, %v1743
      %v2400 = vpop.permute.xlu0 %2399
      %2403 = vset.pattern.permute.xlu0 0
      %2404 = vperm.xlu0 %2403, %v1744
      %v2405 = vpop.permute.xlu0 %2404
      %2408 = vset.pattern.permute.xlu0 0
      %2409 = vperm.xlu0 %2408, %v1745
      %v2410 = vpop.permute.xlu0 %2409
      %2413 = vset.pattern.permute.xlu0 0
      %2414 = vperm.xlu0 %2413, %v1746
      %v2415 = vpop.permute.xlu0 %2414
      %v2417 = vadd.f32 %v2393, %v2400
      %v2418 = vadd.f32 %v2394, %v2405
      %v2419 = vadd.f32 %v2395, %v2410
      %v2420 = vadd.f32 %v2396, %v2415
      %v2421 = vmul.f32 %v2417, %v2417
      %v2422 = vmul.f32 %v2418, %v2418
      %v2423 = vmul.f32 %v2419, %v2419
      %v2424 = vmul.f32 %v2420, %v2420
      %v2425 = vmul.f32 %v2417, %v2421
      %v2426 = vmul.f32 %v2418, %v2422
      %v2427 = vmul.f32 %v2419, %v2423
      %v2428 = vmul.f32 %v2420, %v2424
      %v2429 = vmul.f32 %v2425, 0.044715
      %v2430 = vmul.f32 %v2426, 0.044715
      %v2431 = vmul.f32 %v2427, 0.044715
      %v2432 = vmul.f32 %v2428, 0.044715
      %v2433 = vadd.f32 %v2417, %v2429
      %v2434 = vadd.f32 %v2418, %v2430
      %v2435 = vadd.f32 %v2419, %v2431
      %v2436 = vadd.f32 %v2420, %v2432
      %v2437 = vmul.f32 %v2433, 0.7978846
      %v2438 = vmul.f32 %v2434, 0.7978846
      %v2439 = vmul.f32 %v2435, 0.7978846
      %v2440 = vmul.f32 %v2436, 0.7978846
      %v2441 = vtanh.pop %v2437
      %v2442 = vtanh.pop %v2438
      %v2443 = vtanh.pop %v2439
      %v2444 = vtanh.pop %v2440
      %v2445 = vadd.f32 %v2441, 1.0
      %v2446 = vadd.f32 %v2442, 1.0
      %v2447 = vadd.f32 %v2443, 1.0
      %v2448 = vadd.f32 %v2444, 1.0
      %v2449 = vmul.f32 %v2445, 0.5
      %v2450 = vmul.f32 %v2446, 0.5
      %v2451 = vmul.f32 %v2447, 0.5
      %v2452 = vmul.f32 %v2448, 0.5
      %v2453 = vmul.f32 %v2417, %v2449
      %v2454 = vmul.f32 %v2418, %v2450
      %v2455 = vmul.f32 %v2419, %v2451
      %v2456 = vmul.f32 %v2420, %v2452
      %vm2457 = vcmp.eq.s32.totalorder %v906, %v753
      %vm2458 = vcmp.eq.s32.totalorder %v907, %v753
      %vm2459 = vcmp.eq.s32.totalorder %v908, %v753
      %vm2460 = vcmp.eq.s32.totalorder %v909, %v753
      %v2461 = vsel %vm2457, 1, 0
      %v2462 = vsel %vm2458, 1, 0
      %v2463 = vsel %vm2459, 1, 0
      %v2464 = vsel %vm2460, 1, 0
      %v2465 = vcvt.s32.f32 %v2461
      %v2466 = vcvt.s32.f32 %v2462
      %v2467 = vcvt.s32.f32 %v2463
      %v2468 = vcvt.s32.f32 %v2464
      %v2470 = vsel %vm1232, %v2465, 0
      %v2473 = vsel %vm1232, %v2466, 0
      %v2476 = vsel %vm1232, %v2467, 0
      %v2479 = vsel %vm1232, %v2468, 0
      %v2482 = vsel %vm1232, %v2453, 0
      %v2485 = vsel %vm1232, %v2454, 0
      %v2488 = vsel %vm1232, %v2455, 0
      %v2491 = vsel %vm1232, %v2456, 0
      %2493 = vmatprep.subr.mxu0 0.0
      %2494 = vmatpush1.xpose.msra.mxu0 %v2482
      %2495 = vmatprep.subr.mxu0 0.0
      %2496 = vmatpush1.xpose.msra.mxu0 %v2485
      %2497 = vmatprep.subr.mxu0 0.0
      %2498 = vmatpush1.xpose.msra.mxu0 %v2488
      %2499 = vmatprep.subr.mxu0 0.0
      %2500 = vmatpush1.xpose.msra.mxu0 %v2491
      %2501 = vmatprep.subr.mxu0 0.0
      %2502 = vmatpush1.xpose.msra.mxu0 0.0
      %2503 = vmatprep.subr.mxu0 0.0
      %2504 = vmatpush1.xpose.msra.mxu0 0.0
      %2505 = vmatprep.subr.mxu0 0.0
      %2506 = vmatpush1.xpose.msra.mxu0 0.0
      %2507 = vmatprep.subr.mxu0 0.0
      %2508 = vmatpush1.xpose.msra.mxu0 0.0
      %2509 = vmatprep.subr.mxu0 0.0
      %2510 = vmatpush1.xpose.msra.mxu0 0.0
      %2511 = vmatprep.subr.mxu0 0.0
      %2512 = vmatpush1.xpose.msra.mxu0 0.0
      %2513 = vmatprep.subr.mxu0 0.0
      %2514 = vmatpush1.xpose.msra.mxu0 0.0
      %2515 = vmatprep.subr.mxu0 0.0
      %2516 = vmatpush1.xpose.msra.mxu0 0.0
      %2517 = vmatprep.subr.mxu0 0.0
      %2518 = vmatpush1.xpose.msra.mxu0 0.0
      %2519 = vmatprep.subr.mxu0 0.0
      %2520 = vmatpush1.xpose.msra.mxu0 0.0
      %2521 = vmatprep.subr.mxu0 0.0
      %2522 = vmatpush1.xpose.msra.mxu0 0.0
      %2523 = vmatprep.subr.mxu0 0.0
      %2524 = vmatpush1.xpose.msra.mxu0 0.0
      %2525 = vmatprep.subr.mxu0 0.0
      %2526 = vmatpush1.xpose.msra.mxu0 0.0
      %2527 = vmatprep.subr.mxu0 0.0
      %2528 = vmatpush1.xpose.msra.mxu0 0.0
      %2529 = vmatprep.subr.mxu0 0.0
      %2530 = vmatpush1.xpose.msra.mxu0 0.0
      %2531 = vmatprep.subr.mxu0 0.0
      %2532 = vmatpush1.xpose.msra.mxu0 0.0
      %2533 = vmatprep.subr.mxu0 0.0
      %2534 = vmatpush1.xpose.msra.mxu0 0.0
      %2535 = vmatprep.subr.mxu0 0.0
      %2536 = vmatpush1.xpose.msra.mxu0 0.0
      %2537 = vmatprep.subr.mxu0 0.0
      %2538 = vmatpush1.xpose.msra.mxu0 0.0
      %2539 = vmatprep.subr.mxu0 0.0
      %2540 = vmatpush1.xpose.msra.mxu0 0.0
      %2541 = vmatprep.subr.mxu0 0.0
      %2542 = vmatpush1.xpose.msra.mxu0 0.0
      %2543 = vmatprep.subr.mxu0 0.0
      %2544 = vmatpush1.xpose.msra.mxu0 0.0
      %2545 = vmatprep.subr.mxu0 0.0
      %2546 = vmatpush1.xpose.msra.mxu0 0.0
      %2547 = vmatprep.subr.mxu0 0.0
      %2548 = vmatpush1.xpose.msra.mxu0 0.0
      %2549 = vmatprep.subr.mxu0 0.0
      %2550 = vmatpush1.xpose.msra.mxu0 0.0
      %2551 = vmatprep.subr.mxu0 0.0
      %2552 = vmatpush1.xpose.msra.mxu0 0.0
      %2553 = vmatprep.subr.mxu0 0.0
      %2554 = vmatpush1.xpose.msra.mxu0 0.0
      %2555 = vmatprep.subr.mxu0 0.0
      %2556 = vmatpush1.xpose.msra.mxu0 0.0
      %2557 = vmatprep.mubr.f32.mxu0 0.0
      %2558 = vmatmul.mubr.f32.gmra.mrb[0].mxu0 %v2470
      %v2559 = vpop.f32.mrb[0].mxu0
      %v2560 = vadd.f32 0.0, %v2559
      %v2561 = vpop.f32.mrb[0].mxu0
      %2562 = vmatprep.mubr.f32.mxu0 0.0
      %2563 = vmatmul.mubr.f32.gmra.mrb[0].mxu0 %v2473
      %v2564 = vpop.f32.mrb[0].mxu0
      %v2565 = vadd.f32 0.0, %v2564
      %v2566 = vpop.f32.mrb[0].mxu0
      %2567 = vmatprep.mubr.f32.mxu0 0.0
      %2568 = vmatmul.mubr.f32.gmra.mrb[0].mxu0 %v2476
      %v2569 = vpop.f32.mrb[0].mxu0
      %v2570 = vadd.f32 0.0, %v2569
      %v2571 = vpop.f32.mrb[0].mxu0
      %2572 = vmatprep.mubr.f32.mxu0 0.0
      %2573 = vmatmul.mubr.f32.gmra.mrb[0].mxu0 %v2479
      %v2574 = vpop.f32.mrb[0].mxu0
      %v2575 = vadd.f32 0.0, %v2574
      %v2576 = vpop.f32.mrb[0].mxu0
      %2577 = vdwg.mxu0
      %v2578 = vsel %vm1232, %v2560, 0.0
      %2579 = vadd.xlane.f32.xlu0 %v2578
      %v2580 = vpop.xlane.xlu0 %2579
      %v2581 = vsel %vm1232, %v2565, 0.0
      %2582 = vadd.xlane.f32.xlu0 %v2581
      %v2583 = vpop.xlane.xlu0 %2582
      %v2584 = vsel %vm1232, %v2570, 0.0
      %2585 = vadd.xlane.f32.xlu0 %v2584
      %v2586 = vpop.xlane.xlu0 %2585
      %v2587 = vsel %vm1232, %v2575, 0.0
      %2588 = vadd.xlane.f32.xlu0 %v2587
      %v2589 = vpop.xlane.xlu0 %2588
      %v2590 = vrcp.pop 32.0
      %v2591 = vmul.f32 %v2580, %v2590
      %v2592 = vmul.f32 %v2583, %v2590
      %v2593 = vmul.f32 %v2586, %v2590
      %v2594 = vmul.f32 %v2589, %v2590
      %v2595 = vsub.f32 %v2560, %v2591
      %v2596 = vsub.f32 %v2565, %v2592
      %v2597 = vsub.f32 %v2570, %v2593
      %v2598 = vsub.f32 %v2575, %v2594
      %v2599 = vmul.f32 %v2595, %v2595
      %v2600 = vmul.f32 %v2596, %v2596
      %v2601 = vmul.f32 %v2597, %v2597
      %v2602 = vmul.f32 %v2598, %v2598
      %v2603 = vsel %vm1232, %v2599, 0.0
      %2604 = vadd.xlane.f32.xlu0 %v2603
      %v2605 = vpop.xlane.xlu0 %2604
      %v2606 = vsel %vm1232, %v2600, 0.0
      %2607 = vadd.xlane.f32.xlu0 %v2606
      %v2608 = vpop.xlane.xlu0 %2607
      %v2609 = vsel %vm1232, %v2601, 0.0
      %2610 = vadd.xlane.f32.xlu0 %v2609
      %v2611 = vpop.xlane.xlu0 %2610
      %v2612 = vsel %vm1232, %v2602, 0.0
      %2613 = vadd.xlane.f32.xlu0 %v2612
      %v2614 = vpop.xlane.xlu0 %2613
      %v2615 = vmul.f32 %v2605, %v2590
      %v2616 = vmul.f32 %v2608, %v2590
      %v2617 = vmul.f32 %v2611, %v2590
      %v2618 = vmul.f32 %v2614, %v2590
      %v2619 = vadd.f32 %v2615, 1e-05
      %v2620 = vadd.f32 %v2616, 1e-05
      %v2621 = vadd.f32 %v2617, 1e-05
      %v2622 = vadd.f32 %v2618, 1e-05
      %v2623 = vrsqrt.pop %v2619
      %v2624 = vrsqrt.pop %v2620
      %v2625 = vrsqrt.pop %v2621
      %v2626 = vrsqrt.pop %v2622
      %v2627 = vmul.f32 %v2595, %v2623
      %v2628 = vmul.f32 %v2596, %v2624
      %v2629 = vmul.f32 %v2597, %v2625
      %v2630 = vmul.f32 %v2598, %v2626
      %v2631 = vld [vmem:[%s10] sm:$0x1]
      %v2633 = vlaneseq
      %v2634 = vshrl.u32 %v2633, 7
      %v2635 = vsub.s32 0, %v2634
      %v2636 = vrot.slane %v2631, %v2635
      %v2638 = vmul.f32 %v2627, %v2636
      %v2639 = vmul.f32 %v2628, %v2636
      %v2640 = vmul.f32 %v2629, %v2636
      %v2641 = vmul.f32 %v2630, %v2636
      %v2642 = vld [vmem:[%s11] sm:$0x1]
      %v2644 = vlaneseq
      %v2645 = vshrl.u32 %v2644, 7
      %v2646 = vsub.s32 0, %v2645
      %v2647 = vrot.slane %v2642, %v2646
      %v2649 = vadd.f32 %v2638, %v2647
      %v2650 = vadd.f32 %v2639, %v2647
      %v2651 = vadd.f32 %v2640, %v2647
      %v2652 = vadd.f32 %v2641, %v2647
      %v2653 = vld [vmem:[%s12] sm:$0xff]
      %v2654 = vld [vmem:[%s12 + $0x8] sm:$0xff]
      %v2655 = vld [vmem:[%s12 + $0x10] sm:$0xff]
      %v2656 = vld [vmem:[%s12 + $0x18] sm:$0xff]
      %v2657 = vld [vmem:[%s13] sm:$0x1]
      %v2659 = vlaneseq
      %v2660 = vshrl.u32 %v2659, 7
      %v2661 = vsub.s32 0, %v2660
      %v2662 = vrot.slane %v2657, %v2661
      %v2665 = vsel %vm1232, %v2649, 0
      %v2668 = vsel %vm1232, %v2650, 0
      %v2671 = vsel %vm1232, %v2651, 0
      %v2674 = vsel %vm1232, %v2652, 0
      %2676 = vmatprep.subr.mxu0 0.0
      %2677 = vmatpush1.msra.mxu0 %v2653
      %2678 = vmatprep.subr.mxu0 0.0
      %2679 = vmatpush1.msra.mxu0 %v2654
      %2680 = vmatprep.subr.mxu0 0.0
      %2681 = vmatpush1.msra.mxu0 %v2655
      %2682 = vmatprep.subr.mxu0 0.0
      %2683 = vmatpush1.msra.mxu0 %v2656
      %2684 = vmatprep.subr.mxu0 0.0
      %2685 = vmatpush1.msra.mxu0 0.0
      %2686 = vmatprep.subr.mxu0 0.0
      %2687 = vmatpush1.msra.mxu0 0.0
      %2688 = vmatprep.subr.mxu0 0.0
      %2689 = vmatpush1.msra.mxu0 0.0
      %2690 = vmatprep.subr.mxu0 0.0
      %2691 = vmatpush1.msra.mxu0 0.0
      %2692 = vmatprep.subr.mxu0 0.0
      %2693 = vmatpush1.msra.mxu0 0.0
      %2694 = vmatprep.subr.mxu0 0.0
      %2695 = vmatpush1.msra.mxu0 0.0
      %2696 = vmatprep.subr.mxu0 0.0
      %2697 = vmatpush1.msra.mxu0 0.0
      %2698 = vmatprep.subr.mxu0 0.0
      %2699 = vmatpush1.msra.mxu0 0.0
      %2700 = vmatprep.subr.mxu0 0.0
      %2701 = vmatpush1.msra.mxu0 0.0
      %2702 = vmatprep.subr.mxu0 0.0
      %2703 = vmatpush1.msra.mxu0 0.0
      %2704 = vmatprep.subr.mxu0 0.0
      %2705 = vmatpush1.msra.mxu0 0.0
      %2706 = vmatprep.subr.mxu0 0.0
      %2707 = vmatpush1.msra.mxu0 0.0
      %2708 = vmatprep.subr.mxu0 0.0
      %2709 = vmatpush1.msra.mxu0 0.0
      %2710 = vmatprep.subr.mxu0 0.0
      %2711 = vmatpush1.msra.mxu0 0.0
      %2712 = vmatprep.subr.mxu0 0.0
      %2713 = vmatpush1.msra.mxu0 0.0
      %2714 = vmatprep.subr.mxu0 0.0
      %2715 = vmatpush1.msra.mxu0 0.0
      %2716 = vmatprep.subr.mxu0 0.0
      %2717 = vmatpush1.msra.mxu0 0.0
      %2718 = vmatprep.subr.mxu0 0.0
      %2719 = vmatpush1.msra.mxu0 0.0
      %2720 = vmatprep.subr.mxu0 0.0
      %2721 = vmatpush1.msra.mxu0 0.0
      %2722 = vmatprep.subr.mxu0 0.0
      %2723 = vmatpush1.msra.mxu0 0.0
      %2724 = vmatprep.subr.mxu0 0.0
      %2725 = vmatpush1.msra.mxu0 0.0
      %2726 = vmatprep.subr.mxu0 0.0
      %2727 = vmatpush1.msra.mxu0 0.0
      %2728 = vmatprep.subr.mxu0 0.0
      %2729 = vmatpush1.msra.mxu0 0.0
      %2730 = vmatprep.subr.mxu0 0.0
      %2731 = vmatpush1.msra.mxu0 0.0
      %2732 = vmatprep.subr.mxu0 0.0
      %2733 = vmatpush1.msra.mxu0 0.0
      %2734 = vmatprep.subr.mxu0 0.0
      %2735 = vmatpush1.msra.mxu0 0.0
      %2736 = vmatprep.subr.mxu0 0.0
      %2737 = vmatpush1.msra.mxu0 0.0
      %2738 = vmatprep.subr.mxu0 0.0
      %2739 = vmatpush1.msra.mxu0 0.0
      %2740 = vmatprep.mubr.f32.mxu0 0.0
      %2741 = vmatmul.mubr.f32.gmra.mrb[0].mxu0 %v2665
      %v2742 = vpop.f32.mrb[0].mxu0
      %v2743 = vadd.f32 %v2662, %v2742
      %v2744 = vpop.f32.mrb[0].mxu0
      %2745 = vmatprep.mubr.f32.mxu0 0.0
      %2746 = vmatmul.mubr.f32.gmra.mrb[0].mxu0 %v2668
      %v2747 = vpop.f32.mrb[0].mxu0
      %v2748 = vadd.f32 %v2662, %v2747
      %v2749 = vpop.f32.mrb[0].mxu0
      %2750 = vmatprep.mubr.f32.mxu0 0.0
      %2751 = vmatmul.mubr.f32.gmra.mrb[0].mxu0 %v2671
      %v2752 = vpop.f32.mrb[0].mxu0
      %v2753 = vadd.f32 %v2662, %v2752
      %v2754 = vpop.f32.mrb[0].mxu0
      %2755 = vmatprep.mubr.f32.mxu0 0.0
      %2756 = vmatmul.mubr.f32.gmra.mrb[0].mxu0 %v2674
      %v2757 = vpop.f32.mrb[0].mxu0
      %v2758 = vadd.f32 %v2662, %v2757
      %v2759 = vpop.f32.mrb[0].mxu0
      %2760 = vdwg.mxu0
      %vm2761 = vcmp.lt.s32.totalorder %v906, 31
      %vm2762 = vcmp.lt.s32.totalorder %v907, 31
      %vm2763 = vcmp.lt.s32.totalorder %v908, 31
      %vm2764 = vcmp.lt.s32.totalorder %v909, 31
      %v2765 = vsel %vm2761, 1, 0
      %v2766 = vsel %vm2762, 1, 0
      %v2767 = vsel %vm2763, 1, 0
      %v2768 = vsel %vm2764, 1, 0
      %v2769 = vcvt.s32.f32 %v2765
      %v2770 = vcvt.s32.f32 %v2766
      %v2771 = vcvt.s32.f32 %v2767
      %v2772 = vcvt.s32.f32 %v2768
      %v2773 = vmul.f32 %v2743, %v2769
      %v2774 = vmul.f32 %v2748, %v2770
      %v2775 = vmul.f32 %v2753, %v2771
      %v2776 = vmul.f32 %v2758, %v2772
      %2777 = vst.msk [vmem:[%s464] sm:$0xff] %vm1772, %v2773
      %2778 = vst.msk [vmem:[%s464 + $0x8] sm:$0xff] %vm1772, %v2774
      %2779 = vst.msk [vmem:[%s464 + $0x10] sm:$0xff] %vm1772, %v2775
      %2780 = vst.msk [vmem:[%s464 + $0x18] sm:$0xff] %vm1772, %v2776
      %p2781 = scmp.lt.s32.totalorder %s25, 1
      %s2782 = scalar_select %p2781, %s25, 1
      %s2783 = smul.addr %s2782, 4
      %s2784 = smul.addr %s2783, 8
      %s2785 = scalar_lea.vmem %s14, %s2784
      // Predicated region
      $region77: #{forward.2} parent=75 // pred_check
        %p2786 = pneg %p342
      $region78: #{forward.2} parent=75 // pred_check_branch
        %2788 = sbr.rel (%p2786) target = $region80
      $region79: #{forward.2} parent=75 // pred_region
        _
      $region80: #{forward.2} parent=75 // pred_fallthru
        _
    $region76: #{forward.2} parent=5 // pred_fallthru
      _
    %p2789 = scmp.le.s32.totalorder 2, %s20
    // Predicated region
    $region81: #{forward.2} parent=5 // pred_check
      %p2790 = pneg %p2789
    $region82: #{forward.2} parent=5 // pred_check_branch
      %2792 = sbr.rel (%p2790) target = $region84
    $region83: #{forward.2} parent=5 // pred_region
      %s2793 = ssub.s32 %s20, 2
      // Predicated region
      $region85: #{forward.2} parent=83 // pred_check
        %p2794 = pneg %p348
      $region86: #{forward.2} parent=83 // pred_check_branch
        %2796 = sbr.rel (%p2794) target = $region88
      $region87: #{forward.2} parent=83 // pred_region
        %p2797 = scmp.lt.s32.totalorder %s26, 1
        %s2798 = scalar_select %p2797, %s26, 1
        %s2799 = smul.addr %s2798, 4
        %s2800 = smul.addr %s2799, 8
        %s2801 = scalar_lea.vmem %s14, %s2800
      $region88: #{forward.2} parent=83 // pred_fallthru
        _
    $region84: #{forward.2} parent=5 // pred_fallthru
      _
  $region6: #{forward.2} parent=0 // loop_footer
    %s24 = sadd.s32 1, %s20
  $region7: #{forward.2} parent=0 // loop_footer_branch
    %19 = sbr.rel target = $region3
  $region8: #{forward.2} parent=0 // loop_exit
    _

// kernel: forward.3
$region0: #{forward.3}
  #allocation0 [shape = 'u32[]', space=smem, size = 0x4, offset = 0x4, fixed_abs, tag = 'smem constant byte address 0x4 - core index']
  #allocation1 [shape = 'u32[144,128]{1,0:T(1,128)}', space=vmem, size = 0x12000, scoped, tag = 'internal scratch']
  %s0 = inlined_call_operand.vmem [shape: f32[2,32,64], index: 0, kind: input, shape index: {}]
  %s1 = inlined_call_operand.vmem [shape: f32[4,128,16], index: 1, kind: input, shape index: {}]
  %s2 = inlined_call_operand.vmem [shape: f32[1,64], index: 2, kind: input, shape index: {}]
  %s3 = inlined_call_operand.vmem [shape: f32[1,64], index: 3, kind: input, shape index: {}]
  %s4 = inlined_call_operand.vmem [shape: f32[1,64], index: 4, kind: input, shape index: {}]
  %s5 = inlined_call_operand.vmem [shape: f32[2,64,192], index: 5, kind: input, shape index: {}]
  %s6 = inlined_call_operand.vmem [shape: f32[2,1,192], index: 6, kind: input, shape index: {}]
  %s7 = inlined_call_operand.vmem [shape: f32[2,64,64], index: 7, kind: input, shape index: {}]
  %s8 = inlined_call_operand.vmem [shape: f32[2,1,64], index: 8, kind: input, shape index: {}]
  %s9 = inlined_call_operand.vmem [shape: f32[2,1,64], index: 9, kind: input, shape index: {}]
  %s10 = inlined_call_operand.vmem [shape: f32[2,1,64], index: 10, kind: input, shape index: {}]
  %s11 = inlined_call_operand.vmem [shape: f32[2,64,128], index: 11, kind: input, shape index: {}]
  %s12 = inlined_call_operand.vmem [shape: f32[2,1,128], index: 12, kind: input, shape index: {}]
  %s13 = inlined_call_operand.vmem [shape: f32[2,128,64], index: 13, kind: input, shape index: {}]
  %s14 = inlined_call_operand.vmem [shape: f32[2,1,64], index: 14, kind: input, shape index: {}]
  %s15 = inlined_call_operand.vmem [shape: f32[2,1,64], index: 15, kind: input, shape index: {}]
  %s16 = inlined_call_operand.vmem [shape: f32[2,1,64], index: 16, kind: input, shape index: {}]
  %s17 = inlined_call_operand.vmem [shape: f32[64,32], index: 17, kind: input, shape index: {}]
  %s18 = inlined_call_operand.vmem [shape: f32[1,32], index: 18, kind: input, shape index: {}]
  %s19 = inlined_call_operand.vmem [shape: f32[32,32], index: 19, kind: input, shape index: {}]
  %s20 = inlined_call_operand.vmem [shape: f32[1,32], index: 20, kind: input, shape index: {}]
  %s21 = inlined_call_operand.hbm [shape: f32[2,1,32], index: 21, kind: output, shape index: {}]
  %s22 = sld [smem:[#allocation0]]
  $region117: #{forward.3} parent=0
    _
  %s24 = ssub.s32 1, %s22
  %s25 = scalar_select 0, %s24, %s22
  $region1: #{forward.3} parent=0
    #allocation2 [shape = 'u8[1024]{0}', space=vmem, size = 0x400, scoped, tag = 'output window, operand 0']
    #allocation3 [shape = 's32[2]{0}', space=sflag, size = 0x8, scoped, tag = 'scoped memory for forward.3']
    %26 = vsyncpa [#allocation3], 0
    %s27 = scalar_lea.sflag [#allocation3], 1
    %28 = vsyncpa %s27, 0
    loop: start=0, step=1, limit=4
    $region2: #{forward.3} parent=1 // loop_pre_header
      _
    $region3: #{forward.3} parent=1 // loop_header
      %s30 = sphi 0, %s34
      %p31 = scmp.ge.s32.totalorder %s30, 4
      %s40 = sphi 0, %s42
      %s43 = sphi 0, %s40
      %s44 = sphi 0, %s43
      %s60 = sphi 0, %s44
      %s64 = sphi 0, %s64
      %s66 = sphi 0, %s64
      %s67 = sphi 0, %s66
      %s81 = sphi 0, %s67
      %s85 = sphi 0, %s85
      %s87 = sphi 0, %s85
      %s88 = sphi 0, %s87
      %s102 = sphi 0, %s88
      %s106 = sphi 0, %s106
      %s108 = sphi 0, %s106
      %s109 = sphi 0, %s108
      %s123 = sphi 0, %s109
      %s127 = sphi 0, %s127
      %s129 = sphi 0, %s127
      %s130 = sphi 0, %s129
      %s144 = sphi 0, %s130
      %s148 = sphi 0, %s148
      %s150 = sphi 0, %s148
      %s151 = sphi 0, %s150
      %s165 = sphi 0, %s151
      %s169 = sphi 0, %s169
      %s171 = sphi 0, %s169
      %s172 = sphi 0, %s171
      %s186 = sphi 0, %s172
      %s190 = sphi 0, %s190
      %s192 = sphi 0, %s190
      %s193 = sphi 0, %s192
      %s207 = sphi 0, %s193
      %s211 = sphi 0, %s211
      %s213 = sphi 0, %s211
      %s214 = sphi 0, %s213
      %s228 = sphi 0, %s214
      %s232 = sphi 0, %s232
      %s234 = sphi 0, %s232
      %s235 = sphi 0, %s234
      %s249 = sphi 0, %s235
      %s253 = sphi 0, %s253
      %s255 = sphi 0, %s253
      %s256 = sphi 0, %s255
      %s270 = sphi 0, %s256
      %s274 = sphi 0, %s274
      %s276 = sphi 0, %s274
      %s277 = sphi 0, %s276
      %s291 = sphi 0, %s277
      %s295 = sphi 0, %s295
      %s297 = sphi 0, %s295
      %s298 = sphi 0, %s297
      %s312 = sphi 0, %s298
      %s316 = sphi 0, %s316
      %s318 = sphi 0, %s316
      %s319 = sphi 0, %s318
      %s333 = sphi 0, %s319
      %s337 = sphi 0, %s337
      %s339 = sphi 0, %s337
      %s340 = sphi 0, %s339
      %s354 = sphi 0, %s340
      %s358 = sphi 0, %s358
      %s360 = sphi 0, %s358
      %s361 = sphi 0, %s360
      %s375 = sphi 0, %s361
      %s379 = sphi 0, %s379
      %s381 = sphi 0, %s379
      %s382 = sphi 0, %s381
      %s396 = sphi 0, %s382
      %s400 = sphi 0, %s400
      %s402 = sphi 0, %s400
      %s403 = sphi 0, %s402
      %s417 = sphi 0, %s403
      %s421 = sphi 0, %s421
      %s423 = sphi 0, %s421
      %s424 = sphi 0, %s423
      %s438 = sphi 0, %s424
      %s442 = sphi 0, %s442
      %s444 = sphi 0, %s442
      %s445 = sphi 0, %s444
      %s459 = sphi 0, %s445
      %s463 = sphi 0, %s463
      %s465 = sphi 0, %s463
      %s466 = sphi 0, %s465
      %s480 = sphi 0, %s466
      %s486 = sphi 0, %s488
      %s489 = sphi 0, %s486
      %s490 = sphi 0, %s489
      %s506 = sphi 0, %s490
    $region4: #{forward.3} parent=1 // loop_header_branch
      %33 = sbr.rel (%p31) target = $region8
    $region5: #{forward.3} parent=1 // loop_body
      %s35 = ssub.s32 %s30, 1
      %s36 = ssub.s32 %s30, 2
      %s37 = sadd.s32 %s30, 1
      %s38 = ssub.s32 %s30, %s37
      %p39 = scmp.eq.s32.totalorder %s38, 0
      %s41 = sadd.s32 %s40, 1
      %s42 = scalar_select %p39, %s40, %s41
      %p45 = pneg %p39
      %p46 = scmp.eq.s32.totalorder %s30, 1
      %p47 = por %p45, %p46
      %p48 = scmp.ne.s32.totalorder %s40, %s43
      %p49 = scmp.eq.s32.totalorder %s30, 0
      %p50 = por %p48, %p49
      %p51 = scmp.ne.s32.totalorder %s40, %s43
      %p52 = scmp.eq.s32.totalorder %s35, 1
      %p53 = por %p51, %p52
      %p54 = scmp.ne.s32.totalorder %s43, %s44
      %p55 = scmp.eq.s32.totalorder %s35, 0
      %p56 = por %p54, %p55
      %p57 = scmp.ne.s32.totalorder %s43, %s44
      %p58 = scmp.eq.s32.totalorder %s36, 1
      %p59 = por %p57, %p58
      %p61 = scmp.ne.s32.totalorder %s44, %s60
      %p62 = scmp.eq.s32.totalorder %s36, 0
      %p63 = por %p61, %p62
      %s65 = sadd.s32 %s64, 1
      %p68 = scmp.eq.s32.totalorder %s30, 1
      %p69 = scmp.ne.s32.totalorder %s64, %s66
      %p70 = scmp.eq.s32.totalorder %s30, 0
      %p71 = por %p69, %p70
      %p72 = scmp.ne.s32.totalorder %s64, %s66
      %p73 = scmp.eq.s32.totalorder %s35, 1
      %p74 = por %p72, %p73
      %p75 = scmp.ne.s32.totalorder %s66, %s67
      %p76 = scmp.eq.s32.totalorder %s35, 0
      %p77 = por %p75, %p76
      %p78 = scmp.ne.s32.totalorder %s66, %s67
      %p79 = scmp.eq.s32.totalorder %s36, 1
      %p80 = por %p78, %p79
      %p82 = scmp.ne.s32.totalorder %s67, %s81
      %p83 = scmp.eq.s32.totalorder %s36, 0
      %p84 = por %p82, %p83
      %s86 = sadd.s32 %s85, 1
      %p89 = scmp.eq.s32.totalorder %s30, 1
      %p90 = scmp.ne.s32.totalorder %s85, %s87
      %p91 = scmp.eq.s32.totalorder %s30, 0
      %p92 = por %p90, %p91
      %p93 = scmp.ne.s32.totalorder %s85, %s87
      %p94 = scmp.eq.s32.totalorder %s35, 1
      %p95 = por %p93, %p94
      %p96 = scmp.ne.s32.totalorder %s87, %s88
      %p97 = scmp.eq.s32.totalorder %s35, 0
      %p98 = por %p96, %p97
      %p99 = scmp.ne.s32.totalorder %s87, %s88
      %p100 = scmp.eq.s32.totalorder %s36, 1
      %p101 = por %p99, %p100
      %p103 = scmp.ne.s32.totalorder %s88, %s102
      %p104 = scmp.eq.s32.totalorder %s36, 0
      %p105 = por %p103, %p104
      %s107 = sadd.s32 %s106, 1
      %p110 = scmp.eq.s32.totalorder %s30, 1
      %p111 = scmp.ne.s32.totalorder %s106, %s108
      %p112 = scmp.eq.s32.totalorder %s30, 0
      %p113 = por %p111, %p112
      %p114 = scmp.ne.s32.totalorder %s106, %s108
      %p115 = scmp.eq.s32.totalorder %s35, 1
      %p116 = por %p114, %p115
      %p117 = scmp.ne.s32.totalorder %s108, %s109
      %p118 = scmp.eq.s32.totalorder %s35, 0
      %p119 = por %p117, %p118
      %p120 = scmp.ne.s32.totalorder %s108, %s109
      %p121 = scmp.eq.s32.totalorder %s36, 1
      %p122 = por %p120, %p121
      %p124 = scmp.ne.s32.totalorder %s109, %s123
      %p125 = scmp.eq.s32.totalorder %s36, 0
      %p126 = por %p124, %p125
      %s128 = sadd.s32 %s127, 1
      %p131 = scmp.eq.s32.totalorder %s30, 1
      %p132 = scmp.ne.s32.totalorder %s127, %s129
      %p133 = scmp.eq.s32.totalorder %s30, 0
      %p134 = por %p132, %p133
      %p135 = scmp.ne.s32.totalorder %s127, %s129
      %p136 = scmp.eq.s32.totalorder %s35, 1
      %p137 = por %p135, %p136
      %p138 = scmp.ne.s32.totalorder %s129, %s130
      %p139 = scmp.eq.s32.totalorder %s35, 0
      %p140 = por %p138, %p139
      %p141 = scmp.ne.s32.totalorder %s129, %s130
      %p142 = scmp.eq.s32.totalorder %s36, 1
      %p143 = por %p141, %p142
      %p145 = scmp.ne.s32.totalorder %s130, %s144
      %p146 = scmp.eq.s32.totalorder %s36, 0
      %p147 = por %p145, %p146
      %s149 = sadd.s32 %s148, 1
      %p152 = scmp.eq.s32.totalorder %s30, 1
      %p153 = scmp.ne.s32.totalorder %s148, %s150
      %p154 = scmp.eq.s32.totalorder %s30, 0
      %p155 = por %p153, %p154
      %p156 = scmp.ne.s32.totalorder %s148, %s150
      %p157 = scmp.eq.s32.totalorder %s35, 1
      %p158 = por %p156, %p157
      %p159 = scmp.ne.s32.totalorder %s150, %s151
      %p160 = scmp.eq.s32.totalorder %s35, 0
      %p161 = por %p159, %p160
      %p162 = scmp.ne.s32.totalorder %s150, %s151
      %p163 = scmp.eq.s32.totalorder %s36, 1
      %p164 = por %p162, %p163
      %p166 = scmp.ne.s32.totalorder %s151, %s165
      %p167 = scmp.eq.s32.totalorder %s36, 0
      %p168 = por %p166, %p167
      %s170 = sadd.s32 %s169, 1
      %p173 = scmp.eq.s32.totalorder %s30, 1
      %p174 = scmp.ne.s32.totalorder %s169, %s171
      %p175 = scmp.eq.s32.totalorder %s30, 0
      %p176 = por %p174, %p175
      %p177 = scmp.ne.s32.totalorder %s169, %s171
      %p178 = scmp.eq.s32.totalorder %s35, 1
      %p179 = por %p177, %p178
      %p180 = scmp.ne.s32.totalorder %s171, %s172
      %p181 = scmp.eq.s32.totalorder %s35, 0
      %p182 = por %p180, %p181
      %p183 = scmp.ne.s32.totalorder %s171, %s172
      %p184 = scmp.eq.s32.totalorder %s36, 1
      %p185 = por %p183, %p184
      %p187 = scmp.ne.s32.totalorder %s172, %s186
      %p188 = scmp.eq.s32.totalorder %s36, 0
      %p189 = por %p187, %p188
      %s191 = sadd.s32 %s190, 1
      %p194 = scmp.eq.s32.totalorder %s30, 1
      %p195 = scmp.ne.s32.totalorder %s190, %s192
      %p196 = scmp.eq.s32.totalorder %s30, 0
      %p197 = por %p195, %p196
      %p198 = scmp.ne.s32.totalorder %s190, %s192
      %p199 = scmp.eq.s32.totalorder %s35, 1
      %p200 = por %p198, %p199
      %p201 = scmp.ne.s32.totalorder %s192, %s193
      %p202 = scmp.eq.s32.totalorder %s35, 0
      %p203 = por %p201, %p202
      %p204 = scmp.ne.s32.totalorder %s192, %s193
      %p205 = scmp.eq.s32.totalorder %s36, 1
      %p206 = por %p204, %p205
      %p208 = scmp.ne.s32.totalorder %s193, %s207
      %p209 = scmp.eq.s32.totalorder %s36, 0
      %p210 = por %p208, %p209
      %s212 = sadd.s32 %s211, 1
      %p215 = scmp.eq.s32.totalorder %s30, 1
      %p216 = scmp.ne.s32.totalorder %s211, %s213
      %p217 = scmp.eq.s32.totalorder %s30, 0
      %p218 = por %p216, %p217
      %p219 = scmp.ne.s32.totalorder %s211, %s213
      %p220 = scmp.eq.s32.totalorder %s35, 1
      %p221 = por %p219, %p220
      %p222 = scmp.ne.s32.totalorder %s213, %s214
      %p223 = scmp.eq.s32.totalorder %s35, 0
      %p224 = por %p222, %p223
      %p225 = scmp.ne.s32.totalorder %s213, %s214
      %p226 = scmp.eq.s32.totalorder %s36, 1
      %p227 = por %p225, %p226
      %p229 = scmp.ne.s32.totalorder %s214, %s228
      %p230 = scmp.eq.s32.totalorder %s36, 0
      %p231 = por %p229, %p230
      %s233 = sadd.s32 %s232, 1
      %p236 = scmp.eq.s32.totalorder %s30, 1
      %p237 = scmp.ne.s32.totalorder %s232, %s234
      %p238 = scmp.eq.s32.totalorder %s30, 0
      %p239 = por %p237, %p238
      %p240 = scmp.ne.s32.totalorder %s232, %s234
      %p241 = scmp.eq.s32.totalorder %s35, 1
      %p242 = por %p240, %p241
      %p243 = scmp.ne.s32.totalorder %s234, %s235
      %p244 = scmp.eq.s32.totalorder %s35, 0
      %p245 = por %p243, %p244
      %p246 = scmp.ne.s32.totalorder %s234, %s235
      %p247 = scmp.eq.s32.totalorder %s36, 1
      %p248 = por %p246, %p247
      %p250 = scmp.ne.s32.totalorder %s235, %s249
      %p251 = scmp.eq.s32.totalorder %s36, 0
      %p252 = por %p250, %p251
      %s254 = sadd.s32 %s253, 1
      %p257 = scmp.eq.s32.totalorder %s30, 1
      %p258 = scmp.ne.s32.totalorder %s253, %s255
      %p259 = scmp.eq.s32.totalorder %s30, 0
      %p260 = por %p258, %p259
      %p261 = scmp.ne.s32.totalorder %s253, %s255
      %p262 = scmp.eq.s32.totalorder %s35, 1
      %p263 = por %p261, %p262
      %p264 = scmp.ne.s32.totalorder %s255, %s256
      %p265 = scmp.eq.s32.totalorder %s35, 0
      %p266 = por %p264, %p265
      %p267 = scmp.ne.s32.totalorder %s255, %s256
      %p268 = scmp.eq.s32.totalorder %s36, 1
      %p269 = por %p267, %p268
      %p271 = scmp.ne.s32.totalorder %s256, %s270
      %p272 = scmp.eq.s32.totalorder %s36, 0
      %p273 = por %p271, %p272
      %s275 = sadd.s32 %s274, 1
      %p278 = scmp.eq.s32.totalorder %s30, 1
      %p279 = scmp.ne.s32.totalorder %s274, %s276
      %p280 = scmp.eq.s32.totalorder %s30, 0
      %p281 = por %p279, %p280
      %p282 = scmp.ne.s32.totalorder %s274, %s276
      %p283 = scmp.eq.s32.totalorder %s35, 1
      %p284 = por %p282, %p283
      %p285 = scmp.ne.s32.totalorder %s276, %s277
      %p286 = scmp.eq.s32.totalorder %s35, 0
      %p287 = por %p285, %p286
      %p288 = scmp.ne.s32.totalorder %s276, %s277
      %p289 = scmp.eq.s32.totalorder %s36, 1
      %p290 = por %p288, %p289
      %p292 = scmp.ne.s32.totalorder %s277, %s291
      %p293 = scmp.eq.s32.totalorder %s36, 0
      %p294 = por %p292, %p293
      %s296 = sadd.s32 %s295, 1
      %p299 = scmp.eq.s32.totalorder %s30, 1
      %p300 = scmp.ne.s32.totalorder %s295, %s297
      %p301 = scmp.eq.s32.totalorder %s30, 0
      %p302 = por %p300, %p301
      %p303 = scmp.ne.s32.totalorder %s295, %s297
      %p304 = scmp.eq.s32.totalorder %s35, 1
      %p305 = por %p303, %p304
      %p306 = scmp.ne.s32.totalorder %s297, %s298
      %p307 = scmp.eq.s32.totalorder %s35, 0
      %p308 = por %p306, %p307
      %p309 = scmp.ne.s32.totalorder %s297, %s298
      %p310 = scmp.eq.s32.totalorder %s36, 1
      %p311 = por %p309, %p310
      %p313 = scmp.ne.s32.totalorder %s298, %s312
      %p314 = scmp.eq.s32.totalorder %s36, 0
      %p315 = por %p313, %p314
      %s317 = sadd.s32 %s316, 1
      %p320 = scmp.eq.s32.totalorder %s30, 1
      %p321 = scmp.ne.s32.totalorder %s316, %s318
      %p322 = scmp.eq.s32.totalorder %s30, 0
      %p323 = por %p321, %p322
      %p324 = scmp.ne.s32.totalorder %s316, %s318
      %p325 = scmp.eq.s32.totalorder %s35, 1
      %p326 = por %p324, %p325
      %p327 = scmp.ne.s32.totalorder %s318, %s319
      %p328 = scmp.eq.s32.totalorder %s35, 0
      %p329 = por %p327, %p328
      %p330 = scmp.ne.s32.totalorder %s318, %s319
      %p331 = scmp.eq.s32.totalorder %s36, 1
      %p332 = por %p330, %p331
      %p334 = scmp.ne.s32.totalorder %s319, %s333
      %p335 = scmp.eq.s32.totalorder %s36, 0
      %p336 = por %p334, %p335
      %s338 = sadd.s32 %s337, 1
      %p341 = scmp.eq.s32.totalorder %s30, 1
      %p342 = scmp.ne.s32.totalorder %s337, %s339
      %p343 = scmp.eq.s32.totalorder %s30, 0
      %p344 = por %p342, %p343
      %p345 = scmp.ne.s32.totalorder %s337, %s339
      %p346 = scmp.eq.s32.totalorder %s35, 1
      %p347 = por %p345, %p346
      %p348 = scmp.ne.s32.totalorder %s339, %s340
      %p349 = scmp.eq.s32.totalorder %s35, 0
      %p350 = por %p348, %p349
      %p351 = scmp.ne.s32.totalorder %s339, %s340
      %p352 = scmp.eq.s32.totalorder %s36, 1
      %p353 = por %p351, %p352
      %p355 = scmp.ne.s32.totalorder %s340, %s354
      %p356 = scmp.eq.s32.totalorder %s36, 0
      %p357 = por %p355, %p356
      %s359 = sadd.s32 %s358, 1
      %p362 = scmp.eq.s32.totalorder %s30, 1
      %p363 = scmp.ne.s32.totalorder %s358, %s360
      %p364 = scmp.eq.s32.totalorder %s30, 0
      %p365 = por %p363, %p364
      %p366 = scmp.ne.s32.totalorder %s358, %s360
      %p367 = scmp.eq.s32.totalorder %s35, 1
      %p368 = por %p366, %p367
      %p369 = scmp.ne.s32.totalorder %s360, %s361
      %p370 = scmp.eq.s32.totalorder %s35, 0
      %p371 = por %p369, %p370
      %p372 = scmp.ne.s32.totalorder %s360, %s361
      %p373 = scmp.eq.s32.totalorder %s36, 1
      %p374 = por %p372, %p373
      %p376 = scmp.ne.s32.totalorder %s361, %s375
      %p377 = scmp.eq.s32.totalorder %s36, 0
      %p378 = por %p376, %p377
      %s380 = sadd.s32 %s379, 1
      %p383 = scmp.eq.s32.totalorder %s30, 1
      %p384 = scmp.ne.s32.totalorder %s379, %s381
      %p385 = scmp.eq.s32.totalorder %s30, 0
      %p386 = por %p384, %p385
      %p387 = scmp.ne.s32.totalorder %s379, %s381
      %p388 = scmp.eq.s32.totalorder %s35, 1
      %p389 = por %p387, %p388
      %p390 = scmp.ne.s32.totalorder %s381, %s382
      %p391 = scmp.eq.s32.totalorder %s35, 0
      %p392 = por %p390, %p391
      %p393 = scmp.ne.s32.totalorder %s381, %s382
      %p394 = scmp.eq.s32.totalorder %s36, 1
      %p395 = por %p393, %p394
      %p397 = scmp.ne.s32.totalorder %s382, %s396
      %p398 = scmp.eq.s32.totalorder %s36, 0
      %p399 = por %p397, %p398
      %s401 = sadd.s32 %s400, 1
      %p404 = scmp.eq.s32.totalorder %s30, 1
      %p405 = scmp.ne.s32.totalorder %s400, %s402
      %p406 = scmp.eq.s32.totalorder %s30, 0
      %p407 = por %p405, %p406
      %p408 = scmp.ne.s32.totalorder %s400, %s402
      %p409 = scmp.eq.s32.totalorder %s35, 1
      %p410 = por %p408, %p409
      %p411 = scmp.ne.s32.totalorder %s402, %s403
      %p412 = scmp.eq.s32.totalorder %s35, 0
      %p413 = por %p411, %p412
      %p414 = scmp.ne.s32.totalorder %s402, %s403
      %p415 = scmp.eq.s32.totalorder %s36, 1
      %p416 = por %p414, %p415
      %p418 = scmp.ne.s32.totalorder %s403, %s417
      %p419 = scmp.eq.s32.totalorder %s36, 0
      %p420 = por %p418, %p419
      %s422 = sadd.s32 %s421, 1
      %p425 = scmp.eq.s32.totalorder %s30, 1
      %p426 = scmp.ne.s32.totalorder %s421, %s423
      %p427 = scmp.eq.s32.totalorder %s30, 0
      %p428 = por %p426, %p427
      %p429 = scmp.ne.s32.totalorder %s421, %s423
      %p430 = scmp.eq.s32.totalorder %s35, 1
      %p431 = por %p429, %p430
      %p432 = scmp.ne.s32.totalorder %s423, %s424
      %p433 = scmp.eq.s32.totalorder %s35, 0
      %p434 = por %p432, %p433
      %p435 = scmp.ne.s32.totalorder %s423, %s424
      %p436 = scmp.eq.s32.totalorder %s36, 1
      %p437 = por %p435, %p436
      %p439 = scmp.ne.s32.totalorder %s424, %s438
      %p440 = scmp.eq.s32.totalorder %s36, 0
      %p441 = por %p439, %p440
      %s443 = sadd.s32 %s442, 1
      %p446 = scmp.eq.s32.totalorder %s30, 1
      %p447 = scmp.ne.s32.totalorder %s442, %s444
      %p448 = scmp.eq.s32.totalorder %s30, 0
      %p449 = por %p447, %p448
      %p450 = scmp.ne.s32.totalorder %s442, %s444
      %p451 = scmp.eq.s32.totalorder %s35, 1
      %p452 = por %p450, %p451
      %p453 = scmp.ne.s32.totalorder %s444, %s445
      %p454 = scmp.eq.s32.totalorder %s35, 0
      %p455 = por %p453, %p454
      %p456 = scmp.ne.s32.totalorder %s444, %s445
      %p457 = scmp.eq.s32.totalorder %s36, 1
      %p458 = por %p456, %p457
      %p460 = scmp.ne.s32.totalorder %s445, %s459
      %p461 = scmp.eq.s32.totalorder %s36, 0
      %p462 = por %p460, %p461
      %s464 = sadd.s32 %s463, 1
      %p467 = scmp.eq.s32.totalorder %s30, 1
      %p468 = scmp.ne.s32.totalorder %s463, %s465
      %p469 = scmp.eq.s32.totalorder %s30, 0
      %p470 = por %p468, %p469
      %p471 = scmp.ne.s32.totalorder %s463, %s465
      %p472 = scmp.eq.s32.totalorder %s35, 1
      %p473 = por %p471, %p472
      %p474 = scmp.ne.s32.totalorder %s465, %s466
      %p475 = scmp.eq.s32.totalorder %s35, 0
      %p476 = por %p474, %p475
      %p477 = scmp.ne.s32.totalorder %s465, %s466
      %p478 = scmp.eq.s32.totalorder %s36, 1
      %p479 = por %p477, %p478
      %p481 = scmp.ne.s32.totalorder %s466, %s480
      %p482 = scmp.eq.s32.totalorder %s36, 0
      %p483 = por %p481, %p482
      %s484 = ssub.s32 %s30, %s37
      %p485 = scmp.eq.s32.totalorder %s484, 0
      %s487 = sadd.s32 %s486, 1
      %s488 = scalar_select %p485, %s486, %s487
      %p491 = pneg %p485
      %p492 = scmp.eq.s32.totalorder %s30, 1
      %p493 = por %p491, %p492
      %p494 = scmp.ne.s32.totalorder %s486, %s489
      %p495 = scmp.eq.s32.totalorder %s30, 0
      %p496 = por %p494, %p495
      %p497 = scmp.ne.s32.totalorder %s486, %s489
      %p498 = scmp.eq.s32.totalorder %s35, 1
      %p499 = por %p497, %p498
      %p500 = scmp.ne.s32.totalorder %s489, %s490
      %p501 = scmp.eq.s32.totalorder %s35, 0
      %p502 = por %p500, %p501
      %p503 = scmp.ne.s32.totalorder %s489, %s490
      %p504 = scmp.eq.s32.totalorder %s36, 1
      %p505 = por %p503, %p504
      %p507 = scmp.ne.s32.totalorder %s490, %s506
      %p508 = scmp.eq.s32.totalorder %s36, 0
      %p509 = por %p507, %p508
      %p510 = scmp.le.s32.totalorder 1, %s30
      %p511 = scmp.lt.s32.totalorder %s30, 3
      %p512 = pnand %p510, %p511
      %p513 = pneg %p512
      // Predicated region
      $region9: #{forward.3} parent=5 // pred_check
        _
      $region10: #{forward.3} parent=5 // pred_check_branch
        %515 = sbr.rel (%p512) target = $region12
      $region11: #{forward.3} parent=5 // pred_region
        %s516 = ssub.s32 %s30, 1
        // Predicated region
        $region13: #{forward.3} parent=11 // pred_check
          %p517 = pneg %p77
        $region14: #{forward.3} parent=11 // pred_check_branch
          %519 = sbr.rel (%p517) target = $region16
        $region15: #{forward.3} parent=11 // pred_region
          _
        $region16: #{forward.3} parent=11 // pred_fallthru
          _
        // Predicated region
        $region17: #{forward.3} parent=11 // pred_check
          %p520 = pneg %p98
        $region18: #{forward.3} parent=11 // pred_check_branch
          %522 = sbr.rel (%p520) target = $region20
        $region19: #{forward.3} parent=11 // pred_region
          _
        $region20: #{forward.3} parent=11 // pred_fallthru
          _
        // Predicated region
        $region21: #{forward.3} parent=11 // pred_check
          %p523 = pneg %p119
        $region22: #{forward.3} parent=11 // pred_check_branch
          %525 = sbr.rel (%p523) target = $region24
        $region23: #{forward.3} parent=11 // pred_region
          _
        $region24: #{forward.3} parent=11 // pred_fallthru
          _
        // Predicated region
        $region25: #{forward.3} parent=11 // pred_check
          %p526 = pneg %p140
        $region26: #{forward.3} parent=11 // pred_check_branch
          %528 = sbr.rel (%p526) target = $region28
        $region27: #{forward.3} parent=11 // pred_region
          _
        $region28: #{forward.3} parent=11 // pred_fallthru
          _
        // Predicated region
        $region29: #{forward.3} parent=11 // pred_check
          %p529 = pneg %p161
        $region30: #{forward.3} parent=11 // pred_check_branch
          %531 = sbr.rel (%p529) target = $region32
        $region31: #{forward.3} parent=11 // pred_region
          _
        $region32: #{forward.3} parent=11 // pred_fallthru
          _
        // Predicated region
        $region33: #{forward.3} parent=11 // pred_check
          %p532 = pneg %p182
        $region34: #{forward.3} parent=11 // pred_check_branch
          %534 = sbr.rel (%p532) target = $region36
        $region35: #{forward.3} parent=11 // pred_region
          _
        $region36: #{forward.3} parent=11 // pred_fallthru
          _
        // Predicated region
        $region37: #{forward.3} parent=11 // pred_check
          %p535 = pneg %p203
        $region38: #{forward.3} parent=11 // pred_check_branch
          %537 = sbr.rel (%p535) target = $region40
        $region39: #{forward.3} parent=11 // pred_region
          _
        $region40: #{forward.3} parent=11 // pred_fallthru
          _
        // Predicated region
        $region41: #{forward.3} parent=11 // pred_check
          %p538 = pneg %p224
        $region42: #{forward.3} parent=11 // pred_check_branch
          %540 = sbr.rel (%p538) target = $region44
        $region43: #{forward.3} parent=11 // pred_region
          _
        $region44: #{forward.3} parent=11 // pred_fallthru
          _
        // Predicated region
        $region45: #{forward.3} parent=11 // pred_check
          %p541 = pneg %p245
        $region46: #{forward.3} parent=11 // pred_check_branch
          %543 = sbr.rel (%p541) target = $region48
        $region47: #{forward.3} parent=11 // pred_region
          _
        $region48: #{forward.3} parent=11 // pred_fallthru
          _
        // Predicated region
        $region49: #{forward.3} parent=11 // pred_check
          %p544 = pneg %p266
        $region50: #{forward.3} parent=11 // pred_check_branch
          %546 = sbr.rel (%p544) target = $region52
        $region51: #{forward.3} parent=11 // pred_region
          _
        $region52: #{forward.3} parent=11 // pred_fallthru
          _
        // Predicated region
        $region53: #{forward.3} parent=11 // pred_check
          %p547 = pneg %p287
        $region54: #{forward.3} parent=11 // pred_check_branch
          %549 = sbr.rel (%p547) target = $region56
        $region55: #{forward.3} parent=11 // pred_region
          _
        $region56: #{forward.3} parent=11 // pred_fallthru
          _
        // Predicated region
        $region57: #{forward.3} parent=11 // pred_check
          %p550 = pneg %p308
        $region58: #{forward.3} parent=11 // pred_check_branch
          %552 = sbr.rel (%p550) target = $region60
        $region59: #{forward.3} parent=11 // pred_region
          _
        $region60: #{forward.3} parent=11 // pred_fallthru
          _
        // Predicated region
        $region61: #{forward.3} parent=11 // pred_check
          %p553 = pneg %p329
        $region62: #{forward.3} parent=11 // pred_check_branch
          %555 = sbr.rel (%p553) target = $region64
        $region63: #{forward.3} parent=11 // pred_region
          _
        $region64: #{forward.3} parent=11 // pred_fallthru
          _
        // Predicated region
        $region65: #{forward.3} parent=11 // pred_check
          %p556 = pneg %p350
        $region66: #{forward.3} parent=11 // pred_check_branch
          %558 = sbr.rel (%p556) target = $region68
        $region67: #{forward.3} parent=11 // pred_region
          _
        $region68: #{forward.3} parent=11 // pred_fallthru
          _
        // Predicated region
        $region69: #{forward.3} parent=11 // pred_check
          %p559 = pneg %p371
        $region70: #{forward.3} parent=11 // pred_check_branch
          %561 = sbr.rel (%p559) target = $region72
        $region71: #{forward.3} parent=11 // pred_region
          _
        $region72: #{forward.3} parent=11 // pred_fallthru
          _
        // Predicated region
        $region73: #{forward.3} parent=11 // pred_check
          %p562 = pneg %p392
        $region74: #{forward.3} parent=11 // pred_check_branch
          %564 = sbr.rel (%p562) target = $region76
        $region75: #{forward.3} parent=11 // pred_region
          _
        $region76: #{forward.3} parent=11 // pred_fallthru
          _
        // Predicated region
        $region77: #{forward.3} parent=11 // pred_check
          %p565 = pneg %p413
        $region78: #{forward.3} parent=11 // pred_check_branch
          %567 = sbr.rel (%p565) target = $region80
        $region79: #{forward.3} parent=11 // pred_region
          _
        $region80: #{forward.3} parent=11 // pred_fallthru
          _
        // Predicated region
        $region81: #{forward.3} parent=11 // pred_check
          %p568 = pneg %p434
        $region82: #{forward.3} parent=11 // pred_check_branch
          %570 = sbr.rel (%p568) target = $region84
        $region83: #{forward.3} parent=11 // pred_region
          _
        $region84: #{forward.3} parent=11 // pred_fallthru
          _
        // Predicated region
        $region85: #{forward.3} parent=11 // pred_check
          %p571 = pneg %p455
        $region86: #{forward.3} parent=11 // pred_check_branch
          %573 = sbr.rel (%p571) target = $region88
        $region87: #{forward.3} parent=11 // pred_region
          _
        $region88: #{forward.3} parent=11 // pred_fallthru
          _
        // Predicated region
        $region89: #{forward.3} parent=11 // pred_check
          %p574 = pneg %p476
        $region90: #{forward.3} parent=11 // pred_check_branch
          %576 = sbr.rel (%p574) target = $region92
        $region91: #{forward.3} parent=11 // pred_region
          _
        $region92: #{forward.3} parent=11 // pred_fallthru
          _
      $region12: #{forward.3} parent=5 // pred_fallthru
        _
      %p577 = scmp.lt.s32.totalorder %s30, 2
      // Predicated region
      $region93: #{forward.3} parent=5 // pred_check
        %p578 = pneg %p577
      $region94: #{forward.3} parent=5 // pred_check_branch
        %580 = sbr.rel (%p578) target = $region96
      $region95: #{forward.3} parent=5 // pred_region
        // Predicated region
        $region97: #{forward.3} parent=95 // pred_check
          %p581 = pneg %p50
        $region98: #{forward.3} parent=95 // pred_check_branch
          %583 = sbr.rel (%p581) target = $region100
        $region99: #{forward.3} parent=95 // pred_region
          %p584 = scmp.lt.s32.totalorder %s30, 1
          %s585 = scalar_select %p584, %s30, 1
          %s586 = smul.addr %s585, 4
          %s587 = smul.addr %s586, 8
          %s588 = scalar_lea.vmem %s0, %s587
        $region100: #{forward.3} parent=95 // pred_fallthru
          _
      $region96: #{forward.3} parent=5 // pred_fallthru
        _
      %p589 = scmp.le.s32.totalorder 1, %s30
      %p590 = scmp.lt.s32.totalorder %s30, 3
      %p591 = pnand %p589, %p590
      %p592 = pneg %p591
      // Predicated region
      $region101: #{forward.3} parent=5 // pred_check
        _
      $region102: #{forward.3} parent=5 // pred_check_branch
        %594 = sbr.rel (%p591) target = $region104
      $region103: #{forward.3} parent=5 // pred_region
        %s595 = ssub.s32 %s30, 1
        %p596 = scmp.lt.s32.totalorder %s35, 1
        %s597 = scalar_select %p596, %s35, 1
        %s598 = smul.addr %s597, 4
        %s599 = smul.addr %s598, 8
        %s600 = scalar_lea.vmem %s0, %s599
        %p601 = pneg %p56
        %p602 = pneg %p53
        %p603 = pneg %p77
        %p604 = pneg %p74
        %p605 = pneg %p98
        %p606 = pneg %p95
        %p607 = pneg %p119
        %p608 = pneg %p116
        %p609 = pneg %p140
        %p610 = pneg %p137
        %p611 = pneg %p161
        %p612 = pneg %p158
        %p613 = pneg %p182
        %p614 = pneg %p179
        %p615 = pneg %p203
        %p616 = pneg %p200
        %p617 = pneg %p224
        %p618 = pneg %p221
        %p619 = pneg %p245
        %p620 = pneg %p242
        %p621 = pneg %p266
        %p622 = pneg %p263
        %p623 = pneg %p287
        %p624 = pneg %p284
        %p625 = pneg %p308
        %p626 = pneg %p305
        %p627 = pneg %p329
        %p628 = pneg %p326
        %p629 = pneg %p350
        %p630 = pneg %p347
        %p631 = pneg %p371
        %p632 = pneg %p368
        %p633 = pneg %p392
        %p634 = pneg %p389
        %p635 = pneg %p413
        %p636 = pneg %p410
        %p637 = pneg %p434
        %p638 = pneg %p431
        %p639 = pneg %p455
        %p640 = pneg %p452
        %p641 = pneg %p476
        %p642 = pneg %p473
        %p643 = pneg %p502
        %p644 = pneg %p499
        %s645 = sand.u32 %s489, 1
        %s646 = scalar_lea.sflag [#allocation3], %s645
        %s647 = sand.u32 %s489, 1
        %s648 = scalar_lea.vmem [#allocation2], %s647
        %p649 = scmp.lt.s32.totalorder %s35, 1
        %s650 = scalar_select %p649, %s35, 1
        %s651 = smul.addr %s650, 4
        %s652 = smul.addr %s651, 8
        %s653 = scalar_lea.vmem %s0, %s652
        %v654 = vld [vmem:[%s653] sm:$0xff]
        %v655 = vld [vmem:[%s653 + $0x8] sm:$0xff]
        %v656 = vld [vmem:[%s653 + $0x10] sm:$0xff]
        %v657 = vld [vmem:[%s653 + $0x18] sm:$0xff]
        %vm662 = vcmask 1043456
        %v663 = vrot.slane %v654, 4
        %v664 = vrot.slane %v655, 4
        %v665 = vsel %vm662, %v663, %v664
        %v666 = vrot.slane %v656, 4
        %v667 = vsel %vm662, %v664, %v666
        %v668 = vrot.slane %v657, 4
        %v669 = vsel %vm662, %v666, %v668
        %v675 = vsel %vm662, 0.0, %v663
        %v676 = vsel %vm662, %v668, 0.0
        %vm679 = vcmask 1046528
        %v680 = vrot.slane %v675, 1
        %v681 = vrot.slane %v665, 1
        %v682 = vsel %vm679, %v680, %v681
        %v683 = vrot.slane %v667, 1
        %v684 = vsel %vm679, %v681, %v683
        %v685 = vrot.slane %v669, 1
        %v686 = vsel %vm679, %v683, %v685
        %v687 = vrot.slane %v676, 1
        %v688 = vsel %vm679, %v685, %v687
        %689 = vrot.lane.b32.xlu0 %v682, 16
        %v690 = vpop.permute.xlu0 %689
        %691 = vrot.lane.b32.xlu0 %v684, 16
        %v692 = vpop.permute.xlu0 %691
        %693 = vrot.lane.b32.xlu0 %v686, 16
        %v694 = vpop.permute.xlu0 %693
        %695 = vrot.lane.b32.xlu0 %v688, 16
        %v696 = vpop.permute.xlu0 %695
        %vm701 = vcmask 1045504
        %v702 = vrot.slane %v675, 2
        %v703 = vrot.slane %v665, 2
        %v704 = vsel %vm701, %v702, %v703
        %v705 = vrot.slane %v667, 2
        %v706 = vsel %vm701, %v703, %v705
        %v707 = vrot.slane %v669, 2
        %v708 = vsel %vm701, %v705, %v707
        %v709 = vrot.slane %v676, 2
        %v710 = vsel %vm701, %v707, %v709
        %711 = vrot.lane.b32.xlu0 %v704, 32
        %v712 = vpop.permute.xlu0 %711
        %713 = vrot.lane.b32.xlu0 %v706, 32
        %v714 = vpop.permute.xlu0 %713
        %715 = vrot.lane.b32.xlu0 %v708, 32
        %v716 = vpop.permute.xlu0 %715
        %717 = vrot.lane.b32.xlu0 %v710, 32
        %v718 = vpop.permute.xlu0 %717
        %vm723 = vcmask 1044480
        %v724 = vrot.slane %v675, 3
        %v725 = vrot.slane %v665, 3
        %v726 = vsel %vm723, %v724, %v725
        %v727 = vrot.slane %v667, 3
        %v728 = vsel %vm723, %v725, %v727
        %v729 = vrot.slane %v669, 3
        %v730 = vsel %vm723, %v727, %v729
        %v731 = vrot.slane %v676, 3
        %v732 = vsel %vm723, %v729, %v731
        %733 = vrot.lane.b32.xlu0 %v726, 48
        %v734 = vpop.permute.xlu0 %733
        %735 = vrot.lane.b32.xlu0 %v728, 48
        %v736 = vpop.permute.xlu0 %735
        %737 = vrot.lane.b32.xlu0 %v730, 48
        %v738 = vpop.permute.xlu0 %737
        %739 = vrot.lane.b32.xlu0 %v732, 48
        %v740 = vpop.permute.xlu0 %739
        %v745 = vrot.slane %v675, 4
        %v746 = vrot.slane %v665, 4
        %v747 = vsel %vm662, %v745, %v746
        %v748 = vrot.slane %v667, 4
        %v749 = vsel %vm662, %v746, %v748
        %v750 = vrot.slane %v669, 4
        %v751 = vsel %vm662, %v748, %v750
        %v752 = vrot.slane %v676, 4
        %v753 = vsel %vm662, %v750, %v752
        %754 = vrot.lane.b32.xlu0 %v747, 64
        %v755 = vpop.permute.xlu0 %754
        %756 = vrot.lane.b32.xlu0 %v749, 64
        %v757 = vpop.permute.xlu0 %756
        %758 = vrot.lane.b32.xlu0 %v751, 64
        %v759 = vpop.permute.xlu0 %758
        %760 = vrot.lane.b32.xlu0 %v753, 64
        %v761 = vpop.permute.xlu0 %760
        %vm766 = vcmask 1042432
        %v767 = vrot.slane %v675, 5
        %v768 = vrot.slane %v665, 5
        %v769 = vsel %vm766, %v767, %v768
        %v770 = vrot.slane %v667, 5
        %v771 = vsel %vm766, %v768, %v770
        %v772 = vrot.slane %v669, 5
        %v773 = vsel %vm766, %v770, %v772
        %v774 = vrot.slane %v676, 5
        %v775 = vsel %vm766, %v772, %v774
        %776 = vrot.lane.b32.xlu0 %v769, 80
        %v777 = vpop.permute.xlu0 %776
        %778 = vrot.lane.b32.xlu0 %v771, 80
        %v779 = vpop.permute.xlu0 %778
        %780 = vrot.lane.b32.xlu0 %v773, 80
        %v781 = vpop.permute.xlu0 %780
        %782 = vrot.lane.b32.xlu0 %v775, 80
        %v783 = vpop.permute.xlu0 %782
        %vm788 = vcmask 1041408
        %v789 = vrot.slane %v675, 6
        %v790 = vrot.slane %v665, 6
        %v791 = vsel %vm788, %v789, %v790
        %v792 = vrot.slane %v667, 6
        %v793 = vsel %vm788, %v790, %v792
        %v794 = vrot.slane %v669, 6
        %v795 = vsel %vm788, %v792, %v794
        %v796 = vrot.slane %v676, 6
        %v797 = vsel %vm788, %v794, %v796
        %798 = vrot.lane.b32.xlu0 %v791, 96
        %v799 = vpop.permute.xlu0 %798
        %800 = vrot.lane.b32.xlu0 %v793, 96
        %v801 = vpop.permute.xlu0 %800
        %802 = vrot.lane.b32.xlu0 %v795, 96
        %v803 = vpop.permute.xlu0 %802
        %804 = vrot.lane.b32.xlu0 %v797, 96
        %v805 = vpop.permute.xlu0 %804
        %vm810 = vcmask 1040384
        %v811 = vrot.slane %v675, 7
        %v812 = vrot.slane %v665, 7
        %v813 = vsel %vm810, %v811, %v812
        %v814 = vrot.slane %v667, 7
        %v815 = vsel %vm810, %v812, %v814
        %v816 = vrot.slane %v669, 7
        %v817 = vsel %vm810, %v814, %v816
        %v818 = vrot.slane %v676, 7
        %v819 = vsel %vm810, %v816, %v818
        %820 = vrot.lane.b32.xlu0 %v813, 112
        %v821 = vpop.permute.xlu0 %820
        %822 = vrot.lane.b32.xlu0 %v815, 112
        %v823 = vpop.permute.xlu0 %822
        %824 = vrot.lane.b32.xlu0 %v817, 112
        %v825 = vpop.permute.xlu0 %824
        %826 = vrot.lane.b32.xlu0 %v819, 112
        %v827 = vpop.permute.xlu0 %826
        %vm832 = vcmask 130048
        %v833 = vsel %vm832, %v675, %v690
        %v834 = vsel %vm832, %v665, %v692
        %v835 = vsel %vm832, %v667, %v694
        %v836 = vsel %vm832, %v669, %v696
        %vm837 = vcmask 261120
        %v838 = vsel %vm837, %v833, %v712
        %v839 = vsel %vm837, %v834, %v714
        %v840 = vsel %vm837, %v835, %v716
        %v841 = vsel %vm837, %v836, %v718
        %vm842 = vcmask 392192
        %v843 = vsel %vm842, %v838, %v734
        %v844 = vsel %vm842, %v839, %v736
        %v845 = vsel %vm842, %v840, %v738
        %v846 = vsel %vm842, %v841, %v740
        %vm847 = vcmask 523264
        %v848 = vsel %vm847, %v843, %v755
        %v849 = vsel %vm847, %v844, %v757
        %v850 = vsel %vm847, %v845, %v759
        %v851 = vsel %vm847, %v846, %v761
        %vm852 = vcmask 654336
        %v853 = vsel %vm852, %v848, %v777
        %v854 = vsel %vm852, %v849, %v779
        %v855 = vsel %vm852, %v850, %v781
        %v856 = vsel %vm852, %v851, %v783
        %vm857 = vcmask 785408
        %v858 = vsel %vm857, %v853, %v799
        %v859 = vsel %vm857, %v854, %v801
        %v860 = vsel %vm857, %v855, %v803
        %v861 = vsel %vm857, %v856, %v805
        %vm862 = vcmask 916480
        %v863 = vsel %vm862, %v858, %v821
        %v864 = vsel %vm862, %v859, %v823
        %v865 = vsel %vm862, %v860, %v825
        %v866 = vsel %vm862, %v861, %v827
        %v867 = vld [vmem:[%s1] sm:$0xff]
        %v868 = vld [vmem:[%s1 + $0x8] sm:$0xff]
        %v869 = vld [vmem:[%s1 + $0x10] sm:$0xff]
        %v870 = vld [vmem:[%s1 + $0x18] sm:$0xff]
        %v871 = vld [vmem:[%s1 + $0x20] sm:$0xff]
        %v872 = vld [vmem:[%s1 + $0x28] sm:$0xff]
        %v873 = vld [vmem:[%s1 + $0x30] sm:$0xff]
        %v874 = vld [vmem:[%s1 + $0x38] sm:$0xff]
        %v875 = vld [vmem:[%s1 + $0x40] sm:$0xff]
        %v876 = vld [vmem:[%s1 + $0x48] sm:$0xff]
        %v877 = vld [vmem:[%s1 + $0x50] sm:$0xff]
        %v878 = vld [vmem:[%s1 + $0x58] sm:$0xff]
        %v879 = vld [vmem:[%s1 + $0x60] sm:$0xff]
        %v880 = vld [vmem:[%s1 + $0x68] sm:$0xff]
        %v881 = vld [vmem:[%s1 + $0x70] sm:$0xff]
        %v882 = vld [vmem:[%s1 + $0x78] sm:$0xff]
        %883 = vmatprep.subr.mxu0 0.0
        %884 = vmatpush1.msra.mxu0 %v867
        %885 = vmatprep.subr.mxu0 0.0
        %886 = vmatpush1.msra.mxu0 %v868
        %887 = vmatprep.subr.mxu0 0.0
        %888 = vmatpush1.msra.mxu0 %v869
        %889 = vmatprep.subr.mxu0 0.0
        %890 = vmatpush1.msra.mxu0 %v870
        %891 = vmatprep.subr.mxu0 0.0
        %892 = vmatpush1.msra.mxu0 %v871
        %893 = vmatprep.subr.mxu0 0.0
        %894 = vmatpush1.msra.mxu0 %v872
        %895 = vmatprep.subr.mxu0 0.0
        %896 = vmatpush1.msra.mxu0 %v873
        %897 = vmatprep.subr.mxu0 0.0
        %898 = vmatpush1.msra.mxu0 %v874
        %899 = vmatprep.subr.mxu0 0.0
        %900 = vmatpush1.msra.mxu0 %v875
        %901 = vmatprep.subr.mxu0 0.0
        %902 = vmatpush1.msra.mxu0 %v876
        %903 = vmatprep.subr.mxu0 0.0
        %904 = vmatpush1.msra.mxu0 %v877
        %905 = vmatprep.subr.mxu0 0.0
        %906 = vmatpush1.msra.mxu0 %v878
        %907 = vmatprep.subr.mxu0 0.0
        %908 = vmatpush1.msra.mxu0 %v879
        %909 = vmatprep.subr.mxu0 0.0
        %910 = vmatpush1.msra.mxu0 %v880
        %911 = vmatprep.subr.mxu0 0.0
        %912 = vmatpush1.msra.mxu0 %v881
        %913 = vmatprep.subr.mxu0 0.0
        %914 = vmatpush1.msra.mxu0 %v882
        %915 = vmatprep.subr.mxu0 0.0
        %916 = vmatpush1.msra.mxu0 0.0
        %917 = vmatprep.subr.mxu0 0.0
        %918 = vmatpush1.msra.mxu0 0.0
        %919 = vmatprep.subr.mxu0 0.0
        %920 = vmatpush1.msra.mxu0 0.0
        %921 = vmatprep.subr.mxu0 0.0
        %922 = vmatpush1.msra.mxu0 0.0
        %923 = vmatprep.subr.mxu0 0.0
        %924 = vmatpush1.msra.mxu0 0.0
        %925 = vmatprep.subr.mxu0 0.0
        %926 = vmatpush1.msra.mxu0 0.0
        %927 = vmatprep.subr.mxu0 0.0
        %928 = vmatpush1.msra.mxu0 0.0
        %929 = vmatprep.subr.mxu0 0.0
        %930 = vmatpush1.msra.mxu0 0.0
        %931 = vmatprep.subr.mxu0 0.0
        %932 = vmatpush1.msra.mxu0 0.0
        %933 = vmatprep.subr.mxu0 0.0
        %934 = vmatpush1.msra.mxu0 0.0
        %935 = vmatprep.subr.mxu0 0.0
        %936 = vmatpush1.msra.mxu0 0.0
        %937 = vmatprep.subr.mxu0 0.0
        %938 = vmatpush1.msra.mxu0 0.0
        %939 = vmatprep.subr.mxu0 0.0
        %940 = vmatpush1.msra.mxu0 0.0
        %941 = vmatprep.subr.mxu0 0.0
        %942 = vmatpush1.msra.mxu0 0.0
        %943 = vmatprep.subr.mxu0 0.0
        %944 = vmatpush1.msra.mxu0 0.0
        %945 = vmatprep.subr.mxu0 0.0
        %946 = vmatpush1.msra.mxu0 0.0
        %947 = vmatprep.mubr.f32.mxu0 0.0
        %948 = vmatmul.mubr.f32.gmra.mrb[0].mxu0 %v863
        %v949 = vpop.f32.mrb[0].mxu0
        %v950 = vadd.f32 0.0, %v949
        %v951 = vpop.f32.mrb[0].mxu0
        %952 = vmatprep.mubr.f32.mxu0 0.0
        %953 = vmatmul.mubr.f32.gmra.mrb[0].mxu0 %v864
        %v954 = vpop.f32.mrb[0].mxu0
        %v955 = vadd.f32 0.0, %v954
        %v956 = vpop.f32.mrb[0].mxu0
        %957 = vmatprep.mubr.f32.mxu0 0.0
        %958 = vmatmul.mubr.f32.gmra.mrb[0].mxu0 %v865
        %v959 = vpop.f32.mrb[0].mxu0
        %v960 = vadd.f32 0.0, %v959
        %v961 = vpop.f32.mrb[0].mxu0
        %962 = vmatprep.mubr.f32.mxu0 0.0
        %963 = vmatmul.mubr.f32.gmra.mrb[0].mxu0 %v866
        %v964 = vpop.f32.mrb[0].mxu0
        %v965 = vadd.f32 0.0, %v964
        %v966 = vpop.f32.mrb[0].mxu0
        %967 = vdwg.mxu0
        %968 = vrot.lane.b32.xlu0 %v675, 112
        %v969 = vpop.permute.xlu0 %968
        %970 = vrot.lane.b32.xlu0 %v665, 112
        %v971 = vpop.permute.xlu0 %970
        %972 = vrot.lane.b32.xlu0 %v667, 112
        %v973 = vpop.permute.xlu0 %972
        %974 = vrot.lane.b32.xlu0 %v669, 112
        %v975 = vpop.permute.xlu0 %974
        %984 = vrot.lane.b32.xlu0 %v704, 16
        %v985 = vpop.permute.xlu0 %984
        %986 = vrot.lane.b32.xlu0 %v706, 16
        %v987 = vpop.permute.xlu0 %986
        %988 = vrot.lane.b32.xlu0 %v708, 16
        %v989 = vpop.permute.xlu0 %988
        %990 = vrot.lane.b32.xlu0 %v710, 16
        %v991 = vpop.permute.xlu0 %990
        %996 = vrot.lane.b32.xlu0 %v726, 32
        %v997 = vpop.permute.xlu0 %996
        %998 = vrot.lane.b32.xlu0 %v728, 32
        %v999 = vpop.permute.xlu0 %998
        %1000 = vrot.lane.b32.xlu0 %v730, 32
        %v1001 = vpop.permute.xlu0 %1000
        %1002 = vrot.lane.b32.xlu0 %v732, 32
        %v1003 = vpop.permute.xlu0 %1002
        %1008 = vrot.lane.b32.xlu0 %v747, 48
        %v1009 = vpop.permute.xlu0 %1008
        %1010 = vrot.lane.b32.xlu0 %v749, 48
        %v1011 = vpop.permute.xlu0 %1010
        %1012 = vrot.lane.b32.xlu0 %v751, 48
        %v1013 = vpop.permute.xlu0 %1012
        %1014 = vrot.lane.b32.xlu0 %v753, 48
        %v1015 = vpop.permute.xlu0 %1014
        %1020 = vrot.lane.b32.xlu0 %v769, 64
        %v1021 = vpop.permute.xlu0 %1020
        %1022 = vrot.lane.b32.xlu0 %v771, 64
        %v1023 = vpop.permute.xlu0 %1022
        %1024 = vrot.lane.b32.xlu0 %v773, 64
        %v1025 = vpop.permute.xlu0 %1024
        %1026 = vrot.lane.b32.xlu0 %v775, 64
        %v1027 = vpop.permute.xlu0 %1026
        %1032 = vrot.lane.b32.xlu0 %v791, 80
        %v1033 = vpop.permute.xlu0 %1032
        %1034 = vrot.lane.b32.xlu0 %v793, 80
        %v1035 = vpop.permute.xlu0 %1034
        %1036 = vrot.lane.b32.xlu0 %v795, 80
        %v1037 = vpop.permute.xlu0 %1036
        %1038 = vrot.lane.b32.xlu0 %v797, 80
        %v1039 = vpop.permute.xlu0 %1038
        %1044 = vrot.lane.b32.xlu0 %v813, 96
        %v1045 = vpop.permute.xlu0 %1044
        %1046 = vrot.lane.b32.xlu0 %v815, 96
        %v1047 = vpop.permute.xlu0 %1046
        %1048 = vrot.lane.b32.xlu0 %v817, 96
        %v1049 = vpop.permute.xlu0 %1048
        %1050 = vrot.lane.b32.xlu0 %v819, 96
        %v1051 = vpop.permute.xlu0 %1050
        %v1056 = vsel %vm832, %v969, %v682
        %v1057 = vsel %vm832, %v971, %v684
        %v1058 = vsel %vm832, %v973, %v686
        %v1059 = vsel %vm832, %v975, %v688
        %v1060 = vsel %vm837, %v1056, %v985
        %v1061 = vsel %vm837, %v1057, %v987
        %v1062 = vsel %vm837, %v1058, %v989
        %v1063 = vsel %vm837, %v1059, %v991
        %v1064 = vsel %vm842, %v1060, %v997
        %v1065 = vsel %vm842, %v1061, %v999
        %v1066 = vsel %vm842, %v1062, %v1001
        %v1067 = vsel %vm842, %v1063, %v1003
        %v1068 = vsel %vm847, %v1064, %v1009
        %v1069 = vsel %vm847, %v1065, %v1011
        %v1070 = vsel %vm847, %v1066, %v1013
        %v1071 = vsel %vm847, %v1067, %v1015
        %v1072 = vsel %vm852, %v1068, %v1021
        %v1073 = vsel %vm852, %v1069, %v1023
        %v1074 = vsel %vm852, %v1070, %v1025
        %v1075 = vsel %vm852, %v1071, %v1027
        %v1076 = vsel %vm857, %v1072, %v1033
        %v1077 = vsel %vm857, %v1073, %v1035
        %v1078 = vsel %vm857, %v1074, %v1037
        %v1079 = vsel %vm857, %v1075, %v1039
        %v1080 = vsel %vm862, %v1076, %v1045
        %v1081 = vsel %vm862, %v1077, %v1047
        %v1082 = vsel %vm862, %v1078, %v1049
        %v1083 = vsel %vm862, %v1079, %v1051
        %s1084 = scalar_lea.vmem %s1, 128
        %v1085 = vld [vmem:[%s1084] sm:$0xff]
        %v1086 = vld [vmem:[%s1084 + $0x8] sm:$0xff]
        %v1087 = vld [vmem:[%s1084 + $0x10] sm:$0xff]
        %v1088 = vld [vmem:[%s1084 + $0x18] sm:$0xff]
        %v1089 = vld [vmem:[%s1084 + $0x20] sm:$0xff]
        %v1090 = vld [vmem:[%s1084 + $0x28] sm:$0xff]
        %v1091 = vld [vmem:[%s1084 + $0x30] sm:$0xff]
        %v1092 = vld [vmem:[%s1084 + $0x38] sm:$0xff]
        %v1093 = vld [vmem:[%s1084 + $0x40] sm:$0xff]
        %v1094 = vld [vmem:[%s1084 + $0x48] sm:$0xff]
        %v1095 = vld [vmem:[%s1084 + $0x50] sm:$0xff]
        %v1096 = vld [vmem:[%s1084 + $0x58] sm:$0xff]
        %v1097 = vld [vmem:[%s1084 + $0x60] sm:$0xff]
        %v1098 = vld [vmem:[%s1084 + $0x68] sm:$0xff]
        %v1099 = vld [vmem:[%s1084 + $0x70] sm:$0xff]
        %v1100 = vld [vmem:[%s1084 + $0x78] sm:$0xff]
        %1101 = vmatprep.subr.mxu0 0.0
        %1102 = vmatpush1.msra.mxu0 %v1085
        %1103 = vmatprep.subr.mxu0 0.0
        %1104 = vmatpush1.msra.mxu0 %v1086
        %1105 = vmatprep.subr.mxu0 0.0
        %1106 = vmatpush1.msra.mxu0 %v1087
        %1107 = vmatprep.subr.mxu0 0.0
        %1108 = vmatpush1.msra.mxu0 %v1088
        %1109 = vmatprep.subr.mxu0 0.0
        %1110 = vmatpush1.msra.mxu0 %v1089
        %1111 = vmatprep.subr.mxu0 0.0
        %1112 = vmatpush1.msra.mxu0 %v1090
        %1113 = vmatprep.subr.mxu0 0.0
        %1114 = vmatpush1.msra.mxu0 %v1091
        %1115 = vmatprep.subr.mxu0 0.0
        %1116 = vmatpush1.msra.mxu0 %v1092
        %1117 = vmatprep.subr.mxu0 0.0
        %1118 = vmatpush1.msra.mxu0 %v1093
        %1119 = vmatprep.subr.mxu0 0.0
        %1120 = vmatpush1.msra.mxu0 %v1094
        %1121 = vmatprep.subr.mxu0 0.0
        %1122 = vmatpush1.msra.mxu0 %v1095
        %1123 = vmatprep.subr.mxu0 0.0
        %1124 = vmatpush1.msra.mxu0 %v1096
        %1125 = vmatprep.subr.mxu0 0.0
        %1126 = vmatpush1.msra.mxu0 %v1097
        %1127 = vmatprep.subr.mxu0 0.0
        %1128 = vmatpush1.msra.mxu0 %v1098
        %1129 = vmatprep.subr.mxu0 0.0
        %1130 = vmatpush1.msra.mxu0 %v1099
        %1131 = vmatprep.subr.mxu0 0.0
        %1132 = vmatpush1.msra.mxu0 %v1100
        %1133 = vmatprep.subr.mxu0 0.0
        %1134 = vmatpush1.msra.mxu0 0.0
        %1135 = vmatprep.subr.mxu0 0.0
        %1136 = vmatpush1.msra.mxu0 0.0
        %1137 = vmatprep.subr.mxu0 0.0
        %1138 = vmatpush1.msra.mxu0 0.0
        %1139 = vmatprep.subr.mxu0 0.0
        %1140 = vmatpush1.msra.mxu0 0.0
        %1141 = vmatprep.subr.mxu0 0.0
        %1142 = vmatpush1.msra.mxu0 0.0
        %1143 = vmatprep.subr.mxu0 0.0
        %1144 = vmatpush1.msra.mxu0 0.0
        %1145 = vmatprep.subr.mxu0 0.0
        %1146 = vmatpush1.msra.mxu0 0.0
        %1147 = vmatprep.subr.mxu0 0.0
        %1148 = vmatpush1.msra.mxu0 0.0
        %1149 = vmatprep.subr.mxu0 0.0
        %1150 = vmatpush1.msra.mxu0 0.0
        %1151 = vmatprep.subr.mxu0 0.0
        %1152 = vmatpush1.msra.mxu0 0.0
        %1153 = vmatprep.subr.mxu0 0.0
        %1154 = vmatpush1.msra.mxu0 0.0
        %1155 = vmatprep.subr.mxu0 0.0
        %1156 = vmatpush1.msra.mxu0 0.0
        %1157 = vmatprep.subr.mxu0 0.0
        %1158 = vmatpush1.msra.mxu0 0.0
        %1159 = vmatprep.subr.mxu0 0.0
        %1160 = vmatpush1.msra.mxu0 0.0
        %1161 = vmatprep.subr.mxu0 0.0
        %1162 = vmatpush1.msra.mxu0 0.0
        %1163 = vmatprep.subr.mxu0 0.0
        %1164 = vmatpush1.msra.mxu0 0.0
        %1165 = vmatprep.mubr.f32.mxu0 0.0
        %1166 = vmatmul.mubr.f32.gmra.mrb[0].mxu0 %v1080
        %v1167 = vpop.f32.mrb[0].mxu0
        %v1168 = vadd.f32 0.0, %v1167
        %v1169 = vpop.f32.mrb[0].mxu0
        %1170 = vmatprep.mubr.f32.mxu0 0.0
        %1171 = vmatmul.mubr.f32.gmra.mrb[0].mxu0 %v1081
        %v1172 = vpop.f32.mrb[0].mxu0
        %v1173 = vadd.f32 0.0, %v1172
        %v1174 = vpop.f32.mrb[0].mxu0
        %1175 = vmatprep.mubr.f32.mxu0 0.0
        %1176 = vmatmul.mubr.f32.gmra.mrb[0].mxu0 %v1082
        %v1177 = vpop.f32.mrb[0].mxu0
        %v1178 = vadd.f32 0.0, %v1177
        %v1179 = vpop.f32.mrb[0].mxu0
        %1180 = vmatprep.mubr.f32.mxu0 0.0
        %1181 = vmatmul.mubr.f32.gmra.mrb[0].mxu0 %v1083
        %v1182 = vpop.f32.mrb[0].mxu0
        %v1183 = vadd.f32 0.0, %v1182
        %v1184 = vpop.f32.mrb[0].mxu0
        %1185 = vdwg.mxu0
        %1186 = vrot.lane.b32.xlu0 %v675, 96
        %v1187 = vpop.permute.xlu0 %1186
        %1188 = vrot.lane.b32.xlu0 %v665, 96
        %v1189 = vpop.permute.xlu0 %1188
        %1190 = vrot.lane.b32.xlu0 %v667, 96
        %v1191 = vpop.permute.xlu0 %1190
        %1192 = vrot.lane.b32.xlu0 %v669, 96
        %v1193 = vpop.permute.xlu0 %1192
        %1198 = vrot.lane.b32.xlu0 %v682, 112
        %v1199 = vpop.permute.xlu0 %1198
        %1200 = vrot.lane.b32.xlu0 %v684, 112
        %v1201 = vpop.permute.xlu0 %1200
        %1202 = vrot.lane.b32.xlu0 %v686, 112
        %v1203 = vpop.permute.xlu0 %1202
        %1204 = vrot.lane.b32.xlu0 %v688, 112
        %v1205 = vpop.permute.xlu0 %1204
        %1214 = vrot.lane.b32.xlu0 %v726, 16
        %v1215 = vpop.permute.xlu0 %1214
        %1216 = vrot.lane.b32.xlu0 %v728, 16
        %v1217 = vpop.permute.xlu0 %1216
        %1218 = vrot.lane.b32.xlu0 %v730, 16
        %v1219 = vpop.permute.xlu0 %1218
        %1220 = vrot.lane.b32.xlu0 %v732, 16
        %v1221 = vpop.permute.xlu0 %1220
        %1226 = vrot.lane.b32.xlu0 %v747, 32
        %v1227 = vpop.permute.xlu0 %1226
        %1228 = vrot.lane.b32.xlu0 %v749, 32
        %v1229 = vpop.permute.xlu0 %1228
        %1230 = vrot.lane.b32.xlu0 %v751, 32
        %v1231 = vpop.permute.xlu0 %1230
        %1232 = vrot.lane.b32.xlu0 %v753, 32
        %v1233 = vpop.permute.xlu0 %1232
        %1238 = vrot.lane.b32.xlu0 %v769, 48
        %v1239 = vpop.permute.xlu0 %1238
        %1240 = vrot.lane.b32.xlu0 %v771, 48
        %v1241 = vpop.permute.xlu0 %1240
        %1242 = vrot.lane.b32.xlu0 %v773, 48
        %v1243 = vpop.permute.xlu0 %1242
        %1244 = vrot.lane.b32.xlu0 %v775, 48
        %v1245 = vpop.permute.xlu0 %1244
        %1250 = vrot.lane.b32.xlu0 %v791, 64
        %v1251 = vpop.permute.xlu0 %1250
        %1252 = vrot.lane.b32.xlu0 %v793, 64
        %v1253 = vpop.permute.xlu0 %1252
        %1254 = vrot.lane.b32.xlu0 %v795, 64
        %v1255 = vpop.permute.xlu0 %1254
        %1256 = vrot.lane.b32.xlu0 %v797, 64
        %v1257 = vpop.permute.xlu0 %1256
        %1262 = vrot.lane.b32.xlu0 %v813, 80
        %v1263 = vpop.permute.xlu0 %1262
        %1264 = vrot.lane.b32.xlu0 %v815, 80
        %v1265 = vpop.permute.xlu0 %1264
        %1266 = vrot.lane.b32.xlu0 %v817, 80
        %v1267 = vpop.permute.xlu0 %1266
        %1268 = vrot.lane.b32.xlu0 %v819, 80
        %v1269 = vpop.permute.xlu0 %1268
        %v1274 = vsel %vm832, %v1187, %v1199
        %v1275 = vsel %vm832, %v1189, %v1201
        %v1276 = vsel %vm832, %v1191, %v1203
        %v1277 = vsel %vm832, %v1193, %v1205
        %v1278 = vsel %vm837, %v1274, %v704
        %v1279 = vsel %vm837, %v1275, %v706
        %v1280 = vsel %vm837, %v1276, %v708
        %v1281 = vsel %vm837, %v1277, %v710
        %v1282 = vsel %vm842, %v1278, %v1215
        %v1283 = vsel %vm842, %v1279, %v1217
        %v1284 = vsel %vm842, %v1280, %v1219
        %v1285 = vsel %vm842, %v1281, %v1221
        %v1286 = vsel %vm847, %v1282, %v1227
        %v1287 = vsel %vm847, %v1283, %v1229
        %v1288 = vsel %vm847, %v1284, %v1231
        %v1289 = vsel %vm847, %v1285, %v1233
        %v1290 = vsel %vm852, %v1286, %v1239
        %v1291 = vsel %vm852, %v1287, %v1241
        %v1292 = vsel %vm852, %v1288, %v1243
        %v1293 = vsel %vm852, %v1289, %v1245
        %v1294 = vsel %vm857, %v1290, %v1251
        %v1295 = vsel %vm857, %v1291, %v1253
        %v1296 = vsel %vm857, %v1292, %v1255
        %v1297 = vsel %vm857, %v1293, %v1257
        %v1298 = vsel %vm862, %v1294, %v1263
        %v1299 = vsel %vm862, %v1295, %v1265
        %v1300 = vsel %vm862, %v1296, %v1267
        %v1301 = vsel %vm862, %v1297, %v1269
        %s1302 = scalar_lea.vmem %s1, 256
        %v1303 = vld [vmem:[%s1302] sm:$0xff]
        %v1304 = vld [vmem:[%s1302 + $0x8] sm:$0xff]
        %v1305 = vld [vmem:[%s1302 + $0x10] sm:$0xff]
        %v1306 = vld [vmem:[%s1302 + $0x18] sm:$0xff]
        %v1307 = vld [vmem:[%s1302 + $0x20] sm:$0xff]
        %v1308 = vld [vmem:[%s1302 + $0x28] sm:$0xff]
        %v1309 = vld [vmem:[%s1302 + $0x30] sm:$0xff]
        %v1310 = vld [vmem:[%s1302 + $0x38] sm:$0xff]
        %v1311 = vld [vmem:[%s1302 + $0x40] sm:$0xff]
        %v1312 = vld [vmem:[%s1302 + $0x48] sm:$0xff]
        %v1313 = vld [vmem:[%s1302 + $0x50] sm:$0xff]
        %v1314 = vld [vmem:[%s1302 + $0x58] sm:$0xff]
        %v1315 = vld [vmem:[%s1302 + $0x60] sm:$0xff]
        %v1316 = vld [vmem:[%s1302 + $0x68] sm:$0xff]
        %v1317 = vld [vmem:[%s1302 + $0x70] sm:$0xff]
        %v1318 = vld [vmem:[%s1302 + $0x78] sm:$0xff]
        %1319 = vmatprep.subr.mxu0 0.0
        %1320 = vmatpush1.msra.mxu0 %v1303
        %1321 = vmatprep.subr.mxu0 0.0
        %1322 = vmatpush1.msra.mxu0 %v1304
        %1323 = vmatprep.subr.mxu0 0.0
        %1324 = vmatpush1.msra.mxu0 %v1305
        %1325 = vmatprep.subr.mxu0 0.0
        %1326 = vmatpush1.msra.mxu0 %v1306
        %1327 = vmatprep.subr.mxu0 0.0
        %1328 = vmatpush1.msra.mxu0 %v1307
        %1329 = vmatprep.subr.mxu0 0.0
        %1330 = vmatpush1.msra.mxu0 %v1308
        %1331 = vmatprep.subr.mxu0 0.0
        %1332 = vmatpush1.msra.mxu0 %v1309
        %1333 = vmatprep.subr.mxu0 0.0
        %1334 = vmatpush1.msra.mxu0 %v1310
        %1335 = vmatprep.subr.mxu0 0.0
        %1336 = vmatpush1.msra.mxu0 %v1311
        %1337 = vmatprep.subr.mxu0 0.0
        %1338 = vmatpush1.msra.mxu0 %v1312
        %1339 = vmatprep.subr.mxu0 0.0
        %1340 = vmatpush1.msra.mxu0 %v1313
        %1341 = vmatprep.subr.mxu0 0.0
        %1342 = vmatpush1.msra.mxu0 %v1314
        %1343 = vmatprep.subr.mxu0 0.0
        %1344 = vmatpush1.msra.mxu0 %v1315
        %1345 = vmatprep.subr.mxu0 0.0
        %1346 = vmatpush1.msra.mxu0 %v1316
        %1347 = vmatprep.subr.mxu0 0.0
        %1348 = vmatpush1.msra.mxu0 %v1317
        %1349 = vmatprep.subr.mxu0 0.0
        %1350 = vmatpush1.msra.mxu0 %v1318
        %1351 = vmatprep.subr.mxu0 0.0
        %1352 = vmatpush1.msra.mxu0 0.0
        %1353 = vmatprep.subr.mxu0 0.0
        %1354 = vmatpush1.msra.mxu0 0.0
        %1355 = vmatprep.subr.mxu0 0.0
        %1356 = vmatpush1.msra.mxu0 0.0
        %1357 = vmatprep.subr.mxu0 0.0
        %1358 = vmatpush1.msra.mxu0 0.0
        %1359 = vmatprep.subr.mxu0 0.0
        %1360 = vmatpush1.msra.mxu0 0.0
        %1361 = vmatprep.subr.mxu0 0.0
        %1362 = vmatpush1.msra.mxu0 0.0
        %1363 = vmatprep.subr.mxu0 0.0
        %1364 = vmatpush1.msra.mxu0 0.0
        %1365 = vmatprep.subr.mxu0 0.0
        %1366 = vmatpush1.msra.mxu0 0.0
        %1367 = vmatprep.subr.mxu0 0.0
        %1368 = vmatpush1.msra.mxu0 0.0
        %1369 = vmatprep.subr.mxu0 0.0
        %1370 = vmatpush1.msra.mxu0 0.0
        %1371 = vmatprep.subr.mxu0 0.0
        %1372 = vmatpush1.msra.mxu0 0.0
        %1373 = vmatprep.subr.mxu0 0.0
        %1374 = vmatpush1.msra.mxu0 0.0
        %1375 = vmatprep.subr.mxu0 0.0
        %1376 = vmatpush1.msra.mxu0 0.0
        %1377 = vmatprep.subr.mxu0 0.0
        %1378 = vmatpush1.msra.mxu0 0.0
        %1379 = vmatprep.subr.mxu0 0.0
        %1380 = vmatpush1.msra.mxu0 0.0
        %1381 = vmatprep.subr.mxu0 0.0
        %1382 = vmatpush1.msra.mxu0 0.0
        %1383 = vmatprep.mubr.f32.mxu0 0.0
        %1384 = vmatmul.mubr.f32.gmra.mrb[0].mxu0 %v1298
        %v1385 = vpop.f32.mrb[0].mxu0
        %v1386 = vadd.f32 0.0, %v1385
        %v1387 = vpop.f32.mrb[0].mxu0
        %1388 = vmatprep.mubr.f32.mxu0 0.0
        %1389 = vmatmul.mubr.f32.gmra.mrb[0].mxu0 %v1299
        %v1390 = vpop.f32.mrb[0].mxu0
        %v1391 = vadd.f32 0.0, %v1390
        %v1392 = vpop.f32.mrb[0].mxu0
        %1393 = vmatprep.mubr.f32.mxu0 0.0
        %1394 = vmatmul.mubr.f32.gmra.mrb[0].mxu0 %v1300
        %v1395 = vpop.f32.mrb[0].mxu0
        %v1396 = vadd.f32 0.0, %v1395
        %v1397 = vpop.f32.mrb[0].mxu0
        %1398 = vmatprep.mubr.f32.mxu0 0.0
        %1399 = vmatmul.mubr.f32.gmra.mrb[0].mxu0 %v1301
        %v1400 = vpop.f32.mrb[0].mxu0
        %v1401 = vadd.f32 0.0, %v1400
        %v1402 = vpop.f32.mrb[0].mxu0
        %1403 = vdwg.mxu0
        %1404 = vrot.lane.b32.xlu0 %v675, 80
        %v1405 = vpop.permute.xlu0 %1404
        %1406 = vrot.lane.b32.xlu0 %v665, 80
        %v1407 = vpop.permute.xlu0 %1406
        %1408 = vrot.lane.b32.xlu0 %v667, 80
        %v1409 = vpop.permute.xlu0 %1408
        %1410 = vrot.lane.b32.xlu0 %v669, 80
        %v1411 = vpop.permute.xlu0 %1410
        %1416 = vrot.lane.b32.xlu0 %v682, 96
        %v1417 = vpop.permute.xlu0 %1416
        %1418 = vrot.lane.b32.xlu0 %v684, 96
        %v1419 = vpop.permute.xlu0 %1418
        %1420 = vrot.lane.b32.xlu0 %v686, 96
        %v1421 = vpop.permute.xlu0 %1420
        %1422 = vrot.lane.b32.xlu0 %v688, 96
        %v1423 = vpop.permute.xlu0 %1422
        %1428 = vrot.lane.b32.xlu0 %v704, 112
        %v1429 = vpop.permute.xlu0 %1428
        %1430 = vrot.lane.b32.xlu0 %v706, 112
        %v1431 = vpop.permute.xlu0 %1430
        %1432 = vrot.lane.b32.xlu0 %v708, 112
        %v1433 = vpop.permute.xlu0 %1432
        %1434 = vrot.lane.b32.xlu0 %v710, 112
        %v1435 = vpop.permute.xlu0 %1434
        %1444 = vrot.lane.b32.xlu0 %v747, 16
        %v1445 = vpop.permute.xlu0 %1444
        %1446 = vrot.lane.b32.xlu0 %v749, 16
        %v1447 = vpop.permute.xlu0 %1446
        %1448 = vrot.lane.b32.xlu0 %v751, 16
        %v1449 = vpop.permute.xlu0 %1448
        %1450 = vrot.lane.b32.xlu0 %v753, 16
        %v1451 = vpop.permute.xlu0 %1450
        %1456 = vrot.lane.b32.xlu0 %v769, 32
        %v1457 = vpop.permute.xlu0 %1456
        %1458 = vrot.lane.b32.xlu0 %v771, 32
        %v1459 = vpop.permute.xlu0 %1458
        %1460 = vrot.lane.b32.xlu0 %v773, 32
        %v1461 = vpop.permute.xlu0 %1460
        %1462 = vrot.lane.b32.xlu0 %v775, 32
        %v1463 = vpop.permute.xlu0 %1462
        %1468 = vrot.lane.b32.xlu0 %v791, 48
        %v1469 = vpop.permute.xlu0 %1468
        %1470 = vrot.lane.b32.xlu0 %v793, 48
        %v1471 = vpop.permute.xlu0 %1470
        %1472 = vrot.lane.b32.xlu0 %v795, 48
        %v1473 = vpop.permute.xlu0 %1472
        %1474 = vrot.lane.b32.xlu0 %v797, 48
        %v1475 = vpop.permute.xlu0 %1474
        %1480 = vrot.lane.b32.xlu0 %v813, 64
        %v1481 = vpop.permute.xlu0 %1480
        %1482 = vrot.lane.b32.xlu0 %v815, 64
        %v1483 = vpop.permute.xlu0 %1482
        %1484 = vrot.lane.b32.xlu0 %v817, 64
        %v1485 = vpop.permute.xlu0 %1484
        %1486 = vrot.lane.b32.xlu0 %v819, 64
        %v1487 = vpop.permute.xlu0 %1486
        %v1492 = vsel %vm832, %v1405, %v1417
        %v1493 = vsel %vm832, %v1407, %v1419
        %v1494 = vsel %vm832, %v1409, %v1421
        %v1495 = vsel %vm832, %v1411, %v1423
        %v1496 = vsel %vm837, %v1492, %v1429
        %v1497 = vsel %vm837, %v1493, %v1431
        %v1498 = vsel %vm837, %v1494, %v1433
        %v1499 = vsel %vm837, %v1495, %v1435
        %v1500 = vsel %vm842, %v1496, %v726
        %v1501 = vsel %vm842, %v1497, %v728
        %v1502 = vsel %vm842, %v1498, %v730
        %v1503 = vsel %vm842, %v1499, %v732
        %v1504 = vsel %vm847, %v1500, %v1445
        %v1505 = vsel %vm847, %v1501, %v1447
        %v1506 = vsel %vm847, %v1502, %v1449
        %v1507 = vsel %vm847, %v1503, %v1451
        %v1508 = vsel %vm852, %v1504, %v1457
        %v1509 = vsel %vm852, %v1505, %v1459
        %v1510 = vsel %vm852, %v1506, %v1461
        %v1511 = vsel %vm852, %v1507, %v1463
        %v1512 = vsel %vm857, %v1508, %v1469
        %v1513 = vsel %vm857, %v1509, %v1471
        %v1514 = vsel %vm857, %v1510, %v1473
        %v1515 = vsel %vm857, %v1511, %v1475
        %v1516 = vsel %vm862, %v1512, %v1481
        %v1517 = vsel %vm862, %v1513, %v1483
        %v1518 = vsel %vm862, %v1514, %v1485
        %v1519 = vsel %vm862, %v1515, %v1487
        %s1520 = scalar_lea.vmem %s1, 384
        %v1521 = vld [vmem:[%s1520] sm:$0xff]
        %v1522 = vld [vmem:[%s1520 + $0x8] sm:$0xff]
        %v1523 = vld [vmem:[%s1520 + $0x10] sm:$0xff]
        %v1524 = vld [vmem:[%s1520 + $0x18] sm:$0xff]
        %v1525 = vld [vmem:[%s1520 + $0x20] sm:$0xff]
        %v1526 = vld [vmem:[%s1520 + $0x28] sm:$0xff]
        %v1527 = vld [vmem:[%s1520 + $0x30] sm:$0xff]
        %v1528 = vld [vmem:[%s1520 + $0x38] sm:$0xff]
        %v1529 = vld [vmem:[%s1520 + $0x40] sm:$0xff]
        %v1530 = vld [vmem:[%s1520 + $0x48] sm:$0xff]
        %v1531 = vld [vmem:[%s1520 + $0x50] sm:$0xff]
        %v1532 = vld [vmem:[%s1520 + $0x58] sm:$0xff]
        %v1533 = vld [vmem:[%s1520 + $0x60] sm:$0xff]
        %v1534 = vld [vmem:[%s1520 + $0x68] sm:$0xff]
        %v1535 = vld [vmem:[%s1520 + $0x70] sm:$0xff]
        %v1536 = vld [vmem:[%s1520 + $0x78] sm:$0xff]
        %1537 = vmatprep.subr.mxu0 0.0
        %1538 = vmatpush1.msra.mxu0 %v1521
        %1539 = vmatprep.subr.mxu0 0.0
        %1540 = vmatpush1.msra.mxu0 %v1522
        %1541 = vmatprep.subr.mxu0 0.0
        %1542 = vmatpush1.msra.mxu0 %v1523
        %1543 = vmatprep.subr.mxu0 0.0
        %1544 = vmatpush1.msra.mxu0 %v1524
        %1545 = vmatprep.subr.mxu0 0.0
        %1546 = vmatpush1.msra.mxu0 %v1525
        %1547 = vmatprep.subr.mxu0 0.0
        %1548 = vmatpush1.msra.mxu0 %v1526
        %1549 = vmatprep.subr.mxu0 0.0
        %1550 = vmatpush1.msra.mxu0 %v1527
        %1551 = vmatprep.subr.mxu0 0.0
        %1552 = vmatpush1.msra.mxu0 %v1528
        %1553 = vmatprep.subr.mxu0 0.0
        %1554 = vmatpush1.msra.mxu0 %v1529
        %1555 = vmatprep.subr.mxu0 0.0
        %1556 = vmatpush1.msra.mxu0 %v1530
        %1557 = vmatprep.subr.mxu0 0.0
        %1558 = vmatpush1.msra.mxu0 %v1531
        %1559 = vmatprep.subr.mxu0 0.0
        %1560 = vmatpush1.msra.mxu0 %v1532
        %1561 = vmatprep.subr.mxu0 0.0
        %1562 = vmatpush1.msra.mxu0 %v1533
        %1563 = vmatprep.subr.mxu0 0.0
        %1564 = vmatpush1.msra.mxu0 %v1534
        %1565 = vmatprep.subr.mxu0 0.0
        %1566 = vmatpush1.msra.mxu0 %v1535
        %1567 = vmatprep.subr.mxu0 0.0
        %1568 = vmatpush1.msra.mxu0 %v1536
        %1569 = vmatprep.subr.mxu0 0.0
        %1570 = vmatpush1.msra.mxu0 0.0
        %1571 = vmatprep.subr.mxu0 0.0
        %1572 = vmatpush1.msra.mxu0 0.0
        %1573 = vmatprep.subr.mxu0 0.0
        %1574 = vmatpush1.msra.mxu0 0.0
        %1575 = vmatprep.subr.mxu0 0.0
        %1576 = vmatpush1.msra.mxu0 0.0
        %1577 = vmatprep.subr.mxu0 0.0
        %1578 = vmatpush1.msra.mxu0 0.0
        %1579 = vmatprep.subr.mxu0 0.0
        %1580 = vmatpush1.msra.mxu0 0.0
        %1581 = vmatprep.subr.mxu0 0.0
        %1582 = vmatpush1.msra.mxu0 0.0
        %1583 = vmatprep.subr.mxu0 0.0
        %1584 = vmatpush1.msra.mxu0 0.0
        %1585 = vmatprep.subr.mxu0 0.0
        %1586 = vmatpush1.msra.mxu0 0.0
        %1587 = vmatprep.subr.mxu0 0.0
        %1588 = vmatpush1.msra.mxu0 0.0
        %1589 = vmatprep.subr.mxu0 0.0
        %1590 = vmatpush1.msra.mxu0 0.0
        %1591 = vmatprep.subr.mxu0 0.0
        %1592 = vmatpush1.msra.mxu0 0.0
        %1593 = vmatprep.subr.mxu0 0.0
        %1594 = vmatpush1.msra.mxu0 0.0
        %1595 = vmatprep.subr.mxu0 0.0
        %1596 = vmatpush1.msra.mxu0 0.0
        %1597 = vmatprep.subr.mxu0 0.0
        %1598 = vmatpush1.msra.mxu0 0.0
        %1599 = vmatprep.subr.mxu0 0.0
        %1600 = vmatpush1.msra.mxu0 0.0
        %1601 = vmatprep.mubr.f32.mxu0 0.0
        %1602 = vmatmul.mubr.f32.gmra.mrb[0].mxu0 %v1516
        %v1603 = vpop.f32.mrb[0].mxu0
        %v1604 = vadd.f32 0.0, %v1603
        %v1605 = vpop.f32.mrb[0].mxu0
        %1606 = vmatprep.mubr.f32.mxu0 0.0
        %1607 = vmatmul.mubr.f32.gmra.mrb[0].mxu0 %v1517
        %v1608 = vpop.f32.mrb[0].mxu0
        %v1609 = vadd.f32 0.0, %v1608
        %v1610 = vpop.f32.mrb[0].mxu0
        %1611 = vmatprep.mubr.f32.mxu0 0.0
        %1612 = vmatmul.mubr.f32.gmra.mrb[0].mxu0 %v1518
        %v1613 = vpop.f32.mrb[0].mxu0
        %v1614 = vadd.f32 0.0, %v1613
        %v1615 = vpop.f32.mrb[0].mxu0
        %1616 = vmatprep.mubr.f32.mxu0 0.0
        %1617 = vmatmul.mubr.f32.gmra.mrb[0].mxu0 %v1519
        %v1618 = vpop.f32.mrb[0].mxu0
        %v1619 = vadd.f32 0.0, %v1618
        %v1620 = vpop.f32.mrb[0].mxu0
        %1621 = vdwg.mxu0
        %1626 = vrot.lane.b32.xlu0 %v1168, 16
        %v1627 = vpop.permute.xlu0 %1626
        %1628 = vrot.lane.b32.xlu0 %v1173, 16
        %v1629 = vpop.permute.xlu0 %1628
        %1630 = vrot.lane.b32.xlu0 %v1178, 16
        %v1631 = vpop.permute.xlu0 %1630
        %1632 = vrot.lane.b32.xlu0 %v1183, 16
        %v1633 = vpop.permute.xlu0 %1632
        %1642 = vrot.lane.b32.xlu0 %v1386, 32
        %v1643 = vpop.permute.xlu0 %1642
        %1644 = vrot.lane.b32.xlu0 %v1391, 32
        %v1645 = vpop.permute.xlu0 %1644
        %1646 = vrot.lane.b32.xlu0 %v1396, 32
        %v1647 = vpop.permute.xlu0 %1646
        %1648 = vrot.lane.b32.xlu0 %v1401, 32
        %v1649 = vpop.permute.xlu0 %1648
        %1658 = vrot.lane.b32.xlu0 %v1604, 48
        %v1659 = vpop.permute.xlu0 %1658
        %1660 = vrot.lane.b32.xlu0 %v1609, 48
        %v1661 = vpop.permute.xlu0 %1660
        %1662 = vrot.lane.b32.xlu0 %v1614, 48
        %v1663 = vpop.permute.xlu0 %1662
        %1664 = vrot.lane.b32.xlu0 %v1619, 48
        %v1665 = vpop.permute.xlu0 %1664
        %v1670 = vsel %vm832, %v950, %v1627
        %v1671 = vsel %vm832, %v955, %v1629
        %v1672 = vsel %vm832, %v960, %v1631
        %v1673 = vsel %vm832, %v965, %v1633
        %v1674 = vsel %vm837, %v1670, %v1643
        %v1675 = vsel %vm837, %v1671, %v1645
        %v1676 = vsel %vm837, %v1672, %v1647
        %v1677 = vsel %vm837, %v1673, %v1649
        %v1678 = vsel %vm842, %v1674, %v1659
        %v1679 = vsel %vm842, %v1675, %v1661
        %v1680 = vsel %vm842, %v1676, %v1663
        %v1681 = vsel %vm842, %v1677, %v1665
        %v1682 = vld [vmem:[%s2] sm:$0x1]
        %v1684 = vlaneseq
        %v1685 = vshrl.u32 %v1684, 7
        %v1686 = vsub.s32 0, %v1685
        %v1687 = vrot.slane %v1682, %v1686
        %v1689 = vadd.f32 %v1678, %v1687
        %v1690 = vadd.f32 %v1679, %v1687
        %v1691 = vadd.f32 %v1680, %v1687
        %v1692 = vadd.f32 %v1681, %v1687
        %v1693 = vmul.f32 %v1689, %v1689
        %v1694 = vmul.f32 %v1690, %v1690
        %v1695 = vmul.f32 %v1691, %v1691
        %v1696 = vmul.f32 %v1692, %v1692
        %v1697 = vmul.f32 %v1689, %v1693
        %v1698 = vmul.f32 %v1690, %v1694
        %v1699 = vmul.f32 %v1691, %v1695
        %v1700 = vmul.f32 %v1692, %v1696
        %v1701 = vmul.f32 %v1697, 0.044715
        %v1702 = vmul.f32 %v1698, 0.044715
        %v1703 = vmul.f32 %v1699, 0.044715
        %v1704 = vmul.f32 %v1700, 0.044715
        %v1705 = vadd.f32 %v1689, %v1701
        %v1706 = vadd.f32 %v1690, %v1702
        %v1707 = vadd.f32 %v1691, %v1703
        %v1708 = vadd.f32 %v1692, %v1704
        %v1709 = vmul.f32 %v1705, 0.7978846
        %v1710 = vmul.f32 %v1706, 0.7978846
        %v1711 = vmul.f32 %v1707, 0.7978846
        %v1712 = vmul.f32 %v1708, 0.7978846
        %v1713 = vtanh.pop %v1709
        %v1714 = vtanh.pop %v1710
        %v1715 = vtanh.pop %v1711
        %v1716 = vtanh.pop %v1712
        %v1717 = vadd.f32 %v1713, 1.0
        %v1718 = vadd.f32 %v1714, 1.0
        %v1719 = vadd.f32 %v1715, 1.0
        %v1720 = vadd.f32 %v1716, 1.0
        %v1721 = vmul.f32 %v1717, 0.5
        %v1722 = vmul.f32 %v1718, 0.5
        %v1723 = vmul.f32 %v1719, 0.5
        %v1724 = vmul.f32 %v1720, 0.5
        %v1725 = vmul.f32 %v1689, %v1721
        %v1726 = vmul.f32 %v1690, %v1722
        %v1727 = vmul.f32 %v1691, %v1723
        %v1728 = vmul.f32 %v1692, %v1724
        %v1729 = vadd.f32 %v1725, %v654
        %v1730 = vadd.f32 %v1726, %v655
        %v1731 = vadd.f32 %v1727, %v656
        %v1732 = vadd.f32 %v1728, %v657
        %v1733 = vld [vmem:[%s3] sm:$0x1]
        %v1734 = vld [vmem:[%s4] sm:$0x1]
        %v1735 = vsel %vm847, %v1729, 0.0
        %1736 = vadd.xlane.f32.xlu0 %v1735
        %v1737 = vpop.xlane.xlu0 %1736
        %v1738 = vsel %vm847, %v1730, 0.0
        %1739 = vadd.xlane.f32.xlu0 %v1738
        %v1740 = vpop.xlane.xlu0 %1739
        %v1741 = vsel %vm847, %v1731, 0.0
        %1742 = vadd.xlane.f32.xlu0 %v1741
        %v1743 = vpop.xlane.xlu0 %1742
        %v1744 = vsel %vm847, %v1732, 0.0
        %1745 = vadd.xlane.f32.xlu0 %v1744
        %v1746 = vpop.xlane.xlu0 %1745
        %v1747 = vrcp.pop 64.0
        %v1748 = vmul.f32 %v1737, %v1747
        %v1749 = vmul.f32 %v1740, %v1747
        %v1750 = vmul.f32 %v1743, %v1747
        %v1751 = vmul.f32 %v1746, %v1747
        %v1752 = vsub.f32 %v1729, %v1748
        %v1753 = vsub.f32 %v1730, %v1749
        %v1754 = vsub.f32 %v1731, %v1750
        %v1755 = vsub.f32 %v1732, %v1751
        %v1756 = vmul.f32 %v1752, %v1752
        %v1757 = vmul.f32 %v1753, %v1753
        %v1758 = vmul.f32 %v1754, %v1754
        %v1759 = vmul.f32 %v1755, %v1755
        %v1760 = vsel %vm847, %v1756, 0.0
        %1761 = vadd.xlane.f32.xlu0 %v1760
        %v1762 = vpop.xlane.xlu0 %1761
        %v1763 = vsel %vm847, %v1757, 0.0
        %1764 = vadd.xlane.f32.xlu0 %v1763
        %v1765 = vpop.xlane.xlu0 %1764
        %v1766 = vsel %vm847, %v1758, 0.0
        %1767 = vadd.xlane.f32.xlu0 %v1766
        %v1768 = vpop.xlane.xlu0 %1767
        %v1769 = vsel %vm847, %v1759, 0.0
        %1770 = vadd.xlane.f32.xlu0 %v1769
        %v1771 = vpop.xlane.xlu0 %1770
        %v1772 = vmul.f32 %v1762, %v1747
        %v1773 = vmul.f32 %v1765, %v1747
        %v1774 = vmul.f32 %v1768, %v1747
        %v1775 = vmul.f32 %v1771, %v1747
        %v1776 = vadd.f32 %v1772, 1e-05
        %v1777 = vadd.f32 %v1773, 1e-05
        %v1778 = vadd.f32 %v1774, 1e-05
        %v1779 = vadd.f32 %v1775, 1e-05
        %v1780 = vrsqrt.pop %v1776
        %v1781 = vrsqrt.pop %v1777
        %v1782 = vrsqrt.pop %v1778
        %v1783 = vrsqrt.pop %v1779
        %v1784 = vmul.f32 %v1752, %v1780
        %v1785 = vmul.f32 %v1753, %v1781
        %v1786 = vmul.f32 %v1754, %v1782
        %v1787 = vmul.f32 %v1755, %v1783
        %v1789 = vlaneseq
        %v1790 = vshrl.u32 %v1789, 7
        %v1791 = vsub.s32 0, %v1790
        %v1792 = vrot.slane %v1733, %v1791
        %v1794 = vmul.f32 %v1784, %v1792
        %v1795 = vmul.f32 %v1785, %v1792
        %v1796 = vmul.f32 %v1786, %v1792
        %v1797 = vmul.f32 %v1787, %v1792
        %v1799 = vlaneseq
        %v1800 = vshrl.u32 %v1799, 7
        %v1801 = vsub.s32 0, %v1800
        %v1802 = vrot.slane %v1734, %v1801
        %v1804 = vadd.f32 %v1794, %v1802
        %v1805 = vadd.f32 %v1795, %v1802
        %v1806 = vadd.f32 %v1796, %v1802
        %v1807 = vadd.f32 %v1797, %v1802
        %v1808 = vlaneseq
        %v1809 = vand.u32 %v1808, 127
        %v1810 = vld [vmem:[%s5] sm:$0xff]
        %v1811 = vld [vmem:[%s5 + $0x8] sm:$0xff]
        %v1812 = vld [vmem:[%s5 + $0x10] sm:$0xff]
        %v1813 = vld [vmem:[%s5 + $0x18] sm:$0xff]
        %v1814 = vld [vmem:[%s5 + $0x20] sm:$0xff]
        %v1815 = vld [vmem:[%s5 + $0x28] sm:$0xff]
        %v1816 = vld [vmem:[%s5 + $0x30] sm:$0xff]
        %v1817 = vld [vmem:[%s5 + $0x38] sm:$0xff]
        %v1818 = vld [vmem:[%s5 + $0x40] sm:$0xff]
        %v1819 = vld [vmem:[%s5 + $0x48] sm:$0xff]
        %v1820 = vld [vmem:[%s5 + $0x50] sm:$0xff]
        %v1821 = vld [vmem:[%s5 + $0x58] sm:$0xff]
        %v1822 = vld [vmem:[%s5 + $0x60] sm:$0xff]
        %v1823 = vld [vmem:[%s5 + $0x68] sm:$0xff]
        %v1824 = vld [vmem:[%s5 + $0x70] sm:$0xff]
        %v1825 = vld [vmem:[%s5 + $0x78] sm:$0xff]
        %v1826 = vld [vmem:[%s6] sm:$0x3]
        %v1828 = vlaneseq
        %v1829 = vshrl.u32 %v1828, 7
        %v1830 = vsub.s32 0, %v1829
        %v1831 = vrot.slane %v1826, %v1830
        %v1832 = vlaneseq
        %v1833 = vshrl.u32 %v1832, 7
        %v1834 = vsub.s32 1, %v1833
        %v1835 = vrot.slane %v1826, %v1834
        %v1839 = vsel %vm847, %v1804, 0
        %v1842 = vsel %vm847, %v1805, 0
        %v1845 = vsel %vm847, %v1806, 0
        %v1848 = vsel %vm847, %v1807, 0
        %1850 = vmatprep.subr.mxu0 %v1811
        %1851 = vmatpush1.msra.mxu0 %v1810
        %1852 = vmatprep.subr.mxu0 %v1813
        %1853 = vmatpush1.msra.mxu0 %v1812
        %1854 = vmatprep.subr.mxu0 %v1815
        %1855 = vmatpush1.msra.mxu0 %v1814
        %1856 = vmatprep.subr.mxu0 %v1817
        %1857 = vmatpush1.msra.mxu0 %v1816
        %1858 = vmatprep.subr.mxu0 %v1819
        %1859 = vmatpush1.msra.mxu0 %v1818
        %1860 = vmatprep.subr.mxu0 %v1821
        %1861 = vmatpush1.msra.mxu0 %v1820
        %1862 = vmatprep.subr.mxu0 %v1823
        %1863 = vmatpush1.msra.mxu0 %v1822
        %1864 = vmatprep.subr.mxu0 %v1825
        %1865 = vmatpush1.msra.mxu0 %v1824
        %1866 = vmatprep.subr.mxu0 0.0
        %1867 = vmatpush1.msra.mxu0 0.0
        %1868 = vmatprep.subr.mxu0 0.0
        %1869 = vmatpush1.msra.mxu0 0.0
        %1870 = vmatprep.subr.mxu0 0.0
        %1871 = vmatpush1.msra.mxu0 0.0
        %1872 = vmatprep.subr.mxu0 0.0
        %1873 = vmatpush1.msra.mxu0 0.0
        %1874 = vmatprep.subr.mxu0 0.0
        %1875 = vmatpush1.msra.mxu0 0.0
        %1876 = vmatprep.subr.mxu0 0.0
        %1877 = vmatpush1.msra.mxu0 0.0
        %1878 = vmatprep.subr.mxu0 0.0
        %1879 = vmatpush1.msra.mxu0 0.0
        %1880 = vmatprep.subr.mxu0 0.0
        %1881 = vmatpush1.msra.mxu0 0.0
        %1882 = vmatprep.subr.mxu0 0.0
        %1883 = vmatpush1.msra.mxu0 0.0
        %1884 = vmatprep.subr.mxu0 0.0
        %1885 = vmatpush1.msra.mxu0 0.0
        %1886 = vmatprep.subr.mxu0 0.0
        %1887 = vmatpush1.msra.mxu0 0.0
        %1888 = vmatprep.subr.mxu0 0.0
        %1889 = vmatpush1.msra.mxu0 0.0
        %1890 = vmatprep.subr.mxu0 0.0
        %1891 = vmatpush1.msra.mxu0 0.0
        %1892 = vmatprep.subr.mxu0 0.0
        %1893 = vmatpush1.msra.mxu0 0.0
        %1894 = vmatprep.subr.mxu0 0.0
        %1895 = vmatpush1.msra.mxu0 0.0
        %1896 = vmatprep.subr.mxu0 0.0
        %1897 = vmatpush1.msra.mxu0 0.0
        %1898 = vmatprep.subr.mxu0 0.0
        %1899 = vmatpush1.msra.mxu0 0.0
        %1900 = vmatprep.subr.mxu0 0.0
        %1901 = vmatpush1.msra.mxu0 0.0
        %1902 = vmatprep.subr.mxu0 0.0
        %1903 = vmatpush1.msra.mxu0 0.0
        %1904 = vmatprep.subr.mxu0 0.0
        %1905 = vmatpush1.msra.mxu0 0.0
        %1906 = vmatprep.subr.mxu0 0.0
        %1907 = vmatpush1.msra.mxu0 0.0
        %1908 = vmatprep.subr.mxu0 0.0
        %1909 = vmatpush1.msra.mxu0 0.0
        %1910 = vmatprep.subr.mxu0 0.0
        %1911 = vmatpush1.msra.mxu0 0.0
        %1912 = vmatprep.subr.mxu0 0.0
        %1913 = vmatpush1.msra.mxu0 0.0
        %1914 = vmatprep.mubr.f32.mxu0 0.0
        %1915 = vmatmul.mubr.f32.gmra.mrb[0].mxu0 %v1839
        %v1916 = vpop.f32.mrb[0].mxu0
        %v1917 = vadd.f32 %v1831, %v1916
        %v1918 = vpop.f32.mrb[0].mxu0
        %v1919 = vadd.f32 %v1835, %v1918
        %1920 = vmatprep.mubr.f32.mxu0 0.0
        %1921 = vmatmul.mubr.f32.gmra.mrb[0].mxu0 %v1842
        %v1922 = vpop.f32.mrb[0].mxu0
        %v1923 = vadd.f32 %v1831, %v1922
        %v1924 = vpop.f32.mrb[0].mxu0
        %v1925 = vadd.f32 %v1835, %v1924
        %1926 = vmatprep.mubr.f32.mxu0 0.0
        %1927 = vmatmul.mubr.f32.gmra.mrb[0].mxu0 %v1845
        %v1928 = vpop.f32.mrb[0].mxu0
        %v1929 = vadd.f32 %v1831, %v1928
        %v1930 = vpop.f32.mrb[0].mxu0
        %v1931 = vadd.f32 %v1835, %v1930
        %1932 = vmatprep.mubr.f32.mxu0 0.0
        %1933 = vmatmul.mubr.f32.gmra.mrb[0].mxu0 %v1848
        %v1934 = vpop.f32.mrb[0].mxu0
        %v1935 = vadd.f32 %v1831, %v1934
        %v1936 = vpop.f32.mrb[0].mxu0
        %v1937 = vadd.f32 %v1835, %v1936
        %1938 = vdwg.mxu0
        %v1939 = vld [vmem:[%s7] sm:$0xff]
        %v1940 = vld [vmem:[%s7 + $0x8] sm:$0xff]
        %v1941 = vld [vmem:[%s7 + $0x10] sm:$0xff]
        %v1942 = vld [vmem:[%s7 + $0x18] sm:$0xff]
        %v1943 = vld [vmem:[%s7 + $0x20] sm:$0xff]
        %v1944 = vld [vmem:[%s7 + $0x28] sm:$0xff]
        %v1945 = vld [vmem:[%s7 + $0x30] sm:$0xff]
        %v1946 = vld [vmem:[%s7 + $0x38] sm:$0xff]
        %1951 = vrot.lane.b32.xlu0 %v1917, 64
        %v1952 = vpop.permute.xlu0 %1951
        %1953 = vrot.lane.b32.xlu0 %v1923, 64
        %v1954 = vpop.permute.xlu0 %1953
        %1955 = vrot.lane.b32.xlu0 %v1929, 64
        %v1956 = vpop.permute.xlu0 %1955
        %1957 = vrot.lane.b32.xlu0 %v1935, 64
        %v1958 = vpop.permute.xlu0 %1957
        %v1959 = vsel %vm832, %v1917, 0
        %v1961 = vsel %vm832, %v1923, 0
        %v1963 = vsel %vm832, %v1929, 0
        %v1965 = vsel %vm832, %v1935, 0
        %v1967 = vsel %vm832, %v1952, 0
        %v1969 = vsel %vm832, %v1954, 0
        %v1971 = vsel %vm832, %v1956, 0
        %v1973 = vsel %vm832, %v1958, 0
        %1975 = vmatprep.subr.mxu0 0.0
        %1976 = vmatpush1.xpose.msra.mxu0 %v1967
        %1977 = vmatprep.subr.mxu0 0.0
        %1978 = vmatpush1.xpose.msra.mxu0 %v1969
        %1979 = vmatprep.subr.mxu0 0.0
        %1980 = vmatpush1.xpose.msra.mxu0 %v1971
        %1981 = vmatprep.subr.mxu0 0.0
        %1982 = vmatpush1.xpose.msra.mxu0 %v1973
        %1983 = vmatprep.subr.mxu0 0.0
        %1984 = vmatpush1.xpose.msra.mxu0 0.0
        %1985 = vmatprep.subr.mxu0 0.0
        %1986 = vmatpush1.xpose.msra.mxu0 0.0
        %1987 = vmatprep.subr.mxu0 0.0
        %1988 = vmatpush1.xpose.msra.mxu0 0.0
        %1989 = vmatprep.subr.mxu0 0.0
        %1990 = vmatpush1.xpose.msra.mxu0 0.0
        %1991 = vmatprep.subr.mxu0 0.0
        %1992 = vmatpush1.xpose.msra.mxu0 0.0
        %1993 = vmatprep.subr.mxu0 0.0
        %1994 = vmatpush1.xpose.msra.mxu0 0.0
        %1995 = vmatprep.subr.mxu0 0.0
        %1996 = vmatpush1.xpose.msra.mxu0 0.0
        %1997 = vmatprep.subr.mxu0 0.0
        %1998 = vmatpush1.xpose.msra.mxu0 0.0
        %1999 = vmatprep.subr.mxu0 0.0
        %2000 = vmatpush1.xpose.msra.mxu0 0.0
        %2001 = vmatprep.subr.mxu0 0.0
        %2002 = vmatpush1.xpose.msra.mxu0 0.0
        %2003 = vmatprep.subr.mxu0 0.0
        %2004 = vmatpush1.xpose.msra.mxu0 0.0
        %2005 = vmatprep.subr.mxu0 0.0
        %2006 = vmatpush1.xpose.msra.mxu0 0.0
        %2007 = vmatprep.subr.mxu0 0.0
        %2008 = vmatpush1.xpose.msra.mxu0 0.0
        %2009 = vmatprep.subr.mxu0 0.0
        %2010 = vmatpush1.xpose.msra.mxu0 0.0
        %2011 = vmatprep.subr.mxu0 0.0
        %2012 = vmatpush1.xpose.msra.mxu0 0.0
        %2013 = vmatprep.subr.mxu0 0.0
        %2014 = vmatpush1.xpose.msra.mxu0 0.0
        %2015 = vmatprep.subr.mxu0 0.0
        %2016 = vmatpush1.xpose.msra.mxu0 0.0
        %2017 = vmatprep.subr.mxu0 0.0
        %2018 = vmatpush1.xpose.msra.mxu0 0.0
        %2019 = vmatprep.subr.mxu0 0.0
        %2020 = vmatpush1.xpose.msra.mxu0 0.0
        %2021 = vmatprep.subr.mxu0 0.0
        %2022 = vmatpush1.xpose.msra.mxu0 0.0
        %2023 = vmatprep.subr.mxu0 0.0
        %2024 = vmatpush1.xpose.msra.mxu0 0.0
        %2025 = vmatprep.subr.mxu0 0.0
        %2026 = vmatpush1.xpose.msra.mxu0 0.0
        %2027 = vmatprep.subr.mxu0 0.0
        %2028 = vmatpush1.xpose.msra.mxu0 0.0
        %2029 = vmatprep.subr.mxu0 0.0
        %2030 = vmatpush1.xpose.msra.mxu0 0.0
        %2031 = vmatprep.subr.mxu0 0.0
        %2032 = vmatpush1.xpose.msra.mxu0 0.0
        %2033 = vmatprep.subr.mxu0 0.0
        %2034 = vmatpush1.xpose.msra.mxu0 0.0
        %2035 = vmatprep.subr.mxu0 0.0
        %2036 = vmatpush1.xpose.msra.mxu0 0.0
        %2037 = vmatprep.subr.mxu0 0.0
        %2038 = vmatpush1.xpose.msra.mxu0 0.0
        %2039 = vmatprep.mubr.f32.mxu0 0.0
        %2040 = vmatmul.mubr.f32.gmra.mrb[0].mxu0 %v1959
        %v2041 = vpop.f32.mrb[0].mxu0
        %v2042 = vadd.f32 0.0, %v2041
        %v2043 = vpop.f32.mrb[0].mxu0
        %2044 = vmatprep.mubr.f32.mxu0 0.0
        %2045 = vmatmul.mubr.f32.gmra.mrb[0].mxu0 %v1961
        %v2046 = vpop.f32.mrb[0].mxu0
        %v2047 = vadd.f32 0.0, %v2046
        %v2048 = vpop.f32.mrb[0].mxu0
        %2049 = vmatprep.mubr.f32.mxu0 0.0
        %2050 = vmatmul.mubr.f32.gmra.mrb[0].mxu0 %v1963
        %v2051 = vpop.f32.mrb[0].mxu0
        %v2052 = vadd.f32 0.0, %v2051
        %v2053 = vpop.f32.mrb[0].mxu0
        %2054 = vmatprep.mubr.f32.mxu0 0.0
        %2055 = vmatmul.mubr.f32.gmra.mrb[0].mxu0 %v1965
        %v2056 = vpop.f32.mrb[0].mxu0
        %v2057 = vadd.f32 0.0, %v2056
        %v2058 = vpop.f32.mrb[0].mxu0
        %2059 = vdwg.mxu0
        %vm2060 = vcmp.lt.s32.totalorder %v1809, 31
        %v2061 = vsel %vm2060, %v2042, -1e+30
        %v2062 = vsel %vm2060, %v2047, -1e+30
        %v2063 = vsel %vm2060, %v2052, -1e+30
        %v2064 = vsel %vm2060, %v2057, -1e+30
        %v2065 = vsel %vm837, %v2061, -inf
        %2066 = vmax.xlane.f32.xlu0 %v2065
        %v2067 = vpop.xlane.xlu0 %2066
        %v2068 = vsel %vm837, %v2062, -inf
        %2069 = vmax.xlane.f32.xlu0 %v2068
        %v2070 = vpop.xlane.xlu0 %2069
        %v2071 = vsel %vm837, %v2063, -inf
        %2072 = vmax.xlane.f32.xlu0 %v2071
        %v2073 = vpop.xlane.xlu0 %2072
        %v2074 = vsel %vm837, %v2064, -inf
        %2075 = vmax.xlane.f32.xlu0 %v2074
        %v2076 = vpop.xlane.xlu0 %2075
        %v2077 = vsub.f32 %v2061, %v2067
        %v2078 = vsub.f32 %v2062, %v2070
        %v2079 = vsub.f32 %v2063, %v2073
        %v2080 = vsub.f32 %v2064, %v2076
        %v2081 = vmul.f32 %v2077, 1.442695
        %v2082 = vpow.pop %v2081
        %v2083 = vmul.f32 %v2078, 1.442695
        %v2084 = vpow.pop %v2083
        %v2085 = vmul.f32 %v2079, 1.442695
        %v2086 = vpow.pop %v2085
        %v2087 = vmul.f32 %v2080, 1.442695
        %v2088 = vpow.pop %v2087
        %v2089 = vsel %vm837, %v2082, 0.0
        %2090 = vadd.xlane.f32.xlu0 %v2089
        %v2091 = vpop.xlane.xlu0 %2090
        %v2092 = vsel %vm837, %v2084, 0.0
        %2093 = vadd.xlane.f32.xlu0 %v2092
        %v2094 = vpop.xlane.xlu0 %2093
        %v2095 = vsel %vm837, %v2086, 0.0
        %2096 = vadd.xlane.f32.xlu0 %v2095
        %v2097 = vpop.xlane.xlu0 %2096
        %v2098 = vsel %vm837, %v2088, 0.0
        %2099 = vadd.xlane.f32.xlu0 %v2098
        %v2100 = vpop.xlane.xlu0 %2099
        %v2101 = vrcp.pop %v2091
        %v2102 = vrcp.pop %v2094
        %v2103 = vrcp.pop %v2097
        %v2104 = vrcp.pop %v2100
        %v2105 = vmul.f32 %v2082, %v2101
        %v2106 = vmul.f32 %v2084, %v2102
        %v2107 = vmul.f32 %v2086, %v2103
        %v2108 = vmul.f32 %v2088, %v2104
        %v2110 = vsel %vm837, %v2105, 0
        %v2113 = vsel %vm837, %v2106, 0
        %v2116 = vsel %vm837, %v2107, 0
        %v2119 = vsel %vm837, %v2108, 0
        %2121 = vmatprep.subr.mxu0 0.0
        %2122 = vmatpush1.msra.mxu0 %v1919
        %2123 = vmatprep.subr.mxu0 0.0
        %2124 = vmatpush1.msra.mxu0 %v1925
        %2125 = vmatprep.subr.mxu0 0.0
        %2126 = vmatpush1.msra.mxu0 %v1931
        %2127 = vmatprep.subr.mxu0 0.0
        %2128 = vmatpush1.msra.mxu0 %v1937
        %2129 = vmatprep.subr.mxu0 0.0
        %2130 = vmatpush1.msra.mxu0 0.0
        %2131 = vmatprep.subr.mxu0 0.0
        %2132 = vmatpush1.msra.mxu0 0.0
        %2133 = vmatprep.subr.mxu0 0.0
        %2134 = vmatpush1.msra.mxu0 0.0
        %2135 = vmatprep.subr.mxu0 0.0
        %2136 = vmatpush1.msra.mxu0 0.0
        %2137 = vmatprep.subr.mxu0 0.0
        %2138 = vmatpush1.msra.mxu0 0.0
        %2139 = vmatprep.subr.mxu0 0.0
        %2140 = vmatpush1.msra.mxu0 0.0
        %2141 = vmatprep.subr.mxu0 0.0
        %2142 = vmatpush1.msra.mxu0 0.0
        %2143 = vmatprep.subr.mxu0 0.0
        %2144 = vmatpush1.msra.mxu0 0.0
        %2145 = vmatprep.subr.mxu0 0.0
        %2146 = vmatpush1.msra.mxu0 0.0
        %2147 = vmatprep.subr.mxu0 0.0
        %2148 = vmatpush1.msra.mxu0 0.0
        %2149 = vmatprep.subr.mxu0 0.0
        %2150 = vmatpush1.msra.mxu0 0.0
        %2151 = vmatprep.subr.mxu0 0.0
        %2152 = vmatpush1.msra.mxu0 0.0
        %2153 = vmatprep.subr.mxu0 0.0
        %2154 = vmatpush1.msra.mxu0 0.0
        %2155 = vmatprep.subr.mxu0 0.0
        %2156 = vmatpush1.msra.mxu0 0.0
        %2157 = vmatprep.subr.mxu0 0.0
        %2158 = vmatpush1.msra.mxu0 0.0
        %2159 = vmatprep.subr.mxu0 0.0
        %2160 = vmatpush1.msra.mxu0 0.0
        %2161 = vmatprep.subr.mxu0 0.0
        %2162 = vmatpush1.msra.mxu0 0.0
        %2163 = vmatprep.subr.mxu0 0.0
        %2164 = vmatpush1.msra.mxu0 0.0
        %2165 = vmatprep.subr.mxu0 0.0
        %2166 = vmatpush1.msra.mxu0 0.0
        %2167 = vmatprep.subr.mxu0 0.0
        %2168 = vmatpush1.msra.mxu0 0.0
        %2169 = vmatprep.subr.mxu0 0.0
        %2170 = vmatpush1.msra.mxu0 0.0
        %2171 = vmatprep.subr.mxu0 0.0
        %2172 = vmatpush1.msra.mxu0 0.0
        %2173 = vmatprep.subr.mxu0 0.0
        %2174 = vmatpush1.msra.mxu0 0.0
        %2175 = vmatprep.subr.mxu0 0.0
        %2176 = vmatpush1.msra.mxu0 0.0
        %2177 = vmatprep.subr.mxu0 0.0
        %2178 = vmatpush1.msra.mxu0 0.0
        %2179 = vmatprep.subr.mxu0 0.0
        %2180 = vmatpush1.msra.mxu0 0.0
        %2181 = vmatprep.subr.mxu0 0.0
        %2182 = vmatpush1.msra.mxu0 0.0
        %2183 = vmatprep.subr.mxu0 0.0
        %2184 = vmatpush1.msra.mxu0 0.0
        %2185 = vmatprep.mubr.f32.mxu0 0.0
        %2186 = vmatmul.mubr.f32.gmra.mrb[0].mxu0 %v2110
        %v2187 = vpop.f32.mrb[0].mxu0
        %v2188 = vadd.f32 0.0, %v2187
        %v2189 = vpop.f32.mrb[0].mxu0
        %2190 = vmatprep.mubr.f32.mxu0 0.0
        %2191 = vmatmul.mubr.f32.gmra.mrb[0].mxu0 %v2113
        %v2192 = vpop.f32.mrb[0].mxu0
        %v2193 = vadd.f32 0.0, %v2192
        %v2194 = vpop.f32.mrb[0].mxu0
        %2195 = vmatprep.mubr.f32.mxu0 0.0
        %2196 = vmatmul.mubr.f32.gmra.mrb[0].mxu0 %v2116
        %v2197 = vpop.f32.mrb[0].mxu0
        %v2198 = vadd.f32 0.0, %v2197
        %v2199 = vpop.f32.mrb[0].mxu0
        %2200 = vmatprep.mubr.f32.mxu0 0.0
        %2201 = vmatmul.mubr.f32.gmra.mrb[0].mxu0 %v2119
        %v2202 = vpop.f32.mrb[0].mxu0
        %v2203 = vadd.f32 0.0, %v2202
        %v2204 = vpop.f32.mrb[0].mxu0
        %2205 = vdwg.mxu0
        %2206 = vrot.lane.b32.xlu0 %v1917, 112
        %v2207 = vpop.permute.xlu0 %2206
        %2208 = vrot.lane.b32.xlu0 %v1923, 112
        %v2209 = vpop.permute.xlu0 %2208
        %2210 = vrot.lane.b32.xlu0 %v1929, 112
        %v2211 = vpop.permute.xlu0 %2210
        %2212 = vrot.lane.b32.xlu0 %v1935, 112
        %v2213 = vpop.permute.xlu0 %2212
        %2214 = vrot.lane.b32.xlu0 %v1917, 48
        %v2215 = vpop.permute.xlu0 %2214
        %2216 = vrot.lane.b32.xlu0 %v1923, 48
        %v2217 = vpop.permute.xlu0 %2216
        %2218 = vrot.lane.b32.xlu0 %v1929, 48
        %v2219 = vpop.permute.xlu0 %2218
        %2220 = vrot.lane.b32.xlu0 %v1935, 48
        %v2221 = vpop.permute.xlu0 %2220
        %v2222 = vsel %vm832, %v2207, 0
        %v2224 = vsel %vm832, %v2209, 0
        %v2226 = vsel %vm832, %v2211, 0
        %v2228 = vsel %vm832, %v2213, 0
        %v2230 = vsel %vm832, %v2215, 0
        %v2232 = vsel %vm832, %v2217, 0
        %v2234 = vsel %vm832, %v2219, 0
        %v2236 = vsel %vm832, %v2221, 0
        %2238 = vmatprep.subr.mxu0 0.0
        %2239 = vmatpush1.xpose.msra.mxu0 %v2230
        %2240 = vmatprep.subr.mxu0 0.0
        %2241 = vmatpush1.xpose.msra.mxu0 %v2232
        %2242 = vmatprep.subr.mxu0 0.0
        %2243 = vmatpush1.xpose.msra.mxu0 %v2234
        %2244 = vmatprep.subr.mxu0 0.0
        %2245 = vmatpush1.xpose.msra.mxu0 %v2236
        %2246 = vmatprep.subr.mxu0 0.0
        %2247 = vmatpush1.xpose.msra.mxu0 0.0
        %2248 = vmatprep.subr.mxu0 0.0
        %2249 = vmatpush1.xpose.msra.mxu0 0.0
        %2250 = vmatprep.subr.mxu0 0.0
        %2251 = vmatpush1.xpose.msra.mxu0 0.0
        %2252 = vmatprep.subr.mxu0 0.0
        %2253 = vmatpush1.xpose.msra.mxu0 0.0
        %2254 = vmatprep.subr.mxu0 0.0
        %2255 = vmatpush1.xpose.msra.mxu0 0.0
        %2256 = vmatprep.subr.mxu0 0.0
        %2257 = vmatpush1.xpose.msra.mxu0 0.0
        %2258 = vmatprep.subr.mxu0 0.0
        %2259 = vmatpush1.xpose.msra.mxu0 0.0
        %2260 = vmatprep.subr.mxu0 0.0
        %2261 = vmatpush1.xpose.msra.mxu0 0.0
        %2262 = vmatprep.subr.mxu0 0.0
        %2263 = vmatpush1.xpose.msra.mxu0 0.0
        %2264 = vmatprep.subr.mxu0 0.0
        %2265 = vmatpush1.xpose.msra.mxu0 0.0
        %2266 = vmatprep.subr.mxu0 0.0
        %2267 = vmatpush1.xpose.msra.mxu0 0.0
        %2268 = vmatprep.subr.mxu0 0.0
        %2269 = vmatpush1.xpose.msra.mxu0 0.0
        %2270 = vmatprep.subr.mxu0 0.0
        %2271 = vmatpush1.xpose.msra.mxu0 0.0
        %2272 = vmatprep.subr.mxu0 0.0
        %2273 = vmatpush1.xpose.msra.mxu0 0.0
        %2274 = vmatprep.subr.mxu0 0.0
        %2275 = vmatpush1.xpose.msra.mxu0 0.0
        %2276 = vmatprep.subr.mxu0 0.0
        %2277 = vmatpush1.xpose.msra.mxu0 0.0
        %2278 = vmatprep.subr.mxu0 0.0
        %2279 = vmatpush1.xpose.msra.mxu0 0.0
        %2280 = vmatprep.subr.mxu0 0.0
        %2281 = vmatpush1.xpose.msra.mxu0 0.0
        %2282 = vmatprep.subr.mxu0 0.0
        %2283 = vmatpush1.xpose.msra.mxu0 0.0
        %2284 = vmatprep.subr.mxu0 0.0
        %2285 = vmatpush1.xpose.msra.mxu0 0.0
        %2286 = vmatprep.subr.mxu0 0.0
        %2287 = vmatpush1.xpose.msra.mxu0 0.0
        %2288 = vmatprep.subr.mxu0 0.0
        %2289 = vmatpush1.xpose.msra.mxu0 0.0
        %2290 = vmatprep.subr.mxu0 0.0
        %2291 = vmatpush1.xpose.msra.mxu0 0.0
        %2292 = vmatprep.subr.mxu0 0.0
        %2293 = vmatpush1.xpose.msra.mxu0 0.0
        %2294 = vmatprep.subr.mxu0 0.0
        %2295 = vmatpush1.xpose.msra.mxu0 0.0
        %2296 = vmatprep.subr.mxu0 0.0
        %2297 = vmatpush1.xpose.msra.mxu0 0.0
        %2298 = vmatprep.subr.mxu0 0.0
        %2299 = vmatpush1.xpose.msra.mxu0 0.0
        %2300 = vmatprep.subr.mxu0 0.0
        %2301 = vmatpush1.xpose.msra.mxu0 0.0
        %2302 = vmatprep.mubr.f32.mxu0 0.0
        %2303 = vmatmul.mubr.f32.gmra.mrb[0].mxu0 %v2222
        %v2304 = vpop.f32.mrb[0].mxu0
        %v2305 = vadd.f32 0.0, %v2304
        %v2306 = vpop.f32.mrb[0].mxu0
        %2307 = vmatprep.mubr.f32.mxu0 0.0
        %2308 = vmatmul.mubr.f32.gmra.mrb[0].mxu0 %v2224
        %v2309 = vpop.f32.mrb[0].mxu0
        %v2310 = vadd.f32 0.0, %v2309
        %v2311 = vpop.f32.mrb[0].mxu0
        %2312 = vmatprep.mubr.f32.mxu0 0.0
        %2313 = vmatmul.mubr.f32.gmra.mrb[0].mxu0 %v2226
        %v2314 = vpop.f32.mrb[0].mxu0
        %v2315 = vadd.f32 0.0, %v2314
        %v2316 = vpop.f32.mrb[0].mxu0
        %2317 = vmatprep.mubr.f32.mxu0 0.0
        %2318 = vmatmul.mubr.f32.gmra.mrb[0].mxu0 %v2228
        %v2319 = vpop.f32.mrb[0].mxu0
        %v2320 = vadd.f32 0.0, %v2319
        %v2321 = vpop.f32.mrb[0].mxu0
        %2322 = vdwg.mxu0
        %v2323 = vsel %vm2060, %v2305, -1e+30
        %v2324 = vsel %vm2060, %v2310, -1e+30
        %v2325 = vsel %vm2060, %v2315, -1e+30
        %v2326 = vsel %vm2060, %v2320, -1e+30
        %v2327 = vsel %vm837, %v2323, -inf
        %2328 = vmax.xlane.f32.xlu0 %v2327
        %v2329 = vpop.xlane.xlu0 %2328
        %v2330 = vsel %vm837, %v2324, -inf
        %2331 = vmax.xlane.f32.xlu0 %v2330
        %v2332 = vpop.xlane.xlu0 %2331
        %v2333 = vsel %vm837, %v2325, -inf
        %2334 = vmax.xlane.f32.xlu0 %v2333
        %v2335 = vpop.xlane.xlu0 %2334
        %v2336 = vsel %vm837, %v2326, -inf
        %2337 = vmax.xlane.f32.xlu0 %v2336
        %v2338 = vpop.xlane.xlu0 %2337
        %v2339 = vsub.f32 %v2323, %v2329
        %v2340 = vsub.f32 %v2324, %v2332
        %v2341 = vsub.f32 %v2325, %v2335
        %v2342 = vsub.f32 %v2326, %v2338
        %v2343 = vmul.f32 %v2339, 1.442695
        %v2344 = vpow.pop %v2343
        %v2345 = vmul.f32 %v2340, 1.442695
        %v2346 = vpow.pop %v2345
        %v2347 = vmul.f32 %v2341, 1.442695
        %v2348 = vpow.pop %v2347
        %v2349 = vmul.f32 %v2342, 1.442695
        %v2350 = vpow.pop %v2349
        %v2351 = vsel %vm837, %v2344, 0.0
        %2352 = vadd.xlane.f32.xlu0 %v2351
        %v2353 = vpop.xlane.xlu0 %2352
        %v2354 = vsel %vm837, %v2346, 0.0
        %2355 = vadd.xlane.f32.xlu0 %v2354
        %v2356 = vpop.xlane.xlu0 %2355
        %v2357 = vsel %vm837, %v2348, 0.0
        %2358 = vadd.xlane.f32.xlu0 %v2357
        %v2359 = vpop.xlane.xlu0 %2358
        %v2360 = vsel %vm837, %v2350, 0.0
        %2361 = vadd.xlane.f32.xlu0 %v2360
        %v2362 = vpop.xlane.xlu0 %2361
        %v2363 = vrcp.pop %v2353
        %v2364 = vrcp.pop %v2356
        %v2365 = vrcp.pop %v2359
        %v2366 = vrcp.pop %v2362
        %v2367 = vmul.f32 %v2344, %v2363
        %v2368 = vmul.f32 %v2346, %v2364
        %v2369 = vmul.f32 %v2348, %v2365
        %v2370 = vmul.f32 %v2350, %v2366
        %2375 = vrot.lane.b32.xlu0 %v1919, 112
        %v2376 = vpop.permute.xlu0 %2375
        %2377 = vrot.lane.b32.xlu0 %v1925, 112
        %v2378 = vpop.permute.xlu0 %2377
        %2379 = vrot.lane.b32.xlu0 %v1931, 112
        %v2380 = vpop.permute.xlu0 %2379
        %2381 = vrot.lane.b32.xlu0 %v1937, 112
        %v2382 = vpop.permute.xlu0 %2381
        %v2388 = vsel %vm837, %v2367, 0
        %v2391 = vsel %vm837, %v2368, 0
        %v2394 = vsel %vm837, %v2369, 0
        %v2397 = vsel %vm837, %v2370, 0
        %2399 = vmatprep.subr.mxu0 0.0
        %2400 = vmatpush1.msra.mxu0 %v2376
        %2401 = vmatprep.subr.mxu0 0.0
        %2402 = vmatpush1.msra.mxu0 %v2378
        %2403 = vmatprep.subr.mxu0 0.0
        %2404 = vmatpush1.msra.mxu0 %v2380
        %2405 = vmatprep.subr.mxu0 0.0
        %2406 = vmatpush1.msra.mxu0 %v2382
        %2407 = vmatprep.subr.mxu0 0.0
        %2408 = vmatpush1.msra.mxu0 0.0
        %2409 = vmatprep.subr.mxu0 0.0
        %2410 = vmatpush1.msra.mxu0 0.0
        %2411 = vmatprep.subr.mxu0 0.0
        %2412 = vmatpush1.msra.mxu0 0.0
        %2413 = vmatprep.subr.mxu0 0.0
        %2414 = vmatpush1.msra.mxu0 0.0
        %2415 = vmatprep.subr.mxu0 0.0
        %2416 = vmatpush1.msra.mxu0 0.0
        %2417 = vmatprep.subr.mxu0 0.0
        %2418 = vmatpush1.msra.mxu0 0.0
        %2419 = vmatprep.subr.mxu0 0.0
        %2420 = vmatpush1.msra.mxu0 0.0
        %2421 = vmatprep.subr.mxu0 0.0
        %2422 = vmatpush1.msra.mxu0 0.0
        %2423 = vmatprep.subr.mxu0 0.0
        %2424 = vmatpush1.msra.mxu0 0.0
        %2425 = vmatprep.subr.mxu0 0.0
        %2426 = vmatpush1.msra.mxu0 0.0
        %2427 = vmatprep.subr.mxu0 0.0
        %2428 = vmatpush1.msra.mxu0 0.0
        %2429 = vmatprep.subr.mxu0 0.0
        %2430 = vmatpush1.msra.mxu0 0.0
        %2431 = vmatprep.subr.mxu0 0.0
        %2432 = vmatpush1.msra.mxu0 0.0
        %2433 = vmatprep.subr.mxu0 0.0
        %2434 = vmatpush1.msra.mxu0 0.0
        %2435 = vmatprep.subr.mxu0 0.0
        %2436 = vmatpush1.msra.mxu0 0.0
        %2437 = vmatprep.subr.mxu0 0.0
        %2438 = vmatpush1.msra.mxu0 0.0
        %2439 = vmatprep.subr.mxu0 0.0
        %2440 = vmatpush1.msra.mxu0 0.0
        %2441 = vmatprep.subr.mxu0 0.0
        %2442 = vmatpush1.msra.mxu0 0.0
        %2443 = vmatprep.subr.mxu0 0.0
        %2444 = vmatpush1.msra.mxu0 0.0
        %2445 = vmatprep.subr.mxu0 0.0
        %2446 = vmatpush1.msra.mxu0 0.0
        %2447 = vmatprep.subr.mxu0 0.0
        %2448 = vmatpush1.msra.mxu0 0.0
        %2449 = vmatprep.subr.mxu0 0.0
        %2450 = vmatpush1.msra.mxu0 0.0
        %2451 = vmatprep.subr.mxu0 0.0
        %2452 = vmatpush1.msra.mxu0 0.0
        %2453 = vmatprep.subr.mxu0 0.0
        %2454 = vmatpush1.msra.mxu0 0.0
        %2455 = vmatprep.subr.mxu0 0.0
        %2456 = vmatpush1.msra.mxu0 0.0
        %2457 = vmatprep.subr.mxu0 0.0
        %2458 = vmatpush1.msra.mxu0 0.0
        %2459 = vmatprep.subr.mxu0 0.0
        %2460 = vmatpush1.msra.mxu0 0.0
        %2461 = vmatprep.subr.mxu0 0.0
        %2462 = vmatpush1.msra.mxu0 0.0
        %2463 = vmatprep.mubr.f32.mxu0 0.0
        %2464 = vmatmul.mubr.f32.gmra.mrb[0].mxu0 %v2388
        %v2465 = vpop.f32.mrb[0].mxu0
        %v2466 = vadd.f32 0.0, %v2465
        %v2467 = vpop.f32.mrb[0].mxu0
        %2468 = vmatprep.mubr.f32.mxu0 0.0
        %2469 = vmatmul.mubr.f32.gmra.mrb[0].mxu0 %v2391
        %v2470 = vpop.f32.mrb[0].mxu0
        %v2471 = vadd.f32 0.0, %v2470
        %v2472 = vpop.f32.mrb[0].mxu0
        %2473 = vmatprep.mubr.f32.mxu0 0.0
        %2474 = vmatmul.mubr.f32.gmra.mrb[0].mxu0 %v2394
        %v2475 = vpop.f32.mrb[0].mxu0
        %v2476 = vadd.f32 0.0, %v2475
        %v2477 = vpop.f32.mrb[0].mxu0
        %2478 = vmatprep.mubr.f32.mxu0 0.0
        %2479 = vmatmul.mubr.f32.gmra.mrb[0].mxu0 %v2397
        %v2480 = vpop.f32.mrb[0].mxu0
        %v2481 = vadd.f32 0.0, %v2480
        %v2482 = vpop.f32.mrb[0].mxu0
        %2483 = vdwg.mxu0
        %v2485 = vsel %vm832, %v2466, 0
        %v2488 = vsel %vm832, %v2471, 0
        %v2491 = vsel %vm832, %v2476, 0
        %v2494 = vsel %vm832, %v2481, 0
        %2496 = vmatprep.subr.mxu0 0.0
        %2497 = vmatpush1.msra.mxu0 %v1941
        %2498 = vmatprep.subr.mxu0 0.0
        %2499 = vmatpush1.msra.mxu0 %v1942
        %2500 = vmatprep.subr.mxu0 0.0
        %2501 = vmatpush1.msra.mxu0 0.0
        %2502 = vmatprep.subr.mxu0 0.0
        %2503 = vmatpush1.msra.mxu0 0.0
        %2504 = vmatprep.subr.mxu0 0.0
        %2505 = vmatpush1.msra.mxu0 0.0
        %2506 = vmatprep.subr.mxu0 0.0
        %2507 = vmatpush1.msra.mxu0 0.0
        %2508 = vmatprep.subr.mxu0 0.0
        %2509 = vmatpush1.msra.mxu0 0.0
        %2510 = vmatprep.subr.mxu0 0.0
        %2511 = vmatpush1.msra.mxu0 0.0
        %2512 = vmatprep.subr.mxu0 0.0
        %2513 = vmatpush1.msra.mxu0 0.0
        %2514 = vmatprep.subr.mxu0 0.0
        %2515 = vmatpush1.msra.mxu0 0.0
        %2516 = vmatprep.subr.mxu0 0.0
        %2517 = vmatpush1.msra.mxu0 0.0
        %2518 = vmatprep.subr.mxu0 0.0
        %2519 = vmatpush1.msra.mxu0 0.0
        %2520 = vmatprep.subr.mxu0 0.0
        %2521 = vmatpush1.msra.mxu0 0.0
        %2522 = vmatprep.subr.mxu0 0.0
        %2523 = vmatpush1.msra.mxu0 0.0
        %2524 = vmatprep.subr.mxu0 0.0
        %2525 = vmatpush1.msra.mxu0 0.0
        %2526 = vmatprep.subr.mxu0 0.0
        %2527 = vmatpush1.msra.mxu0 0.0
        %2528 = vmatprep.subr.mxu0 0.0
        %2529 = vmatpush1.msra.mxu0 0.0
        %2530 = vmatprep.subr.mxu0 0.0
        %2531 = vmatpush1.msra.mxu0 0.0
        %2532 = vmatprep.subr.mxu0 0.0
        %2533 = vmatpush1.msra.mxu0 0.0
        %2534 = vmatprep.subr.mxu0 0.0
        %2535 = vmatpush1.msra.mxu0 0.0
        %2536 = vmatprep.subr.mxu0 0.0
        %2537 = vmatpush1.msra.mxu0 0.0
        %2538 = vmatprep.subr.mxu0 0.0
        %2539 = vmatpush1.msra.mxu0 0.0
        %2540 = vmatprep.subr.mxu0 0.0
        %2541 = vmatpush1.msra.mxu0 0.0
        %2542 = vmatprep.subr.mxu0 0.0
        %2543 = vmatpush1.msra.mxu0 0.0
        %2544 = vmatprep.subr.mxu0 0.0
        %2545 = vmatpush1.msra.mxu0 0.0
        %2546 = vmatprep.subr.mxu0 0.0
        %2547 = vmatpush1.msra.mxu0 0.0
        %2548 = vmatprep.subr.mxu0 0.0
        %2549 = vmatpush1.msra.mxu0 0.0
        %2550 = vmatprep.subr.mxu0 0.0
        %2551 = vmatpush1.msra.mxu0 0.0
        %2552 = vmatprep.subr.mxu0 0.0
        %2553 = vmatpush1.msra.mxu0 0.0
        %2554 = vmatprep.subr.mxu0 0.0
        %2555 = vmatpush1.msra.mxu0 0.0
        %2556 = vmatprep.subr.mxu0 0.0
        %2557 = vmatpush1.msra.mxu0 0.0
        %2558 = vmatprep.subr.mxu0 0.0
        %2559 = vmatpush1.msra.mxu0 0.0
        %2560 = vmatprep.mubr.f32.mxu0 0.0
        %2561 = vmatmul.mubr.f32.gmra.mrb[0].mxu0 %v2485
        %v2562 = vpop.f32.mrb[0].mxu0
        %v2563 = vadd.f32 0.0, %v2562
        %v2564 = vpop.f32.mrb[0].mxu0
        %2565 = vmatprep.mubr.f32.mxu0 0.0
        %2566 = vmatmul.mubr.f32.gmra.mrb[0].mxu0 %v2488
        %v2567 = vpop.f32.mrb[0].mxu0
        %v2568 = vadd.f32 0.0, %v2567
        %v2569 = vpop.f32.mrb[0].mxu0
        %2570 = vmatprep.mubr.f32.mxu0 0.0
        %2571 = vmatmul.mubr.f32.gmra.mrb[0].mxu0 %v2491
        %v2572 = vpop.f32.mrb[0].mxu0
        %v2573 = vadd.f32 0.0, %v2572
        %v2574 = vpop.f32.mrb[0].mxu0
        %2575 = vmatprep.mubr.f32.mxu0 0.0
        %2576 = vmatmul.mubr.f32.gmra.mrb[0].mxu0 %v2494
        %v2577 = vpop.f32.mrb[0].mxu0
        %v2578 = vadd.f32 0.0, %v2577
        %v2579 = vpop.f32.mrb[0].mxu0
        %2580 = vdwg.mxu0
        %v2582 = vsel %vm832, %v2188, 0
        %v2585 = vsel %vm832, %v2193, 0
        %v2588 = vsel %vm832, %v2198, 0
        %v2591 = vsel %vm832, %v2203, 0
        %2593 = vmatprep.subr.mxu0 0.0
        %2594 = vmatpush1.msra.mxu0 %v1939
        %2595 = vmatprep.subr.mxu0 0.0
        %2596 = vmatpush1.msra.mxu0 %v1940
        %2597 = vmatprep.subr.mxu0 0.0
        %2598 = vmatpush1.msra.mxu0 0.0
        %2599 = vmatprep.subr.mxu0 0.0
        %2600 = vmatpush1.msra.mxu0 0.0
        %2601 = vmatprep.subr.mxu0 0.0
        %2602 = vmatpush1.msra.mxu0 0.0
        %2603 = vmatprep.subr.mxu0 0.0
        %2604 = vmatpush1.msra.mxu0 0.0
        %2605 = vmatprep.subr.mxu0 0.0
        %2606 = vmatpush1.msra.mxu0 0.0
        %2607 = vmatprep.subr.mxu0 0.0
        %2608 = vmatpush1.msra.mxu0 0.0
        %2609 = vmatprep.subr.mxu0 0.0
        %2610 = vmatpush1.msra.mxu0 0.0
        %2611 = vmatprep.subr.mxu0 0.0
        %2612 = vmatpush1.msra.mxu0 0.0
        %2613 = vmatprep.subr.mxu0 0.0
        %2614 = vmatpush1.msra.mxu0 0.0
        %2615 = vmatprep.subr.mxu0 0.0
        %2616 = vmatpush1.msra.mxu0 0.0
        %2617 = vmatprep.subr.mxu0 0.0
        %2618 = vmatpush1.msra.mxu0 0.0
        %2619 = vmatprep.subr.mxu0 0.0
        %2620 = vmatpush1.msra.mxu0 0.0
        %2621 = vmatprep.subr.mxu0 0.0
        %2622 = vmatpush1.msra.mxu0 0.0
        %2623 = vmatprep.subr.mxu0 0.0
        %2624 = vmatpush1.msra.mxu0 0.0
        %2625 = vmatprep.subr.mxu0 0.0
        %2626 = vmatpush1.msra.mxu0 0.0
        %2627 = vmatprep.subr.mxu0 0.0
        %2628 = vmatpush1.msra.mxu0 0.0
        %2629 = vmatprep.subr.mxu0 0.0
        %2630 = vmatpush1.msra.mxu0 0.0
        %2631 = vmatprep.subr.mxu0 0.0
        %2632 = vmatpush1.msra.mxu0 0.0
        %2633 = vmatprep.subr.mxu0 0.0
        %2634 = vmatpush1.msra.mxu0 0.0
        %2635 = vmatprep.subr.mxu0 0.0
        %2636 = vmatpush1.msra.mxu0 0.0
        %2637 = vmatprep.subr.mxu0 0.0
        %2638 = vmatpush1.msra.mxu0 0.0
        %2639 = vmatprep.subr.mxu0 0.0
        %2640 = vmatpush1.msra.mxu0 0.0
        %2641 = vmatprep.subr.mxu0 0.0
        %2642 = vmatpush1.msra.mxu0 0.0
        %2643 = vmatprep.subr.mxu0 0.0
        %2644 = vmatpush1.msra.mxu0 0.0
        %2645 = vmatprep.subr.mxu0 0.0
        %2646 = vmatpush1.msra.mxu0 0.0
        %2647 = vmatprep.subr.mxu0 0.0
        %2648 = vmatpush1.msra.mxu0 0.0
        %2649 = vmatprep.subr.mxu0 0.0
        %2650 = vmatpush1.msra.mxu0 0.0
        %2651 = vmatprep.subr.mxu0 0.0
        %2652 = vmatpush1.msra.mxu0 0.0
        %2653 = vmatprep.subr.mxu0 0.0
        %2654 = vmatpush1.msra.mxu0 0.0
        %2655 = vmatprep.subr.mxu0 0.0
        %2656 = vmatpush1.msra.mxu0 0.0
        %2657 = vmatprep.mubr.f32.mxu0 0.0
        %2658 = vmatmul.mubr.f32.gmra.mrb[0].mxu0 %v2582
        %v2659 = vpop.f32.mrb[0].mxu0
        %v2660 = vadd.f32 %v2563, %v2659
        %v2661 = vpop.f32.mrb[0].mxu0
        %2662 = vmatprep.mubr.f32.mxu0 0.0
        %2663 = vmatmul.mubr.f32.gmra.mrb[0].mxu0 %v2585
        %v2664 = vpop.f32.mrb[0].mxu0
        %v2665 = vadd.f32 %v2568, %v2664
        %v2666 = vpop.f32.mrb[0].mxu0
        %2667 = vmatprep.mubr.f32.mxu0 0.0
        %2668 = vmatmul.mubr.f32.gmra.mrb[0].mxu0 %v2588
        %v2669 = vpop.f32.mrb[0].mxu0
        %v2670 = vadd.f32 %v2573, %v2669
        %v2671 = vpop.f32.mrb[0].mxu0
        %2672 = vmatprep.mubr.f32.mxu0 0.0
        %2673 = vmatmul.mubr.f32.gmra.mrb[0].mxu0 %v2591
        %v2674 = vpop.f32.mrb[0].mxu0
        %v2675 = vadd.f32 %v2578, %v2674
        %v2676 = vpop.f32.mrb[0].mxu0
        %2677 = vdwg.mxu0
        %2678 = vrot.lane.b32.xlu0 %v1917, 96
        %v2679 = vpop.permute.xlu0 %2678
        %2680 = vrot.lane.b32.xlu0 %v1923, 96
        %v2681 = vpop.permute.xlu0 %2680
        %2682 = vrot.lane.b32.xlu0 %v1929, 96
        %v2683 = vpop.permute.xlu0 %2682
        %2684 = vrot.lane.b32.xlu0 %v1935, 96
        %v2685 = vpop.permute.xlu0 %2684
        %2686 = vrot.lane.b32.xlu0 %v1917, 32
        %v2687 = vpop.permute.xlu0 %2686
        %2688 = vrot.lane.b32.xlu0 %v1923, 32
        %v2689 = vpop.permute.xlu0 %2688
        %2690 = vrot.lane.b32.xlu0 %v1929, 32
        %v2691 = vpop.permute.xlu0 %2690
        %2692 = vrot.lane.b32.xlu0 %v1935, 32
        %v2693 = vpop.permute.xlu0 %2692
        %v2694 = vsel %vm832, %v2679, 0
        %v2696 = vsel %vm832, %v2681, 0
        %v2698 = vsel %vm832, %v2683, 0
        %v2700 = vsel %vm832, %v2685, 0
        %v2702 = vsel %vm832, %v2687, 0
        %v2704 = vsel %vm832, %v2689, 0
        %v2706 = vsel %vm832, %v2691, 0
        %v2708 = vsel %vm832, %v2693, 0
        %2710 = vmatprep.subr.mxu0 0.0
        %2711 = vmatpush1.xpose.msra.mxu0 %v2702
        %2712 = vmatprep.subr.mxu0 0.0
        %2713 = vmatpush1.xpose.msra.mxu0 %v2704
        %2714 = vmatprep.subr.mxu0 0.0
        %2715 = vmatpush1.xpose.msra.mxu0 %v2706
        %2716 = vmatprep.subr.mxu0 0.0
        %2717 = vmatpush1.xpose.msra.mxu0 %v2708
        %2718 = vmatprep.subr.mxu0 0.0
        %2719 = vmatpush1.xpose.msra.mxu0 0.0
        %2720 = vmatprep.subr.mxu0 0.0
        %2721 = vmatpush1.xpose.msra.mxu0 0.0
        %2722 = vmatprep.subr.mxu0 0.0
        %2723 = vmatpush1.xpose.msra.mxu0 0.0
        %2724 = vmatprep.subr.mxu0 0.0
        %2725 = vmatpush1.xpose.msra.mxu0 0.0
        %2726 = vmatprep.subr.mxu0 0.0
        %2727 = vmatpush1.xpose.msra.mxu0 0.0
        %2728 = vmatprep.subr.mxu0 0.0
        %2729 = vmatpush1.xpose.msra.mxu0 0.0
        %2730 = vmatprep.subr.mxu0 0.0
        %2731 = vmatpush1.xpose.msra.mxu0 0.0
        %2732 = vmatprep.subr.mxu0 0.0
        %2733 = vmatpush1.xpose.msra.mxu0 0.0
        %2734 = vmatprep.subr.mxu0 0.0
        %2735 = vmatpush1.xpose.msra.mxu0 0.0
        %2736 = vmatprep.subr.mxu0 0.0
        %2737 = vmatpush1.xpose.msra.mxu0 0.0
        %2738 = vmatprep.subr.mxu0 0.0
        %2739 = vmatpush1.xpose.msra.mxu0 0.0
        %2740 = vmatprep.subr.mxu0 0.0
        %2741 = vmatpush1.xpose.msra.mxu0 0.0
        %2742 = vmatprep.subr.mxu0 0.0
        %2743 = vmatpush1.xpose.msra.mxu0 0.0
        %2744 = vmatprep.subr.mxu0 0.0
        %2745 = vmatpush1.xpose.msra.mxu0 0.0
        %2746 = vmatprep.subr.mxu0 0.0
        %2747 = vmatpush1.xpose.msra.mxu0 0.0
        %2748 = vmatprep.subr.mxu0 0.0
        %2749 = vmatpush1.xpose.msra.mxu0 0.0
        %2750 = vmatprep.subr.mxu0 0.0
        %2751 = vmatpush1.xpose.msra.mxu0 0.0
        %2752 = vmatprep.subr.mxu0 0.0
        %2753 = vmatpush1.xpose.msra.mxu0 0.0
        %2754 = vmatprep.subr.mxu0 0.0
        %2755 = vmatpush1.xpose.msra.mxu0 0.0
        %2756 = vmatprep.subr.mxu0 0.0
        %2757 = vmatpush1.xpose.msra.mxu0 0.0
        %2758 = vmatprep.subr.mxu0 0.0
        %2759 = vmatpush1.xpose.msra.mxu0 0.0
        %2760 = vmatprep.subr.mxu0 0.0
        %2761 = vmatpush1.xpose.msra.mxu0 0.0
        %2762 = vmatprep.subr.mxu0 0.0
        %2763 = vmatpush1.xpose.msra.mxu0 0.0
        %2764 = vmatprep.subr.mxu0 0.0
        %2765 = vmatpush1.xpose.msra.mxu0 0.0
        %2766 = vmatprep.subr.mxu0 0.0
        %2767 = vmatpush1.xpose.msra.mxu0 0.0
        %2768 = vmatprep.subr.mxu0 0.0
        %2769 = vmatpush1.xpose.msra.mxu0 0.0
        %2770 = vmatprep.subr.mxu0 0.0
        %2771 = vmatpush1.xpose.msra.mxu0 0.0
        %2772 = vmatprep.subr.mxu0 0.0
        %2773 = vmatpush1.xpose.msra.mxu0 0.0
        %2774 = vmatprep.mubr.f32.mxu0 0.0
        %2775 = vmatmul.mubr.f32.gmra.mrb[0].mxu0 %v2694
        %v2776 = vpop.f32.mrb[0].mxu0
        %v2777 = vadd.f32 0.0, %v2776
        %v2778 = vpop.f32.mrb[0].mxu0
        %2779 = vmatprep.mubr.f32.mxu0 0.0
        %2780 = vmatmul.mubr.f32.gmra.mrb[0].mxu0 %v2696
        %v2781 = vpop.f32.mrb[0].mxu0
        %v2782 = vadd.f32 0.0, %v2781
        %v2783 = vpop.f32.mrb[0].mxu0
        %2784 = vmatprep.mubr.f32.mxu0 0.0
        %2785 = vmatmul.mubr.f32.gmra.mrb[0].mxu0 %v2698
        %v2786 = vpop.f32.mrb[0].mxu0
        %v2787 = vadd.f32 0.0, %v2786
        %v2788 = vpop.f32.mrb[0].mxu0
        %2789 = vmatprep.mubr.f32.mxu0 0.0
        %2790 = vmatmul.mubr.f32.gmra.mrb[0].mxu0 %v2700
        %v2791 = vpop.f32.mrb[0].mxu0
        %v2792 = vadd.f32 0.0, %v2791
        %v2793 = vpop.f32.mrb[0].mxu0
        %2794 = vdwg.mxu0
        %v2795 = vsel %vm2060, %v2777, -1e+30
        %v2796 = vsel %vm2060, %v2782, -1e+30
        %v2797 = vsel %vm2060, %v2787, -1e+30
        %v2798 = vsel %vm2060, %v2792, -1e+30
        %v2799 = vsel %vm837, %v2795, -inf
        %2800 = vmax.xlane.f32.xlu0 %v2799
        %v2801 = vpop.xlane.xlu0 %2800
        %v2802 = vsel %vm837, %v2796, -inf
        %2803 = vmax.xlane.f32.xlu0 %v2802
        %v2804 = vpop.xlane.xlu0 %2803
        %v2805 = vsel %vm837, %v2797, -inf
        %2806 = vmax.xlane.f32.xlu0 %v2805
        %v2807 = vpop.xlane.xlu0 %2806
        %v2808 = vsel %vm837, %v2798, -inf
        %2809 = vmax.xlane.f32.xlu0 %v2808
        %v2810 = vpop.xlane.xlu0 %2809
        %v2811 = vsub.f32 %v2795, %v2801
        %v2812 = vsub.f32 %v2796, %v2804
        %v2813 = vsub.f32 %v2797, %v2807
        %v2814 = vsub.f32 %v2798, %v2810
        %v2815 = vmul.f32 %v2811, 1.442695
        %v2816 = vpow.pop %v2815
        %v2817 = vmul.f32 %v2812, 1.442695
        %v2818 = vpow.pop %v2817
        %v2819 = vmul.f32 %v2813, 1.442695
        %v2820 = vpow.pop %v2819
        %v2821 = vmul.f32 %v2814, 1.442695
        %v2822 = vpow.pop %v2821
        %v2823 = vsel %vm837, %v2816, 0.0
        %2824 = vadd.xlane.f32.xlu0 %v2823
        %v2825 = vpop.xlane.xlu0 %2824
        %v2826 = vsel %vm837, %v2818, 0.0
        %2827 = vadd.xlane.f32.xlu0 %v2826
        %v2828 = vpop.xlane.xlu0 %2827
        %v2829 = vsel %vm837, %v2820, 0.0
        %2830 = vadd.xlane.f32.xlu0 %v2829
        %v2831 = vpop.xlane.xlu0 %2830
        %v2832 = vsel %vm837, %v2822, 0.0
        %2833 = vadd.xlane.f32.xlu0 %v2832
        %v2834 = vpop.xlane.xlu0 %2833
        %v2835 = vrcp.pop %v2825
        %v2836 = vrcp.pop %v2828
        %v2837 = vrcp.pop %v2831
        %v2838 = vrcp.pop %v2834
        %v2839 = vmul.f32 %v2816, %v2835
        %v2840 = vmul.f32 %v2818, %v2836
        %v2841 = vmul.f32 %v2820, %v2837
        %v2842 = vmul.f32 %v2822, %v2838
        %2843 = vrot.lane.b32.xlu0 %v1919, 96
        %v2844 = vpop.permute.xlu0 %2843
        %2845 = vrot.lane.b32.xlu0 %v1925, 96
        %v2846 = vpop.permute.xlu0 %2845
        %2847 = vrot.lane.b32.xlu0 %v1931, 96
        %v2848 = vpop.permute.xlu0 %2847
        %2849 = vrot.lane.b32.xlu0 %v1937, 96
        %v2850 = vpop.permute.xlu0 %2849
        %v2856 = vsel %vm837, %v2839, 0
        %v2859 = vsel %vm837, %v2840, 0
        %v2862 = vsel %vm837, %v2841, 0
        %v2865 = vsel %vm837, %v2842, 0
        %2867 = vmatprep.subr.mxu0 0.0
        %2868 = vmatpush1.msra.mxu0 %v2844
        %2869 = vmatprep.subr.mxu0 0.0
        %2870 = vmatpush1.msra.mxu0 %v2846
        %2871 = vmatprep.subr.mxu0 0.0
        %2872 = vmatpush1.msra.mxu0 %v2848
        %2873 = vmatprep.subr.mxu0 0.0
        %2874 = vmatpush1.msra.mxu0 %v2850
        %2875 = vmatprep.subr.mxu0 0.0
        %2876 = vmatpush1.msra.mxu0 0.0
        %2877 = vmatprep.subr.mxu0 0.0
        %2878 = vmatpush1.msra.mxu0 0.0
        %2879 = vmatprep.subr.mxu0 0.0
        %2880 = vmatpush1.msra.mxu0 0.0
        %2881 = vmatprep.subr.mxu0 0.0
        %2882 = vmatpush1.msra.mxu0 0.0
        %2883 = vmatprep.subr.mxu0 0.0
        %2884 = vmatpush1.msra.mxu0 0.0
        %2885 = vmatprep.subr.mxu0 0.0
        %2886 = vmatpush1.msra.mxu0 0.0
        %2887 = vmatprep.subr.mxu0 0.0
        %2888 = vmatpush1.msra.mxu0 0.0
        %2889 = vmatprep.subr.mxu0 0.0
        %2890 = vmatpush1.msra.mxu0 0.0
        %2891 = vmatprep.subr.mxu0 0.0
        %2892 = vmatpush1.msra.mxu0 0.0
        %2893 = vmatprep.subr.mxu0 0.0
        %2894 = vmatpush1.msra.mxu0 0.0
        %2895 = vmatprep.subr.mxu0 0.0
        %2896 = vmatpush1.msra.mxu0 0.0
        %2897 = vmatprep.subr.mxu0 0.0
        %2898 = vmatpush1.msra.mxu0 0.0
        %2899 = vmatprep.subr.mxu0 0.0
        %2900 = vmatpush1.msra.mxu0 0.0
        %2901 = vmatprep.subr.mxu0 0.0
        %2902 = vmatpush1.msra.mxu0 0.0
        %2903 = vmatprep.subr.mxu0 0.0
        %2904 = vmatpush1.msra.mxu0 0.0
        %2905 = vmatprep.subr.mxu0 0.0
        %2906 = vmatpush1.msra.mxu0 0.0
        %2907 = vmatprep.subr.mxu0 0.0
        %2908 = vmatpush1.msra.mxu0 0.0
        %2909 = vmatprep.subr.mxu0 0.0
        %2910 = vmatpush1.msra.mxu0 0.0
        %2911 = vmatprep.subr.mxu0 0.0
        %2912 = vmatpush1.msra.mxu0 0.0
        %2913 = vmatprep.subr.mxu0 0.0
        %2914 = vmatpush1.msra.mxu0 0.0
        %2915 = vmatprep.subr.mxu0 0.0
        %2916 = vmatpush1.msra.mxu0 0.0
        %2917 = vmatprep.subr.mxu0 0.0
        %2918 = vmatpush1.msra.mxu0 0.0
        %2919 = vmatprep.subr.mxu0 0.0
        %2920 = vmatpush1.msra.mxu0 0.0
        %2921 = vmatprep.subr.mxu0 0.0
        %2922 = vmatpush1.msra.mxu0 0.0
        %2923 = vmatprep.subr.mxu0 0.0
        %2924 = vmatpush1.msra.mxu0 0.0
        %2925 = vmatprep.subr.mxu0 0.0
        %2926 = vmatpush1.msra.mxu0 0.0
        %2927 = vmatprep.subr.mxu0 0.0
        %2928 = vmatpush1.msra.mxu0 0.0
        %2929 = vmatprep.subr.mxu0 0.0
        %2930 = vmatpush1.msra.mxu0 0.0
        %2931 = vmatprep.mubr.f32.mxu0 0.0
        %2932 = vmatmul.mubr.f32.gmra.mrb[0].mxu0 %v2856
        %v2933 = vpop.f32.mrb[0].mxu0
        %v2934 = vadd.f32 0.0, %v2933
        %v2935 = vpop.f32.mrb[0].mxu0
        %2936 = vmatprep.mubr.f32.mxu0 0.0
        %2937 = vmatmul.mubr.f32.gmra.mrb[0].mxu0 %v2859
        %v2938 = vpop.f32.mrb[0].mxu0
        %v2939 = vadd.f32 0.0, %v2938
        %v2940 = vpop.f32.mrb[0].mxu0
        %2941 = vmatprep.mubr.f32.mxu0 0.0
        %2942 = vmatmul.mubr.f32.gmra.mrb[0].mxu0 %v2862
        %v2943 = vpop.f32.mrb[0].mxu0
        %v2944 = vadd.f32 0.0, %v2943
        %v2945 = vpop.f32.mrb[0].mxu0
        %2946 = vmatprep.mubr.f32.mxu0 0.0
        %2947 = vmatmul.mubr.f32.gmra.mrb[0].mxu0 %v2865
        %v2948 = vpop.f32.mrb[0].mxu0
        %v2949 = vadd.f32 0.0, %v2948
        %v2950 = vpop.f32.mrb[0].mxu0
        %2951 = vdwg.mxu0
        %v2953 = vsel %vm832, %v2934, 0
        %v2956 = vsel %vm832, %v2939, 0
        %v2959 = vsel %vm832, %v2944, 0
        %v2962 = vsel %vm832, %v2949, 0
        %2964 = vmatprep.subr.mxu0 0.0
        %2965 = vmatpush1.msra.mxu0 %v1943
        %2966 = vmatprep.subr.mxu0 0.0
        %2967 = vmatpush1.msra.mxu0 %v1944
        %2968 = vmatprep.subr.mxu0 0.0
        %2969 = vmatpush1.msra.mxu0 0.0
        %2970 = vmatprep.subr.mxu0 0.0
        %2971 = vmatpush1.msra.mxu0 0.0
        %2972 = vmatprep.subr.mxu0 0.0
        %2973 = vmatpush1.msra.mxu0 0.0
        %2974 = vmatprep.subr.mxu0 0.0
        %2975 = vmatpush1.msra.mxu0 0.0
        %2976 = vmatprep.subr.mxu0 0.0
        %2977 = vmatpush1.msra.mxu0 0.0
        %2978 = vmatprep.subr.mxu0 0.0
        %2979 = vmatpush1.msra.mxu0 0.0
        %2980 = vmatprep.subr.mxu0 0.0
        %2981 = vmatpush1.msra.mxu0 0.0
        %2982 = vmatprep.subr.mxu0 0.0
        %2983 = vmatpush1.msra.mxu0 0.0
        %2984 = vmatprep.subr.mxu0 0.0
        %2985 = vmatpush1.msra.mxu0 0.0
        %2986 = vmatprep.subr.mxu0 0.0
        %2987 = vmatpush1.msra.mxu0 0.0
        %2988 = vmatprep.subr.mxu0 0.0
        %2989 = vmatpush1.msra.mxu0 0.0
        %2990 = vmatprep.subr.mxu0 0.0
        %2991 = vmatpush1.msra.mxu0 0.0
        %2992 = vmatprep.subr.mxu0 0.0
        %2993 = vmatpush1.msra.mxu0 0.0
        %2994 = vmatprep.subr.mxu0 0.0
        %2995 = vmatpush1.msra.mxu0 0.0
        %2996 = vmatprep.subr.mxu0 0.0
        %2997 = vmatpush1.msra.mxu0 0.0
        %2998 = vmatprep.subr.mxu0 0.0
        %2999 = vmatpush1.msra.mxu0 0.0
        %3000 = vmatprep.subr.mxu0 0.0
        %3001 = vmatpush1.msra.mxu0 0.0
        %3002 = vmatprep.subr.mxu0 0.0
        %3003 = vmatpush1.msra.mxu0 0.0
        %3004 = vmatprep.subr.mxu0 0.0
        %3005 = vmatpush1.msra.mxu0 0.0
        %3006 = vmatprep.subr.mxu0 0.0
        %3007 = vmatpush1.msra.mxu0 0.0
        %3008 = vmatprep.subr.mxu0 0.0
        %3009 = vmatpush1.msra.mxu0 0.0
        %3010 = vmatprep.subr.mxu0 0.0
        %3011 = vmatpush1.msra.mxu0 0.0
        %3012 = vmatprep.subr.mxu0 0.0
        %3013 = vmatpush1.msra.mxu0 0.0
        %3014 = vmatprep.subr.mxu0 0.0
        %3015 = vmatpush1.msra.mxu0 0.0
        %3016 = vmatprep.subr.mxu0 0.0
        %3017 = vmatpush1.msra.mxu0 0.0
        %3018 = vmatprep.subr.mxu0 0.0
        %3019 = vmatpush1.msra.mxu0 0.0
        %3020 = vmatprep.subr.mxu0 0.0
        %3021 = vmatpush1.msra.mxu0 0.0
        %3022 = vmatprep.subr.mxu0 0.0
        %3023 = vmatpush1.msra.mxu0 0.0
        %3024 = vmatprep.subr.mxu0 0.0
        %3025 = vmatpush1.msra.mxu0 0.0
        %3026 = vmatprep.subr.mxu0 0.0
        %3027 = vmatpush1.msra.mxu0 0.0
        %3028 = vmatprep.mubr.f32.mxu0 0.0
        %3029 = vmatmul.mubr.f32.gmra.mrb[0].mxu0 %v2953
        %v3030 = vpop.f32.mrb[0].mxu0
        %v3031 = vadd.f32 0.0, %v3030
        %v3032 = vpop.f32.mrb[0].mxu0
        %3033 = vmatprep.mubr.f32.mxu0 0.0
        %3034 = vmatmul.mubr.f32.gmra.mrb[0].mxu0 %v2956
        %v3035 = vpop.f32.mrb[0].mxu0
        %v3036 = vadd.f32 0.0, %v3035
        %v3037 = vpop.f32.mrb[0].mxu0
        %3038 = vmatprep.mubr.f32.mxu0 0.0
        %3039 = vmatmul.mubr.f32.gmra.mrb[0].mxu0 %v2959
        %v3040 = vpop.f32.mrb[0].mxu0
        %v3041 = vadd.f32 0.0, %v3040
        %v3042 = vpop.f32.mrb[0].mxu0
        %3043 = vmatprep.mubr.f32.mxu0 0.0
        %3044 = vmatmul.mubr.f32.gmra.mrb[0].mxu0 %v2962
        %v3045 = vpop.f32.mrb[0].mxu0
        %v3046 = vadd.f32 0.0, %v3045
        %v3047 = vpop.f32.mrb[0].mxu0
        %3048 = vdwg.mxu0
        %v3049 = vadd.f32 %v2660, %v3031
        %v3050 = vadd.f32 %v2665, %v3036
        %v3051 = vadd.f32 %v2670, %v3041
        %v3052 = vadd.f32 %v2675, %v3046
        %3053 = vrot.lane.b32.xlu0 %v1917, 80
        %v3054 = vpop.permute.xlu0 %3053
        %3055 = vrot.lane.b32.xlu0 %v1923, 80
        %v3056 = vpop.permute.xlu0 %3055
        %3057 = vrot.lane.b32.xlu0 %v1929, 80
        %v3058 = vpop.permute.xlu0 %3057
        %3059 = vrot.lane.b32.xlu0 %v1935, 80
        %v3060 = vpop.permute.xlu0 %3059
        %3061 = vrot.lane.b32.xlu0 %v1917, 16
        %v3062 = vpop.permute.xlu0 %3061
        %3063 = vrot.lane.b32.xlu0 %v1923, 16
        %v3064 = vpop.permute.xlu0 %3063
        %3065 = vrot.lane.b32.xlu0 %v1929, 16
        %v3066 = vpop.permute.xlu0 %3065
        %3067 = vrot.lane.b32.xlu0 %v1935, 16
        %v3068 = vpop.permute.xlu0 %3067
        %v3069 = vsel %vm832, %v3054, 0
        %v3071 = vsel %vm832, %v3056, 0
        %v3073 = vsel %vm832, %v3058, 0
        %v3075 = vsel %vm832, %v3060, 0
        %v3077 = vsel %vm832, %v3062, 0
        %v3079 = vsel %vm832, %v3064, 0
        %v3081 = vsel %vm832, %v3066, 0
        %v3083 = vsel %vm832, %v3068, 0
        %3085 = vmatprep.subr.mxu0 0.0
        %3086 = vmatpush1.xpose.msra.mxu0 %v3077
        %3087 = vmatprep.subr.mxu0 0.0
        %3088 = vmatpush1.xpose.msra.mxu0 %v3079
        %3089 = vmatprep.subr.mxu0 0.0
        %3090 = vmatpush1.xpose.msra.mxu0 %v3081
        %3091 = vmatprep.subr.mxu0 0.0
        %3092 = vmatpush1.xpose.msra.mxu0 %v3083
        %3093 = vmatprep.subr.mxu0 0.0
        %3094 = vmatpush1.xpose.msra.mxu0 0.0
        %3095 = vmatprep.subr.mxu0 0.0
        %3096 = vmatpush1.xpose.msra.mxu0 0.0
        %3097 = vmatprep.subr.mxu0 0.0
        %3098 = vmatpush1.xpose.msra.mxu0 0.0
        %3099 = vmatprep.subr.mxu0 0.0
        %3100 = vmatpush1.xpose.msra.mxu0 0.0
        %3101 = vmatprep.subr.mxu0 0.0
        %3102 = vmatpush1.xpose.msra.mxu0 0.0
        %3103 = vmatprep.subr.mxu0 0.0
        %3104 = vmatpush1.xpose.msra.mxu0 0.0
        %3105 = vmatprep.subr.mxu0 0.0
        %3106 = vmatpush1.xpose.msra.mxu0 0.0
        %3107 = vmatprep.subr.mxu0 0.0
        %3108 = vmatpush1.xpose.msra.mxu0 0.0
        %3109 = vmatprep.subr.mxu0 0.0
        %3110 = vmatpush1.xpose.msra.mxu0 0.0
        %3111 = vmatprep.subr.mxu0 0.0
        %3112 = vmatpush1.xpose.msra.mxu0 0.0
        %3113 = vmatprep.subr.mxu0 0.0
        %3114 = vmatpush1.xpose.msra.mxu0 0.0
        %3115 = vmatprep.subr.mxu0 0.0
        %3116 = vmatpush1.xpose.msra.mxu0 0.0
        %3117 = vmatprep.subr.mxu0 0.0
        %3118 = vmatpush1.xpose.msra.mxu0 0.0
        %3119 = vmatprep.subr.mxu0 0.0
        %3120 = vmatpush1.xpose.msra.mxu0 0.0
        %3121 = vmatprep.subr.mxu0 0.0
        %3122 = vmatpush1.xpose.msra.mxu0 0.0
        %3123 = vmatprep.subr.mxu0 0.0
        %3124 = vmatpush1.xpose.msra.mxu0 0.0
        %3125 = vmatprep.subr.mxu0 0.0
        %3126 = vmatpush1.xpose.msra.mxu0 0.0
        %3127 = vmatprep.subr.mxu0 0.0
        %3128 = vmatpush1.xpose.msra.mxu0 0.0
        %3129 = vmatprep.subr.mxu0 0.0
        %3130 = vmatpush1.xpose.msra.mxu0 0.0
        %3131 = vmatprep.subr.mxu0 0.0
        %3132 = vmatpush1.xpose.msra.mxu0 0.0
        %3133 = vmatprep.subr.mxu0 0.0
        %3134 = vmatpush1.xpose.msra.mxu0 0.0
        %3135 = vmatprep.subr.mxu0 0.0
        %3136 = vmatpush1.xpose.msra.mxu0 0.0
        %3137 = vmatprep.subr.mxu0 0.0
        %3138 = vmatpush1.xpose.msra.mxu0 0.0
        %3139 = vmatprep.subr.mxu0 0.0
        %3140 = vmatpush1.xpose.msra.mxu0 0.0
        %3141 = vmatprep.subr.mxu0 0.0
        %3142 = vmatpush1.xpose.msra.mxu0 0.0
        %3143 = vmatprep.subr.mxu0 0.0
        %3144 = vmatpush1.xpose.msra.mxu0 0.0
        %3145 = vmatprep.subr.mxu0 0.0
        %3146 = vmatpush1.xpose.msra.mxu0 0.0
        %3147 = vmatprep.subr.mxu0 0.0
        %3148 = vmatpush1.xpose.msra.mxu0 0.0
        %3149 = vmatprep.mubr.f32.mxu0 0.0
        %3150 = vmatmul.mubr.f32.gmra.mrb[0].mxu0 %v3069
        %v3151 = vpop.f32.mrb[0].mxu0
        %v3152 = vadd.f32 0.0, %v3151
        %v3153 = vpop.f32.mrb[0].mxu0
        %3154 = vmatprep.mubr.f32.mxu0 0.0
        %3155 = vmatmul.mubr.f32.gmra.mrb[0].mxu0 %v3071
        %v3156 = vpop.f32.mrb[0].mxu0
        %v3157 = vadd.f32 0.0, %v3156
        %v3158 = vpop.f32.mrb[0].mxu0
        %3159 = vmatprep.mubr.f32.mxu0 0.0
        %3160 = vmatmul.mubr.f32.gmra.mrb[0].mxu0 %v3073
        %v3161 = vpop.f32.mrb[0].mxu0
        %v3162 = vadd.f32 0.0, %v3161
        %v3163 = vpop.f32.mrb[0].mxu0
        %3164 = vmatprep.mubr.f32.mxu0 0.0
        %3165 = vmatmul.mubr.f32.gmra.mrb[0].mxu0 %v3075
        %v3166 = vpop.f32.mrb[0].mxu0
        %v3167 = vadd.f32 0.0, %v3166
        %v3168 = vpop.f32.mrb[0].mxu0
        %3169 = vdwg.mxu0
        %v3170 = vsel %vm2060, %v3152, -1e+30
        %v3171 = vsel %vm2060, %v3157, -1e+30
        %v3172 = vsel %vm2060, %v3162, -1e+30
        %v3173 = vsel %vm2060, %v3167, -1e+30
        %v3174 = vsel %vm837, %v3170, -inf
        %3175 = vmax.xlane.f32.xlu0 %v3174
        %v3176 = vpop.xlane.xlu0 %3175
        %v3177 = vsel %vm837, %v3171, -inf
        %3178 = vmax.xlane.f32.xlu0 %v3177
        %v3179 = vpop.xlane.xlu0 %3178
        %v3180 = vsel %vm837, %v3172, -inf
        %3181 = vmax.xlane.f32.xlu0 %v3180
        %v3182 = vpop.xlane.xlu0 %3181
        %v3183 = vsel %vm837, %v3173, -inf
        %3184 = vmax.xlane.f32.xlu0 %v3183
        %v3185 = vpop.xlane.xlu0 %3184
        %v3186 = vsub.f32 %v3170, %v3176
        %v3187 = vsub.f32 %v3171, %v3179
        %v3188 = vsub.f32 %v3172, %v3182
        %v3189 = vsub.f32 %v3173, %v3185
        %v3190 = vmul.f32 %v3186, 1.442695
        %v3191 = vpow.pop %v3190
        %v3192 = vmul.f32 %v3187, 1.442695
        %v3193 = vpow.pop %v3192
        %v3194 = vmul.f32 %v3188, 1.442695
        %v3195 = vpow.pop %v3194
        %v3196 = vmul.f32 %v3189, 1.442695
        %v3197 = vpow.pop %v3196
        %v3198 = vsel %vm837, %v3191, 0.0
        %3199 = vadd.xlane.f32.xlu0 %v3198
        %v3200 = vpop.xlane.xlu0 %3199
        %v3201 = vsel %vm837, %v3193, 0.0
        %3202 = vadd.xlane.f32.xlu0 %v3201
        %v3203 = vpop.xlane.xlu0 %3202
        %v3204 = vsel %vm837, %v3195, 0.0
        %3205 = vadd.xlane.f32.xlu0 %v3204
        %v3206 = vpop.xlane.xlu0 %3205
        %v3207 = vsel %vm837, %v3197, 0.0
        %3208 = vadd.xlane.f32.xlu0 %v3207
        %v3209 = vpop.xlane.xlu0 %3208
        %v3210 = vrcp.pop %v3200
        %v3211 = vrcp.pop %v3203
        %v3212 = vrcp.pop %v3206
        %v3213 = vrcp.pop %v3209
        %v3214 = vmul.f32 %v3191, %v3210
        %v3215 = vmul.f32 %v3193, %v3211
        %v3216 = vmul.f32 %v3195, %v3212
        %v3217 = vmul.f32 %v3197, %v3213
        %3218 = vrot.lane.b32.xlu0 %v1919, 80
        %v3219 = vpop.permute.xlu0 %3218
        %3220 = vrot.lane.b32.xlu0 %v1925, 80
        %v3221 = vpop.permute.xlu0 %3220
        %3222 = vrot.lane.b32.xlu0 %v1931, 80
        %v3223 = vpop.permute.xlu0 %3222
        %3224 = vrot.lane.b32.xlu0 %v1937, 80
        %v3225 = vpop.permute.xlu0 %3224
        %v3231 = vsel %vm837, %v3214, 0
        %v3234 = vsel %vm837, %v3215, 0
        %v3237 = vsel %vm837, %v3216, 0
        %v3240 = vsel %vm837, %v3217, 0
        %3242 = vmatprep.subr.mxu0 0.0
        %3243 = vmatpush1.msra.mxu0 %v3219
        %3244 = vmatprep.subr.mxu0 0.0
        %3245 = vmatpush1.msra.mxu0 %v3221
        %3246 = vmatprep.subr.mxu0 0.0
        %3247 = vmatpush1.msra.mxu0 %v3223
        %3248 = vmatprep.subr.mxu0 0.0
        %3249 = vmatpush1.msra.mxu0 %v3225
        %3250 = vmatprep.subr.mxu0 0.0
        %3251 = vmatpush1.msra.mxu0 0.0
        %3252 = vmatprep.subr.mxu0 0.0
        %3253 = vmatpush1.msra.mxu0 0.0
        %3254 = vmatprep.subr.mxu0 0.0
        %3255 = vmatpush1.msra.mxu0 0.0
        %3256 = vmatprep.subr.mxu0 0.0
        %3257 = vmatpush1.msra.mxu0 0.0
        %3258 = vmatprep.subr.mxu0 0.0
        %3259 = vmatpush1.msra.mxu0 0.0
        %3260 = vmatprep.subr.mxu0 0.0
        %3261 = vmatpush1.msra.mxu0 0.0
        %3262 = vmatprep.subr.mxu0 0.0
        %3263 = vmatpush1.msra.mxu0 0.0
        %3264 = vmatprep.subr.mxu0 0.0
        %3265 = vmatpush1.msra.mxu0 0.0
        %3266 = vmatprep.subr.mxu0 0.0
        %3267 = vmatpush1.msra.mxu0 0.0
        %3268 = vmatprep.subr.mxu0 0.0
        %3269 = vmatpush1.msra.mxu0 0.0
        %3270 = vmatprep.subr.mxu0 0.0
        %3271 = vmatpush1.msra.mxu0 0.0
        %3272 = vmatprep.subr.mxu0 0.0
        %3273 = vmatpush1.msra.mxu0 0.0
        %3274 = vmatprep.subr.mxu0 0.0
        %3275 = vmatpush1.msra.mxu0 0.0
        %3276 = vmatprep.subr.mxu0 0.0
        %3277 = vmatpush1.msra.mxu0 0.0
        %3278 = vmatprep.subr.mxu0 0.0
        %3279 = vmatpush1.msra.mxu0 0.0
        %3280 = vmatprep.subr.mxu0 0.0
        %3281 = vmatpush1.msra.mxu0 0.0
        %3282 = vmatprep.subr.mxu0 0.0
        %3283 = vmatpush1.msra.mxu0 0.0
        %3284 = vmatprep.subr.mxu0 0.0
        %3285 = vmatpush1.msra.mxu0 0.0
        %3286 = vmatprep.subr.mxu0 0.0
        %3287 = vmatpush1.msra.mxu0 0.0
        %3288 = vmatprep.subr.mxu0 0.0
        %3289 = vmatpush1.msra.mxu0 0.0
        %3290 = vmatprep.subr.mxu0 0.0
        %3291 = vmatpush1.msra.mxu0 0.0
        %3292 = vmatprep.subr.mxu0 0.0
        %3293 = vmatpush1.msra.mxu0 0.0
        %3294 = vmatprep.subr.mxu0 0.0
        %3295 = vmatpush1.msra.mxu0 0.0
        %3296 = vmatprep.subr.mxu0 0.0
        %3297 = vmatpush1.msra.mxu0 0.0
        %3298 = vmatprep.subr.mxu0 0.0
        %3299 = vmatpush1.msra.mxu0 0.0
        %3300 = vmatprep.subr.mxu0 0.0
        %3301 = vmatpush1.msra.mxu0 0.0
        %3302 = vmatprep.subr.mxu0 0.0
        %3303 = vmatpush1.msra.mxu0 0.0
        %3304 = vmatprep.subr.mxu0 0.0
        %3305 = vmatpush1.msra.mxu0 0.0
        %3306 = vmatprep.mubr.f32.mxu0 0.0
        %3307 = vmatmul.mubr.f32.gmra.mrb[0].mxu0 %v3231
        %v3308 = vpop.f32.mrb[0].mxu0
        %v3309 = vadd.f32 0.0, %v3308
        %v3310 = vpop.f32.mrb[0].mxu0
        %3311 = vmatprep.mubr.f32.mxu0 0.0
        %3312 = vmatmul.mubr.f32.gmra.mrb[0].mxu0 %v3234
        %v3313 = vpop.f32.mrb[0].mxu0
        %v3314 = vadd.f32 0.0, %v3313
        %v3315 = vpop.f32.mrb[0].mxu0
        %3316 = vmatprep.mubr.f32.mxu0 0.0
        %3317 = vmatmul.mubr.f32.gmra.mrb[0].mxu0 %v3237
        %v3318 = vpop.f32.mrb[0].mxu0
        %v3319 = vadd.f32 0.0, %v3318
        %v3320 = vpop.f32.mrb[0].mxu0
        %3321 = vmatprep.mubr.f32.mxu0 0.0
        %3322 = vmatmul.mubr.f32.gmra.mrb[0].mxu0 %v3240
        %v3323 = vpop.f32.mrb[0].mxu0
        %v3324 = vadd.f32 0.0, %v3323
        %v3325 = vpop.f32.mrb[0].mxu0
        %3326 = vdwg.mxu0
        %v3328 = vsel %vm832, %v3309, 0
        %v3331 = vsel %vm832, %v3314, 0
        %v3334 = vsel %vm832, %v3319, 0
        %v3337 = vsel %vm832, %v3324, 0
        %3339 = vmatprep.subr.mxu0 0.0
        %3340 = vmatpush1.msra.mxu0 %v1945
        %3341 = vmatprep.subr.mxu0 0.0
        %3342 = vmatpush1.msra.mxu0 %v1946
        %3343 = vmatprep.subr.mxu0 0.0
        %3344 = vmatpush1.msra.mxu0 0.0
        %3345 = vmatprep.subr.mxu0 0.0
        %3346 = vmatpush1.msra.mxu0 0.0
        %3347 = vmatprep.subr.mxu0 0.0
        %3348 = vmatpush1.msra.mxu0 0.0
        %3349 = vmatprep.subr.mxu0 0.0
        %3350 = vmatpush1.msra.mxu0 0.0
        %3351 = vmatprep.subr.mxu0 0.0
        %3352 = vmatpush1.msra.mxu0 0.0
        %3353 = vmatprep.subr.mxu0 0.0
        %3354 = vmatpush1.msra.mxu0 0.0
        %3355 = vmatprep.subr.mxu0 0.0
        %3356 = vmatpush1.msra.mxu0 0.0
        %3357 = vmatprep.subr.mxu0 0.0
        %3358 = vmatpush1.msra.mxu0 0.0
        %3359 = vmatprep.subr.mxu0 0.0
        %3360 = vmatpush1.msra.mxu0 0.0
        %3361 = vmatprep.subr.mxu0 0.0
        %3362 = vmatpush1.msra.mxu0 0.0
        %3363 = vmatprep.subr.mxu0 0.0
        %3364 = vmatpush1.msra.mxu0 0.0
        %3365 = vmatprep.subr.mxu0 0.0
        %3366 = vmatpush1.msra.mxu0 0.0
        %3367 = vmatprep.subr.mxu0 0.0
        %3368 = vmatpush1.msra.mxu0 0.0
        %3369 = vmatprep.subr.mxu0 0.0
        %3370 = vmatpush1.msra.mxu0 0.0
        %3371 = vmatprep.subr.mxu0 0.0
        %3372 = vmatpush1.msra.mxu0 0.0
        %3373 = vmatprep.subr.mxu0 0.0
        %3374 = vmatpush1.msra.mxu0 0.0
        %3375 = vmatprep.subr.mxu0 0.0
        %3376 = vmatpush1.msra.mxu0 0.0
        %3377 = vmatprep.subr.mxu0 0.0
        %3378 = vmatpush1.msra.mxu0 0.0
        %3379 = vmatprep.subr.mxu0 0.0
        %3380 = vmatpush1.msra.mxu0 0.0
        %3381 = vmatprep.subr.mxu0 0.0
        %3382 = vmatpush1.msra.mxu0 0.0
        %3383 = vmatprep.subr.mxu0 0.0
        %3384 = vmatpush1.msra.mxu0 0.0
        %3385 = vmatprep.subr.mxu0 0.0
        %3386 = vmatpush1.msra.mxu0 0.0
        %3387 = vmatprep.subr.mxu0 0.0
        %3388 = vmatpush1.msra.mxu0 0.0
        %3389 = vmatprep.subr.mxu0 0.0
        %3390 = vmatpush1.msra.mxu0 0.0
        %3391 = vmatprep.subr.mxu0 0.0
        %3392 = vmatpush1.msra.mxu0 0.0
        %3393 = vmatprep.subr.mxu0 0.0
        %3394 = vmatpush1.msra.mxu0 0.0
        %3395 = vmatprep.subr.mxu0 0.0
        %3396 = vmatpush1.msra.mxu0 0.0
        %3397 = vmatprep.subr.mxu0 0.0
        %3398 = vmatpush1.msra.mxu0 0.0
        %3399 = vmatprep.subr.mxu0 0.0
        %3400 = vmatpush1.msra.mxu0 0.0
        %3401 = vmatprep.subr.mxu0 0.0
        %3402 = vmatpush1.msra.mxu0 0.0
        %3403 = vmatprep.mubr.f32.mxu0 0.0
        %3404 = vmatmul.mubr.f32.gmra.mrb[0].mxu0 %v3328
        %v3405 = vpop.f32.mrb[0].mxu0
        %v3406 = vadd.f32 0.0, %v3405
        %v3407 = vpop.f32.mrb[0].mxu0
        %3408 = vmatprep.mubr.f32.mxu0 0.0
        %3409 = vmatmul.mubr.f32.gmra.mrb[0].mxu0 %v3331
        %v3410 = vpop.f32.mrb[0].mxu0
        %v3411 = vadd.f32 0.0, %v3410
        %v3412 = vpop.f32.mrb[0].mxu0
        %3413 = vmatprep.mubr.f32.mxu0 0.0
        %3414 = vmatmul.mubr.f32.gmra.mrb[0].mxu0 %v3334
        %v3415 = vpop.f32.mrb[0].mxu0
        %v3416 = vadd.f32 0.0, %v3415
        %v3417 = vpop.f32.mrb[0].mxu0
        %3418 = vmatprep.mubr.f32.mxu0 0.0
        %3419 = vmatmul.mubr.f32.gmra.mrb[0].mxu0 %v3337
        %v3420 = vpop.f32.mrb[0].mxu0
        %v3421 = vadd.f32 0.0, %v3420
        %v3422 = vpop.f32.mrb[0].mxu0
        %3423 = vdwg.mxu0
        %v3424 = vadd.f32 %v3049, %v3406
        %v3425 = vadd.f32 %v3050, %v3411
        %v3426 = vadd.f32 %v3051, %v3416
        %v3427 = vadd.f32 %v3052, %v3421
        %v3428 = vld [vmem:[%s8] sm:$0x1]
        %v3430 = vlaneseq
        %v3431 = vshrl.u32 %v3430, 7
        %v3432 = vsub.s32 0, %v3431
        %v3433 = vrot.slane %v3428, %v3432
        %v3435 = vadd.f32 %v3424, %v3433
        %v3436 = vadd.f32 %v3425, %v3433
        %v3437 = vadd.f32 %v3426, %v3433
        %v3438 = vadd.f32 %v3427, %v3433
        %v3439 = vadd.f32 %v3435, %v1804
        %v3440 = vadd.f32 %v3436, %v1805
        %v3441 = vadd.f32 %v3437, %v1806
        %v3442 = vadd.f32 %v3438, %v1807
        %v3443 = vld [vmem:[%s9] sm:$0x1]
        %v3444 = vld [vmem:[%s10] sm:$0x1]
        %v3445 = vsel %vm847, %v3439, 0.0
        %3446 = vadd.xlane.f32.xlu0 %v3445
        %v3447 = vpop.xlane.xlu0 %3446
        %v3448 = vsel %vm847, %v3440, 0.0
        %3449 = vadd.xlane.f32.xlu0 %v3448
        %v3450 = vpop.xlane.xlu0 %3449
        %v3451 = vsel %vm847, %v3441, 0.0
        %3452 = vadd.xlane.f32.xlu0 %v3451
        %v3453 = vpop.xlane.xlu0 %3452
        %v3454 = vsel %vm847, %v3442, 0.0
        %3455 = vadd.xlane.f32.xlu0 %v3454
        %v3456 = vpop.xlane.xlu0 %3455
        %v3457 = vmul.f32 %v3447, %v1747
        %v3458 = vmul.f32 %v3450, %v1747
        %v3459 = vmul.f32 %v3453, %v1747
        %v3460 = vmul.f32 %v3456, %v1747
        %v3461 = vsub.f32 %v3439, %v3457
        %v3462 = vsub.f32 %v3440, %v3458
        %v3463 = vsub.f32 %v3441, %v3459
        %v3464 = vsub.f32 %v3442, %v3460
        %v3465 = vmul.f32 %v3461, %v3461
        %v3466 = vmul.f32 %v3462, %v3462
        %v3467 = vmul.f32 %v3463, %v3463
        %v3468 = vmul.f32 %v3464, %v3464
        %v3469 = vsel %vm847, %v3465, 0.0
        %3470 = vadd.xlane.f32.xlu0 %v3469
        %v3471 = vpop.xlane.xlu0 %3470
        %v3472 = vsel %vm847, %v3466, 0.0
        %3473 = vadd.xlane.f32.xlu0 %v3472
        %v3474 = vpop.xlane.xlu0 %3473
        %v3475 = vsel %vm847, %v3467, 0.0
        %3476 = vadd.xlane.f32.xlu0 %v3475
        %v3477 = vpop.xlane.xlu0 %3476
        %v3478 = vsel %vm847, %v3468, 0.0
        %3479 = vadd.xlane.f32.xlu0 %v3478
        %v3480 = vpop.xlane.xlu0 %3479
        %v3481 = vmul.f32 %v3471, %v1747
        %v3482 = vmul.f32 %v3474, %v1747
        %v3483 = vmul.f32 %v3477, %v1747
        %v3484 = vmul.f32 %v3480, %v1747
        %v3485 = vadd.f32 %v3481, 1e-05
        %v3486 = vadd.f32 %v3482, 1e-05
        %v3487 = vadd.f32 %v3483, 1e-05
        %v3488 = vadd.f32 %v3484, 1e-05
        %v3489 = vrsqrt.pop %v3485
        %v3490 = vrsqrt.pop %v3486
        %v3491 = vrsqrt.pop %v3487
        %v3492 = vrsqrt.pop %v3488
        %v3493 = vmul.f32 %v3461, %v3489
        %v3494 = vmul.f32 %v3462, %v3490
        %v3495 = vmul.f32 %v3463, %v3491
        %v3496 = vmul.f32 %v3464, %v3492
        %v3498 = vlaneseq
        %v3499 = vshrl.u32 %v3498, 7
        %v3500 = vsub.s32 0, %v3499
        %v3501 = vrot.slane %v3443, %v3500
        %v3503 = vmul.f32 %v3493, %v3501
        %v3504 = vmul.f32 %v3494, %v3501
        %v3505 = vmul.f32 %v3495, %v3501
        %v3506 = vmul.f32 %v3496, %v3501
        %v3508 = vlaneseq
        %v3509 = vshrl.u32 %v3508, 7
        %v3510 = vsub.s32 0, %v3509
        %v3511 = vrot.slane %v3444, %v3510
        %v3513 = vadd.f32 %v3503, %v3511
        %v3514 = vadd.f32 %v3504, %v3511
        %v3515 = vadd.f32 %v3505, %v3511
        %v3516 = vadd.f32 %v3506, %v3511
        %v3517 = vld [vmem:[%s11] sm:$0xff]
        %v3518 = vld [vmem:[%s11 + $0x8] sm:$0xff]
        %v3519 = vld [vmem:[%s11 + $0x10] sm:$0xff]
        %v3520 = vld [vmem:[%s11 + $0x18] sm:$0xff]
        %v3521 = vld [vmem:[%s11 + $0x20] sm:$0xff]
        %v3522 = vld [vmem:[%s11 + $0x28] sm:$0xff]
        %v3523 = vld [vmem:[%s11 + $0x30] sm:$0xff]
        %v3524 = vld [vmem:[%s11 + $0x38] sm:$0xff]
        %v3525 = vld [vmem:[%s12] sm:$0x1]
        %v3527 = vlaneseq
        %v3528 = vshrl.u32 %v3527, 7
        %v3529 = vsub.s32 0, %v3528
        %v3530 = vrot.slane %v3525, %v3529
        %v3533 = vsel %vm847, %v3513, 0
        %v3536 = vsel %vm847, %v3514, 0
        %v3539 = vsel %vm847, %v3515, 0
        %v3542 = vsel %vm847, %v3516, 0
        %3544 = vmatprep.subr.mxu0 0.0
        %3545 = vmatpush1.msra.mxu0 %v3517
        %3546 = vmatprep.subr.mxu0 0.0
        %3547 = vmatpush1.msra.mxu0 %v3518
        %3548 = vmatprep.subr.mxu0 0.0
        %3549 = vmatpush1.msra.mxu0 %v3519
        %3550 = vmatprep.subr.mxu0 0.0
        %3551 = vmatpush1.msra.mxu0 %v3520
        %3552 = vmatprep.subr.mxu0 0.0
        %3553 = vmatpush1.msra.mxu0 %v3521
        %3554 = vmatprep.subr.mxu0 0.0
        %3555 = vmatpush1.msra.mxu0 %v3522
        %3556 = vmatprep.subr.mxu0 0.0
        %3557 = vmatpush1.msra.mxu0 %v3523
        %3558 = vmatprep.subr.mxu0 0.0
        %3559 = vmatpush1.msra.mxu0 %v3524
        %3560 = vmatprep.subr.mxu0 0.0
        %3561 = vmatpush1.msra.mxu0 0.0
        %3562 = vmatprep.subr.mxu0 0.0
        %3563 = vmatpush1.msra.mxu0 0.0
        %3564 = vmatprep.subr.mxu0 0.0
        %3565 = vmatpush1.msra.mxu0 0.0
        %3566 = vmatprep.subr.mxu0 0.0
        %3567 = vmatpush1.msra.mxu0 0.0
        %3568 = vmatprep.subr.mxu0 0.0
        %3569 = vmatpush1.msra.mxu0 0.0
        %3570 = vmatprep.subr.mxu0 0.0
        %3571 = vmatpush1.msra.mxu0 0.0
        %3572 = vmatprep.subr.mxu0 0.0
        %3573 = vmatpush1.msra.mxu0 0.0
        %3574 = vmatprep.subr.mxu0 0.0
        %3575 = vmatpush1.msra.mxu0 0.0
        %3576 = vmatprep.subr.mxu0 0.0
        %3577 = vmatpush1.msra.mxu0 0.0
        %3578 = vmatprep.subr.mxu0 0.0
        %3579 = vmatpush1.msra.mxu0 0.0
        %3580 = vmatprep.subr.mxu0 0.0
        %3581 = vmatpush1.msra.mxu0 0.0
        %3582 = vmatprep.subr.mxu0 0.0
        %3583 = vmatpush1.msra.mxu0 0.0
        %3584 = vmatprep.subr.mxu0 0.0
        %3585 = vmatpush1.msra.mxu0 0.0
        %3586 = vmatprep.subr.mxu0 0.0
        %3587 = vmatpush1.msra.mxu0 0.0
        %3588 = vmatprep.subr.mxu0 0.0
        %3589 = vmatpush1.msra.mxu0 0.0
        %3590 = vmatprep.subr.mxu0 0.0
        %3591 = vmatpush1.msra.mxu0 0.0
        %3592 = vmatprep.subr.mxu0 0.0
        %3593 = vmatpush1.msra.mxu0 0.0
        %3594 = vmatprep.subr.mxu0 0.0
        %3595 = vmatpush1.msra.mxu0 0.0
        %3596 = vmatprep.subr.mxu0 0.0
        %3597 = vmatpush1.msra.mxu0 0.0
        %3598 = vmatprep.subr.mxu0 0.0
        %3599 = vmatpush1.msra.mxu0 0.0
        %3600 = vmatprep.subr.mxu0 0.0
        %3601 = vmatpush1.msra.mxu0 0.0
        %3602 = vmatprep.subr.mxu0 0.0
        %3603 = vmatpush1.msra.mxu0 0.0
        %3604 = vmatprep.subr.mxu0 0.0
        %3605 = vmatpush1.msra.mxu0 0.0
        %3606 = vmatprep.subr.mxu0 0.0
        %3607 = vmatpush1.msra.mxu0 0.0
        %3608 = vmatprep.mubr.f32.mxu0 0.0
        %3609 = vmatmul.mubr.f32.gmra.mrb[0].mxu0 %v3533
        %v3610 = vpop.f32.mrb[0].mxu0
        %v3611 = vadd.f32 %v3530, %v3610
        %v3612 = vpop.f32.mrb[0].mxu0
        %3613 = vmatprep.mubr.f32.mxu0 0.0
        %3614 = vmatmul.mubr.f32.gmra.mrb[0].mxu0 %v3536
        %v3615 = vpop.f32.mrb[0].mxu0
        %v3616 = vadd.f32 %v3530, %v3615
        %v3617 = vpop.f32.mrb[0].mxu0
        %3618 = vmatprep.mubr.f32.mxu0 0.0
        %3619 = vmatmul.mubr.f32.gmra.mrb[0].mxu0 %v3539
        %v3620 = vpop.f32.mrb[0].mxu0
        %v3621 = vadd.f32 %v3530, %v3620
        %v3622 = vpop.f32.mrb[0].mxu0
        %3623 = vmatprep.mubr.f32.mxu0 0.0
        %3624 = vmatmul.mubr.f32.gmra.mrb[0].mxu0 %v3542
        %v3625 = vpop.f32.mrb[0].mxu0
        %v3626 = vadd.f32 %v3530, %v3625
        %v3627 = vpop.f32.mrb[0].mxu0
        %3628 = vdwg.mxu0
        %v3629 = vmul.f32 %v3611, %v3611
        %v3630 = vmul.f32 %v3616, %v3616
        %v3631 = vmul.f32 %v3621, %v3621
        %v3632 = vmul.f32 %v3626, %v3626
        %v3633 = vmul.f32 %v3611, %v3629
        %v3634 = vmul.f32 %v3616, %v3630
        %v3635 = vmul.f32 %v3621, %v3631
        %v3636 = vmul.f32 %v3626, %v3632
        %v3637 = vmul.f32 %v3633, 0.044715
        %v3638 = vmul.f32 %v3634, 0.044715
        %v3639 = vmul.f32 %v3635, 0.044715
        %v3640 = vmul.f32 %v3636, 0.044715
        %v3641 = vadd.f32 %v3611, %v3637
        %v3642 = vadd.f32 %v3616, %v3638
        %v3643 = vadd.f32 %v3621, %v3639
        %v3644 = vadd.f32 %v3626, %v3640
        %v3645 = vmul.f32 %v3641, 0.7978846
        %v3646 = vmul.f32 %v3642, 0.7978846
        %v3647 = vmul.f32 %v3643, 0.7978846
        %v3648 = vmul.f32 %v3644, 0.7978846
        %v3649 = vtanh.pop %v3645
        %v3650 = vtanh.pop %v3646
        %v3651 = vtanh.pop %v3647
        %v3652 = vtanh.pop %v3648
        %v3653 = vadd.f32 %v3649, 1.0
        %v3654 = vadd.f32 %v3650, 1.0
        %v3655 = vadd.f32 %v3651, 1.0
        %v3656 = vadd.f32 %v3652, 1.0
        %v3657 = vmul.f32 %v3653, 0.5
        %v3658 = vmul.f32 %v3654, 0.5
        %v3659 = vmul.f32 %v3655, 0.5
        %v3660 = vmul.f32 %v3656, 0.5
        %v3661 = vmul.f32 %v3611, %v3657
        %v3662 = vmul.f32 %v3616, %v3658
        %v3663 = vmul.f32 %v3621, %v3659
        %v3664 = vmul.f32 %v3626, %v3660
        %v3665 = vld [vmem:[%s13] sm:$0xff]
        %v3666 = vld [vmem:[%s13 + $0x8] sm:$0xff]
        %v3667 = vld [vmem:[%s13 + $0x10] sm:$0xff]
        %v3668 = vld [vmem:[%s13 + $0x18] sm:$0xff]
        %v3669 = vld [vmem:[%s13 + $0x20] sm:$0xff]
        %v3670 = vld [vmem:[%s13 + $0x28] sm:$0xff]
        %v3671 = vld [vmem:[%s13 + $0x30] sm:$0xff]
        %v3672 = vld [vmem:[%s13 + $0x38] sm:$0xff]
        %v3673 = vld [vmem:[%s13 + $0x40] sm:$0xff]
        %v3674 = vld [vmem:[%s13 + $0x48] sm:$0xff]
        %v3675 = vld [vmem:[%s13 + $0x50] sm:$0xff]
        %v3676 = vld [vmem:[%s13 + $0x58] sm:$0xff]
        %v3677 = vld [vmem:[%s13 + $0x60] sm:$0xff]
        %v3678 = vld [vmem:[%s13 + $0x68] sm:$0xff]
        %v3679 = vld [vmem:[%s13 + $0x70] sm:$0xff]
        %v3680 = vld [vmem:[%s13 + $0x78] sm:$0xff]
        %v3681 = vld [vmem:[%s14] sm:$0x1]
        %v3683 = vlaneseq
        %v3684 = vshrl.u32 %v3683, 7
        %v3685 = vsub.s32 0, %v3684
        %v3686 = vrot.slane %v3681, %v3685
        %3688 = vmatprep.subr.mxu0 0.0
        %3689 = vmatpush1.msra.mxu0 %v3665
        %3690 = vmatprep.subr.mxu0 0.0
        %3691 = vmatpush1.msra.mxu0 %v3666
        %3692 = vmatprep.subr.mxu0 0.0
        %3693 = vmatpush1.msra.mxu0 %v3667
        %3694 = vmatprep.subr.mxu0 0.0
        %3695 = vmatpush1.msra.mxu0 %v3668
        %3696 = vmatprep.subr.mxu0 0.0
        %3697 = vmatpush1.msra.mxu0 %v3669
        %3698 = vmatprep.subr.mxu0 0.0
        %3699 = vmatpush1.msra.mxu0 %v3670
        %3700 = vmatprep.subr.mxu0 0.0
        %3701 = vmatpush1.msra.mxu0 %v3671
        %3702 = vmatprep.subr.mxu0 0.0
        %3703 = vmatpush1.msra.mxu0 %v3672
        %3704 = vmatprep.subr.mxu0 0.0
        %3705 = vmatpush1.msra.mxu0 %v3673
        %3706 = vmatprep.subr.mxu0 0.0
        %3707 = vmatpush1.msra.mxu0 %v3674
        %3708 = vmatprep.subr.mxu0 0.0
        %3709 = vmatpush1.msra.mxu0 %v3675
        %3710 = vmatprep.subr.mxu0 0.0
        %3711 = vmatpush1.msra.mxu0 %v3676
        %3712 = vmatprep.subr.mxu0 0.0
        %3713 = vmatpush1.msra.mxu0 %v3677
        %3714 = vmatprep.subr.mxu0 0.0
        %3715 = vmatpush1.msra.mxu0 %v3678
        %3716 = vmatprep.subr.mxu0 0.0
        %3717 = vmatpush1.msra.mxu0 %v3679
        %3718 = vmatprep.subr.mxu0 0.0
        %3719 = vmatpush1.msra.mxu0 %v3680
        %3720 = vmatprep.subr.mxu0 0.0
        %3721 = vmatpush1.msra.mxu0 0.0
        %3722 = vmatprep.subr.mxu0 0.0
        %3723 = vmatpush1.msra.mxu0 0.0
        %3724 = vmatprep.subr.mxu0 0.0
        %3725 = vmatpush1.msra.mxu0 0.0
        %3726 = vmatprep.subr.mxu0 0.0
        %3727 = vmatpush1.msra.mxu0 0.0
        %3728 = vmatprep.subr.mxu0 0.0
        %3729 = vmatpush1.msra.mxu0 0.0
        %3730 = vmatprep.subr.mxu0 0.0
        %3731 = vmatpush1.msra.mxu0 0.0
        %3732 = vmatprep.subr.mxu0 0.0
        %3733 = vmatpush1.msra.mxu0 0.0
        %3734 = vmatprep.subr.mxu0 0.0
        %3735 = vmatpush1.msra.mxu0 0.0
        %3736 = vmatprep.subr.mxu0 0.0
        %3737 = vmatpush1.msra.mxu0 0.0
        %3738 = vmatprep.subr.mxu0 0.0
        %3739 = vmatpush1.msra.mxu0 0.0
        %3740 = vmatprep.subr.mxu0 0.0
        %3741 = vmatpush1.msra.mxu0 0.0
        %3742 = vmatprep.subr.mxu0 0.0
        %3743 = vmatpush1.msra.mxu0 0.0
        %3744 = vmatprep.subr.mxu0 0.0
        %3745 = vmatpush1.msra.mxu0 0.0
        %3746 = vmatprep.subr.mxu0 0.0
        %3747 = vmatpush1.msra.mxu0 0.0
        %3748 = vmatprep.subr.mxu0 0.0
        %3749 = vmatpush1.msra.mxu0 0.0
        %3750 = vmatprep.subr.mxu0 0.0
        %3751 = vmatpush1.msra.mxu0 0.0
        %3752 = vmatprep.mubr.f32.mxu0 0.0
        %3753 = vmatmul.mubr.f32.gmra.mrb[0].mxu0 %v3661
        %v3754 = vpop.f32.mrb[0].mxu0
        %v3755 = vadd.f32 %v3686, %v3754
        %v3756 = vpop.f32.mrb[0].mxu0
        %3757 = vmatprep.mubr.f32.mxu0 0.0
        %3758 = vmatmul.mubr.f32.gmra.mrb[0].mxu0 %v3662
        %v3759 = vpop.f32.mrb[0].mxu0
        %v3760 = vadd.f32 %v3686, %v3759
        %v3761 = vpop.f32.mrb[0].mxu0
        %3762 = vmatprep.mubr.f32.mxu0 0.0
        %3763 = vmatmul.mubr.f32.gmra.mrb[0].mxu0 %v3663
        %v3764 = vpop.f32.mrb[0].mxu0
        %v3765 = vadd.f32 %v3686, %v3764
        %v3766 = vpop.f32.mrb[0].mxu0
        %3767 = vmatprep.mubr.f32.mxu0 0.0
        %3768 = vmatmul.mubr.f32.gmra.mrb[0].mxu0 %v3664
        %v3769 = vpop.f32.mrb[0].mxu0
        %v3770 = vadd.f32 %v3686, %v3769
        %v3771 = vpop.f32.mrb[0].mxu0
        %3772 = vdwg.mxu0
        %v3773 = vadd.f32 %v3755, %v3513
        %v3774 = vadd.f32 %v3760, %v3514
        %v3775 = vadd.f32 %v3765, %v3515
        %v3776 = vadd.f32 %v3770, %v3516
        %v3777 = vld [vmem:[%s15] sm:$0x1]
        %v3778 = vld [vmem:[%s16] sm:$0x1]
        %v3779 = vsel %vm847, %v3773, 0.0
        %3780 = vadd.xlane.f32.xlu0 %v3779
        %v3781 = vpop.xlane.xlu0 %3780
        %v3782 = vsel %vm847, %v3774, 0.0
        %3783 = vadd.xlane.f32.xlu0 %v3782
        %v3784 = vpop.xlane.xlu0 %3783
        %v3785 = vsel %vm847, %v3775, 0.0
        %3786 = vadd.xlane.f32.xlu0 %v3785
        %v3787 = vpop.xlane.xlu0 %3786
        %v3788 = vsel %vm847, %v3776, 0.0
        %3789 = vadd.xlane.f32.xlu0 %v3788
        %v3790 = vpop.xlane.xlu0 %3789
        %v3791 = vmul.f32 %v3781, %v1747
        %v3792 = vmul.f32 %v3784, %v1747
        %v3793 = vmul.f32 %v3787, %v1747
        %v3794 = vmul.f32 %v3790, %v1747
        %v3795 = vsub.f32 %v3773, %v3791
        %v3796 = vsub.f32 %v3774, %v3792
        %v3797 = vsub.f32 %v3775, %v3793
        %v3798 = vsub.f32 %v3776, %v3794
        %v3799 = vmul.f32 %v3795, %v3795
        %v3800 = vmul.f32 %v3796, %v3796
        %v3801 = vmul.f32 %v3797, %v3797
        %v3802 = vmul.f32 %v3798, %v3798
        %v3803 = vsel %vm847, %v3799, 0.0
        %3804 = vadd.xlane.f32.xlu0 %v3803
        %v3805 = vpop.xlane.xlu0 %3804
        %v3806 = vsel %vm847, %v3800, 0.0
        %3807 = vadd.xlane.f32.xlu0 %v3806
        %v3808 = vpop.xlane.xlu0 %3807
        %v3809 = vsel %vm847, %v3801, 0.0
        %3810 = vadd.xlane.f32.xlu0 %v3809
        %v3811 = vpop.xlane.xlu0 %3810
        %v3812 = vsel %vm847, %v3802, 0.0
        %3813 = vadd.xlane.f32.xlu0 %v3812
        %v3814 = vpop.xlane.xlu0 %3813
        %v3815 = vmul.f32 %v3805, %v1747
        %v3816 = vmul.f32 %v3808, %v1747
        %v3817 = vmul.f32 %v3811, %v1747
        %v3818 = vmul.f32 %v3814, %v1747
        %v3819 = vadd.f32 %v3815, 1e-05
        %v3820 = vadd.f32 %v3816, 1e-05
        %v3821 = vadd.f32 %v3817, 1e-05
        %v3822 = vadd.f32 %v3818, 1e-05
        %v3823 = vrsqrt.pop %v3819
        %v3824 = vrsqrt.pop %v3820
        %v3825 = vrsqrt.pop %v3821
        %v3826 = vrsqrt.pop %v3822
        %v3827 = vmul.f32 %v3795, %v3823
        %v3828 = vmul.f32 %v3796, %v3824
        %v3829 = vmul.f32 %v3797, %v3825
        %v3830 = vmul.f32 %v3798, %v3826
        %v3832 = vlaneseq
        %v3833 = vshrl.u32 %v3832, 7
        %v3834 = vsub.s32 0, %v3833
        %v3835 = vrot.slane %v3777, %v3834
        %v3837 = vmul.f32 %v3827, %v3835
        %v3838 = vmul.f32 %v3828, %v3835
        %v3839 = vmul.f32 %v3829, %v3835
        %v3840 = vmul.f32 %v3830, %v3835
        %v3842 = vlaneseq
        %v3843 = vshrl.u32 %v3842, 7
        %v3844 = vsub.s32 0, %v3843
        %v3845 = vrot.slane %v3778, %v3844
        %v3847 = vadd.f32 %v3837, %v3845
        %v3848 = vadd.f32 %v3838, %v3845
        %v3849 = vadd.f32 %v3839, %v3845
        %v3850 = vadd.f32 %v3840, %v3845
        %s3851 = scalar_lea.vmem %s5, 128
        %v3852 = vld [vmem:[%s3851] sm:$0xff]
        %v3853 = vld [vmem:[%s3851 + $0x8] sm:$0xff]
        %v3854 = vld [vmem:[%s3851 + $0x10] sm:$0xff]
        %v3855 = vld [vmem:[%s3851 + $0x18] sm:$0xff]
        %v3856 = vld [vmem:[%s3851 + $0x20] sm:$0xff]
        %v3857 = vld [vmem:[%s3851 + $0x28] sm:$0xff]
        %v3858 = vld [vmem:[%s3851 + $0x30] sm:$0xff]
        %v3859 = vld [vmem:[%s3851 + $0x38] sm:$0xff]
        %v3860 = vld [vmem:[%s3851 + $0x40] sm:$0xff]
        %v3861 = vld [vmem:[%s3851 + $0x48] sm:$0xff]
        %v3862 = vld [vmem:[%s3851 + $0x50] sm:$0xff]
        %v3863 = vld [vmem:[%s3851 + $0x58] sm:$0xff]
        %v3864 = vld [vmem:[%s3851 + $0x60] sm:$0xff]
        %v3865 = vld [vmem:[%s3851 + $0x68] sm:$0xff]
        %v3866 = vld [vmem:[%s3851 + $0x70] sm:$0xff]
        %v3867 = vld [vmem:[%s3851 + $0x78] sm:$0xff]
        %s3868 = scalar_lea.vmem %s6, 2
        %v3869 = vld [vmem:[%s3868] sm:$0x3]
        %v3871 = vlaneseq
        %v3872 = vshrl.u32 %v3871, 7
        %v3873 = vsub.s32 0, %v3872
        %v3874 = vrot.slane %v3869, %v3873
        %v3875 = vlaneseq
        %v3876 = vshrl.u32 %v3875, 7
        %v3877 = vsub.s32 1, %v3876
        %v3878 = vrot.slane %v3869, %v3877
        %v3882 = vsel %vm847, %v3847, 0
        %v3885 = vsel %vm847, %v3848, 0
        %v3888 = vsel %vm847, %v3849, 0
        %v3891 = vsel %vm847, %v3850, 0
        %3893 = vmatprep.subr.mxu0 %v3853
        %3894 = vmatpush1.msra.mxu0 %v3852
        %3895 = vmatprep.subr.mxu0 %v3855
        %3896 = vmatpush1.msra.mxu0 %v3854
        %3897 = vmatprep.subr.mxu0 %v3857
        %3898 = vmatpush1.msra.mxu0 %v3856
        %3899 = vmatprep.subr.mxu0 %v3859
        %3900 = vmatpush1.msra.mxu0 %v3858
        %3901 = vmatprep.subr.mxu0 %v3861
        %3902 = vmatpush1.msra.mxu0 %v3860
        %3903 = vmatprep.subr.mxu0 %v3863
        %3904 = vmatpush1.msra.mxu0 %v3862
        %3905 = vmatprep.subr.mxu0 %v3865
        %3906 = vmatpush1.msra.mxu0 %v3864
        %3907 = vmatprep.subr.mxu0 %v3867
        %3908 = vmatpush1.msra.mxu0 %v3866
        %3909 = vmatprep.subr.mxu0 0.0
        %3910 = vmatpush1.msra.mxu0 0.0
        %3911 = vmatprep.subr.mxu0 0.0
        %3912 = vmatpush1.msra.mxu0 0.0
        %3913 = vmatprep.subr.mxu0 0.0
        %3914 = vmatpush1.msra.mxu0 0.0
        %3915 = vmatprep.subr.mxu0 0.0
        %3916 = vmatpush1.msra.mxu0 0.0
        %3917 = vmatprep.subr.mxu0 0.0
        %3918 = vmatpush1.msra.mxu0 0.0
        %3919 = vmatprep.subr.mxu0 0.0
        %3920 = vmatpush1.msra.mxu0 0.0
        %3921 = vmatprep.subr.mxu0 0.0
        %3922 = vmatpush1.msra.mxu0 0.0
        %3923 = vmatprep.subr.mxu0 0.0
        %3924 = vmatpush1.msra.mxu0 0.0
        %3925 = vmatprep.subr.mxu0 0.0
        %3926 = vmatpush1.msra.mxu0 0.0
        %3927 = vmatprep.subr.mxu0 0.0
        %3928 = vmatpush1.msra.mxu0 0.0
        %3929 = vmatprep.subr.mxu0 0.0
        %3930 = vmatpush1.msra.mxu0 0.0
        %3931 = vmatprep.subr.mxu0 0.0
        %3932 = vmatpush1.msra.mxu0 0.0
        %3933 = vmatprep.subr.mxu0 0.0
        %3934 = vmatpush1.msra.mxu0 0.0
        %3935 = vmatprep.subr.mxu0 0.0
        %3936 = vmatpush1.msra.mxu0 0.0
        %3937 = vmatprep.subr.mxu0 0.0
        %3938 = vmatpush1.msra.mxu0 0.0
        %3939 = vmatprep.subr.mxu0 0.0
        %3940 = vmatpush1.msra.mxu0 0.0
        %3941 = vmatprep.subr.mxu0 0.0
        %3942 = vmatpush1.msra.mxu0 0.0
        %3943 = vmatprep.subr.mxu0 0.0
        %3944 = vmatpush1.msra.mxu0 0.0
        %3945 = vmatprep.subr.mxu0 0.0
        %3946 = vmatpush1.msra.mxu0 0.0
        %3947 = vmatprep.subr.mxu0 0.0
        %3948 = vmatpush1.msra.mxu0 0.0
        %3949 = vmatprep.subr.mxu0 0.0
        %3950 = vmatpush1.msra.mxu0 0.0
        %3951 = vmatprep.subr.mxu0 0.0
        %3952 = vmatpush1.msra.mxu0 0.0
        %3953 = vmatprep.subr.mxu0 0.0
        %3954 = vmatpush1.msra.mxu0 0.0
        %3955 = vmatprep.subr.mxu0 0.0
        %3956 = vmatpush1.msra.mxu0 0.0
        %3957 = vmatprep.mubr.f32.mxu0 0.0
        %3958 = vmatmul.mubr.f32.gmra.mrb[0].mxu0 %v3882
        %v3959 = vpop.f32.mrb[0].mxu0
        %v3960 = vadd.f32 %v3874, %v3959
        %v3961 = vpop.f32.mrb[0].mxu0
        %v3962 = vadd.f32 %v3878, %v3961
        %3963 = vmatprep.mubr.f32.mxu0 0.0
        %3964 = vmatmul.mubr.f32.gmra.mrb[0].mxu0 %v3885
        %v3965 = vpop.f32.mrb[0].mxu0
        %v3966 = vadd.f32 %v3874, %v3965
        %v3967 = vpop.f32.mrb[0].mxu0
        %v3968 = vadd.f32 %v3878, %v3967
        %3969 = vmatprep.mubr.f32.mxu0 0.0
        %3970 = vmatmul.mubr.f32.gmra.mrb[0].mxu0 %v3888
        %v3971 = vpop.f32.mrb[0].mxu0
        %v3972 = vadd.f32 %v3874, %v3971
        %v3973 = vpop.f32.mrb[0].mxu0
        %v3974 = vadd.f32 %v3878, %v3973
        %3975 = vmatprep.mubr.f32.mxu0 0.0
        %3976 = vmatmul.mubr.f32.gmra.mrb[0].mxu0 %v3891
        %v3977 = vpop.f32.mrb[0].mxu0
        %v3978 = vadd.f32 %v3874, %v3977
        %v3979 = vpop.f32.mrb[0].mxu0
        %v3980 = vadd.f32 %v3878, %v3979
        %3981 = vdwg.mxu0
        %s3982 = scalar_lea.vmem %s7, 64
        %v3983 = vld [vmem:[%s3982] sm:$0xff]
        %v3984 = vld [vmem:[%s3982 + $0x8] sm:$0xff]
        %v3985 = vld [vmem:[%s3982 + $0x10] sm:$0xff]
        %v3986 = vld [vmem:[%s3982 + $0x18] sm:$0xff]
        %v3987 = vld [vmem:[%s3982 + $0x20] sm:$0xff]
        %v3988 = vld [vmem:[%s3982 + $0x28] sm:$0xff]
        %v3989 = vld [vmem:[%s3982 + $0x30] sm:$0xff]
        %v3990 = vld [vmem:[%s3982 + $0x38] sm:$0xff]
        %3995 = vrot.lane.b32.xlu0 %v3960, 64
        %v3996 = vpop.permute.xlu0 %3995
        %3997 = vrot.lane.b32.xlu0 %v3966, 64
        %v3998 = vpop.permute.xlu0 %3997
        %3999 = vrot.lane.b32.xlu0 %v3972, 64
        %v4000 = vpop.permute.xlu0 %3999
        %4001 = vrot.lane.b32.xlu0 %v3978, 64
        %v4002 = vpop.permute.xlu0 %4001
        %v4003 = vsel %vm832, %v3960, 0
        %v4005 = vsel %vm832, %v3966, 0
        %v4007 = vsel %vm832, %v3972, 0
        %v4009 = vsel %vm832, %v3978, 0
        %v4011 = vsel %vm832, %v3996, 0
        %v4013 = vsel %vm832, %v3998, 0
        %v4015 = vsel %vm832, %v4000, 0
        %v4017 = vsel %vm832, %v4002, 0
        %4019 = vmatprep.subr.mxu0 0.0
        %4020 = vmatpush1.xpose.msra.mxu0 %v4011
        %4021 = vmatprep.subr.mxu0 0.0
        %4022 = vmatpush1.xpose.msra.mxu0 %v4013
        %4023 = vmatprep.subr.mxu0 0.0
        %4024 = vmatpush1.xpose.msra.mxu0 %v4015
        %4025 = vmatprep.subr.mxu0 0.0
        %4026 = vmatpush1.xpose.msra.mxu0 %v4017
        %4027 = vmatprep.subr.mxu0 0.0
        %4028 = vmatpush1.xpose.msra.mxu0 0.0
        %4029 = vmatprep.subr.mxu0 0.0
        %4030 = vmatpush1.xpose.msra.mxu0 0.0
        %4031 = vmatprep.subr.mxu0 0.0
        %4032 = vmatpush1.xpose.msra.mxu0 0.0
        %4033 = vmatprep.subr.mxu0 0.0
        %4034 = vmatpush1.xpose.msra.mxu0 0.0
        %4035 = vmatprep.subr.mxu0 0.0
        %4036 = vmatpush1.xpose.msra.mxu0 0.0
        %4037 = vmatprep.subr.mxu0 0.0
        %4038 = vmatpush1.xpose.msra.mxu0 0.0
        %4039 = vmatprep.subr.mxu0 0.0
        %4040 = vmatpush1.xpose.msra.mxu0 0.0
        %4041 = vmatprep.subr.mxu0 0.0
        %4042 = vmatpush1.xpose.msra.mxu0 0.0
        %4043 = vmatprep.subr.mxu0 0.0
        %4044 = vmatpush1.xpose.msra.mxu0 0.0
        %4045 = vmatprep.subr.mxu0 0.0
        %4046 = vmatpush1.xpose.msra.mxu0 0.0
        %4047 = vmatprep.subr.mxu0 0.0
        %4048 = vmatpush1.xpose.msra.mxu0 0.0
        %4049 = vmatprep.subr.mxu0 0.0
        %4050 = vmatpush1.xpose.msra.mxu0 0.0
        %4051 = vmatprep.subr.mxu0 0.0
        %4052 = vmatpush1.xpose.msra.mxu0 0.0
        %4053 = vmatprep.subr.mxu0 0.0
        %4054 = vmatpush1.xpose.msra.mxu0 0.0
        %4055 = vmatprep.subr.mxu0 0.0
        %4056 = vmatpush1.xpose.msra.mxu0 0.0
        %4057 = vmatprep.subr.mxu0 0.0
        %4058 = vmatpush1.xpose.msra.mxu0 0.0
        %4059 = vmatprep.subr.mxu0 0.0
        %4060 = vmatpush1.xpose.msra.mxu0 0.0
        %4061 = vmatprep.subr.mxu0 0.0
        %4062 = vmatpush1.xpose.msra.mxu0 0.0
        %4063 = vmatprep.subr.mxu0 0.0
        %4064 = vmatpush1.xpose.msra.mxu0 0.0
        %4065 = vmatprep.subr.mxu0 0.0
        %4066 = vmatpush1.xpose.msra.mxu0 0.0
        %4067 = vmatprep.subr.mxu0 0.0
        %4068 = vmatpush1.xpose.msra.mxu0 0.0
        %4069 = vmatprep.subr.mxu0 0.0
        %4070 = vmatpush1.xpose.msra.mxu0 0.0
        %4071 = vmatprep.subr.mxu0 0.0
        %4072 = vmatpush1.xpose.msra.mxu0 0.0
        %4073 = vmatprep.subr.mxu0 0.0
        %4074 = vmatpush1.xpose.msra.mxu0 0.0
        %4075 = vmatprep.subr.mxu0 0.0
        %4076 = vmatpush1.xpose.msra.mxu0 0.0
        %4077 = vmatprep.subr.mxu0 0.0
        %4078 = vmatpush1.xpose.msra.mxu0 0.0
        %4079 = vmatprep.subr.mxu0 0.0
        %4080 = vmatpush1.xpose.msra.mxu0 0.0
        %4081 = vmatprep.subr.mxu0 0.0
        %4082 = vmatpush1.xpose.msra.mxu0 0.0
        %4083 = vmatprep.mubr.f32.mxu0 0.0
        %4084 = vmatmul.mubr.f32.gmra.mrb[0].mxu0 %v4003
        %v4085 = vpop.f32.mrb[0].mxu0
        %v4086 = vadd.f32 0.0, %v4085
        %v4087 = vpop.f32.mrb[0].mxu0
        %4088 = vmatprep.mubr.f32.mxu0 0.0
        %4089 = vmatmul.mubr.f32.gmra.mrb[0].mxu0 %v4005
        %v4090 = vpop.f32.mrb[0].mxu0
        %v4091 = vadd.f32 0.0, %v4090
        %v4092 = vpop.f32.mrb[0].mxu0
        %4093 = vmatprep.mubr.f32.mxu0 0.0
        %4094 = vmatmul.mubr.f32.gmra.mrb[0].mxu0 %v4007
        %v4095 = vpop.f32.mrb[0].mxu0
        %v4096 = vadd.f32 0.0, %v4095
        %v4097 = vpop.f32.mrb[0].mxu0
        %4098 = vmatprep.mubr.f32.mxu0 0.0
        %4099 = vmatmul.mubr.f32.gmra.mrb[0].mxu0 %v4009
        %v4100 = vpop.f32.mrb[0].mxu0
        %v4101 = vadd.f32 0.0, %v4100
        %v4102 = vpop.f32.mrb[0].mxu0
        %4103 = vdwg.mxu0
        %v4104 = vsel %vm2060, %v4086, -1e+30
        %v4105 = vsel %vm2060, %v4091, -1e+30
        %v4106 = vsel %vm2060, %v4096, -1e+30
        %v4107 = vsel %vm2060, %v4101, -1e+30
        %v4108 = vsel %vm837, %v4104, -inf
        %4109 = vmax.xlane.f32.xlu0 %v4108
        %v4110 = vpop.xlane.xlu0 %4109
        %v4111 = vsel %vm837, %v4105, -inf
        %4112 = vmax.xlane.f32.xlu0 %v4111
        %v4113 = vpop.xlane.xlu0 %4112
        %v4114 = vsel %vm837, %v4106, -inf
        %4115 = vmax.xlane.f32.xlu0 %v4114
        %v4116 = vpop.xlane.xlu0 %4115
        %v4117 = vsel %vm837, %v4107, -inf
        %4118 = vmax.xlane.f32.xlu0 %v4117
        %v4119 = vpop.xlane.xlu0 %4118
        %v4120 = vsub.f32 %v4104, %v4110
        %v4121 = vsub.f32 %v4105, %v4113
        %v4122 = vsub.f32 %v4106, %v4116
        %v4123 = vsub.f32 %v4107, %v4119
        %v4124 = vmul.f32 %v4120, 1.442695
        %v4125 = vpow.pop %v4124
        %v4126 = vmul.f32 %v4121, 1.442695
        %v4127 = vpow.pop %v4126
        %v4128 = vmul.f32 %v4122, 1.442695
        %v4129 = vpow.pop %v4128
        %v4130 = vmul.f32 %v4123, 1.442695
        %v4131 = vpow.pop %v4130
        %v4132 = vsel %vm837, %v4125, 0.0
        %4133 = vadd.xlane.f32.xlu0 %v4132
        %v4134 = vpop.xlane.xlu0 %4133
        %v4135 = vsel %vm837, %v4127, 0.0
        %4136 = vadd.xlane.f32.xlu0 %v4135
        %v4137 = vpop.xlane.xlu0 %4136
        %v4138 = vsel %vm837, %v4129, 0.0
        %4139 = vadd.xlane.f32.xlu0 %v4138
        %v4140 = vpop.xlane.xlu0 %4139
        %v4141 = vsel %vm837, %v4131, 0.0
        %4142 = vadd.xlane.f32.xlu0 %v4141
        %v4143 = vpop.xlane.xlu0 %4142
        %v4144 = vrcp.pop %v4134
        %v4145 = vrcp.pop %v4137
        %v4146 = vrcp.pop %v4140
        %v4147 = vrcp.pop %v4143
        %v4148 = vmul.f32 %v4125, %v4144
        %v4149 = vmul.f32 %v4127, %v4145
        %v4150 = vmul.f32 %v4129, %v4146
        %v4151 = vmul.f32 %v4131, %v4147
        %v4153 = vsel %vm837, %v4148, 0
        %v4156 = vsel %vm837, %v4149, 0
        %v4159 = vsel %vm837, %v4150, 0
        %v4162 = vsel %vm837, %v4151, 0
        %4164 = vmatprep.subr.mxu0 0.0
        %4165 = vmatpush1.msra.mxu0 %v3962
        %4166 = vmatprep.subr.mxu0 0.0
        %4167 = vmatpush1.msra.mxu0 %v3968
        %4168 = vmatprep.subr.mxu0 0.0
        %4169 = vmatpush1.msra.mxu0 %v3974
        %4170 = vmatprep.subr.mxu0 0.0
        %4171 = vmatpush1.msra.mxu0 %v3980
        %4172 = vmatprep.subr.mxu0 0.0
        %4173 = vmatpush1.msra.mxu0 0.0
        %4174 = vmatprep.subr.mxu0 0.0
        %4175 = vmatpush1.msra.mxu0 0.0
        %4176 = vmatprep.subr.mxu0 0.0
        %4177 = vmatpush1.msra.mxu0 0.0
        %4178 = vmatprep.subr.mxu0 0.0
        %4179 = vmatpush1.msra.mxu0 0.0
        %4180 = vmatprep.subr.mxu0 0.0
        %4181 = vmatpush1.msra.mxu0 0.0
        %4182 = vmatprep.subr.mxu0 0.0
        %4183 = vmatpush1.msra.mxu0 0.0
        %4184 = vmatprep.subr.mxu0 0.0
        %4185 = vmatpush1.msra.mxu0 0.0
        %4186 = vmatprep.subr.mxu0 0.0
        %4187 = vmatpush1.msra.mxu0 0.0
        %4188 = vmatprep.subr.mxu0 0.0
        %4189 = vmatpush1.msra.mxu0 0.0
        %4190 = vmatprep.subr.mxu0 0.0
        %4191 = vmatpush1.msra.mxu0 0.0
        %4192 = vmatprep.subr.mxu0 0.0
        %4193 = vmatpush1.msra.mxu0 0.0
        %4194 = vmatprep.subr.mxu0 0.0
        %4195 = vmatpush1.msra.mxu0 0.0
        %4196 = vmatprep.subr.mxu0 0.0
        %4197 = vmatpush1.msra.mxu0 0.0
        %4198 = vmatprep.subr.mxu0 0.0
        %4199 = vmatpush1.msra.mxu0 0.0
        %4200 = vmatprep.subr.mxu0 0.0
        %4201 = vmatpush1.msra.mxu0 0.0
        %4202 = vmatprep.subr.mxu0 0.0
        %4203 = vmatpush1.msra.mxu0 0.0
        %4204 = vmatprep.subr.mxu0 0.0
        %4205 = vmatpush1.msra.mxu0 0.0
        %4206 = vmatprep.subr.mxu0 0.0
        %4207 = vmatpush1.msra.mxu0 0.0
        %4208 = vmatprep.subr.mxu0 0.0
        %4209 = vmatpush1.msra.mxu0 0.0
        %4210 = vmatprep.subr.mxu0 0.0
        %4211 = vmatpush1.msra.mxu0 0.0
        %4212 = vmatprep.subr.mxu0 0.0
        %4213 = vmatpush1.msra.mxu0 0.0
        %4214 = vmatprep.subr.mxu0 0.0
        %4215 = vmatpush1.msra.mxu0 0.0
        %4216 = vmatprep.subr.mxu0 0.0
        %4217 = vmatpush1.msra.mxu0 0.0
        %4218 = vmatprep.subr.mxu0 0.0
        %4219 = vmatpush1.msra.mxu0 0.0
        %4220 = vmatprep.subr.mxu0 0.0
        %4221 = vmatpush1.msra.mxu0 0.0
        %4222 = vmatprep.subr.mxu0 0.0
        %4223 = vmatpush1.msra.mxu0 0.0
        %4224 = vmatprep.subr.mxu0 0.0
        %4225 = vmatpush1.msra.mxu0 0.0
        %4226 = vmatprep.subr.mxu0 0.0
        %4227 = vmatpush1.msra.mxu0 0.0
        %4228 = vmatprep.mubr.f32.mxu0 0.0
        %4229 = vmatmul.mubr.f32.gmra.mrb[0].mxu0 %v4153
        %v4230 = vpop.f32.mrb[0].mxu0
        %v4231 = vadd.f32 0.0, %v4230
        %v4232 = vpop.f32.mrb[0].mxu0
        %4233 = vmatprep.mubr.f32.mxu0 0.0
        %4234 = vmatmul.mubr.f32.gmra.mrb[0].mxu0 %v4156
        %v4235 = vpop.f32.mrb[0].mxu0
        %v4236 = vadd.f32 0.0, %v4235
        %v4237 = vpop.f32.mrb[0].mxu0
        %4238 = vmatprep.mubr.f32.mxu0 0.0
        %4239 = vmatmul.mubr.f32.gmra.mrb[0].mxu0 %v4159
        %v4240 = vpop.f32.mrb[0].mxu0
        %v4241 = vadd.f32 0.0, %v4240
        %v4242 = vpop.f32.mrb[0].mxu0
        %4243 = vmatprep.mubr.f32.mxu0 0.0
        %4244 = vmatmul.mubr.f32.gmra.mrb[0].mxu0 %v4162
        %v4245 = vpop.f32.mrb[0].mxu0
        %v4246 = vadd.f32 0.0, %v4245
        %v4247 = vpop.f32.mrb[0].mxu0
        %4248 = vdwg.mxu0
        %4249 = vrot.lane.b32.xlu0 %v3960, 112
        %v4250 = vpop.permute.xlu0 %4249
        %4251 = vrot.lane.b32.xlu0 %v3966, 112
        %v4252 = vpop.permute.xlu0 %4251
        %4253 = vrot.lane.b32.xlu0 %v3972, 112
        %v4254 = vpop.permute.xlu0 %4253
        %4255 = vrot.lane.b32.xlu0 %v3978, 112
        %v4256 = vpop.permute.xlu0 %4255
        %4257 = vrot.lane.b32.xlu0 %v3960, 48
        %v4258 = vpop.permute.xlu0 %4257
        %4259 = vrot.lane.b32.xlu0 %v3966, 48
        %v4260 = vpop.permute.xlu0 %4259
        %4261 = vrot.lane.b32.xlu0 %v3972, 48
        %v4262 = vpop.permute.xlu0 %4261
        %4263 = vrot.lane.b32.xlu0 %v3978, 48
        %v4264 = vpop.permute.xlu0 %4263
        %v4265 = vsel %vm832, %v4250, 0
        %v4267 = vsel %vm832, %v4252, 0
        %v4269 = vsel %vm832, %v4254, 0
        %v4271 = vsel %vm832, %v4256, 0
        %v4273 = vsel %vm832, %v4258, 0
        %v4275 = vsel %vm832, %v4260, 0
        %v4277 = vsel %vm832, %v4262, 0
        %v4279 = vsel %vm832, %v4264, 0
        %4281 = vmatprep.subr.mxu0 0.0
        %4282 = vmatpush1.xpose.msra.mxu0 %v4273
        %4283 = vmatprep.subr.mxu0 0.0
        %4284 = vmatpush1.xpose.msra.mxu0 %v4275
        %4285 = vmatprep.subr.mxu0 0.0
        %4286 = vmatpush1.xpose.msra.mxu0 %v4277
        %4287 = vmatprep.subr.mxu0 0.0
        %4288 = vmatpush1.xpose.msra.mxu0 %v4279
        %4289 = vmatprep.subr.mxu0 0.0
        %4290 = vmatpush1.xpose.msra.mxu0 0.0
        %4291 = vmatprep.subr.mxu0 0.0
        %4292 = vmatpush1.xpose.msra.mxu0 0.0
        %4293 = vmatprep.subr.mxu0 0.0
        %4294 = vmatpush1.xpose.msra.mxu0 0.0
        %4295 = vmatprep.subr.mxu0 0.0
        %4296 = vmatpush1.xpose.msra.mxu0 0.0
        %4297 = vmatprep.subr.mxu0 0.0
        %4298 = vmatpush1.xpose.msra.mxu0 0.0
        %4299 = vmatprep.subr.mxu0 0.0
        %4300 = vmatpush1.xpose.msra.mxu0 0.0
        %4301 = vmatprep.subr.mxu0 0.0
        %4302 = vmatpush1.xpose.msra.mxu0 0.0
        %4303 = vmatprep.subr.mxu0 0.0
        %4304 = vmatpush1.xpose.msra.mxu0 0.0
        %4305 = vmatprep.subr.mxu0 0.0
        %4306 = vmatpush1.xpose.msra.mxu0 0.0
        %4307 = vmatprep.subr.mxu0 0.0
        %4308 = vmatpush1.xpose.msra.mxu0 0.0
        %4309 = vmatprep.subr.mxu0 0.0
        %4310 = vmatpush1.xpose.msra.mxu0 0.0
        %4311 = vmatprep.subr.mxu0 0.0
        %4312 = vmatpush1.xpose.msra.mxu0 0.0
        %4313 = vmatprep.subr.mxu0 0.0
        %4314 = vmatpush1.xpose.msra.mxu0 0.0
        %4315 = vmatprep.subr.mxu0 0.0
        %4316 = vmatpush1.xpose.msra.mxu0 0.0
        %4317 = vmatprep.subr.mxu0 0.0
        %4318 = vmatpush1.xpose.msra.mxu0 0.0
        %4319 = vmatprep.subr.mxu0 0.0
        %4320 = vmatpush1.xpose.msra.mxu0 0.0
        %4321 = vmatprep.subr.mxu0 0.0
        %4322 = vmatpush1.xpose.msra.mxu0 0.0
        %4323 = vmatprep.subr.mxu0 0.0
        %4324 = vmatpush1.xpose.msra.mxu0 0.0
        %4325 = vmatprep.subr.mxu0 0.0
        %4326 = vmatpush1.xpose.msra.mxu0 0.0
        %4327 = vmatprep.subr.mxu0 0.0
        %4328 = vmatpush1.xpose.msra.mxu0 0.0
        %4329 = vmatprep.subr.mxu0 0.0
        %4330 = vmatpush1.xpose.msra.mxu0 0.0
        %4331 = vmatprep.subr.mxu0 0.0
        %4332 = vmatpush1.xpose.msra.mxu0 0.0
        %4333 = vmatprep.subr.mxu0 0.0
        %4334 = vmatpush1.xpose.msra.mxu0 0.0
        %4335 = vmatprep.subr.mxu0 0.0
        %4336 = vmatpush1.xpose.msra.mxu0 0.0
        %4337 = vmatprep.subr.mxu0 0.0
        %4338 = vmatpush1.xpose.msra.mxu0 0.0
        %4339 = vmatprep.subr.mxu0 0.0
        %4340 = vmatpush1.xpose.msra.mxu0 0.0
        %4341 = vmatprep.subr.mxu0 0.0
        %4342 = vmatpush1.xpose.msra.mxu0 0.0
        %4343 = vmatprep.subr.mxu0 0.0
        %4344 = vmatpush1.xpose.msra.mxu0 0.0
        %4345 = vmatprep.mubr.f32.mxu0 0.0
        %4346 = vmatmul.mubr.f32.gmra.mrb[0].mxu0 %v4265
        %v4347 = vpop.f32.mrb[0].mxu0
        %v4348 = vadd.f32 0.0, %v4347
        %v4349 = vpop.f32.mrb[0].mxu0
        %4350 = vmatprep.mubr.f32.mxu0 0.0
        %4351 = vmatmul.mubr.f32.gmra.mrb[0].mxu0 %v4267
        %v4352 = vpop.f32.mrb[0].mxu0
        %v4353 = vadd.f32 0.0, %v4352
        %v4354 = vpop.f32.mrb[0].mxu0
        %4355 = vmatprep.mubr.f32.mxu0 0.0
        %4356 = vmatmul.mubr.f32.gmra.mrb[0].mxu0 %v4269
        %v4357 = vpop.f32.mrb[0].mxu0
        %v4358 = vadd.f32 0.0, %v4357
        %v4359 = vpop.f32.mrb[0].mxu0
        %4360 = vmatprep.mubr.f32.mxu0 0.0
        %4361 = vmatmul.mubr.f32.gmra.mrb[0].mxu0 %v4271
        %v4362 = vpop.f32.mrb[0].mxu0
        %v4363 = vadd.f32 0.0, %v4362
        %v4364 = vpop.f32.mrb[0].mxu0
        %4365 = vdwg.mxu0
        %v4366 = vsel %vm2060, %v4348, -1e+30
        %v4367 = vsel %vm2060, %v4353, -1e+30
        %v4368 = vsel %vm2060, %v4358, -1e+30
        %v4369 = vsel %vm2060, %v4363, -1e+30
        %v4370 = vsel %vm837, %v4366, -inf
        %4371 = vmax.xlane.f32.xlu0 %v4370
        %v4372 = vpop.xlane.xlu0 %4371
        %v4373 = vsel %vm837, %v4367, -inf
        %4374 = vmax.xlane.f32.xlu0 %v4373
        %v4375 = vpop.xlane.xlu0 %4374
        %v4376 = vsel %vm837, %v4368, -inf
        %4377 = vmax.xlane.f32.xlu0 %v4376
        %v4378 = vpop.xlane.xlu0 %4377
        %v4379 = vsel %vm837, %v4369, -inf
        %4380 = vmax.xlane.f32.xlu0 %v4379
        %v4381 = vpop.xlane.xlu0 %4380
        %v4382 = vsub.f32 %v4366, %v4372
        %v4383 = vsub.f32 %v4367, %v4375
        %v4384 = vsub.f32 %v4368, %v4378
        %v4385 = vsub.f32 %v4369, %v4381
        %v4386 = vmul.f32 %v4382, 1.442695
        %v4387 = vpow.pop %v4386
        %v4388 = vmul.f32 %v4383, 1.442695
        %v4389 = vpow.pop %v4388
        %v4390 = vmul.f32 %v4384, 1.442695
        %v4391 = vpow.pop %v4390
        %v4392 = vmul.f32 %v4385, 1.442695
        %v4393 = vpow.pop %v4392
        %v4394 = vsel %vm837, %v4387, 0.0
        %4395 = vadd.xlane.f32.xlu0 %v4394
        %v4396 = vpop.xlane.xlu0 %4395
        %v4397 = vsel %vm837, %v4389, 0.0
        %4398 = vadd.xlane.f32.xlu0 %v4397
        %v4399 = vpop.xlane.xlu0 %4398
        %v4400 = vsel %vm837, %v4391, 0.0
        %4401 = vadd.xlane.f32.xlu0 %v4400
        %v4402 = vpop.xlane.xlu0 %4401
        %v4403 = vsel %vm837, %v4393, 0.0
        %4404 = vadd.xlane.f32.xlu0 %v4403
        %v4405 = vpop.xlane.xlu0 %4404
        %v4406 = vrcp.pop %v4396
        %v4407 = vrcp.pop %v4399
        %v4408 = vrcp.pop %v4402
        %v4409 = vrcp.pop %v4405
        %v4410 = vmul.f32 %v4387, %v4406
        %v4411 = vmul.f32 %v4389, %v4407
        %v4412 = vmul.f32 %v4391, %v4408
        %v4413 = vmul.f32 %v4393, %v4409
        %4418 = vrot.lane.b32.xlu0 %v3962, 112
        %v4419 = vpop.permute.xlu0 %4418
        %4420 = vrot.lane.b32.xlu0 %v3968, 112
        %v4421 = vpop.permute.xlu0 %4420
        %4422 = vrot.lane.b32.xlu0 %v3974, 112
        %v4423 = vpop.permute.xlu0 %4422
        %4424 = vrot.lane.b32.xlu0 %v3980, 112
        %v4425 = vpop.permute.xlu0 %4424
        %v4431 = vsel %vm837, %v4410, 0
        %v4434 = vsel %vm837, %v4411, 0
        %v4437 = vsel %vm837, %v4412, 0
        %v4440 = vsel %vm837, %v4413, 0
        %4442 = vmatprep.subr.mxu0 0.0
        %4443 = vmatpush1.msra.mxu0 %v4419
        %4444 = vmatprep.subr.mxu0 0.0
        %4445 = vmatpush1.msra.mxu0 %v4421
        %4446 = vmatprep.subr.mxu0 0.0
        %4447 = vmatpush1.msra.mxu0 %v4423
        %4448 = vmatprep.subr.mxu0 0.0
        %4449 = vmatpush1.msra.mxu0 %v4425
        %4450 = vmatprep.subr.mxu0 0.0
        %4451 = vmatpush1.msra.mxu0 0.0
        %4452 = vmatprep.subr.mxu0 0.0
        %4453 = vmatpush1.msra.mxu0 0.0
        %4454 = vmatprep.subr.mxu0 0.0
        %4455 = vmatpush1.msra.mxu0 0.0
        %4456 = vmatprep.subr.mxu0 0.0
        %4457 = vmatpush1.msra.mxu0 0.0
        %4458 = vmatprep.subr.mxu0 0.0
        %4459 = vmatpush1.msra.mxu0 0.0
        %4460 = vmatprep.subr.mxu0 0.0
        %4461 = vmatpush1.msra.mxu0 0.0
        %4462 = vmatprep.subr.mxu0 0.0
        %4463 = vmatpush1.msra.mxu0 0.0
        %4464 = vmatprep.subr.mxu0 0.0
        %4465 = vmatpush1.msra.mxu0 0.0
        %4466 = vmatprep.subr.mxu0 0.0
        %4467 = vmatpush1.msra.mxu0 0.0
        %4468 = vmatprep.subr.mxu0 0.0
        %4469 = vmatpush1.msra.mxu0 0.0
        %4470 = vmatprep.subr.mxu0 0.0
        %4471 = vmatpush1.msra.mxu0 0.0
        %4472 = vmatprep.subr.mxu0 0.0
        %4473 = vmatpush1.msra.mxu0 0.0
        %4474 = vmatprep.subr.mxu0 0.0
        %4475 = vmatpush1.msra.mxu0 0.0
        %4476 = vmatprep.subr.mxu0 0.0
        %4477 = vmatpush1.msra.mxu0 0.0
        %4478 = vmatprep.subr.mxu0 0.0
        %4479 = vmatpush1.msra.mxu0 0.0
        %4480 = vmatprep.subr.mxu0 0.0
        %4481 = vmatpush1.msra.mxu0 0.0
        %4482 = vmatprep.subr.mxu0 0.0
        %4483 = vmatpush1.msra.mxu0 0.0
        %4484 = vmatprep.subr.mxu0 0.0
        %4485 = vmatpush1.msra.mxu0 0.0
        %4486 = vmatprep.subr.mxu0 0.0
        %4487 = vmatpush1.msra.mxu0 0.0
        %4488 = vmatprep.subr.mxu0 0.0
        %4489 = vmatpush1.msra.mxu0 0.0
        %4490 = vmatprep.subr.mxu0 0.0
        %4491 = vmatpush1.msra.mxu0 0.0
        %4492 = vmatprep.subr.mxu0 0.0
        %4493 = vmatpush1.msra.mxu0 0.0
        %4494 = vmatprep.subr.mxu0 0.0
        %4495 = vmatpush1.msra.mxu0 0.0
        %4496 = vmatprep.subr.mxu0 0.0
        %4497 = vmatpush1.msra.mxu0 0.0
        %4498 = vmatprep.subr.mxu0 0.0
        %4499 = vmatpush1.msra.mxu0 0.0
        %4500 = vmatprep.subr.mxu0 0.0
        %4501 = vmatpush1.msra.mxu0 0.0
        %4502 = vmatprep.subr.mxu0 0.0
        %4503 = vmatpush1.msra.mxu0 0.0
        %4504 = vmatprep.subr.mxu0 0.0
        %4505 = vmatpush1.msra.mxu0 0.0
        %4506 = vmatprep.mubr.f32.mxu0 0.0
        %4507 = vmatmul.mubr.f32.gmra.mrb[0].mxu0 %v4431
        %v4508 = vpop.f32.mrb[0].mxu0
        %v4509 = vadd.f32 0.0, %v4508
        %v4510 = vpop.f32.mrb[0].mxu0
        %4511 = vmatprep.mubr.f32.mxu0 0.0
        %4512 = vmatmul.mubr.f32.gmra.mrb[0].mxu0 %v4434
        %v4513 = vpop.f32.mrb[0].mxu0
        %v4514 = vadd.f32 0.0, %v4513
        %v4515 = vpop.f32.mrb[0].mxu0
        %4516 = vmatprep.mubr.f32.mxu0 0.0
        %4517 = vmatmul.mubr.f32.gmra.mrb[0].mxu0 %v4437
        %v4518 = vpop.f32.mrb[0].mxu0
        %v4519 = vadd.f32 0.0, %v4518
        %v4520 = vpop.f32.mrb[0].mxu0
        %4521 = vmatprep.mubr.f32.mxu0 0.0
        %4522 = vmatmul.mubr.f32.gmra.mrb[0].mxu0 %v4440
        %v4523 = vpop.f32.mrb[0].mxu0
        %v4524 = vadd.f32 0.0, %v4523
        %v4525 = vpop.f32.mrb[0].mxu0
        %4526 = vdwg.mxu0
        %v4528 = vsel %vm832, %v4509, 0
        %v4531 = vsel %vm832, %v4514, 0
        %v4534 = vsel %vm832, %v4519, 0
        %v4537 = vsel %vm832, %v4524, 0
        %4539 = vmatprep.subr.mxu0 0.0
        %4540 = vmatpush1.msra.mxu0 %v3985
        %4541 = vmatprep.subr.mxu0 0.0
        %4542 = vmatpush1.msra.mxu0 %v3986
        %4543 = vmatprep.subr.mxu0 0.0
        %4544 = vmatpush1.msra.mxu0 0.0
        %4545 = vmatprep.subr.mxu0 0.0
        %4546 = vmatpush1.msra.mxu0 0.0
        %4547 = vmatprep.subr.mxu0 0.0
        %4548 = vmatpush1.msra.mxu0 0.0
        %4549 = vmatprep.subr.mxu0 0.0
        %4550 = vmatpush1.msra.mxu0 0.0
        %4551 = vmatprep.subr.mxu0 0.0
        %4552 = vmatpush1.msra.mxu0 0.0
        %4553 = vmatprep.subr.mxu0 0.0
        %4554 = vmatpush1.msra.mxu0 0.0
        %4555 = vmatprep.subr.mxu0 0.0
        %4556 = vmatpush1.msra.mxu0 0.0
        %4557 = vmatprep.subr.mxu0 0.0
        %4558 = vmatpush1.msra.mxu0 0.0
        %4559 = vmatprep.subr.mxu0 0.0
        %4560 = vmatpush1.msra.mxu0 0.0
        %4561 = vmatprep.subr.mxu0 0.0
        %4562 = vmatpush1.msra.mxu0 0.0
        %4563 = vmatprep.subr.mxu0 0.0
        %4564 = vmatpush1.msra.mxu0 0.0
        %4565 = vmatprep.subr.mxu0 0.0
        %4566 = vmatpush1.msra.mxu0 0.0
        %4567 = vmatprep.subr.mxu0 0.0
        %4568 = vmatpush1.msra.mxu0 0.0
        %4569 = vmatprep.subr.mxu0 0.0
        %4570 = vmatpush1.msra.mxu0 0.0
        %4571 = vmatprep.subr.mxu0 0.0
        %4572 = vmatpush1.msra.mxu0 0.0
        %4573 = vmatprep.subr.mxu0 0.0
        %4574 = vmatpush1.msra.mxu0 0.0
        %4575 = vmatprep.subr.mxu0 0.0
        %4576 = vmatpush1.msra.mxu0 0.0
        %4577 = vmatprep.subr.mxu0 0.0
        %4578 = vmatpush1.msra.mxu0 0.0
        %4579 = vmatprep.subr.mxu0 0.0
        %4580 = vmatpush1.msra.mxu0 0.0
        %4581 = vmatprep.subr.mxu0 0.0
        %4582 = vmatpush1.msra.mxu0 0.0
        %4583 = vmatprep.subr.mxu0 0.0
        %4584 = vmatpush1.msra.mxu0 0.0
        %4585 = vmatprep.subr.mxu0 0.0
        %4586 = vmatpush1.msra.mxu0 0.0
        %4587 = vmatprep.subr.mxu0 0.0
        %4588 = vmatpush1.msra.mxu0 0.0
        %4589 = vmatprep.subr.mxu0 0.0
        %4590 = vmatpush1.msra.mxu0 0.0
        %4591 = vmatprep.subr.mxu0 0.0
        %4592 = vmatpush1.msra.mxu0 0.0
        %4593 = vmatprep.subr.mxu0 0.0
        %4594 = vmatpush1.msra.mxu0 0.0
        %4595 = vmatprep.subr.mxu0 0.0
        %4596 = vmatpush1.msra.mxu0 0.0
        %4597 = vmatprep.subr.mxu0 0.0
        %4598 = vmatpush1.msra.mxu0 0.0
        %4599 = vmatprep.subr.mxu0 0.0
        %4600 = vmatpush1.msra.mxu0 0.0
        %4601 = vmatprep.subr.mxu0 0.0
        %4602 = vmatpush1.msra.mxu0 0.0
        %4603 = vmatprep.mubr.f32.mxu0 0.0
        %4604 = vmatmul.mubr.f32.gmra.mrb[0].mxu0 %v4528
        %v4605 = vpop.f32.mrb[0].mxu0
        %v4606 = vadd.f32 0.0, %v4605
        %v4607 = vpop.f32.mrb[0].mxu0
        %4608 = vmatprep.mubr.f32.mxu0 0.0
        %4609 = vmatmul.mubr.f32.gmra.mrb[0].mxu0 %v4531
        %v4610 = vpop.f32.mrb[0].mxu0
        %v4611 = vadd.f32 0.0, %v4610
        %v4612 = vpop.f32.mrb[0].mxu0
        %4613 = vmatprep.mubr.f32.mxu0 0.0
        %4614 = vmatmul.mubr.f32.gmra.mrb[0].mxu0 %v4534
        %v4615 = vpop.f32.mrb[0].mxu0
        %v4616 = vadd.f32 0.0, %v4615
        %v4617 = vpop.f32.mrb[0].mxu0
        %4618 = vmatprep.mubr.f32.mxu0 0.0
        %4619 = vmatmul.mubr.f32.gmra.mrb[0].mxu0 %v4537
        %v4620 = vpop.f32.mrb[0].mxu0
        %v4621 = vadd.f32 0.0, %v4620
        %v4622 = vpop.f32.mrb[0].mxu0
        %4623 = vdwg.mxu0
        %v4625 = vsel %vm832, %v4231, 0
        %v4628 = vsel %vm832, %v4236, 0
        %v4631 = vsel %vm832, %v4241, 0
        %v4634 = vsel %vm832, %v4246, 0
        %4636 = vmatprep.subr.mxu0 0.0
        %4637 = vmatpush1.msra.mxu0 %v3983
        %4638 = vmatprep.subr.mxu0 0.0
        %4639 = vmatpush1.msra.mxu0 %v3984
        %4640 = vmatprep.subr.mxu0 0.0
        %4641 = vmatpush1.msra.mxu0 0.0
        %4642 = vmatprep.subr.mxu0 0.0
        %4643 = vmatpush1.msra.mxu0 0.0
        %4644 = vmatprep.subr.mxu0 0.0
        %4645 = vmatpush1.msra.mxu0 0.0
        %4646 = vmatprep.subr.mxu0 0.0
        %4647 = vmatpush1.msra.mxu0 0.0
        %4648 = vmatprep.subr.mxu0 0.0
        %4649 = vmatpush1.msra.mxu0 0.0
        %4650 = vmatprep.subr.mxu0 0.0
        %4651 = vmatpush1.msra.mxu0 0.0
        %4652 = vmatprep.subr.mxu0 0.0
        %4653 = vmatpush1.msra.mxu0 0.0
        %4654 = vmatprep.subr.mxu0 0.0
        %4655 = vmatpush1.msra.mxu0 0.0
        %4656 = vmatprep.subr.mxu0 0.0
        %4657 = vmatpush1.msra.mxu0 0.0
        %4658 = vmatprep.subr.mxu0 0.0
        %4659 = vmatpush1.msra.mxu0 0.0
        %4660 = vmatprep.subr.mxu0 0.0
        %4661 = vmatpush1.msra.mxu0 0.0
        %4662 = vmatprep.subr.mxu0 0.0
        %4663 = vmatpush1.msra.mxu0 0.0
        %4664 = vmatprep.subr.mxu0 0.0
        %4665 = vmatpush1.msra.mxu0 0.0
        %4666 = vmatprep.subr.mxu0 0.0
        %4667 = vmatpush1.msra.mxu0 0.0
        %4668 = vmatprep.subr.mxu0 0.0
        %4669 = vmatpush1.msra.mxu0 0.0
        %4670 = vmatprep.subr.mxu0 0.0
        %4671 = vmatpush1.msra.mxu0 0.0
        %4672 = vmatprep.subr.mxu0 0.0
        %4673 = vmatpush1.msra.mxu0 0.0
        %4674 = vmatprep.subr.mxu0 0.0
        %4675 = vmatpush1.msra.mxu0 0.0
        %4676 = vmatprep.subr.mxu0 0.0
        %4677 = vmatpush1.msra.mxu0 0.0
        %4678 = vmatprep.subr.mxu0 0.0
        %4679 = vmatpush1.msra.mxu0 0.0
        %4680 = vmatprep.subr.mxu0 0.0
        %4681 = vmatpush1.msra.mxu0 0.0
        %4682 = vmatprep.subr.mxu0 0.0
        %4683 = vmatpush1.msra.mxu0 0.0
        %4684 = vmatprep.subr.mxu0 0.0
        %4685 = vmatpush1.msra.mxu0 0.0
        %4686 = vmatprep.subr.mxu0 0.0
        %4687 = vmatpush1.msra.mxu0 0.0
        %4688 = vmatprep.subr.mxu0 0.0
        %4689 = vmatpush1.msra.mxu0 0.0
        %4690 = vmatprep.subr.mxu0 0.0
        %4691 = vmatpush1.msra.mxu0 0.0
        %4692 = vmatprep.subr.mxu0 0.0
        %4693 = vmatpush1.msra.mxu0 0.0
        %4694 = vmatprep.subr.mxu0 0.0
        %4695 = vmatpush1.msra.mxu0 0.0
        %4696 = vmatprep.subr.mxu0 0.0
        %4697 = vmatpush1.msra.mxu0 0.0
        %4698 = vmatprep.subr.mxu0 0.0
        %4699 = vmatpush1.msra.mxu0 0.0
        %4700 = vmatprep.mubr.f32.mxu0 0.0
        %4701 = vmatmul.mubr.f32.gmra.mrb[0].mxu0 %v4625
        %v4702 = vpop.f32.mrb[0].mxu0
        %v4703 = vadd.f32 %v4606, %v4702
        %v4704 = vpop.f32.mrb[0].mxu0
        %4705 = vmatprep.mubr.f32.mxu0 0.0
        %4706 = vmatmul.mubr.f32.gmra.mrb[0].mxu0 %v4628
        %v4707 = vpop.f32.mrb[0].mxu0
        %v4708 = vadd.f32 %v4611, %v4707
        %v4709 = vpop.f32.mrb[0].mxu0
        %4710 = vmatprep.mubr.f32.mxu0 0.0
        %4711 = vmatmul.mubr.f32.gmra.mrb[0].mxu0 %v4631
        %v4712 = vpop.f32.mrb[0].mxu0
        %v4713 = vadd.f32 %v4616, %v4712
        %v4714 = vpop.f32.mrb[0].mxu0
        %4715 = vmatprep.mubr.f32.mxu0 0.0
        %4716 = vmatmul.mubr.f32.gmra.mrb[0].mxu0 %v4634
        %v4717 = vpop.f32.mrb[0].mxu0
        %v4718 = vadd.f32 %v4621, %v4717
        %v4719 = vpop.f32.mrb[0].mxu0
        %4720 = vdwg.mxu0
        %4721 = vrot.lane.b32.xlu0 %v3960, 96
        %v4722 = vpop.permute.xlu0 %4721
        %4723 = vrot.lane.b32.xlu0 %v3966, 96
        %v4724 = vpop.permute.xlu0 %4723
        %4725 = vrot.lane.b32.xlu0 %v3972, 96
        %v4726 = vpop.permute.xlu0 %4725
        %4727 = vrot.lane.b32.xlu0 %v3978, 96
        %v4728 = vpop.permute.xlu0 %4727
        %4729 = vrot.lane.b32.xlu0 %v3960, 32
        %v4730 = vpop.permute.xlu0 %4729
        %4731 = vrot.lane.b32.xlu0 %v3966, 32
        %v4732 = vpop.permute.xlu0 %4731
        %4733 = vrot.lane.b32.xlu0 %v3972, 32
        %v4734 = vpop.permute.xlu0 %4733
        %4735 = vrot.lane.b32.xlu0 %v3978, 32
        %v4736 = vpop.permute.xlu0 %4735
        %v4737 = vsel %vm832, %v4722, 0
        %v4739 = vsel %vm832, %v4724, 0
        %v4741 = vsel %vm832, %v4726, 0
        %v4743 = vsel %vm832, %v4728, 0
        %v4745 = vsel %vm832, %v4730, 0
        %v4747 = vsel %vm832, %v4732, 0
        %v4749 = vsel %vm832, %v4734, 0
        %v4751 = vsel %vm832, %v4736, 0
        %4753 = vmatprep.subr.mxu0 0.0
        %4754 = vmatpush1.xpose.msra.mxu0 %v4745
        %4755 = vmatprep.subr.mxu0 0.0
        %4756 = vmatpush1.xpose.msra.mxu0 %v4747
        %4757 = vmatprep.subr.mxu0 0.0
        %4758 = vmatpush1.xpose.msra.mxu0 %v4749
        %4759 = vmatprep.subr.mxu0 0.0
        %4760 = vmatpush1.xpose.msra.mxu0 %v4751
        %4761 = vmatprep.subr.mxu0 0.0
        %4762 = vmatpush1.xpose.msra.mxu0 0.0
        %4763 = vmatprep.subr.mxu0 0.0
        %4764 = vmatpush1.xpose.msra.mxu0 0.0
        %4765 = vmatprep.subr.mxu0 0.0
        %4766 = vmatpush1.xpose.msra.mxu0 0.0
        %4767 = vmatprep.subr.mxu0 0.0
        %4768 = vmatpush1.xpose.msra.mxu0 0.0
        %4769 = vmatprep.subr.mxu0 0.0
        %4770 = vmatpush1.xpose.msra.mxu0 0.0
        %4771 = vmatprep.subr.mxu0 0.0
        %4772 = vmatpush1.xpose.msra.mxu0 0.0
        %4773 = vmatprep.subr.mxu0 0.0
        %4774 = vmatpush1.xpose.msra.mxu0 0.0
        %4775 = vmatprep.subr.mxu0 0.0
        %4776 = vmatpush1.xpose.msra.mxu0 0.0
        %4777 = vmatprep.subr.mxu0 0.0
        %4778 = vmatpush1.xpose.msra.mxu0 0.0
        %4779 = vmatprep.subr.mxu0 0.0
        %4780 = vmatpush1.xpose.msra.mxu0 0.0
        %4781 = vmatprep.subr.mxu0 0.0
        %4782 = vmatpush1.xpose.msra.mxu0 0.0
        %4783 = vmatprep.subr.mxu0 0.0
        %4784 = vmatpush1.xpose.msra.mxu0 0.0
        %4785 = vmatprep.subr.mxu0 0.0
        %4786 = vmatpush1.xpose.msra.mxu0 0.0
        %4787 = vmatprep.subr.mxu0 0.0
        %4788 = vmatpush1.xpose.msra.mxu0 0.0
        %4789 = vmatprep.subr.mxu0 0.0
        %4790 = vmatpush1.xpose.msra.mxu0 0.0
        %4791 = vmatprep.subr.mxu0 0.0
        %4792 = vmatpush1.xpose.msra.mxu0 0.0
        %4793 = vmatprep.subr.mxu0 0.0
        %4794 = vmatpush1.xpose.msra.mxu0 0.0
        %4795 = vmatprep.subr.mxu0 0.0
        %4796 = vmatpush1.xpose.msra.mxu0 0.0
        %4797 = vmatprep.subr.mxu0 0.0
        %4798 = vmatpush1.xpose.msra.mxu0 0.0
        %4799 = vmatprep.subr.mxu0 0.0
        %4800 = vmatpush1.xpose.msra.mxu0 0.0
        %4801 = vmatprep.subr.mxu0 0.0
        %4802 = vmatpush1.xpose.msra.mxu0 0.0
        %4803 = vmatprep.subr.mxu0 0.0
        %4804 = vmatpush1.xpose.msra.mxu0 0.0
        %4805 = vmatprep.subr.mxu0 0.0
        %4806 = vmatpush1.xpose.msra.mxu0 0.0
        %4807 = vmatprep.subr.mxu0 0.0
        %4808 = vmatpush1.xpose.msra.mxu0 0.0
        %4809 = vmatprep.subr.mxu0 0.0
        %4810 = vmatpush1.xpose.msra.mxu0 0.0
        %4811 = vmatprep.subr.mxu0 0.0
        %4812 = vmatpush1.xpose.msra.mxu0 0.0
        %4813 = vmatprep.subr.mxu0 0.0
        %4814 = vmatpush1.xpose.msra.mxu0 0.0
        %4815 = vmatprep.subr.mxu0 0.0
        %4816 = vmatpush1.xpose.msra.mxu0 0.0
        %4817 = vmatprep.mubr.f32.mxu0 0.0
        %4818 = vmatmul.mubr.f32.gmra.mrb[0].mxu0 %v4737
        %v4819 = vpop.f32.mrb[0].mxu0
        %v4820 = vadd.f32 0.0, %v4819
        %v4821 = vpop.f32.mrb[0].mxu0
        %4822 = vmatprep.mubr.f32.mxu0 0.0
        %4823 = vmatmul.mubr.f32.gmra.mrb[0].mxu0 %v4739
        %v4824 = vpop.f32.mrb[0].mxu0
        %v4825 = vadd.f32 0.0, %v4824
        %v4826 = vpop.f32.mrb[0].mxu0
        %4827 = vmatprep.mubr.f32.mxu0 0.0
        %4828 = vmatmul.mubr.f32.gmra.mrb[0].mxu0 %v4741
        %v4829 = vpop.f32.mrb[0].mxu0
        %v4830 = vadd.f32 0.0, %v4829
        %v4831 = vpop.f32.mrb[0].mxu0
        %4832 = vmatprep.mubr.f32.mxu0 0.0
        %4833 = vmatmul.mubr.f32.gmra.mrb[0].mxu0 %v4743
        %v4834 = vpop.f32.mrb[0].mxu0
        %v4835 = vadd.f32 0.0, %v4834
        %v4836 = vpop.f32.mrb[0].mxu0
        %4837 = vdwg.mxu0
        %v4838 = vsel %vm2060, %v4820, -1e+30
        %v4839 = vsel %vm2060, %v4825, -1e+30
        %v4840 = vsel %vm2060, %v4830, -1e+30
        %v4841 = vsel %vm2060, %v4835, -1e+30
        %v4842 = vsel %vm837, %v4838, -inf
        %4843 = vmax.xlane.f32.xlu0 %v4842
        %v4844 = vpop.xlane.xlu0 %4843
        %v4845 = vsel %vm837, %v4839, -inf
        %4846 = vmax.xlane.f32.xlu0 %v4845
        %v4847 = vpop.xlane.xlu0 %4846
        %v4848 = vsel %vm837, %v4840, -inf
        %4849 = vmax.xlane.f32.xlu0 %v4848
        %v4850 = vpop.xlane.xlu0 %4849
        %v4851 = vsel %vm837, %v4841, -inf
        %4852 = vmax.xlane.f32.xlu0 %v4851
        %v4853 = vpop.xlane.xlu0 %4852
        %v4854 = vsub.f32 %v4838, %v4844
        %v4855 = vsub.f32 %v4839, %v4847
        %v4856 = vsub.f32 %v4840, %v4850
        %v4857 = vsub.f32 %v4841, %v4853
        %v4858 = vmul.f32 %v4854, 1.442695
        %v4859 = vpow.pop %v4858
        %v4860 = vmul.f32 %v4855, 1.442695
        %v4861 = vpow.pop %v4860
        %v4862 = vmul.f32 %v4856, 1.442695
        %v4863 = vpow.pop %v4862
        %v4864 = vmul.f32 %v4857, 1.442695
        %v4865 = vpow.pop %v4864
        %v4866 = vsel %vm837, %v4859, 0.0
        %4867 = vadd.xlane.f32.xlu0 %v4866
        %v4868 = vpop.xlane.xlu0 %4867
        %v4869 = vsel %vm837, %v4861, 0.0
        %4870 = vadd.xlane.f32.xlu0 %v4869
        %v4871 = vpop.xlane.xlu0 %4870
        %v4872 = vsel %vm837, %v4863, 0.0
        %4873 = vadd.xlane.f32.xlu0 %v4872
        %v4874 = vpop.xlane.xlu0 %4873
        %v4875 = vsel %vm837, %v4865, 0.0
        %4876 = vadd.xlane.f32.xlu0 %v4875
        %v4877 = vpop.xlane.xlu0 %4876
        %v4878 = vrcp.pop %v4868
        %v4879 = vrcp.pop %v4871
        %v4880 = vrcp.pop %v4874
        %v4881 = vrcp.pop %v4877
        %v4882 = vmul.f32 %v4859, %v4878
        %v4883 = vmul.f32 %v4861, %v4879
        %v4884 = vmul.f32 %v4863, %v4880
        %v4885 = vmul.f32 %v4865, %v4881
        %4886 = vrot.lane.b32.xlu0 %v3962, 96
        %v4887 = vpop.permute.xlu0 %4886
        %4888 = vrot.lane.b32.xlu0 %v3968, 96
        %v4889 = vpop.permute.xlu0 %4888
        %4890 = vrot.lane.b32.xlu0 %v3974, 96
        %v4891 = vpop.permute.xlu0 %4890
        %4892 = vrot.lane.b32.xlu0 %v3980, 96
        %v4893 = vpop.permute.xlu0 %4892
        %v4899 = vsel %vm837, %v4882, 0
        %v4902 = vsel %vm837, %v4883, 0
        %v4905 = vsel %vm837, %v4884, 0
        %v4908 = vsel %vm837, %v4885, 0
        %4910 = vmatprep.subr.mxu0 0.0
        %4911 = vmatpush1.msra.mxu0 %v4887
        %4912 = vmatprep.subr.mxu0 0.0
        %4913 = vmatpush1.msra.mxu0 %v4889
        %4914 = vmatprep.subr.mxu0 0.0
        %4915 = vmatpush1.msra.mxu0 %v4891
        %4916 = vmatprep.subr.mxu0 0.0
        %4917 = vmatpush1.msra.mxu0 %v4893
        %4918 = vmatprep.subr.mxu0 0.0
        %4919 = vmatpush1.msra.mxu0 0.0
        %4920 = vmatprep.subr.mxu0 0.0
        %4921 = vmatpush1.msra.mxu0 0.0
        %4922 = vmatprep.subr.mxu0 0.0
        %4923 = vmatpush1.msra.mxu0 0.0
        %4924 = vmatprep.subr.mxu0 0.0
        %4925 = vmatpush1.msra.mxu0 0.0
        %4926 = vmatprep.subr.mxu0 0.0
        %4927 = vmatpush1.msra.mxu0 0.0
        %4928 = vmatprep.subr.mxu0 0.0
        %4929 = vmatpush1.msra.mxu0 0.0
        %4930 = vmatprep.subr.mxu0 0.0
        %4931 = vmatpush1.msra.mxu0 0.0
        %4932 = vmatprep.subr.mxu0 0.0
        %4933 = vmatpush1.msra.mxu0 0.0
        %4934 = vmatprep.subr.mxu0 0.0
        %4935 = vmatpush1.msra.mxu0 0.0
        %4936 = vmatprep.subr.mxu0 0.0
        %4937 = vmatpush1.msra.mxu0 0.0
        %4938 = vmatprep.subr.mxu0 0.0
        %4939 = vmatpush1.msra.mxu0 0.0
        %4940 = vmatprep.subr.mxu0 0.0
        %4941 = vmatpush1.msra.mxu0 0.0
        %4942 = vmatprep.subr.mxu0 0.0
        %4943 = vmatpush1.msra.mxu0 0.0
        %4944 = vmatprep.subr.mxu0 0.0
        %4945 = vmatpush1.msra.mxu0 0.0
        %4946 = vmatprep.subr.mxu0 0.0
        %4947 = vmatpush1.msra.mxu0 0.0
        %4948 = vmatprep.subr.mxu0 0.0
        %4949 = vmatpush1.msra.mxu0 0.0
        %4950 = vmatprep.subr.mxu0 0.0
        %4951 = vmatpush1.msra.mxu0 0.0
        %4952 = vmatprep.subr.mxu0 0.0
        %4953 = vmatpush1.msra.mxu0 0.0
        %4954 = vmatprep.subr.mxu0 0.0
        %4955 = vmatpush1.msra.mxu0 0.0
        %4956 = vmatprep.subr.mxu0 0.0
        %4957 = vmatpush1.msra.mxu0 0.0
        %4958 = vmatprep.subr.mxu0 0.0
        %4959 = vmatpush1.msra.mxu0 0.0
        %4960 = vmatprep.subr.mxu0 0.0
        %4961 = vmatpush1.msra.mxu0 0.0
        %4962 = vmatprep.subr.mxu0 0.0
        %4963 = vmatpush1.msra.mxu0 0.0
        %4964 = vmatprep.subr.mxu0 0.0
        %4965 = vmatpush1.msra.mxu0 0.0
        %4966 = vmatprep.subr.mxu0 0.0
        %4967 = vmatpush1.msra.mxu0 0.0
        %4968 = vmatprep.subr.mxu0 0.0
        %4969 = vmatpush1.msra.mxu0 0.0
        %4970 = vmatprep.subr.mxu0 0.0
        %4971 = vmatpush1.msra.mxu0 0.0
        %4972 = vmatprep.subr.mxu0 0.0
        %4973 = vmatpush1.msra.mxu0 0.0
        %4974 = vmatprep.mubr.f32.mxu0 0.0
        %4975 = vmatmul.mubr.f32.gmra.mrb[0].mxu0 %v4899
        %v4976 = vpop.f32.mrb[0].mxu0
        %v4977 = vadd.f32 0.0, %v4976
        %v4978 = vpop.f32.mrb[0].mxu0
        %4979 = vmatprep.mubr.f32.mxu0 0.0
        %4980 = vmatmul.mubr.f32.gmra.mrb[0].mxu0 %v4902
        %v4981 = vpop.f32.mrb[0].mxu0
        %v4982 = vadd.f32 0.0, %v4981
        %v4983 = vpop.f32.mrb[0].mxu0
        %4984 = vmatprep.mubr.f32.mxu0 0.0
        %4985 = vmatmul.mubr.f32.gmra.mrb[0].mxu0 %v4905
        %v4986 = vpop.f32.mrb[0].mxu0
        %v4987 = vadd.f32 0.0, %v4986
        %v4988 = vpop.f32.mrb[0].mxu0
        %4989 = vmatprep.mubr.f32.mxu0 0.0
        %4990 = vmatmul.mubr.f32.gmra.mrb[0].mxu0 %v4908
        %v4991 = vpop.f32.mrb[0].mxu0
        %v4992 = vadd.f32 0.0, %v4991
        %v4993 = vpop.f32.mrb[0].mxu0
        %4994 = vdwg.mxu0
        %v4996 = vsel %vm832, %v4977, 0
        %v4999 = vsel %vm832, %v4982, 0
        %v5002 = vsel %vm832, %v4987, 0
        %v5005 = vsel %vm832, %v4992, 0
        %5007 = vmatprep.subr.mxu0 0.0
        %5008 = vmatpush1.msra.mxu0 %v3987
        %5009 = vmatprep.subr.mxu0 0.0
        %5010 = vmatpush1.msra.mxu0 %v3988
        %5011 = vmatprep.subr.mxu0 0.0
        %5012 = vmatpush1.msra.mxu0 0.0
        %5013 = vmatprep.subr.mxu0 0.0
        %5014 = vmatpush1.msra.mxu0 0.0
        %5015 = vmatprep.subr.mxu0 0.0
        %5016 = vmatpush1.msra.mxu0 0.0
        %5017 = vmatprep.subr.mxu0 0.0
        %5018 = vmatpush1.msra.mxu0 0.0
        %5019 = vmatprep.subr.mxu0 0.0
        %5020 = vmatpush1.msra.mxu0 0.0
        %5021 = vmatprep.subr.mxu0 0.0
        %5022 = vmatpush1.msra.mxu0 0.0
        %5023 = vmatprep.subr.mxu0 0.0
        %5024 = vmatpush1.msra.mxu0 0.0
        %5025 = vmatprep.subr.mxu0 0.0
        %5026 = vmatpush1.msra.mxu0 0.0
        %5027 = vmatprep.subr.mxu0 0.0
        %5028 = vmatpush1.msra.mxu0 0.0
        %5029 = vmatprep.subr.mxu0 0.0
        %5030 = vmatpush1.msra.mxu0 0.0
        %5031 = vmatprep.subr.mxu0 0.0
        %5032 = vmatpush1.msra.mxu0 0.0
        %5033 = vmatprep.subr.mxu0 0.0
        %5034 = vmatpush1.msra.mxu0 0.0
        %5035 = vmatprep.subr.mxu0 0.0
        %5036 = vmatpush1.msra.mxu0 0.0
        %5037 = vmatprep.subr.mxu0 0.0
        %5038 = vmatpush1.msra.mxu0 0.0
        %5039 = vmatprep.subr.mxu0 0.0
        %5040 = vmatpush1.msra.mxu0 0.0
        %5041 = vmatprep.subr.mxu0 0.0
        %5042 = vmatpush1.msra.mxu0 0.0
        %5043 = vmatprep.subr.mxu0 0.0
        %5044 = vmatpush1.msra.mxu0 0.0
        %5045 = vmatprep.subr.mxu0 0.0
        %5046 = vmatpush1.msra.mxu0 0.0
        %5047 = vmatprep.subr.mxu0 0.0
        %5048 = vmatpush1.msra.mxu0 0.0
        %5049 = vmatprep.subr.mxu0 0.0
        %5050 = vmatpush1.msra.mxu0 0.0
        %5051 = vmatprep.subr.mxu0 0.0
        %5052 = vmatpush1.msra.mxu0 0.0
        %5053 = vmatprep.subr.mxu0 0.0
        %5054 = vmatpush1.msra.mxu0 0.0
        %5055 = vmatprep.subr.mxu0 0.0
        %5056 = vmatpush1.msra.mxu0 0.0
        %5057 = vmatprep.subr.mxu0 0.0
        %5058 = vmatpush1.msra.mxu0 0.0
        %5059 = vmatprep.subr.mxu0 0.0
        %5060 = vmatpush1.msra.mxu0 0.0
        %5061 = vmatprep.subr.mxu0 0.0
        %5062 = vmatpush1.msra.mxu0 0.0
        %5063 = vmatprep.subr.mxu0 0.0
        %5064 = vmatpush1.msra.mxu0 0.0
        %5065 = vmatprep.subr.mxu0 0.0
        %5066 = vmatpush1.msra.mxu0 0.0
        %5067 = vmatprep.subr.mxu0 0.0
        %5068 = vmatpush1.msra.mxu0 0.0
        %5069 = vmatprep.subr.mxu0 0.0
        %5070 = vmatpush1.msra.mxu0 0.0
        %5071 = vmatprep.mubr.f32.mxu0 0.0
        %5072 = vmatmul.mubr.f32.gmra.mrb[0].mxu0 %v4996
        %v5073 = vpop.f32.mrb[0].mxu0
        %v5074 = vadd.f32 0.0, %v5073
        %v5075 = vpop.f32.mrb[0].mxu0
        %5076 = vmatprep.mubr.f32.mxu0 0.0
        %5077 = vmatmul.mubr.f32.gmra.mrb[0].mxu0 %v4999
        %v5078 = vpop.f32.mrb[0].mxu0
        %v5079 = vadd.f32 0.0, %v5078
        %v5080 = vpop.f32.mrb[0].mxu0
        %5081 = vmatprep.mubr.f32.mxu0 0.0
        %5082 = vmatmul.mubr.f32.gmra.mrb[0].mxu0 %v5002
        %v5083 = vpop.f32.mrb[0].mxu0
        %v5084 = vadd.f32 0.0, %v5083
        %v5085 = vpop.f32.mrb[0].mxu0
        %5086 = vmatprep.mubr.f32.mxu0 0.0
        %5087 = vmatmul.mubr.f32.gmra.mrb[0].mxu0 %v5005
        %v5088 = vpop.f32.mrb[0].mxu0
        %v5089 = vadd.f32 0.0, %v5088
        %v5090 = vpop.f32.mrb[0].mxu0
        %5091 = vdwg.mxu0
        %v5092 = vadd.f32 %v4703, %v5074
        %v5093 = vadd.f32 %v4708, %v5079
        %v5094 = vadd.f32 %v4713, %v5084
        %v5095 = vadd.f32 %v4718, %v5089
        %5096 = vrot.lane.b32.xlu0 %v3960, 80
        %v5097 = vpop.permute.xlu0 %5096
        %5098 = vrot.lane.b32.xlu0 %v3966, 80
        %v5099 = vpop.permute.xlu0 %5098
        %5100 = vrot.lane.b32.xlu0 %v3972, 80
        %v5101 = vpop.permute.xlu0 %5100
        %5102 = vrot.lane.b32.xlu0 %v3978, 80
        %v5103 = vpop.permute.xlu0 %5102
        %5104 = vrot.lane.b32.xlu0 %v3960, 16
        %v5105 = vpop.permute.xlu0 %5104
        %5106 = vrot.lane.b32.xlu0 %v3966, 16
        %v5107 = vpop.permute.xlu0 %5106
        %5108 = vrot.lane.b32.xlu0 %v3972, 16
        %v5109 = vpop.permute.xlu0 %5108
        %5110 = vrot.lane.b32.xlu0 %v3978, 16
        %v5111 = vpop.permute.xlu0 %5110
        %v5112 = vsel %vm832, %v5097, 0
        %v5114 = vsel %vm832, %v5099, 0
        %v5116 = vsel %vm832, %v5101, 0
        %v5118 = vsel %vm832, %v5103, 0
        %v5120 = vsel %vm832, %v5105, 0
        %v5122 = vsel %vm832, %v5107, 0
        %v5124 = vsel %vm832, %v5109, 0
        %v5126 = vsel %vm832, %v5111, 0
        %5128 = vmatprep.subr.mxu0 0.0
        %5129 = vmatpush1.xpose.msra.mxu0 %v5120
        %5130 = vmatprep.subr.mxu0 0.0
        %5131 = vmatpush1.xpose.msra.mxu0 %v5122
        %5132 = vmatprep.subr.mxu0 0.0
        %5133 = vmatpush1.xpose.msra.mxu0 %v5124
        %5134 = vmatprep.subr.mxu0 0.0
        %5135 = vmatpush1.xpose.msra.mxu0 %v5126
        %5136 = vmatprep.subr.mxu0 0.0
        %5137 = vmatpush1.xpose.msra.mxu0 0.0
        %5138 = vmatprep.subr.mxu0 0.0
        %5139 = vmatpush1.xpose.msra.mxu0 0.0
        %5140 = vmatprep.subr.mxu0 0.0
        %5141 = vmatpush1.xpose.msra.mxu0 0.0
        %5142 = vmatprep.subr.mxu0 0.0
        %5143 = vmatpush1.xpose.msra.mxu0 0.0
        %5144 = vmatprep.subr.mxu0 0.0
        %5145 = vmatpush1.xpose.msra.mxu0 0.0
        %5146 = vmatprep.subr.mxu0 0.0
        %5147 = vmatpush1.xpose.msra.mxu0 0.0
        %5148 = vmatprep.subr.mxu0 0.0
        %5149 = vmatpush1.xpose.msra.mxu0 0.0
        %5150 = vmatprep.subr.mxu0 0.0
        %5151 = vmatpush1.xpose.msra.mxu0 0.0
        %5152 = vmatprep.subr.mxu0 0.0
        %5153 = vmatpush1.xpose.msra.mxu0 0.0
        %5154 = vmatprep.subr.mxu0 0.0
        %5155 = vmatpush1.xpose.msra.mxu0 0.0
        %5156 = vmatprep.subr.mxu0 0.0
        %5157 = vmatpush1.xpose.msra.mxu0 0.0
        %5158 = vmatprep.subr.mxu0 0.0
        %5159 = vmatpush1.xpose.msra.mxu0 0.0
        %5160 = vmatprep.subr.mxu0 0.0
        %5161 = vmatpush1.xpose.msra.mxu0 0.0
        %5162 = vmatprep.subr.mxu0 0.0
        %5163 = vmatpush1.xpose.msra.mxu0 0.0
        %5164 = vmatprep.subr.mxu0 0.0
        %5165 = vmatpush1.xpose.msra.mxu0 0.0
        %5166 = vmatprep.subr.mxu0 0.0
        %5167 = vmatpush1.xpose.msra.mxu0 0.0
        %5168 = vmatprep.subr.mxu0 0.0
        %5169 = vmatpush1.xpose.msra.mxu0 0.0
        %5170 = vmatprep.subr.mxu0 0.0
        %5171 = vmatpush1.xpose.msra.mxu0 0.0
        %5172 = vmatprep.subr.mxu0 0.0
        %5173 = vmatpush1.xpose.msra.mxu0 0.0
        %5174 = vmatprep.subr.mxu0 0.0
        %5175 = vmatpush1.xpose.msra.mxu0 0.0
        %5176 = vmatprep.subr.mxu0 0.0
        %5177 = vmatpush1.xpose.msra.mxu0 0.0
        %5178 = vmatprep.subr.mxu0 0.0
        %5179 = vmatpush1.xpose.msra.mxu0 0.0
        %5180 = vmatprep.subr.mxu0 0.0
        %5181 = vmatpush1.xpose.msra.mxu0 0.0
        %5182 = vmatprep.subr.mxu0 0.0
        %5183 = vmatpush1.xpose.msra.mxu0 0.0
        %5184 = vmatprep.subr.mxu0 0.0
        %5185 = vmatpush1.xpose.msra.mxu0 0.0
        %5186 = vmatprep.subr.mxu0 0.0
        %5187 = vmatpush1.xpose.msra.mxu0 0.0
        %5188 = vmatprep.subr.mxu0 0.0
        %5189 = vmatpush1.xpose.msra.mxu0 0.0
        %5190 = vmatprep.subr.mxu0 0.0
        %5191 = vmatpush1.xpose.msra.mxu0 0.0
        %5192 = vmatprep.mubr.f32.mxu0 0.0
        %5193 = vmatmul.mubr.f32.gmra.mrb[0].mxu0 %v5112
        %v5194 = vpop.f32.mrb[0].mxu0
        %v5195 = vadd.f32 0.0, %v5194
        %v5196 = vpop.f32.mrb[0].mxu0
        %5197 = vmatprep.mubr.f32.mxu0 0.0
        %5198 = vmatmul.mubr.f32.gmra.mrb[0].mxu0 %v5114
        %v5199 = vpop.f32.mrb[0].mxu0
        %v5200 = vadd.f32 0.0, %v5199
        %v5201 = vpop.f32.mrb[0].mxu0
        %5202 = vmatprep.mubr.f32.mxu0 0.0
        %5203 = vmatmul.mubr.f32.gmra.mrb[0].mxu0 %v5116
        %v5204 = vpop.f32.mrb[0].mxu0
        %v5205 = vadd.f32 0.0, %v5204
        %v5206 = vpop.f32.mrb[0].mxu0
        %5207 = vmatprep.mubr.f32.mxu0 0.0
        %5208 = vmatmul.mubr.f32.gmra.mrb[0].mxu0 %v5118
        %v5209 = vpop.f32.mrb[0].mxu0
        %v5210 = vadd.f32 0.0, %v5209
        %v5211 = vpop.f32.mrb[0].mxu0
        %5212 = vdwg.mxu0
        %v5213 = vsel %vm2060, %v5195, -1e+30
        %v5214 = vsel %vm2060, %v5200, -1e+30
        %v5215 = vsel %vm2060, %v5205, -1e+30
        %v5216 = vsel %vm2060, %v5210, -1e+30
        %v5217 = vsel %vm837, %v5213, -inf
        %5218 = vmax.xlane.f32.xlu0 %v5217
        %v5219 = vpop.xlane.xlu0 %5218
        %v5220 = vsel %vm837, %v5214, -inf
        %5221 = vmax.xlane.f32.xlu0 %v5220
        %v5222 = vpop.xlane.xlu0 %5221
        %v5223 = vsel %vm837, %v5215, -inf
        %5224 = vmax.xlane.f32.xlu0 %v5223
        %v5225 = vpop.xlane.xlu0 %5224
        %v5226 = vsel %vm837, %v5216, -inf
        %5227 = vmax.xlane.f32.xlu0 %v5226
        %v5228 = vpop.xlane.xlu0 %5227
        %v5229 = vsub.f32 %v5213, %v5219
        %v5230 = vsub.f32 %v5214, %v5222
        %v5231 = vsub.f32 %v5215, %v5225
        %v5232 = vsub.f32 %v5216, %v5228
        %v5233 = vmul.f32 %v5229, 1.442695
        %v5234 = vpow.pop %v5233
        %v5235 = vmul.f32 %v5230, 1.442695
        %v5236 = vpow.pop %v5235
        %v5237 = vmul.f32 %v5231, 1.442695
        %v5238 = vpow.pop %v5237
        %v5239 = vmul.f32 %v5232, 1.442695
        %v5240 = vpow.pop %v5239
        %v5241 = vsel %vm837, %v5234, 0.0
        %5242 = vadd.xlane.f32.xlu0 %v5241
        %v5243 = vpop.xlane.xlu0 %5242
        %v5244 = vsel %vm837, %v5236, 0.0
        %5245 = vadd.xlane.f32.xlu0 %v5244
        %v5246 = vpop.xlane.xlu0 %5245
        %v5247 = vsel %vm837, %v5238, 0.0
        %5248 = vadd.xlane.f32.xlu0 %v5247
        %v5249 = vpop.xlane.xlu0 %5248
        %v5250 = vsel %vm837, %v5240, 0.0
        %5251 = vadd.xlane.f32.xlu0 %v5250
        %v5252 = vpop.xlane.xlu0 %5251
        %v5253 = vrcp.pop %v5243
        %v5254 = vrcp.pop %v5246
        %v5255 = vrcp.pop %v5249
        %v5256 = vrcp.pop %v5252
        %v5257 = vmul.f32 %v5234, %v5253
        %v5258 = vmul.f32 %v5236, %v5254
        %v5259 = vmul.f32 %v5238, %v5255
        %v5260 = vmul.f32 %v5240, %v5256
        %5261 = vrot.lane.b32.xlu0 %v3962, 80
        %v5262 = vpop.permute.xlu0 %5261
        %5263 = vrot.lane.b32.xlu0 %v3968, 80
        %v5264 = vpop.permute.xlu0 %5263
        %5265 = vrot.lane.b32.xlu0 %v3974, 80
        %v5266 = vpop.permute.xlu0 %5265
        %5267 = vrot.lane.b32.xlu0 %v3980, 80
        %v5268 = vpop.permute.xlu0 %5267
        %v5274 = vsel %vm837, %v5257, 0
        %v5277 = vsel %vm837, %v5258, 0
        %v5280 = vsel %vm837, %v5259, 0
        %v5283 = vsel %vm837, %v5260, 0
        %5285 = vmatprep.subr.mxu0 0.0
        %5286 = vmatpush1.msra.mxu0 %v5262
        %5287 = vmatprep.subr.mxu0 0.0
        %5288 = vmatpush1.msra.mxu0 %v5264
        %5289 = vmatprep.subr.mxu0 0.0
        %5290 = vmatpush1.msra.mxu0 %v5266
        %5291 = vmatprep.subr.mxu0 0.0
        %5292 = vmatpush1.msra.mxu0 %v5268
        %5293 = vmatprep.subr.mxu0 0.0
        %5294 = vmatpush1.msra.mxu0 0.0
        %5295 = vmatprep.subr.mxu0 0.0
        %5296 = vmatpush1.msra.mxu0 0.0
        %5297 = vmatprep.subr.mxu0 0.0
        %5298 = vmatpush1.msra.mxu0 0.0
        %5299 = vmatprep.subr.mxu0 0.0
        %5300 = vmatpush1.msra.mxu0 0.0
        %5301 = vmatprep.subr.mxu0 0.0
        %5302 = vmatpush1.msra.mxu0 0.0
        %5303 = vmatprep.subr.mxu0 0.0
        %5304 = vmatpush1.msra.mxu0 0.0
        %5305 = vmatprep.subr.mxu0 0.0
        %5306 = vmatpush1.msra.mxu0 0.0
        %5307 = vmatprep.subr.mxu0 0.0
        %5308 = vmatpush1.msra.mxu0 0.0
        %5309 = vmatprep.subr.mxu0 0.0
        %5310 = vmatpush1.msra.mxu0 0.0
        %5311 = vmatprep.subr.mxu0 0.0
        %5312 = vmatpush1.msra.mxu0 0.0
        %5313 = vmatprep.subr.mxu0 0.0
        %5314 = vmatpush1.msra.mxu0 0.0
        %5315 = vmatprep.subr.mxu0 0.0
        %5316 = vmatpush1.msra.mxu0 0.0
        %5317 = vmatprep.subr.mxu0 0.0
        %5318 = vmatpush1.msra.mxu0 0.0
        %5319 = vmatprep.subr.mxu0 0.0
        %5320 = vmatpush1.msra.mxu0 0.0
        %5321 = vmatprep.subr.mxu0 0.0
        %5322 = vmatpush1.msra.mxu0 0.0
        %5323 = vmatprep.subr.mxu0 0.0
        %5324 = vmatpush1.msra.mxu0 0.0
        %5325 = vmatprep.subr.mxu0 0.0
        %5326 = vmatpush1.msra.mxu0 0.0
        %5327 = vmatprep.subr.mxu0 0.0
        %5328 = vmatpush1.msra.mxu0 0.0
        %5329 = vmatprep.subr.mxu0 0.0
        %5330 = vmatpush1.msra.mxu0 0.0
        %5331 = vmatprep.subr.mxu0 0.0
        %5332 = vmatpush1.msra.mxu0 0.0
        %5333 = vmatprep.subr.mxu0 0.0
        %5334 = vmatpush1.msra.mxu0 0.0
        %5335 = vmatprep.subr.mxu0 0.0
        %5336 = vmatpush1.msra.mxu0 0.0
        %5337 = vmatprep.subr.mxu0 0.0
        %5338 = vmatpush1.msra.mxu0 0.0
        %5339 = vmatprep.subr.mxu0 0.0
        %5340 = vmatpush1.msra.mxu0 0.0
        %5341 = vmatprep.subr.mxu0 0.0
        %5342 = vmatpush1.msra.mxu0 0.0
        %5343 = vmatprep.subr.mxu0 0.0
        %5344 = vmatpush1.msra.mxu0 0.0
        %5345 = vmatprep.subr.mxu0 0.0
        %5346 = vmatpush1.msra.mxu0 0.0
        %5347 = vmatprep.subr.mxu0 0.0
        %5348 = vmatpush1.msra.mxu0 0.0
        %5349 = vmatprep.mubr.f32.mxu0 0.0
        %5350 = vmatmul.mubr.f32.gmra.mrb[0].mxu0 %v5274
        %v5351 = vpop.f32.mrb[0].mxu0
        %v5352 = vadd.f32 0.0, %v5351
        %v5353 = vpop.f32.mrb[0].mxu0
        %5354 = vmatprep.mubr.f32.mxu0 0.0
        %5355 = vmatmul.mubr.f32.gmra.mrb[0].mxu0 %v5277
        %v5356 = vpop.f32.mrb[0].mxu0
        %v5357 = vadd.f32 0.0, %v5356
        %v5358 = vpop.f32.mrb[0].mxu0
        %5359 = vmatprep.mubr.f32.mxu0 0.0
        %5360 = vmatmul.mubr.f32.gmra.mrb[0].mxu0 %v5280
        %v5361 = vpop.f32.mrb[0].mxu0
        %v5362 = vadd.f32 0.0, %v5361
        %v5363 = vpop.f32.mrb[0].mxu0
        %5364 = vmatprep.mubr.f32.mxu0 0.0
        %5365 = vmatmul.mubr.f32.gmra.mrb[0].mxu0 %v5283
        %v5366 = vpop.f32.mrb[0].mxu0
        %v5367 = vadd.f32 0.0, %v5366
        %v5368 = vpop.f32.mrb[0].mxu0
        %5369 = vdwg.mxu0
        %v5371 = vsel %vm832, %v5352, 0
        %v5374 = vsel %vm832, %v5357, 0
        %v5377 = vsel %vm832, %v5362, 0
        %v5380 = vsel %vm832, %v5367, 0
        %5382 = vmatprep.subr.mxu0 0.0
        %5383 = vmatpush1.msra.mxu0 %v3989
        %5384 = vmatprep.subr.mxu0 0.0
        %5385 = vmatpush1.msra.mxu0 %v3990
        %5386 = vmatprep.subr.mxu0 0.0
        %5387 = vmatpush1.msra.mxu0 0.0
        %5388 = vmatprep.subr.mxu0 0.0
        %5389 = vmatpush1.msra.mxu0 0.0
        %5390 = vmatprep.subr.mxu0 0.0
        %5391 = vmatpush1.msra.mxu0 0.0
        %5392 = vmatprep.subr.mxu0 0.0
        %5393 = vmatpush1.msra.mxu0 0.0
        %5394 = vmatprep.subr.mxu0 0.0
        %5395 = vmatpush1.msra.mxu0 0.0
        %5396 = vmatprep.subr.mxu0 0.0
        %5397 = vmatpush1.msra.mxu0 0.0
        %5398 = vmatprep.subr.mxu0 0.0
        %5399 = vmatpush1.msra.mxu0 0.0
        %5400 = vmatprep.subr.mxu0 0.0
        %5401 = vmatpush1.msra.mxu0 0.0
        %5402 = vmatprep.subr.mxu0 0.0
        %5403 = vmatpush1.msra.mxu0 0.0
        %5404 = vmatprep.subr.mxu0 0.0
        %5405 = vmatpush1.msra.mxu0 0.0
        %5406 = vmatprep.subr.mxu0 0.0
        %5407 = vmatpush1.msra.mxu0 0.0
        %5408 = vmatprep.subr.mxu0 0.0
        %5409 = vmatpush1.msra.mxu0 0.0
        %5410 = vmatprep.subr.mxu0 0.0
        %5411 = vmatpush1.msra.mxu0 0.0
        %5412 = vmatprep.subr.mxu0 0.0
        %5413 = vmatpush1.msra.mxu0 0.0
        %5414 = vmatprep.subr.mxu0 0.0
        %5415 = vmatpush1.msra.mxu0 0.0
        %5416 = vmatprep.subr.mxu0 0.0
        %5417 = vmatpush1.msra.mxu0 0.0
        %5418 = vmatprep.subr.mxu0 0.0
        %5419 = vmatpush1.msra.mxu0 0.0
        %5420 = vmatprep.subr.mxu0 0.0
        %5421 = vmatpush1.msra.mxu0 0.0
        %5422 = vmatprep.subr.mxu0 0.0
        %5423 = vmatpush1.msra.mxu0 0.0
        %5424 = vmatprep.subr.mxu0 0.0
        %5425 = vmatpush1.msra.mxu0 0.0
        %5426 = vmatprep.subr.mxu0 0.0
        %5427 = vmatpush1.msra.mxu0 0.0
        %5428 = vmatprep.subr.mxu0 0.0
        %5429 = vmatpush1.msra.mxu0 0.0
        %5430 = vmatprep.subr.mxu0 0.0
        %5431 = vmatpush1.msra.mxu0 0.0
        %5432 = vmatprep.subr.mxu0 0.0
        %5433 = vmatpush1.msra.mxu0 0.0
        %5434 = vmatprep.subr.mxu0 0.0
        %5435 = vmatpush1.msra.mxu0 0.0
        %5436 = vmatprep.subr.mxu0 0.0
        %5437 = vmatpush1.msra.mxu0 0.0
        %5438 = vmatprep.subr.mxu0 0.0
        %5439 = vmatpush1.msra.mxu0 0.0
        %5440 = vmatprep.subr.mxu0 0.0
        %5441 = vmatpush1.msra.mxu0 0.0
        %5442 = vmatprep.subr.mxu0 0.0
        %5443 = vmatpush1.msra.mxu0 0.0
        %5444 = vmatprep.subr.mxu0 0.0
        %5445 = vmatpush1.msra.mxu0 0.0
        %5446 = vmatprep.mubr.f32.mxu0 0.0
        %5447 = vmatmul.mubr.f32.gmra.mrb[0].mxu0 %v5371
        %v5448 = vpop.f32.mrb[0].mxu0
        %v5449 = vadd.f32 0.0, %v5448
        %v5450 = vpop.f32.mrb[0].mxu0
        %5451 = vmatprep.mubr.f32.mxu0 0.0
        %5452 = vmatmul.mubr.f32.gmra.mrb[0].mxu0 %v5374
        %v5453 = vpop.f32.mrb[0].mxu0
        %v5454 = vadd.f32 0.0, %v5453
        %v5455 = vpop.f32.mrb[0].mxu0
        %5456 = vmatprep.mubr.f32.mxu0 0.0
        %5457 = vmatmul.mubr.f32.gmra.mrb[0].mxu0 %v5377
        %v5458 = vpop.f32.mrb[0].mxu0
        %v5459 = vadd.f32 0.0, %v5458
        %v5460 = vpop.f32.mrb[0].mxu0
        %5461 = vmatprep.mubr.f32.mxu0 0.0
        %5462 = vmatmul.mubr.f32.gmra.mrb[0].mxu0 %v5380
        %v5463 = vpop.f32.mrb[0].mxu0
        %v5464 = vadd.f32 0.0, %v5463
        %v5465 = vpop.f32.mrb[0].mxu0
        %5466 = vdwg.mxu0
        %v5467 = vadd.f32 %v5092, %v5449
        %v5468 = vadd.f32 %v5093, %v5454
        %v5469 = vadd.f32 %v5094, %v5459
        %v5470 = vadd.f32 %v5095, %v5464
        %s5471 = scalar_lea.vmem %s8, 1
        %v5472 = vld [vmem:[%s5471] sm:$0x1]
        %v5474 = vlaneseq
        %v5475 = vshrl.u32 %v5474, 7
        %v5476 = vsub.s32 0, %v5475
        %v5477 = vrot.slane %v5472, %v5476
        %v5479 = vadd.f32 %v5467, %v5477
        %v5480 = vadd.f32 %v5468, %v5477
        %v5481 = vadd.f32 %v5469, %v5477
        %v5482 = vadd.f32 %v5470, %v5477
        %v5483 = vadd.f32 %v5479, %v3847
        %v5484 = vadd.f32 %v5480, %v3848
        %v5485 = vadd.f32 %v5481, %v3849
        %v5486 = vadd.f32 %v5482, %v3850
        %s5487 = scalar_lea.vmem %s9, 1
        %v5488 = vld [vmem:[%s5487] sm:$0x1]
        %s5489 = scalar_lea.vmem %s10, 1
        %v5490 = vld [vmem:[%s5489] sm:$0x1]
        %v5491 = vsel %vm847, %v5483, 0.0
        %5492 = vadd.xlane.f32.xlu0 %v5491
        %v5493 = vpop.xlane.xlu0 %5492
        %v5494 = vsel %vm847, %v5484, 0.0
        %5495 = vadd.xlane.f32.xlu0 %v5494
        %v5496 = vpop.xlane.xlu0 %5495
        %v5497 = vsel %vm847, %v5485, 0.0
        %5498 = vadd.xlane.f32.xlu0 %v5497
        %v5499 = vpop.xlane.xlu0 %5498
        %v5500 = vsel %vm847, %v5486, 0.0
        %5501 = vadd.xlane.f32.xlu0 %v5500
        %v5502 = vpop.xlane.xlu0 %5501
        %v5503 = vmul.f32 %v5493, %v1747
        %v5504 = vmul.f32 %v5496, %v1747
        %v5505 = vmul.f32 %v5499, %v1747
        %v5506 = vmul.f32 %v5502, %v1747
        %v5507 = vsub.f32 %v5483, %v5503
        %v5508 = vsub.f32 %v5484, %v5504
        %v5509 = vsub.f32 %v5485, %v5505
        %v5510 = vsub.f32 %v5486, %v5506
        %v5511 = vmul.f32 %v5507, %v5507
        %v5512 = vmul.f32 %v5508, %v5508
        %v5513 = vmul.f32 %v5509, %v5509
        %v5514 = vmul.f32 %v5510, %v5510
        %v5515 = vsel %vm847, %v5511, 0.0
        %5516 = vadd.xlane.f32.xlu0 %v5515
        %v5517 = vpop.xlane.xlu0 %5516
        %v5518 = vsel %vm847, %v5512, 0.0
        %5519 = vadd.xlane.f32.xlu0 %v5518
        %v5520 = vpop.xlane.xlu0 %5519
        %v5521 = vsel %vm847, %v5513, 0.0
        %5522 = vadd.xlane.f32.xlu0 %v5521
        %v5523 = vpop.xlane.xlu0 %5522
        %v5524 = vsel %vm847, %v5514, 0.0
        %5525 = vadd.xlane.f32.xlu0 %v5524
        %v5526 = vpop.xlane.xlu0 %5525
        %v5527 = vmul.f32 %v5517, %v1747
        %v5528 = vmul.f32 %v5520, %v1747
        %v5529 = vmul.f32 %v5523, %v1747
        %v5530 = vmul.f32 %v5526, %v1747
        %v5531 = vadd.f32 %v5527, 1e-05
        %v5532 = vadd.f32 %v5528, 1e-05
        %v5533 = vadd.f32 %v5529, 1e-05
        %v5534 = vadd.f32 %v5530, 1e-05
        %v5535 = vrsqrt.pop %v5531
        %v5536 = vrsqrt.pop %v5532
        %v5537 = vrsqrt.pop %v5533
        %v5538 = vrsqrt.pop %v5534
        %v5539 = vmul.f32 %v5507, %v5535
        %v5540 = vmul.f32 %v5508, %v5536
        %v5541 = vmul.f32 %v5509, %v5537
        %v5542 = vmul.f32 %v5510, %v5538
        %v5544 = vlaneseq
        %v5545 = vshrl.u32 %v5544, 7
        %v5546 = vsub.s32 0, %v5545
        %v5547 = vrot.slane %v5488, %v5546
        %v5549 = vmul.f32 %v5539, %v5547
        %v5550 = vmul.f32 %v5540, %v5547
        %v5551 = vmul.f32 %v5541, %v5547
        %v5552 = vmul.f32 %v5542, %v5547
        %v5554 = vlaneseq
        %v5555 = vshrl.u32 %v5554, 7
        %v5556 = vsub.s32 0, %v5555
        %v5557 = vrot.slane %v5490, %v5556
        %v5559 = vadd.f32 %v5549, %v5557
        %v5560 = vadd.f32 %v5550, %v5557
        %v5561 = vadd.f32 %v5551, %v5557
        %v5562 = vadd.f32 %v5552, %v5557
        %s5563 = scalar_lea.vmem %s11, 64
        %v5564 = vld [vmem:[%s5563] sm:$0xff]
        %v5565 = vld [vmem:[%s5563 + $0x8] sm:$0xff]
        %v5566 = vld [vmem:[%s5563 + $0x10] sm:$0xff]
        %v5567 = vld [vmem:[%s5563 + $0x18] sm:$0xff]
        %v5568 = vld [vmem:[%s5563 + $0x20] sm:$0xff]
        %v5569 = vld [vmem:[%s5563 + $0x28] sm:$0xff]
        %v5570 = vld [vmem:[%s5563 + $0x30] sm:$0xff]
        %v5571 = vld [vmem:[%s5563 + $0x38] sm:$0xff]
        %s5572 = scalar_lea.vmem %s12, 1
        %v5573 = vld [vmem:[%s5572] sm:$0x1]
        %v5575 = vlaneseq
        %v5576 = vshrl.u32 %v5575, 7
        %v5577 = vsub.s32 0, %v5576
        %v5578 = vrot.slane %v5573, %v5577
        %v5581 = vsel %vm847, %v5559, 0
        %v5584 = vsel %vm847, %v5560, 0
        %v5587 = vsel %vm847, %v5561, 0
        %v5590 = vsel %vm847, %v5562, 0
        %5592 = vmatprep.subr.mxu0 0.0
        %5593 = vmatpush1.msra.mxu0 %v5564
        %5594 = vmatprep.subr.mxu0 0.0
        %5595 = vmatpush1.msra.mxu0 %v5565
        %5596 = vmatprep.subr.mxu0 0.0
        %5597 = vmatpush1.msra.mxu0 %v5566
        %5598 = vmatprep.subr.mxu0 0.0
        %5599 = vmatpush1.msra.mxu0 %v5567
        %5600 = vmatprep.subr.mxu0 0.0
        %5601 = vmatpush1.msra.mxu0 %v5568
        %5602 = vmatprep.subr.mxu0 0.0
        %5603 = vmatpush1.msra.mxu0 %v5569
        %5604 = vmatprep.subr.mxu0 0.0
        %5605 = vmatpush1.msra.mxu0 %v5570
        %5606 = vmatprep.subr.mxu0 0.0
        %5607 = vmatpush1.msra.mxu0 %v5571
        %5608 = vmatprep.subr.mxu0 0.0
        %5609 = vmatpush1.msra.mxu0 0.0
        %5610 = vmatprep.subr.mxu0 0.0
        %5611 = vmatpush1.msra.mxu0 0.0
        %5612 = vmatprep.subr.mxu0 0.0
        %5613 = vmatpush1.msra.mxu0 0.0
        %5614 = vmatprep.subr.mxu0 0.0
        %5615 = vmatpush1.msra.mxu0 0.0
        %5616 = vmatprep.subr.mxu0 0.0
        %5617 = vmatpush1.msra.mxu0 0.0
        %5618 = vmatprep.subr.mxu0 0.0
        %5619 = vmatpush1.msra.mxu0 0.0
        %5620 = vmatprep.subr.mxu0 0.0
        %5621 = vmatpush1.msra.mxu0 0.0
        %5622 = vmatprep.subr.mxu0 0.0
        %5623 = vmatpush1.msra.mxu0 0.0
        %5624 = vmatprep.subr.mxu0 0.0
        %5625 = vmatpush1.msra.mxu0 0.0
        %5626 = vmatprep.subr.mxu0 0.0
        %5627 = vmatpush1.msra.mxu0 0.0
        %5628 = vmatprep.subr.mxu0 0.0
        %5629 = vmatpush1.msra.mxu0 0.0
        %5630 = vmatprep.subr.mxu0 0.0
        %5631 = vmatpush1.msra.mxu0 0.0
        %5632 = vmatprep.subr.mxu0 0.0
        %5633 = vmatpush1.msra.mxu0 0.0
        %5634 = vmatprep.subr.mxu0 0.0
        %5635 = vmatpush1.msra.mxu0 0.0
        %5636 = vmatprep.subr.mxu0 0.0
        %5637 = vmatpush1.msra.mxu0 0.0
        %5638 = vmatprep.subr.mxu0 0.0
        %5639 = vmatpush1.msra.mxu0 0.0
        %5640 = vmatprep.subr.mxu0 0.0
        %5641 = vmatpush1.msra.mxu0 0.0
        %5642 = vmatprep.subr.mxu0 0.0
        %5643 = vmatpush1.msra.mxu0 0.0
        %5644 = vmatprep.subr.mxu0 0.0
        %5645 = vmatpush1.msra.mxu0 0.0
        %5646 = vmatprep.subr.mxu0 0.0
        %5647 = vmatpush1.msra.mxu0 0.0
        %5648 = vmatprep.subr.mxu0 0.0
        %5649 = vmatpush1.msra.mxu0 0.0
        %5650 = vmatprep.subr.mxu0 0.0
        %5651 = vmatpush1.msra.mxu0 0.0
        %5652 = vmatprep.subr.mxu0 0.0
        %5653 = vmatpush1.msra.mxu0 0.0
        %5654 = vmatprep.subr.mxu0 0.0
        %5655 = vmatpush1.msra.mxu0 0.0
        %5656 = vmatprep.mubr.f32.mxu0 0.0
        %5657 = vmatmul.mubr.f32.gmra.mrb[0].mxu0 %v5581
        %v5658 = vpop.f32.mrb[0].mxu0
        %v5659 = vadd.f32 %v5578, %v5658
        %v5660 = vpop.f32.mrb[0].mxu0
        %5661 = vmatprep.mubr.f32.mxu0 0.0
        %5662 = vmatmul.mubr.f32.gmra.mrb[0].mxu0 %v5584
        %v5663 = vpop.f32.mrb[0].mxu0
        %v5664 = vadd.f32 %v5578, %v5663
        %v5665 = vpop.f32.mrb[0].mxu0
        %5666 = vmatprep.mubr.f32.mxu0 0.0
        %5667 = vmatmul.mubr.f32.gmra.mrb[0].mxu0 %v5587
        %v5668 = vpop.f32.mrb[0].mxu0
        %v5669 = vadd.f32 %v5578, %v5668
        %v5670 = vpop.f32.mrb[0].mxu0
        %5671 = vmatprep.mubr.f32.mxu0 0.0
        %5672 = vmatmul.mubr.f32.gmra.mrb[0].mxu0 %v5590
        %v5673 = vpop.f32.mrb[0].mxu0
        %v5674 = vadd.f32 %v5578, %v5673
        %v5675 = vpop.f32.mrb[0].mxu0
        %5676 = vdwg.mxu0
        %v5677 = vmul.f32 %v5659, %v5659
        %v5678 = vmul.f32 %v5664, %v5664
        %v5679 = vmul.f32 %v5669, %v5669
        %v5680 = vmul.f32 %v5674, %v5674
        %v5681 = vmul.f32 %v5659, %v5677
        %v5682 = vmul.f32 %v5664, %v5678
        %v5683 = vmul.f32 %v5669, %v5679
        %v5684 = vmul.f32 %v5674, %v5680
        %v5685 = vmul.f32 %v5681, 0.044715
        %v5686 = vmul.f32 %v5682, 0.044715
        %v5687 = vmul.f32 %v5683, 0.044715
        %v5688 = vmul.f32 %v5684, 0.044715
        %v5689 = vadd.f32 %v5659, %v5685
        %v5690 = vadd.f32 %v5664, %v5686
        %v5691 = vadd.f32 %v5669, %v5687
        %v5692 = vadd.f32 %v5674, %v5688
        %v5693 = vmul.f32 %v5689, 0.7978846
        %v5694 = vmul.f32 %v5690, 0.7978846
        %v5695 = vmul.f32 %v5691, 0.7978846
        %v5696 = vmul.f32 %v5692, 0.7978846
        %v5697 = vtanh.pop %v5693
        %v5698 = vtanh.pop %v5694
        %v5699 = vtanh.pop %v5695
        %v5700 = vtanh.pop %v5696
        %v5701 = vadd.f32 %v5697, 1.0
        %v5702 = vadd.f32 %v5698, 1.0
        %v5703 = vadd.f32 %v5699, 1.0
        %v5704 = vadd.f32 %v5700, 1.0
        %v5705 = vmul.f32 %v5701, 0.5
        %v5706 = vmul.f32 %v5702, 0.5
        %v5707 = vmul.f32 %v5703, 0.5
        %v5708 = vmul.f32 %v5704, 0.5
        %v5709 = vmul.f32 %v5659, %v5705
        %v5710 = vmul.f32 %v5664, %v5706
        %v5711 = vmul.f32 %v5669, %v5707
        %v5712 = vmul.f32 %v5674, %v5708
        %s5713 = scalar_lea.vmem %s13, 128
        %v5714 = vld [vmem:[%s5713] sm:$0xff]
        %v5715 = vld [vmem:[%s5713 + $0x8] sm:$0xff]
        %v5716 = vld [vmem:[%s5713 + $0x10] sm:$0xff]
        %v5717 = vld [vmem:[%s5713 + $0x18] sm:$0xff]
        %v5718 = vld [vmem:[%s5713 + $0x20] sm:$0xff]
        %v5719 = vld [vmem:[%s5713 + $0x28] sm:$0xff]
        %v5720 = vld [vmem:[%s5713 + $0x30] sm:$0xff]
        %v5721 = vld [vmem:[%s5713 + $0x38] sm:$0xff]
        %v5722 = vld [vmem:[%s5713 + $0x40] sm:$0xff]
        %v5723 = vld [vmem:[%s5713 + $0x48] sm:$0xff]
        %v5724 = vld [vmem:[%s5713 + $0x50] sm:$0xff]
        %v5725 = vld [vmem:[%s5713 + $0x58] sm:$0xff]
        %v5726 = vld [vmem:[%s5713 + $0x60] sm:$0xff]
        %v5727 = vld [vmem:[%s5713 + $0x68] sm:$0xff]
        %v5728 = vld [vmem:[%s5713 + $0x70] sm:$0xff]
        %v5729 = vld [vmem:[%s5713 + $0x78] sm:$0xff]
        %s5730 = scalar_lea.vmem %s14, 1
        %v5731 = vld [vmem:[%s5730] sm:$0x1]
        %v5733 = vlaneseq
        %v5734 = vshrl.u32 %v5733, 7
        %v5735 = vsub.s32 0, %v5734
        %v5736 = vrot.slane %v5731, %v5735
        %5738 = vmatprep.subr.mxu0 0.0
        %5739 = vmatpush1.msra.mxu0 %v5714
        %5740 = vmatprep.subr.mxu0 0.0
        %5741 = vmatpush1.msra.mxu0 %v5715
        %5742 = vmatprep.subr.mxu0 0.0
        %5743 = vmatpush1.msra.mxu0 %v5716
        %5744 = vmatprep.subr.mxu0 0.0
        %5745 = vmatpush1.msra.mxu0 %v5717
        %5746 = vmatprep.subr.mxu0 0.0
        %5747 = vmatpush1.msra.mxu0 %v5718
        %5748 = vmatprep.subr.mxu0 0.0
        %5749 = vmatpush1.msra.mxu0 %v5719
        %5750 = vmatprep.subr.mxu0 0.0
        %5751 = vmatpush1.msra.mxu0 %v5720
        %5752 = vmatprep.subr.mxu0 0.0
        %5753 = vmatpush1.msra.mxu0 %v5721
        %5754 = vmatprep.subr.mxu0 0.0
        %5755 = vmatpush1.msra.mxu0 %v5722
        %5756 = vmatprep.subr.mxu0 0.0
        %5757 = vmatpush1.msra.mxu0 %v5723
        %5758 = vmatprep.subr.mxu0 0.0
        %5759 = vmatpush1.msra.mxu0 %v5724
        %5760 = vmatprep.subr.mxu0 0.0
        %5761 = vmatpush1.msra.mxu0 %v5725
        %5762 = vmatprep.subr.mxu0 0.0
        %5763 = vmatpush1.msra.mxu0 %v5726
        %5764 = vmatprep.subr.mxu0 0.0
        %5765 = vmatpush1.msra.mxu0 %v5727
        %5766 = vmatprep.subr.mxu0 0.0
        %5767 = vmatpush1.msra.mxu0 %v5728
        %5768 = vmatprep.subr.mxu0 0.0
        %5769 = vmatpush1.msra.mxu0 %v5729
        %5770 = vmatprep.subr.mxu0 0.0
        %5771 = vmatpush1.msra.mxu0 0.0
        %5772 = vmatprep.subr.mxu0 0.0
        %5773 = vmatpush1.msra.mxu0 0.0
        %5774 = vmatprep.subr.mxu0 0.0
        %5775 = vmatpush1.msra.mxu0 0.0
        %5776 = vmatprep.subr.mxu0 0.0
        %5777 = vmatpush1.msra.mxu0 0.0
        %5778 = vmatprep.subr.mxu0 0.0
        %5779 = vmatpush1.msra.mxu0 0.0
        %5780 = vmatprep.subr.mxu0 0.0
        %5781 = vmatpush1.msra.mxu0 0.0
        %5782 = vmatprep.subr.mxu0 0.0
        %5783 = vmatpush1.msra.mxu0 0.0
        %5784 = vmatprep.subr.mxu0 0.0
        %5785 = vmatpush1.msra.mxu0 0.0
        %5786 = vmatprep.subr.mxu0 0.0
        %5787 = vmatpush1.msra.mxu0 0.0
        %5788 = vmatprep.subr.mxu0 0.0
        %5789 = vmatpush1.msra.mxu0 0.0
        %5790 = vmatprep.subr.mxu0 0.0
        %5791 = vmatpush1.msra.mxu0 0.0
        %5792 = vmatprep.subr.mxu0 0.0
        %5793 = vmatpush1.msra.mxu0 0.0
        %5794 = vmatprep.subr.mxu0 0.0
        %5795 = vmatpush1.msra.mxu0 0.0
        %5796 = vmatprep.subr.mxu0 0.0
        %5797 = vmatpush1.msra.mxu0 0.0
        %5798 = vmatprep.subr.mxu0 0.0
        %5799 = vmatpush1.msra.mxu0 0.0
        %5800 = vmatprep.subr.mxu0 0.0
        %5801 = vmatpush1.msra.mxu0 0.0
        %5802 = vmatprep.mubr.f32.mxu0 0.0
        %5803 = vmatmul.mubr.f32.gmra.mrb[0].mxu0 %v5709
        %v5804 = vpop.f32.mrb[0].mxu0
        %v5805 = vadd.f32 %v5736, %v5804
        %v5806 = vpop.f32.mrb[0].mxu0
        %5807 = vmatprep.mubr.f32.mxu0 0.0
        %5808 = vmatmul.mubr.f32.gmra.mrb[0].mxu0 %v5710
        %v5809 = vpop.f32.mrb[0].mxu0
        %v5810 = vadd.f32 %v5736, %v5809
        %v5811 = vpop.f32.mrb[0].mxu0
        %5812 = vmatprep.mubr.f32.mxu0 0.0
        %5813 = vmatmul.mubr.f32.gmra.mrb[0].mxu0 %v5711
        %v5814 = vpop.f32.mrb[0].mxu0
        %v5815 = vadd.f32 %v5736, %v5814
        %v5816 = vpop.f32.mrb[0].mxu0
        %5817 = vmatprep.mubr.f32.mxu0 0.0
        %5818 = vmatmul.mubr.f32.gmra.mrb[0].mxu0 %v5712
        %v5819 = vpop.f32.mrb[0].mxu0
        %v5820 = vadd.f32 %v5736, %v5819
        %v5821 = vpop.f32.mrb[0].mxu0
        %5822 = vdwg.mxu0
        %v5823 = vadd.f32 %v5805, %v5559
        %v5824 = vadd.f32 %v5810, %v5560
        %v5825 = vadd.f32 %v5815, %v5561
        %v5826 = vadd.f32 %v5820, %v5562
        %s5827 = scalar_lea.vmem %s15, 1
        %v5828 = vld [vmem:[%s5827] sm:$0x1]
        %s5829 = scalar_lea.vmem %s16, 1
        %v5830 = vld [vmem:[%s5829] sm:$0x1]
        %v5831 = vsel %vm847, %v5823, 0.0
        %5832 = vadd.xlane.f32.xlu0 %v5831
        %v5833 = vpop.xlane.xlu0 %5832
        %v5834 = vsel %vm847, %v5824, 0.0
        %5835 = vadd.xlane.f32.xlu0 %v5834
        %v5836 = vpop.xlane.xlu0 %5835
        %v5837 = vsel %vm847, %v5825, 0.0
        %5838 = vadd.xlane.f32.xlu0 %v5837
        %v5839 = vpop.xlane.xlu0 %5838
        %v5840 = vsel %vm847, %v5826, 0.0
        %5841 = vadd.xlane.f32.xlu0 %v5840
        %v5842 = vpop.xlane.xlu0 %5841
        %v5843 = vmul.f32 %v5833, %v1747
        %v5844 = vmul.f32 %v5836, %v1747
        %v5845 = vmul.f32 %v5839, %v1747
        %v5846 = vmul.f32 %v5842, %v1747
        %v5847 = vsub.f32 %v5823, %v5843
        %v5848 = vsub.f32 %v5824, %v5844
        %v5849 = vsub.f32 %v5825, %v5845
        %v5850 = vsub.f32 %v5826, %v5846
        %v5851 = vmul.f32 %v5847, %v5847
        %v5852 = vmul.f32 %v5848, %v5848
        %v5853 = vmul.f32 %v5849, %v5849
        %v5854 = vmul.f32 %v5850, %v5850
        %v5855 = vsel %vm847, %v5851, 0.0
        %5856 = vadd.xlane.f32.xlu0 %v5855
        %v5857 = vpop.xlane.xlu0 %5856
        %v5858 = vsel %vm847, %v5852, 0.0
        %5859 = vadd.xlane.f32.xlu0 %v5858
        %v5860 = vpop.xlane.xlu0 %5859
        %v5861 = vsel %vm847, %v5853, 0.0
        %5862 = vadd.xlane.f32.xlu0 %v5861
        %v5863 = vpop.xlane.xlu0 %5862
        %v5864 = vsel %vm847, %v5854, 0.0
        %5865 = vadd.xlane.f32.xlu0 %v5864
        %v5866 = vpop.xlane.xlu0 %5865
        %v5867 = vmul.f32 %v5857, %v1747
        %v5868 = vmul.f32 %v5860, %v1747
        %v5869 = vmul.f32 %v5863, %v1747
        %v5870 = vmul.f32 %v5866, %v1747
        %v5871 = vadd.f32 %v5867, 1e-05
        %v5872 = vadd.f32 %v5868, 1e-05
        %v5873 = vadd.f32 %v5869, 1e-05
        %v5874 = vadd.f32 %v5870, 1e-05
        %v5875 = vrsqrt.pop %v5871
        %v5876 = vrsqrt.pop %v5872
        %v5877 = vrsqrt.pop %v5873
        %v5878 = vrsqrt.pop %v5874
        %v5879 = vmul.f32 %v5847, %v5875
        %v5880 = vmul.f32 %v5848, %v5876
        %v5881 = vmul.f32 %v5849, %v5877
        %v5882 = vmul.f32 %v5850, %v5878
        %v5884 = vlaneseq
        %v5885 = vshrl.u32 %v5884, 7
        %v5886 = vsub.s32 0, %v5885
        %v5887 = vrot.slane %v5828, %v5886
        %v5889 = vmul.f32 %v5879, %v5887
        %v5890 = vmul.f32 %v5880, %v5887
        %v5891 = vmul.f32 %v5881, %v5887
        %v5892 = vmul.f32 %v5882, %v5887
        %v5894 = vlaneseq
        %v5895 = vshrl.u32 %v5894, 7
        %v5896 = vsub.s32 0, %v5895
        %v5897 = vrot.slane %v5830, %v5896
        %v5899 = vadd.f32 %v5889, %v5897
        %v5900 = vadd.f32 %v5890, %v5897
        %v5901 = vadd.f32 %v5891, %v5897
        %v5902 = vadd.f32 %v5892, %v5897
        %v5903 = vlaneseq
        %v5904 = vshrl.u32 %v5903, 7
        %v5905 = vadd.s32 %v5904, 8
        %v5906 = vadd.s32 %v5904, 16
        %v5907 = vadd.s32 %v5904, 24
        %vm5908 = vcmp.lt.s32.totalorder %v5904, 31
        %vm5909 = vcmp.lt.s32.totalorder %v5905, 31
        %vm5910 = vcmp.lt.s32.totalorder %v5906, 31
        %vm5911 = vcmp.lt.s32.totalorder %v5907, 31
        %v5912 = vsel %vm5908, 1, 0
        %v5913 = vsel %vm5909, 1, 0
        %v5914 = vsel %vm5910, 1, 0
        %v5915 = vsel %vm5911, 1, 0
        %v5916 = vcvt.s32.f32 %v5912
        %v5917 = vcvt.s32.f32 %v5913
        %v5918 = vcvt.s32.f32 %v5914
        %v5919 = vcvt.s32.f32 %v5915
        %v5920 = vmul.f32 %v5899, %v5916
        %v5921 = vmul.f32 %v5900, %v5917
        %v5922 = vmul.f32 %v5901, %v5918
        %v5923 = vmul.f32 %v5902, %v5919
        %v5924 = vsel %vm847, %v5920, 0.0
        %v5925 = vsel %vm847, %v5921, 0.0
        %v5926 = vadd.f32 %v5924, %v5925
        %v5927 = vsel %vm847, %v5922, 0.0
        %v5928 = vadd.f32 %v5926, %v5927
        %v5929 = vsel %vm847, %v5923, 0.0
        %v5930 = vadd.f32 %v5928, %v5929
        %v5931 = vrot.slane %v5930, 4
        %v5932 = vadd.f32 %v5930, %v5931
        %v5933 = vrot.slane %v5932, 2
        %v5934 = vadd.f32 %v5932, %v5933
        %v5935 = vrot.slane %v5934, 1
        %v5936 = vadd.f32 %v5934, %v5935
        %v5937 = vmul.f32 %v5936, 0.032258064
        %v5938 = vld [vmem:[%s17] sm:$0xff]
        %v5939 = vld [vmem:[%s17 + $0x8] sm:$0xff]
        %v5940 = vld [vmem:[%s17 + $0x10] sm:$0xff]
        %v5941 = vld [vmem:[%s17 + $0x18] sm:$0xff]
        %v5942 = vld [vmem:[%s17 + $0x20] sm:$0xff]
        %v5943 = vld [vmem:[%s17 + $0x28] sm:$0xff]
        %v5944 = vld [vmem:[%s17 + $0x30] sm:$0xff]
        %v5945 = vld [vmem:[%s17 + $0x38] sm:$0xff]
        %v5946 = vld [vmem:[%s18] sm:$0x1]
        %v5948 = vsel %vm847, %v5937, 0
        %5950 = vmatprep.subr.mxu0 0.0
        %5951 = vmatpush1.msra.mxu0 %v5938
        %5952 = vmatprep.subr.mxu0 0.0
        %5953 = vmatpush1.msra.mxu0 %v5939
        %5954 = vmatprep.subr.mxu0 0.0
        %5955 = vmatpush1.msra.mxu0 %v5940
        %5956 = vmatprep.subr.mxu0 0.0
        %5957 = vmatpush1.msra.mxu0 %v5941
        %5958 = vmatprep.subr.mxu0 0.0
        %5959 = vmatpush1.msra.mxu0 %v5942
        %5960 = vmatprep.subr.mxu0 0.0
        %5961 = vmatpush1.msra.mxu0 %v5943
        %5962 = vmatprep.subr.mxu0 0.0
        %5963 = vmatpush1.msra.mxu0 %v5944
        %5964 = vmatprep.subr.mxu0 0.0
        %5965 = vmatpush1.msra.mxu0 %v5945
        %5966 = vmatprep.subr.mxu0 0.0
        %5967 = vmatpush1.msra.mxu0 0.0
        %5968 = vmatprep.subr.mxu0 0.0
        %5969 = vmatpush1.msra.mxu0 0.0
        %5970 = vmatprep.subr.mxu0 0.0
        %5971 = vmatpush1.msra.mxu0 0.0
        %5972 = vmatprep.subr.mxu0 0.0
        %5973 = vmatpush1.msra.mxu0 0.0
        %5974 = vmatprep.subr.mxu0 0.0
        %5975 = vmatpush1.msra.mxu0 0.0
        %5976 = vmatprep.subr.mxu0 0.0
        %5977 = vmatpush1.msra.mxu0 0.0
        %5978 = vmatprep.subr.mxu0 0.0
        %5979 = vmatpush1.msra.mxu0 0.0
        %5980 = vmatprep.subr.mxu0 0.0
        %5981 = vmatpush1.msra.mxu0 0.0
        %5982 = vmatprep.subr.mxu0 0.0
        %5983 = vmatpush1.msra.mxu0 0.0
        %5984 = vmatprep.subr.mxu0 0.0
        %5985 = vmatpush1.msra.mxu0 0.0
        %5986 = vmatprep.subr.mxu0 0.0
        %5987 = vmatpush1.msra.mxu0 0.0
        %5988 = vmatprep.subr.mxu0 0.0
        %5989 = vmatpush1.msra.mxu0 0.0
        %5990 = vmatprep.subr.mxu0 0.0
        %5991 = vmatpush1.msra.mxu0 0.0
        %5992 = vmatprep.subr.mxu0 0.0
        %5993 = vmatpush1.msra.mxu0 0.0
        %5994 = vmatprep.subr.mxu0 0.0
        %5995 = vmatpush1.msra.mxu0 0.0
        %5996 = vmatprep.subr.mxu0 0.0
        %5997 = vmatpush1.msra.mxu0 0.0
        %5998 = vmatprep.subr.mxu0 0.0
        %5999 = vmatpush1.msra.mxu0 0.0
        %6000 = vmatprep.subr.mxu0 0.0
        %6001 = vmatpush1.msra.mxu0 0.0
        %6002 = vmatprep.subr.mxu0 0.0
        %6003 = vmatpush1.msra.mxu0 0.0
        %6004 = vmatprep.subr.mxu0 0.0
        %6005 = vmatpush1.msra.mxu0 0.0
        %6006 = vmatprep.subr.mxu0 0.0
        %6007 = vmatpush1.msra.mxu0 0.0
        %6008 = vmatprep.subr.mxu0 0.0
        %6009 = vmatpush1.msra.mxu0 0.0
        %6010 = vmatprep.subr.mxu0 0.0
        %6011 = vmatpush1.msra.mxu0 0.0
        %6012 = vmatprep.subr.mxu0 0.0
        %6013 = vmatpush1.msra.mxu0 0.0
        %6014 = vmatprep.mubr.f32.mxu0 0.0
        %6015 = vmatmul.mubr.f32.gmra.mrb[0].mxu0 %v5948
        %v6016 = vpop.f32.mrb[0].mxu0
        %v6017 = vadd.f32 %v5946, %v6016
        %v6018 = vpop.f32.mrb[0].mxu0
        %6019 = vdwg.mxu0
        %v6020 = vmax.f32 %v6017, 0.0
        %v6021 = vld [vmem:[%s19] sm:$0xff]
        %v6022 = vld [vmem:[%s19 + $0x8] sm:$0xff]
        %v6023 = vld [vmem:[%s19 + $0x10] sm:$0xff]
        %v6024 = vld [vmem:[%s19 + $0x18] sm:$0xff]
        %v6025 = vld [vmem:[%s20] sm:$0x1]
        %v6027 = vsel %vm837, %v6020, 0
        %6029 = vmatprep.subr.mxu0 0.0
        %6030 = vmatpush1.msra.mxu0 %v6021
        %6031 = vmatprep.subr.mxu0 0.0
        %6032 = vmatpush1.msra.mxu0 %v6022
        %6033 = vmatprep.subr.mxu0 0.0
        %6034 = vmatpush1.msra.mxu0 %v6023
        %6035 = vmatprep.subr.mxu0 0.0
        %6036 = vmatpush1.msra.mxu0 %v6024
        %6037 = vmatprep.subr.mxu0 0.0
        %6038 = vmatpush1.msra.mxu0 0.0
        %6039 = vmatprep.subr.mxu0 0.0
        %6040 = vmatpush1.msra.mxu0 0.0
        %6041 = vmatprep.subr.mxu0 0.0
        %6042 = vmatpush1.msra.mxu0 0.0
        %6043 = vmatprep.subr.mxu0 0.0
        %6044 = vmatpush1.msra.mxu0 0.0
        %6045 = vmatprep.subr.mxu0 0.0
        %6046 = vmatpush1.msra.mxu0 0.0
        %6047 = vmatprep.subr.mxu0 0.0
        %6048 = vmatpush1.msra.mxu0 0.0
        %6049 = vmatprep.subr.mxu0 0.0
        %6050 = vmatpush1.msra.mxu0 0.0
        %6051 = vmatprep.subr.mxu0 0.0
        %6052 = vmatpush1.msra.mxu0 0.0
        %6053 = vmatprep.subr.mxu0 0.0
        %6054 = vmatpush1.msra.mxu0 0.0
        %6055 = vmatprep.subr.mxu0 0.0
        %6056 = vmatpush1.msra.mxu0 0.0
        %6057 = vmatprep.subr.mxu0 0.0
        %6058 = vmatpush1.msra.mxu0 0.0
        %6059 = vmatprep.subr.mxu0 0.0
        %6060 = vmatpush1.msra.mxu0 0.0
        %6061 = vmatprep.subr.mxu0 0.0
        %6062 = vmatpush1.msra.mxu0 0.0
        %6063 = vmatprep.subr.mxu0 0.0
        %6064 = vmatpush1.msra.mxu0 0.0
        %6065 = vmatprep.subr.mxu0 0.0
        %6066 = vmatpush1.msra.mxu0 0.0
        %6067 = vmatprep.subr.mxu0 0.0
        %6068 = vmatpush1.msra.mxu0 0.0
        %6069 = vmatprep.subr.mxu0 0.0
        %6070 = vmatpush1.msra.mxu0 0.0
        %6071 = vmatprep.subr.mxu0 0.0
        %6072 = vmatpush1.msra.mxu0 0.0
        %6073 = vmatprep.subr.mxu0 0.0
        %6074 = vmatpush1.msra.mxu0 0.0
        %6075 = vmatprep.subr.mxu0 0.0
        %6076 = vmatpush1.msra.mxu0 0.0
        %6077 = vmatprep.subr.mxu0 0.0
        %6078 = vmatpush1.msra.mxu0 0.0
        %6079 = vmatprep.subr.mxu0 0.0
        %6080 = vmatpush1.msra.mxu0 0.0
        %6081 = vmatprep.subr.mxu0 0.0
        %6082 = vmatpush1.msra.mxu0 0.0
        %6083 = vmatprep.subr.mxu0 0.0
        %6084 = vmatpush1.msra.mxu0 0.0
        %6085 = vmatprep.subr.mxu0 0.0
        %6086 = vmatpush1.msra.mxu0 0.0
        %6087 = vmatprep.subr.mxu0 0.0
        %6088 = vmatpush1.msra.mxu0 0.0
        %6089 = vmatprep.subr.mxu0 0.0
        %6090 = vmatpush1.msra.mxu0 0.0
        %6091 = vmatprep.subr.mxu0 0.0
        %6092 = vmatpush1.msra.mxu0 0.0
        %6093 = vmatprep.mubr.f32.mxu0 0.0
        %6094 = vmatmul.mubr.f32.gmra.mrb[0].mxu0 %v6027
        %v6095 = vpop.f32.mrb[0].mxu0
        %v6096 = vadd.f32 %v6025, %v6095
        %v6097 = vpop.f32.mrb[0].mxu0
        %6098 = vdwg.mxu0
        %vm6099 = vcmask 253952
        %6100 = vst.msk [vmem:[%s648] sm:$0x1] %vm6099, %v6096
        %s6101 = sand.u32 %s489, 1
        %s6102 = scalar_lea.sflag [#allocation3], %s6101
        %s6103 = sand.u32 %s489, 1
        %s6104 = scalar_lea.vmem [#allocation2], %s6103
        // Predicated region
        $region105: #{forward.3} parent=103 // pred_check
          %p6105 = pneg %p499
        $region106: #{forward.3} parent=103 // pred_check_branch
          %6107 = sbr.rel (%p6105) target = $region108
        $region107: #{forward.3} parent=103 // pred_region
          %s6109 = ssub.s32 16, 16
          %6110 = vsyncadd %s6102, %s6109
          %s6111 = smul.addr %s35, 16
          %s6112 = scalar_lea.hbm %s21, %s6111
          %s6114 = sshll.u32 %s6104, 4
          %s6115 = int_to_ptr.vmem [resolvable:$true] %s6114
          %6117 = dma.vmem_to_hbm [thread:$0]  %s6115, 16, %s6112, %s6102
        $region108: #{forward.3} parent=103 // pred_fallthru
          _
      $region104: #{forward.3} parent=5 // pred_fallthru
        _
      %p6118 = scmp.le.s32.totalorder 2, %s30
      // Predicated region
      $region109: #{forward.3} parent=5 // pred_check
        %p6119 = pneg %p6118
      $region110: #{forward.3} parent=5 // pred_check_branch
        %6121 = sbr.rel (%p6119) target = $region112
      $region111: #{forward.3} parent=5 // pred_region
        %s6122 = ssub.s32 %s30, 2
        // Predicated region
        $region113: #{forward.3} parent=111 // pred_check
          %p6123 = pneg %p505
        $region114: #{forward.3} parent=111 // pred_check_branch
          %6125 = sbr.rel (%p6123) target = $region116
        $region115: #{forward.3} parent=111 // pred_region
          %s6126 = sand.u32 %s490, 1
          %s6127 = scalar_lea.sflag [#allocation3], %s6126
          %s6128 = sand.u32 %s490, 1
          %s6129 = scalar_lea.vmem [#allocation2], %s6128
          %6130 = dma.done %s6127, 16
        $region116: #{forward.3} parent=111 // pred_fallthru
          _
      $region112: #{forward.3} parent=5 // pred_fallthru
        _
    $region6: #{forward.3} parent=1 // loop_footer
      %s34 = sadd.s32 1, %s30
    $region7: #{forward.3} parent=1 // loop_footer_branch
      %29 = sbr.rel target = $region3
    $region8: #{forward.3} parent=1 // loop_exit
      _
    %6131 = vsyncpa [#allocation3], 1
    %s6132 = scalar_lea.sflag [#allocation3], 1
    %6133 = vsyncpa %s6132, 1

</llo_original>
